<compile_context>
chip_gen: v6e
topology: v6e:2x2x1
jax: 0.10.0
libtpu: 0.0.40
codegen_flags: <defaults>
</compile_context>

<pallas_src>
import functools

import jax
import jax.numpy as jnp
from jax.experimental import pallas as pl
from jax.experimental.pallas import tpu as pltpu


LANE = 128            # lane width: every feature dim is zero-padded to this
TILE_ROWS = 1024      # node/dst row tile for kernels 1, 4, 5 (and agg dst tile)
TILE_EDGES = 1024     # edge row tile for the edge-message kernel
AGG_TILE_E = 512      # edge tile inside the aggregation (bounds the one-hot)
AGG_TILE_D = TILE_ROWS
BN_EPS = 1e-5
BN_SCALE = (1.0 + BN_EPS) ** -0.5      # eval-mode BatchNorm1d == constant scale


def _vmem_limit_bytes():
    # Per-generation scoped-VMEM limit: ~75% of physical, capped at 96 MiB
    # (-> 96 MiB on v5e/v6e, 48 MiB on v7x); safe fallback if detection fails.
    try:
        cap = pltpu.get_tpu_info().vmem_capacity_bytes
        return int(min(cap * 3 // 4, 96 * 1024 * 1024))
    except Exception:
        return 48 * 1024 * 1024


VMEM_LIMIT = _vmem_limit_bytes()


# ----------------------------------------------------------------------------
# small host-side helpers (tiling / padding)
# ----------------------------------------------------------------------------
def _round_up(n, m):
    return ((n + m - 1) // m) * m


def _tile_and_pad(n, max_tile, gran):
    tile = min(max_tile, _round_up(n, gran))
    return tile, _round_up(n, tile)


def _tile_for(n_padded, max_tile):
    return n_padded if n_padded <= max_tile else max_tile


def _divisor_tile(n, max_tile, quantum):
    """Largest multiple of `quantum` that divides n and is <= max_tile."""
    if n <= max_tile:
        return n
    t = (max_tile // quantum) * quantum
    while t > quantum and n % t:
        t -= quantum
    return t


def _pad2(x, rows, cols):
    return jnp.pad(x, ((0, rows - x.shape[0]), (0, cols - x.shape[1])))


def _pad_row(x, cols):
    return jnp.pad(x, ((0, 0), (0, cols - x.shape[1])))


def _cparams(*sem):
    return pltpu.CompilerParams(dimension_semantics=sem,
                                vmem_limit_bytes=VMEM_LIMIT)


# ----------------------------------------------------------------------------
# in-kernel helpers (pure jnp -> also usable in the JAX glue)
# ----------------------------------------------------------------------------
def _elu(x):
    return jnp.where(x > 0, x, jnp.exp(jnp.minimum(x, 0.0)) - 1.0)


def _selu(x):
    alpha = 1.6732632423543772848170429916717
    scale = 1.0507009873554804934193349852946
    return scale * jnp.where(x > 0, x, alpha * (jnp.exp(jnp.minimum(x, 0.0)) - 1.0))


def _one_minus_sigmoid(x):
    # exact: 1 - sigmoid(x) == 1 / (1 + exp(x))
    return 1.0 / (1.0 + jnp.exp(x))


def _masked_layernorm(h, gamma, beta, valid, eps=1e-5):
    # LayerNorm over the first `valid` lanes of a lane-padded f32 activation.
    # Padded lanes of h are exactly zero, so the plain sum equals the valid sum.
    lanes = jax.lax.broadcasted_iota(jnp.int32, (1, h.shape[-1]), 1)
    mask = lanes < valid
    inv_n = 1.0 / float(valid)
    mean = jnp.sum(h, axis=-1, keepdims=True) * inv_n
    centered = jnp.where(mask, h - mean, 0.0)
    var = jnp.sum(centered * centered, axis=-1, keepdims=True) * inv_n
    return centered * jax.lax.rsqrt(var + eps) * gamma + beta


# ----------------------------------------------------------------------------
# Kernel 1: in_lin LinearLayer batched across the 3 CurvGNNs.
# grid = (row tiles, 3): the feature tile is reused across the inner GNN axis.
# ----------------------------------------------------------------------------
def _in_lin_kernel(x_ref, w1_ref, b1_ref, g_ref, bt_ref, w2_ref, b2_ref,
                   o_ref, *, hid_valid):
    h = jnp.dot(x_ref[...], w1_ref[...],
                preferred_element_type=jnp.float32) + b1_ref[...]
    h = _elu(h)                                  # Dropout = identity (eval)
    h = _masked_layernorm(h, g_ref[...], bt_ref[...], hid_valid)
    h = jnp.dot(h.astype(jnp.bfloat16), w2_ref[...],
                preferred_element_type=jnp.float32) + b2_ref[...]
    h = _elu(h)
    o_ref[...] = h.astype(o_ref.dtype)


def run_in_lin(x, stacked_params, hid_valid):
    w1, b1, g, bt, w2, b2 = stacked_params        # each leading dim = 3 (GNNs)
    n, in_p = x.shape
    h_p = w1.shape[2]
    tile = _tile_for(n, TILE_ROWS)
    wmap = lambda i, gg: (gg, 0, 0)
    return pl.pallas_call(
        functools.partial(_in_lin_kernel, hid_valid=hid_valid),
        out_shape=jax.ShapeDtypeStruct((3, n, h_p), jnp.bfloat16),
        grid=(n // tile, 3),
        in_specs=[pl.BlockSpec((tile, in_p), lambda i, gg: (i, 0)),
                  pl.BlockSpec((None, in_p, h_p), wmap),
                  pl.BlockSpec((None, 1, h_p), wmap),
                  pl.BlockSpec((None, 1, h_p), wmap),
                  pl.BlockSpec((None, 1, h_p), wmap),
                  pl.BlockSpec((None, h_p, h_p), wmap),
                  pl.BlockSpec((None, 1, h_p), wmap)],
        out_specs=pl.BlockSpec((None, tile, h_p), lambda i, gg: (gg, i, 0)),
        compiler_params=_cparams("parallel", "arbitrary"),
    )(x, w1, b1, g, bt, w2, b2)


# ----------------------------------------------------------------------------
# Kernel 2: per-edge message (curvature coef + edge LinearLayer + fused edge_bn)
# W1 is pre-split into its src/dst halves so the concat is two matmuls.
# ----------------------------------------------------------------------------
def _edge_msg_kernel(src_ref, dst_ref, w1s_ref, w1d_ref, b1_ref, g_ref, bt_ref,
                     w2_ref, b2_ref, o_ref, *, c, curv_zero, hid_valid, bn_scale):
    src_bf = src_ref[...]
    dst_bf = dst_ref[...]
    src = src_bf.astype(jnp.float32)
    dst = dst_bf.astype(jnp.float32)
    diff = src - dst
    dist = jnp.sqrt(jnp.sum(diff * diff, axis=-1, keepdims=True))
    if curv_zero:
        arg = dist
    else:
        multi = jnp.sum(src * dst, axis=-1, keepdims=True)
        arg = 2.0 * dist - 2.0 * c * (dist * dist * dist * (1.0 / 3.0)
                                      + multi * dist * dist)
    coef = _one_minus_sigmoid(arg)
    left = ((coef + 1.0) * src).astype(jnp.bfloat16)     # coef*src + src
    h = (jnp.dot(left, w1s_ref[...], preferred_element_type=jnp.float32)
         + jnp.dot(dst_bf, w1d_ref[...], preferred_element_type=jnp.float32)
         + b1_ref[...])
    h = _elu(h)
    h = _masked_layernorm(h, g_ref[...], bt_ref[...], hid_valid)
    h = jnp.dot(h.astype(jnp.bfloat16), w2_ref[...],
                preferred_element_type=jnp.float32) + b2_ref[...]
    h = _elu(h) * bn_scale                               # fused eval-mode edge_bn
    o_ref[...] = h.astype(o_ref.dtype)                   # bf16 message stream


def run_edge_msg(src_h, dst_h, c, edge_params, hid_valid, curv_zero):
    w1s, w1d, b1, g, bt, w2, b2 = edge_params
    e_p, h_p = src_h.shape
    tile = _tile_for(e_p, TILE_EDGES)
    rep = lambda i: (0, 0)
    return pl.pallas_call(
        functools.partial(_edge_msg_kernel, c=float(c), curv_zero=curv_zero,
                          hid_valid=hid_valid, bn_scale=BN_SCALE),
        out_shape=jax.ShapeDtypeStruct((e_p, h_p), jnp.bfloat16),
        grid=(e_p // tile,),
        in_specs=[pl.BlockSpec((tile, h_p), lambda i: (i, 0)),
                  pl.BlockSpec((tile, h_p), lambda i: (i, 0)),
                  pl.BlockSpec((h_p, h_p), rep),
                  pl.BlockSpec((h_p, h_p), rep),
                  pl.BlockSpec((1, h_p), rep),
                  pl.BlockSpec((1, h_p), rep),
                  pl.BlockSpec((1, h_p), rep),
                  pl.BlockSpec((h_p, h_p), rep),
                  pl.BlockSpec((1, h_p), rep)],
        out_specs=pl.BlockSpec((tile, h_p), lambda i: (i, 0)),
        compiler_params=_cparams("parallel"),
    )(src_h, dst_h, w1s, w1d, b1, g, bt, w2, b2)


# ----------------------------------------------------------------------------
# Kernel 3: segment-sum aggregation edge->dst (on-the-fly bf16 one-hot from
# dst_idx), f32 accumulator, fused with the gnn_out Linear (+ residual for c=0).
# Grid: (dst tiles [parallel], edge tiles [reduction]).  The dst tile is 1024
# rows, so for typical minibatch dst counts the accumulator is resident and
# the bf16 message stream is read from HBM exactly once.
# NOTE(v7x): when the dst extent is 1 one TensorCore idles for this kernel;
# that is the trade for streaming msg a single time.
# ----------------------------------------------------------------------------
def _agg_out_kernel(ids_ref, msg_ref, dstf_ref, wo_ref, bo_ref, o_ref, acc_ref,
                    *, fuse_residual):
    d = pl.program_id(0)
    e = pl.program_id(1)

    @pl.when(e == 0)
    def _():
        acc_ref[...] = jnp.zeros_like(acc_ref)

    tile_d = acc_ref.shape[0]
    ids = ids_ref[...]                                            # (1, tile_e)
    rows = (jax.lax.broadcasted_iota(jnp.int32, (tile_d, ids.shape[1]), 0)
            + d * tile_d)
    onehot = jnp.where(rows == ids, 1.0, 0.0).astype(jnp.bfloat16)
    acc_ref[...] += jnp.dot(onehot, msg_ref[...],
                            preferred_element_type=jnp.float32)

    @pl.when(e == pl.num_programs(1) - 1)
    def _():
        out = (jnp.dot(acc_ref[...].astype(jnp.bfloat16), wo_ref[...],
                       preferred_element_type=jnp.float32) + bo_ref[...])
        if fuse_residual:
            out = out + dstf_ref[...].astype(jnp.float32)
        o_ref[...] = out


def run_agg_out(agg_ids, msg, dst_feats, wo, bo, fuse_residual):
    e_p, h_p = msg.shape
    n_d = dst_feats.shape[0]
    out_p = wo.shape[1]
    tile_e = _divisor_tile(e_p, AGG_TILE_E, LANE)
    tile_d = _tile_for(n_d, AGG_TILE_D)
    rep2 = lambda d, e: (0, 0)
    return pl.pallas_call(
        functools.partial(_agg_out_kernel, fuse_residual=fuse_residual),
        out_shape=jax.ShapeDtypeStruct((n_d, out_p), jnp.float32),
        grid=(n_d // tile_d, e_p // tile_e),
        in_specs=[pl.BlockSpec((1, tile_e), lambda d, e: (0, e)),
                  pl.BlockSpec((tile_e, h_p), lambda d, e: (e, 0)),
                  pl.BlockSpec((tile_d, h_p), lambda d, e: (d, 0)),
                  pl.BlockSpec((h_p, out_p), rep2),
                  pl.BlockSpec((1, out_p), rep2)],
        out_specs=pl.BlockSpec((tile_d, out_p), lambda d, e: (d, 0)),
        scratch_shapes=[pltpu.VMEM((tile_d, h_p), jnp.float32)],
        compiler_params=_cparams("parallel", "arbitrary"),
    )(agg_ids, msg, dst_feats, wo, bo)


# ----------------------------------------------------------------------------
# Kernel 4: per-layer out_lin with fused BatchNorm scale + SELU on the GNN
# branch, plus this layer's slice of the final Linear -> partial class logits.
# ----------------------------------------------------------------------------
def _outlin_kernel(hin_ref, hgnn_ref, wa_ref, wb_ref, b_ref, wf_ref, o_ref,
                   *, bn_scale):
    hg = _selu(hgnn_ref[...] * bn_scale).astype(jnp.bfloat16)   # bns[i] + selu
    t = (jnp.dot(hin_ref[...], wa_ref[...], preferred_element_type=jnp.float32)
         + jnp.dot(hg, wb_ref[...], preferred_element_type=jnp.float32)
         + b_ref[...])
    o_ref[...] = jnp.dot(t.astype(jnp.bfloat16), wf_ref[...],
                         preferred_element_type=jnp.float32)


def run_outlin(h_in, h_gnn, wa, wb, b, wf_l):
    n, h_p = h_in.shape
    out_p = wf_l.shape[1]
    tile = _tile_for(n, TILE_ROWS)
    rep = lambda i: (0, 0)
    return pl.pallas_call(
        functools.partial(_outlin_kernel, bn_scale=BN_SCALE),
        out_shape=jax.ShapeDtypeStruct((n, out_p), jnp.float32),
        grid=(n // tile,),
        in_specs=[pl.BlockSpec((tile, h_p), lambda i: (i, 0)),
                  pl.BlockSpec((tile, h_p), lambda i: (i, 0)),
                  pl.BlockSpec((h_p, h_p), rep),
                  pl.BlockSpec((h_p, h_p), rep),
                  pl.BlockSpec((1, h_p), rep),
                  pl.BlockSpec((h_p, out_p), rep)],
        out_specs=pl.BlockSpec((tile, out_p), lambda i: (i, 0)),
        compiler_params=_cparams("parallel"),
    )(h_in, h_gnn, wa, wb, b, wf_l)


# ----------------------------------------------------------------------------
# Kernel 5: final bias + log_softmax masked to the valid class lanes
# (the final matmul itself is already folded into kernel 4).
# ----------------------------------------------------------------------------
def _final_kernel(x_ref, b_ref, o_ref, *, out_valid):
    h = x_ref[...] + b_ref[...]
    lanes = jax.lax.broadcasted_iota(jnp.int32, (1, h.shape[-1]), 1)
    h = jnp.where(lanes < out_valid, h, -1e30)
    m = jnp.max(h, axis=-1, keepdims=True)
    s = h - m
    lse = jnp.log(jnp.sum(jnp.exp(s), axis=-1, keepdims=True))
    o_ref[...] = s - lse


def run_final(logits, b_f, out_valid):
    n, out_p = logits.shape
    tile = _tile_for(n, TILE_ROWS)
    rep = lambda i: (0, 0)
    return pl.pallas_call(
        functools.partial(_final_kernel, out_valid=out_valid),
        out_shape=jax.ShapeDtypeStruct((n, out_p), jnp.float32),
        grid=(n // tile,),
        in_specs=[pl.BlockSpec((tile, out_p), lambda i: (i, 0)),
                  pl.BlockSpec((1, out_p), rep)],
        out_specs=pl.BlockSpec((tile, out_p), lambda i: (i, 0)),
        compiler_params=_cparams("parallel"),
    )(logits, b_f)


# ----------------------------------------------------------------------------
# JAX glue: curvature maps (expmap -> proj -> logmap), f32.
# TODO(synk): tan/arctan/arctanh have no guaranteed Mosaic lowering; kept here.
# ----------------------------------------------------------------------------
def curvature_transform(x, c_val):
    negcurv = float(c_val) < 0.0
    sqrt_c = abs(float(c_val)) ** 0.5
    norm = jnp.maximum(jnp.linalg.norm(x, axis=-1, keepdims=True), 1e-15)
    if negcurv:
        h = jnp.tanh(sqrt_c * norm) * x / (sqrt_c * norm)
    else:
        h = jnp.tan(sqrt_c * norm) * x / (sqrt_c * norm)
    n = jnp.maximum(jnp.linalg.norm(h, axis=-1, keepdims=True), 1e-15)
    maxnorm = (1.0 - 1e-5) / sqrt_c
    h = jnp.where(n > maxnorm, h / n * maxnorm, h)
    hn = jnp.maximum(jnp.linalg.norm(h, axis=-1, keepdims=True), 1e-15)
    if negcurv:
        scale = (1.0 / sqrt_c) * jnp.arctanh(sqrt_c * hn) / hn
    else:
        scale = (1.0 / sqrt_c) * jnp.arctan(sqrt_c * hn) / hn
    return scale * h


# ----------------------------------------------------------------------------
# Model orchestration (layers outer, the 3 CurvGNNs inner)
# ----------------------------------------------------------------------------
def spacegnn_forward(features_list, src_idx, dst_idx, num_dst,
                     params_neg, params_pos, params_euc, cneg, cpos,
                     in_dim, hid_dim, out_dim):
    layer_num = len(cneg)
    num_src = features_list[0].shape[0]
    num_edges = src_idx.shape[0]

    in_p = _round_up(in_dim, LANE)
    _, n_src_p = _tile_and_pad(num_src, TILE_ROWS, 8)
    _, n_dst_p = _tile_and_pad(num_dst, TILE_ROWS, 8)
    _, e_p = _tile_and_pad(num_edges, TILE_EDGES, LANE)

    feats_p = [_pad2(f, n_src_p, in_p).astype(jnp.bfloat16) for f in features_list]
    src_gidx = jnp.pad(src_idx, (0, e_p - num_edges)).astype(jnp.int32)
    dst_gidx = jnp.pad(dst_idx, (0, e_p - num_edges)).astype(jnp.int32)
    # padded edges get sentinel -1 so they never match any dst row in the kernel
    agg_ids = jnp.pad(dst_idx, (0, e_p - num_edges),
                      constant_values=-1).reshape(1, e_p).astype(jnp.int32)

    pp = [prep_curvgnn(p, in_dim, hid_dim, out_dim, layer_num)
          for p in (params_neg, params_pos, params_euc)]
    c_per_gnn = [list(cneg), list(cpos), [0.0] * layer_num]

    logits = [None, None, None]
    for li in range(layer_num):
        # kernel 1 batched across the 3 GNNs (shared feature tile)
        stacked = [jnp.stack([pp[g]['layers'][li]['in_lin'][k] for g in range(3)])
                   for k in range(6)]
        h_all = run_in_lin(feats_p[li], stacked, hid_dim)    # [3, n_src_p, H_P] bf16

        for g in range(3):
            c = float(c_per_gnn[g][li])
            lp = pp[g]['layers'][li]
            h = h_all[g]
            h_in_dst = h[:n_dst_p]                            # pre-GNN branch
            if c == 0.0:
                feats_e = h
                dstf_bf = h[:n_dst_p]
                dstf_f32 = None
            else:
                feats_f32 = curvature_transform(h.astype(jnp.float32), c)
                dstf_f32 = feats_f32[:n_dst_p]
                feats_e = feats_f32.astype(jnp.bfloat16)
                dstf_bf = feats_e[:n_dst_p]
            # TODO(synk): per-edge row gather kept in XLA glue (see header note).
            src_h = feats_e[src_gidx]                         # [E_p, H_P] bf16
            dst_h = feats_e[dst_gidx]
            msg = run_edge_msg(src_h, dst_h, c, lp['edge_lin'], hid_dim,
                               curv_zero=(c == 0.0))
            wo, bo = lp['gnn_out']
            out = run_agg_out(agg_ids, msg, dstf_bf, wo, bo,
                              fuse_residual=(c == 0.0))
            if c != 0.0:
                out = curvature_transform(out, c)
                out = _selu(out)
                out = out + dstf_f32
            wa, wb, bol, wf_l = lp['out_lin']
            partial = run_outlin(h_in_dst, out, wa, wb, bol, wf_l)
            logits[g] = partial if logits[g] is None else logits[g] + partial

    outs = []
    for g in range(3):
        o = run_final(logits[g], pp[g]['final_bias'], out_dim)
        outs.append(o[:num_dst, :out_dim])
    return tuple(outs)


# ----------------------------------------------------------------------------
# Deterministic parameter init (xavier_normal weights [in,out], zero biases)
# followed by zero-padding / splitting / bf16 casting to the kernel layout.
# ----------------------------------------------------------------------------
def xavier_normal(key, fan_in, fan_out):
    std = (2.0 / (fan_in + fan_out)) ** 0.5
    return jax.random.normal(key, (fan_in, fan_out), jnp.float32) * std


def init_linearlayer(key, in_dim, hid_dim, out_dim):
    k1, k2 = jax.random.split(key)
    return (xavier_normal(k1, in_dim, hid_dim), jnp.zeros((1, hid_dim), jnp.float32),
            jnp.ones((1, hid_dim), jnp.float32), jnp.zeros((1, hid_dim), jnp.float32),
            xavier_normal(k2, hid_dim, out_dim), jnp.zeros((1, out_dim), jnp.float32))


def init_curvgnn(key, in_dim, hid_dim, out_dim, layer_num):
    keys = jax.random.split(key, layer_num + 1)
    layers = []
    for i in range(layer_num):
        ki = jax.random.split(keys[i], 4)
        layers.append(dict(
            in_lin=init_linearlayer(ki[0], in_dim, hid_dim, hid_dim),
            edge_lin=init_linearlayer(ki[1], 2 * hid_dim, hid_dim, hid_dim),
            gnn_out=(xavier_normal(ki[2], hid_dim, hid_dim),
                     jnp.zeros((1, hid_dim), jnp.float32)),
            out_lin=(xavier_normal(ki[3], 2 * hid_dim, hid_dim),
                     jnp.zeros((1, hid_dim), jnp.float32)),
        ))
    final = (xavier_normal(keys[-1], hid_dim * layer_num, out_dim),
             jnp.zeros((1, out_dim), jnp.float32))
    return dict(layers=layers, final=final)


def prep_curvgnn(params, in_dim, hid_dim, out_dim, layer_num):
    in_p = _round_up(in_dim, LANE)
    h_p = _round_up(hid_dim, LANE)
    out_p = _round_up(out_dim, LANE)
    bf = jnp.bfloat16
    w_f, b_f = params['final']
    layers = []
    for li, lp in enumerate(params['layers']):
        w1, b1, g, bt, w2, b2 = lp['in_lin']
        in_lin = (_pad2(w1, in_p, h_p).astype(bf), _pad_row(b1, h_p),
                  _pad_row(g, h_p), _pad_row(bt, h_p),
                  _pad2(w2, h_p, h_p).astype(bf), _pad_row(b2, h_p))
        w1, b1, g, bt, w2, b2 = lp['edge_lin']
        edge_lin = (_pad2(w1[:hid_dim], h_p, h_p).astype(bf),
                    _pad2(w1[hid_dim:], h_p, h_p).astype(bf),
                    _pad_row(b1, h_p), _pad_row(g, h_p), _pad_row(bt, h_p),
                    _pad2(w2, h_p, h_p).astype(bf), _pad_row(b2, h_p))
        wo, bo = lp['gnn_out']
        gnn_out = (_pad2(wo, h_p, h_p).astype(bf), _pad_row(bo, h_p))
        wol, bol = lp['out_lin']
        # per-layer slice of the final Linear, fused into the out_lin kernel
        wf_l = _pad2(w_f[li * hid_dim:(li + 1) * hid_dim], h_p, out_p).astype(bf)
        out_lin = (_pad2(wol[:hid_dim], h_p, h_p).astype(bf),
                   _pad2(wol[hid_dim:], h_p, h_p).astype(bf),
                   _pad_row(bol, h_p), wf_l)
        layers.append(dict(in_lin=in_lin, edge_lin=edge_lin,
                           gnn_out=gnn_out, out_lin=out_lin))
    return dict(layers=layers, final_bias=_pad_row(b_f, out_p))


# ----------------------------------------------------------------------------
if __name__ == "__main__":
    in_dim, hid_dim, out_dim, layer_num = 16, 32, 8, 2
    num_src, num_dst, num_edges = 16, 8, 32

    key = jax.random.PRNGKey(0)
    k_feat, k_es, k_ed, k_p1, k_p2, k_p3 = jax.random.split(key, 6)

    # blocks[0].srcdata['feature_i']
    features_list = [
        jax.random.normal(jax.random.fold_in(k_feat, i), (num_src, in_dim), jnp.float32)
        for i in range(layer_num)
    ]
    # synthetic DGL block: edges src -> dst (dst nodes are the first num_dst nodes)
    src_idx = jax.random.randint(k_es, (num_edges,), 0, num_src)
    dst_idx = jax.random.randint(k_ed, (num_edges,), 0, num_dst)

    params_neg = init_curvgnn(k_p1, in_dim, hid_dim, out_dim, layer_num)
    params_pos = init_curvgnn(k_p2, in_dim, hid_dim, out_dim, layer_num)
    params_euc = init_curvgnn(k_p3, in_dim, hid_dim, out_dim, layer_num)

    # curvature parameters (nn.Parameter cneg < 0, cpos > 0), deterministic values
    cneg = [-1.0, -0.5]
    cpos = [0.9, 0.5]

    @jax.jit
    def fwd(feats, si, di, p1, p2, p3):
        return spacegnn_forward(feats, si, di, num_dst, p1, p2, p3,
                                cneg, cpos, in_dim, hid_dim, out_dim)

    h1, h2, h3 = fwd(features_list, src_idx, dst_idx,
                     params_neg, params_pos, params_euc)
    jax.block_until_ready((h1, h2, h3))

    assert h1.shape == (num_dst, out_dim)
    assert h2.shape == (num_dst, out_dim)
    assert h3.shape == (num_dst, out_dim)
    assert bool(jnp.all(jnp.isfinite(h1))) and bool(jnp.all(jnp.isfinite(h3)))
    # each row of a log_softmax output should sum (in prob space) to ~1
    assert jnp.allclose(jnp.sum(jnp.exp(h1), axis=-1), 1.0, atol=1e-4)
    assert jnp.allclose(jnp.sum(jnp.exp(h3), axis=-1), 1.0, atol=1e-4)

    print("KERNEL_OK")
</pallas_src>

<mosaic_0001>
module attributes {stable_mosaic.version = 11 : i64} {
  func.func @_in_lin_kernel(%arg0: i32, %arg1: i32, %arg2: memref<16x128xbf16, #tpu.memory_space<vmem>>, %arg3: memref<1x128x128xbf16, #tpu.memory_space<vmem>>, %arg4: memref<1x1x128xf32, #tpu.memory_space<vmem>>, %arg5: memref<1x1x128xf32, #tpu.memory_space<vmem>>, %arg6: memref<1x1x128xf32, #tpu.memory_space<vmem>>, %arg7: memref<1x128x128xbf16, #tpu.memory_space<vmem>>, %arg8: memref<1x1x128xf32, #tpu.memory_space<vmem>>, %arg9: memref<1x16x128xbf16, #tpu.memory_space<vmem>>) attributes {dimension_semantics = [#tpu.dimension_semantics<parallel>, #tpu.dimension_semantics<arbitrary>], iteration_bounds = array<i64: 1, 3>, scalar_prefetch = 0 : i64, scratch_operands = 0 : i64, tpu.core_type = #tpu.core_type<tc>, window_params = [{transform_indices = @transform_0, window_bounds = array<i64: 16, 128>}, {transform_indices = @transform_1, window_bounds = array<i64: 1, 128, 128>}, {transform_indices = @transform_2, window_bounds = array<i64: 1, 1, 128>}, {transform_indices = @transform_3, window_bounds = array<i64: 1, 1, 128>}, {transform_indices = @transform_4, window_bounds = array<i64: 1, 1, 128>}, {transform_indices = @transform_5, window_bounds = array<i64: 1, 128, 128>}, {transform_indices = @transform_6, window_bounds = array<i64: 1, 1, 128>}, {transform_indices = @transform_7, window_bounds = array<i64: 1, 16, 128>}]} {
    %c0 = arith.constant 0 : index
    %c0_0 = arith.constant 0 : index
    %0 = vector.load %arg2[%c0, %c0_0] : memref<16x128xbf16, #tpu.memory_space<vmem>>, vector<16x128xbf16>
    %c0_1 = arith.constant 0 : index
    %c0_2 = arith.constant 0 : index
    %c0_3 = arith.constant 0 : index
    %1 = vector.load %arg3[%c0_1, %c0_2, %c0_3] : memref<1x128x128xbf16, #tpu.memory_space<vmem>>, vector<1x128x128xbf16>
    %2 = vector.shape_cast %1 : vector<1x128x128xbf16> to vector<128x128xbf16>
    %cst = arith.constant dense<0.000000e+00> : vector<16x128xf32>
    %3 = tpu.matmul %0, %2, %cst {dimension_numbers = #tpu.dot_dimension_numbers<[1], [0], [0], [1], [0, 0, 1, 1], [], []>} : vector<16x128xbf16>, vector<128x128xbf16>, vector<16x128xf32> -> vector<16x128xf32>
    %c0_4 = arith.constant 0 : index
    %c0_5 = arith.constant 0 : index
    %c0_6 = arith.constant 0 : index
    %4 = vector.load %arg4[%c0_4, %c0_5, %c0_6] : memref<1x1x128xf32, #tpu.memory_space<vmem>>, vector<1x1x128xf32>
    %5 = vector.shape_cast %4 : vector<1x1x128xf32> to vector<1x128xf32>
    %6 = vector.broadcast %5 : vector<1x128xf32> to vector<16x128xf32>
    %7 = arith.addf %3, %6 : vector<16x128xf32>
    %cst_7 = arith.constant 0.000000e+00 : f32
    %8 = vector.broadcast %cst_7 : f32 to vector<16x128xf32>
    %9 = arith.cmpf ogt, %7, %8 : vector<16x128xf32>
    %cst_8 = arith.constant 0.000000e+00 : f32
    %10 = vector.broadcast %cst_8 : f32 to vector<16x128xf32>
    %11 = arith.minimumf %7, %10 : vector<16x128xf32>
    %12 = math.exp %11 : vector<16x128xf32>
    %cst_9 = arith.constant 1.000000e+00 : f32
    %13 = vector.broadcast %cst_9 : f32 to vector<16x128xf32>
    %14 = arith.subf %12, %13 : vector<16x128xf32>
    %15 = arith.select %9, %7, %14 : vector<16x128xi1>, vector<16x128xf32>
    %c0_10 = arith.constant 0 : index
    %c0_11 = arith.constant 0 : index
    %c0_12 = arith.constant 0 : index
    %16 = vector.load %arg5[%c0_10, %c0_11, %c0_12] : memref<1x1x128xf32, #tpu.memory_space<vmem>>, vector<1x1x128xf32>
    %17 = vector.shape_cast %16 : vector<1x1x128xf32> to vector<1x128xf32>
    %c0_13 = arith.constant 0 : index
    %c0_14 = arith.constant 0 : index
    %c0_15 = arith.constant 0 : index
    %18 = vector.load %arg6[%c0_13, %c0_14, %c0_15] : memref<1x1x128xf32, #tpu.memory_space<vmem>>, vector<1x1x128xf32>
    %19 = vector.shape_cast %18 : vector<1x1x128xf32> to vector<1x128xf32>
    %20 = tpu.iota {dimensions = array<i32: 1>} : vector<1x128xi32>
    %c32_i32 = arith.constant 32 : i32
    %21 = vector.broadcast %c32_i32 : i32 to vector<1x128xi32>
    %22 = arith.cmpi slt, %20, %21 : vector<1x128xi32>
    %cst_16 = arith.constant dense<0.000000e+00> : vector<16xf32>
    %23 = vector.multi_reduction <add>, %15, %cst_16 [1] : vector<16x128xf32> to vector<16xf32>
    %24 = vector.shape_cast %23 : vector<16xf32> to vector<16x1xf32>
    %cst_17 = arith.constant 3.125000e-02 : f32
    %25 = vector.broadcast %cst_17 : f32 to vector<16x1xf32>
    %26 = arith.mulf %24, %25 : vector<16x1xf32>
    %27 = vector.broadcast %26 : vector<16x1xf32> to vector<16x128xf32>
    %28 = arith.subf %15, %27 : vector<16x128xf32>
    %cst_18 = arith.constant 0.000000e+00 : f32
    %29 = vector.shape_cast %22 : vector<1x128xi1> to vector<1x128xi1>
    %30 = vector.broadcast %29 : vector<1x128xi1> to vector<16x128xi1>
    %31 = vector.broadcast %cst_18 : f32 to vector<16x128xf32>
    %32 = arith.select %30, %28, %31 : vector<16x128xi1>, vector<16x128xf32>
    %33 = arith.mulf %32, %32 : vector<16x128xf32>
    %cst_19 = arith.constant dense<0.000000e+00> : vector<16xf32>
    %34 = vector.multi_reduction <add>, %33, %cst_19 [1] : vector<16x128xf32> to vector<16xf32>
    %35 = vector.shape_cast %34 : vector<16xf32> to vector<16x1xf32>
    %cst_20 = arith.constant 3.125000e-02 : f32
    %36 = vector.broadcast %cst_20 : f32 to vector<16x1xf32>
    %37 = arith.mulf %35, %36 : vector<16x1xf32>
    %cst_21 = arith.constant 9.99999974E-6 : f32
    %38 = vector.broadcast %cst_21 : f32 to vector<16x1xf32>
    %39 = arith.addf %37, %38 : vector<16x1xf32>
    %40 = math.rsqrt %39 : vector<16x1xf32>
    %41 = vector.broadcast %40 : vector<16x1xf32> to vector<16x128xf32>
    %42 = arith.mulf %32, %41 : vector<16x128xf32>
    %43 = vector.broadcast %17 : vector<1x128xf32> to vector<16x128xf32>
    %44 = arith.mulf %42, %43 : vector<16x128xf32>
    %45 = vector.broadcast %19 : vector<1x128xf32> to vector<16x128xf32>
    %46 = arith.addf %44, %45 : vector<16x128xf32>
    %47 = arith.truncf %46 : vector<16x128xf32> to vector<16x128xbf16>
    %c0_22 = arith.constant 0 : index
    %c0_23 = arith.constant 0 : index
    %c0_24 = arith.constant 0 : index
    %48 = vector.load %arg7[%c0_22, %c0_23, %c0_24] : memref<1x128x128xbf16, #tpu.memory_space<vmem>>, vector<1x128x128xbf16>
    %49 = vector.shape_cast %48 : vector<1x128x128xbf16> to vector<128x128xbf16>
    %cst_25 = arith.constant dense<0.000000e+00> : vector<16x128xf32>
    %50 = tpu.matmul %47, %49, %cst_25 {dimension_numbers = #tpu.dot_dimension_numbers<[1], [0], [0], [1], [0, 0, 1, 1], [], []>} : vector<16x128xbf16>, vector<128x128xbf16>, vector<16x128xf32> -> vector<16x128xf32>
    %c0_26 = arith.constant 0 : index
    %c0_27 = arith.constant 0 : index
    %c0_28 = arith.constant 0 : index
    %51 = vector.load %arg8[%c0_26, %c0_27, %c0_28] : memref<1x1x128xf32, #tpu.memory_space<vmem>>, vector<1x1x128xf32>
    %52 = vector.shape_cast %51 : vector<1x1x128xf32> to vector<1x128xf32>
    %53 = vector.broadcast %52 : vector<1x128xf32> to vector<16x128xf32>
    %54 = arith.addf %50, %53 : vector<16x128xf32>
    %cst_29 = arith.constant 0.000000e+00 : f32
    %55 = vector.broadcast %cst_29 : f32 to vector<16x128xf32>
    %56 = arith.cmpf ogt, %54, %55 : vector<16x128xf32>
    %cst_30 = arith.constant 0.000000e+00 : f32
    %57 = vector.broadcast %cst_30 : f32 to vector<16x128xf32>
    %58 = arith.minimumf %54, %57 : vector<16x128xf32>
    %59 = math.exp %58 : vector<16x128xf32>
    %cst_31 = arith.constant 1.000000e+00 : f32
    %60 = vector.broadcast %cst_31 : f32 to vector<16x128xf32>
    %61 = arith.subf %59, %60 : vector<16x128xf32>
    %62 = arith.select %56, %54, %61 : vector<16x128xi1>, vector<16x128xf32>
    %63 = arith.truncf %62 : vector<16x128xf32> to vector<16x128xbf16>
    %c0_32 = arith.constant 0 : index
    %c0_33 = arith.constant 0 : index
    %c0_34 = arith.constant 0 : index
    %64 = vector.load %arg9[%c0_32, %c0_33, %c0_34] : memref<1x16x128xbf16, #tpu.memory_space<vmem>>, vector<1x16x128xbf16>
    %65 = vector.shape_cast %64 : vector<1x16x128xbf16> to vector<16x128xbf16>
    %66 = vector.shape_cast %63 : vector<16x128xbf16> to vector<1x16x128xbf16>
    tpu.vector_store %arg9[%c0_32, %c0_33, %c0_34], %66 {strides = array<i32>} : memref<1x16x128xbf16, #tpu.memory_space<vmem>>, vector<1x16x128xbf16>,
    return
  }
  func.func @transform_0(%arg0: i32, %arg1: i32) -> (i32, i32) {
    %c0_i32 = arith.constant 0 : i32
    %c0_i32_0 = arith.constant 0 : i32
    return %arg0, %c0_i32 : i32, i32
  }
  func.func @transform_1(%arg0: i32, %arg1: i32) -> (i32, i32, i32) {
    %c0_i32 = arith.constant 0 : i32
    %c0_i32_0 = arith.constant 0 : i32
    %c0_i32_1 = arith.constant 0 : i32
    return %arg1, %c0_i32, %c0_i32_0 : i32, i32, i32
  }
  func.func @transform_2(%arg0: i32, %arg1: i32) -> (i32, i32, i32) {
    %c0_i32 = arith.constant 0 : i32
    %c0_i32_0 = arith.constant 0 : i32
    %c0_i32_1 = arith.constant 0 : i32
    return %arg1, %c0_i32, %c0_i32_0 : i32, i32, i32
  }
  func.func @transform_3(%arg0: i32, %arg1: i32) -> (i32, i32, i32) {
    %c0_i32 = arith.constant 0 : i32
    %c0_i32_0 = arith.constant 0 : i32
    %c0_i32_1 = arith.constant 0 : i32
    return %arg1, %c0_i32, %c0_i32_0 : i32, i32, i32
  }
  func.func @transform_4(%arg0: i32, %arg1: i32) -> (i32, i32, i32) {
    %c0_i32 = arith.constant 0 : i32
    %c0_i32_0 = arith.constant 0 : i32
    %c0_i32_1 = arith.constant 0 : i32
    return %arg1, %c0_i32, %c0_i32_0 : i32, i32, i32
  }
  func.func @transform_5(%arg0: i32, %arg1: i32) -> (i32, i32, i32) {
    %c0_i32 = arith.constant 0 : i32
    %c0_i32_0 = arith.constant 0 : i32
    %c0_i32_1 = arith.constant 0 : i32
    return %arg1, %c0_i32, %c0_i32_0 : i32, i32, i32
  }
  func.func @transform_6(%arg0: i32, %arg1: i32) -> (i32, i32, i32) {
    %c0_i32 = arith.constant 0 : i32
    %c0_i32_0 = arith.constant 0 : i32
    %c0_i32_1 = arith.constant 0 : i32
    return %arg1, %c0_i32, %c0_i32_0 : i32, i32, i32
  }
  func.func @transform_7(%arg0: i32, %arg1: i32) -> (i32, i32, i32) {
    %c0_i32 = arith.constant 0 : i32
    %c0_i32_0 = arith.constant 0 : i32
    return %arg1, %arg0, %c0_i32 : i32, i32, i32
  }
}

module attributes {stable_mosaic.version = 11 : i64} {
  func.func @_agg_out_kernel(%arg0: i32, %arg1: i32, %arg2: memref<1x128xi32, #tpu.memory_space<vmem>>, %arg3: memref<128x128xbf16, #tpu.memory_space<vmem>>, %arg4: memref<8x128xbf16, #tpu.memory_space<vmem>>, %arg5: memref<128x128xbf16, #tpu.memory_space<vmem>>, %arg6: memref<1x128xf32, #tpu.memory_space<vmem>>, %arg7: memref<8x128xf32, #tpu.memory_space<vmem>>, %arg8: memref<8x128xf32, #tpu.memory_space<vmem>>) attributes {dimension_semantics = [#tpu.dimension_semantics<parallel>, #tpu.dimension_semantics<arbitrary>], iteration_bounds = array<i64: 1, 1>, scalar_prefetch = 0 : i64, scratch_operands = 1 : i64, tpu.core_type = #tpu.core_type<tc>, window_params = [{transform_indices = @transform_0, window_bounds = array<i64: 1, 128>}, {transform_indices = @transform_1, window_bounds = array<i64: 128, 128>}, {transform_indices = @transform_2, window_bounds = array<i64: 8, 128>}, {pipeline_mode = #tpu.pipeline_mode<synchronous>, transform_indices = @transform_3, window_bounds = array<i64: 128, 128>}, {pipeline_mode = #tpu.pipeline_mode<synchronous>, transform_indices = @transform_4, window_bounds = array<i64: 1, 128>}, {transform_indices = @transform_5, window_bounds = array<i64: 8, 128>}]} {
    %c0_i32 = arith.constant 0 : i32
    %0 = arith.cmpi eq, %arg1, %c0_i32 : i32
    %1 = arith.extui %0 : i1 to i32
    %c0_i32_0 = arith.constant 0 : i32
    %2 = arith.cmpi ne, %1, %c0_i32_0 : i32
    scf.if %2 {
      %cst_12 = arith.constant 0.000000e+00 : f32
      %22 = vector.broadcast %cst_12 : f32 to vector<8x128xf32>
      %c0_13 = arith.constant 0 : index
      %c0_14 = arith.constant 0 : index
      %23 = vector.load %arg8[%c0_13, %c0_14] : memref<8x128xf32, #tpu.memory_space<vmem>>, vector<8x128xf32>
      tpu.vector_store %arg8[%c0_13, %c0_14], %22 {strides = array<i32>} : memref<8x128xf32, #tpu.memory_space<vmem>>, vector<8x128xf32>,
    } else {
    }
    %c0 = arith.constant 0 : index
    %c0_1 = arith.constant 0 : index
    %3 = vector.load %arg2[%c0, %c0_1] : memref<1x128xi32, #tpu.memory_space<vmem>>, vector<1x128xi32>
    %4 = tpu.iota {dimensions = array<i32: 0>} : vector<8x128xi32>
    %c8_i32 = arith.constant 8 : i32
    %5 = arith.muli %arg0, %c8_i32 : i32
    %6 = vector.broadcast %5 : i32 to vector<8x128xi32>
    %7 = arith.addi %4, %6 : vector<8x128xi32>
    %8 = vector.broadcast %3 : vector<1x128xi32> to vector<8x128xi32>
    %9 = arith.cmpi eq, %7, %8 : vector<8x128xi32>
    %cst = arith.constant 1.000000e+00 : f32
    %cst_2 = arith.constant 0.000000e+00 : f32
    %10 = vector.broadcast %cst : f32 to vector<8x128xf32>
    %11 = vector.broadcast %cst_2 : f32 to vector<8x128xf32>
    %12 = arith.select %9, %10, %11 : vector<8x128xi1>, vector<8x128xf32>
    %13 = arith.truncf %12 : vector<8x128xf32> to vector<8x128xbf16>
    %c0_3 = arith.constant 0 : index
    %c0_4 = arith.constant 0 : index
    %14 = vector.load %arg8[%c0_3, %c0_4] : memref<8x128xf32, #tpu.memory_space<vmem>>, vector<8x128xf32>
    %c0_5 = arith.constant 0 : index
    %c0_6 = arith.constant 0 : index
    %15 = vector.load %arg3[%c0_5, %c0_6] : memref<128x128xbf16, #tpu.memory_space<vmem>>, vector<128x128xbf16>
    %cst_7 = arith.constant dense<0.000000e+00> : vector<8x128xf32>
    %16 = tpu.matmul %13, %15, %cst_7 {dimension_numbers = #tpu.dot_dimension_numbers<[1], [0], [0], [1], [0, 0, 1, 1], [], []>} : vector<8x128xbf16>, vector<128x128xbf16>, vector<8x128xf32> -> vector<8x128xf32>
    %17 = arith.addf %14, %16 : vector<8x128xf32>
    %c0_8 = arith.constant 0 : index
    %c0_9 = arith.constant 0 : index
    %18 = vector.load %arg8[%c0_8, %c0_9] : memref<8x128xf32, #tpu.memory_space<vmem>>, vector<8x128xf32>
    tpu.vector_store %arg8[%c0_8, %c0_9], %17 {strides = array<i32>} : memref<8x128xf32, #tpu.memory_space<vmem>>, vector<8x128xf32>,
    %c0_i32_10 = arith.constant 0 : i32
    %19 = arith.cmpi eq, %arg1, %c0_i32_10 : i32
    %20 = arith.extui %19 : i1 to i32
    %c0_i32_11 = arith.constant 0 : i32
    %21 = arith.cmpi ne, %20, %c0_i32_11 : i32
    scf.if %21 {
      %c0_12 = arith.constant 0 : index
      %c0_13 = arith.constant 0 : index
      %22 = vector.load %arg8[%c0_12, %c0_13] : memref<8x128xf32, #tpu.memory_space<vmem>>, vector<8x128xf32>
      %23 = arith.truncf %22 : vector<8x128xf32> to vector<8x128xbf16>
      %c0_14 = arith.constant 0 : index
      %c0_15 = arith.constant 0 : index
      %24 = vector.load %arg5[%c0_14, %c0_15] : memref<128x128xbf16, #tpu.memory_space<vmem>>, vector<128x128xbf16>
      %cst_16 = arith.constant dense<0.000000e+00> : vector<8x128xf32>
      %25 = tpu.matmul %23, %24, %cst_16 {dimension_numbers = #tpu.dot_dimension_numbers<[1], [0], [0], [1], [0, 0, 1, 1], [], []>} : vector<8x128xbf16>, vector<128x128xbf16>, vector<8x128xf32> -> vector<8x128xf32>
      %c0_17 = arith.constant 0 : index
      %c0_18 = arith.constant 0 : index
      %26 = vector.load %arg6[%c0_17, %c0_18] : memref<1x128xf32, #tpu.memory_space<vmem>>, vector<1x128xf32>
      %27 = vector.broadcast %26 : vector<1x128xf32> to vector<8x128xf32>
      %28 = arith.addf %25, %27 : vector<8x128xf32>
      %c0_19 = arith.constant 0 : index
      %c0_20 = arith.constant 0 : index
      %29 = vector.load %arg7[%c0_19, %c0_20] : memref<8x128xf32, #tpu.memory_space<vmem>>, vector<8x128xf32>
      tpu.vector_store %arg7[%c0_19, %c0_20], %28 {strides = array<i32>} : memref<8x128xf32, #tpu.memory_space<vmem>>, vector<8x128xf32>,
    } else {
    }
    return
  }
  func.func @transform_0(%arg0: i32, %arg1: i32) -> (i32, i32) {
    %c0_i32 = arith.constant 0 : i32
    %c0_i32_0 = arith.constant 0 : i32
    return %c0_i32, %arg1 : i32, i32
  }
  func.func @transform_1(%arg0: i32, %arg1: i32) -> (i32, i32) {
    %c0_i32 = arith.constant 0 : i32
    %c0_i32_0 = arith.constant 0 : i32
    return %arg1, %c0_i32 : i32, i32
  }
  func.func @transform_2(%arg0: i32, %arg1: i32) -> (i32, i32) {
    %c0_i32 = arith.constant 0 : i32
    %c0_i32_0 = arith.constant 0 : i32
    return %arg0, %c0_i32 : i32, i32
  }
  func.func @transform_3(%arg0: i32, %arg1: i32) -> (i32, i32) {
    %c0_i32 = arith.constant 0 : i32
    %c0_i32_0 = arith.constant 0 : i32
    %c0_i32_1 = arith.constant 0 : i32
    return %c0_i32, %c0_i32_0 : i32, i32
  }
  func.func @transform_4(%arg0: i32, %arg1: i32) -> (i32, i32) {
    %c0_i32 = arith.constant 0 : i32
    %c0_i32_0 = arith.constant 0 : i32
    %c0_i32_1 = arith.constant 0 : i32
    return %c0_i32, %c0_i32_0 : i32, i32
  }
  func.func @transform_5(%arg0: i32, %arg1: i32) -> (i32, i32) {
    %c0_i32 = arith.constant 0 : i32
    %c0_i32_0 = arith.constant 0 : i32
    return %arg0, %c0_i32 : i32, i32
  }
}

module attributes {stable_mosaic.version = 11 : i64} {
  func.func @_edge_msg_kernel(%arg0: i32, %arg1: memref<128x128xbf16, #tpu.memory_space<vmem>>, %arg2: memref<128x128xbf16, #tpu.memory_space<vmem>>, %arg3: memref<128x128xbf16, #tpu.memory_space<vmem>>, %arg4: memref<128x128xbf16, #tpu.memory_space<vmem>>, %arg5: memref<1x128xf32, #tpu.memory_space<vmem>>, %arg6: memref<1x128xf32, #tpu.memory_space<vmem>>, %arg7: memref<1x128xf32, #tpu.memory_space<vmem>>, %arg8: memref<128x128xbf16, #tpu.memory_space<vmem>>, %arg9: memref<1x128xf32, #tpu.memory_space<vmem>>, %arg10: memref<128x128xbf16, #tpu.memory_space<vmem>>) attributes {dimension_semantics = [#tpu.dimension_semantics<parallel>], iteration_bounds = array<i64: 1>, scalar_prefetch = 0 : i64, scratch_operands = 0 : i64, tpu.core_type = #tpu.core_type<tc>, window_params = [{transform_indices = @transform_0, window_bounds = array<i64: 128, 128>}, {transform_indices = @transform_1, window_bounds = array<i64: 128, 128>}, {pipeline_mode = #tpu.pipeline_mode<synchronous>, transform_indices = @transform_2, window_bounds = array<i64: 128, 128>}, {pipeline_mode = #tpu.pipeline_mode<synchronous>, transform_indices = @transform_3, window_bounds = array<i64: 128, 128>}, {pipeline_mode = #tpu.pipeline_mode<synchronous>, transform_indices = @transform_4, window_bounds = array<i64: 1, 128>}, {pipeline_mode = #tpu.pipeline_mode<synchronous>, transform_indices = @transform_5, window_bounds = array<i64: 1, 128>}, {pipeline_mode = #tpu.pipeline_mode<synchronous>, transform_indices = @transform_6, window_bounds = array<i64: 1, 128>}, {pipeline_mode = #tpu.pipeline_mode<synchronous>, transform_indices = @transform_7, window_bounds = array<i64: 128, 128>}, {pipeline_mode = #tpu.pipeline_mode<synchronous>, transform_indices = @transform_8, window_bounds = array<i64: 1, 128>}, {transform_indices = @transform_9, window_bounds = array<i64: 128, 128>}]} {
    %c0 = arith.constant 0 : index
    %c0_0 = arith.constant 0 : index
    %0 = vector.load %arg1[%c0, %c0_0] : memref<128x128xbf16, #tpu.memory_space<vmem>>, vector<128x128xbf16>
    %c0_1 = arith.constant 0 : index
    %c0_2 = arith.constant 0 : index
    %1 = vector.load %arg2[%c0_1, %c0_2] : memref<128x128xbf16, #tpu.memory_space<vmem>>, vector<128x128xbf16>
    %2 = arith.extf %0 : vector<128x128xbf16> to vector<128x128xf32>
    %3 = arith.extf %1 : vector<128x128xbf16> to vector<128x128xf32>
    %4 = arith.subf %2, %3 : vector<128x128xf32>
    %5 = arith.mulf %4, %4 : vector<128x128xf32>
    %cst = arith.constant dense<0.000000e+00> : vector<128xf32>
    %6 = vector.multi_reduction <add>, %5, %cst [1] : vector<128x128xf32> to vector<128xf32>
    %7 = vector.shape_cast %6 : vector<128xf32> to vector<128x1xf32>
    %8 = math.sqrt %7 : vector<128x1xf32>
    %9 = arith.mulf %2, %3 : vector<128x128xf32>
    %cst_3 = arith.constant dense<0.000000e+00> : vector<128xf32>
    %10 = vector.multi_reduction <add>, %9, %cst_3 [1] : vector<128x128xf32> to vector<128xf32>
    %11 = vector.shape_cast %10 : vector<128xf32> to vector<128x1xf32>
    %cst_4 = arith.constant 2.000000e+00 : f32
    %12 = vector.broadcast %cst_4 : f32 to vector<128x1xf32>
    %13 = arith.mulf %12, %8 : vector<128x1xf32>
    %14 = arith.mulf %8, %8 : vector<128x1xf32>
    %15 = arith.mulf %14, %8 : vector<128x1xf32>
    %cst_5 = arith.constant 0.333333343 : f32
    %16 = vector.broadcast %cst_5 : f32 to vector<128x1xf32>
    %17 = arith.mulf %15, %16 : vector<128x1xf32>
    %18 = arith.mulf %11, %8 : vector<128x1xf32>
    %19 = arith.mulf %18, %8 : vector<128x1xf32>
    %20 = arith.addf %17, %19 : vector<128x1xf32>
    %cst_6 = arith.constant 1.000000e+00 : f32
    %21 = vector.broadcast %cst_6 : f32 to vector<128x1xf32>
    %22 = arith.mulf %21, %20 : vector<128x1xf32>
    %23 = arith.subf %13, %22 : vector<128x1xf32>
    %24 = math.exp %23 : vector<128x1xf32>
    %cst_7 = arith.constant 1.000000e+00 : f32
    %25 = vector.broadcast %cst_7 : f32 to vector<128x1xf32>
    %26 = arith.addf %25, %24 : vector<128x1xf32>
    %cst_8 = arith.constant 1.000000e+00 : f32
    %27 = vector.broadcast %cst_8 : f32 to vector<128x1xf32>
    %28 = arith.divf %27, %26 : vector<128x1xf32>
    %cst_9 = arith.constant 1.000000e+00 : f32
    %29 = vector.broadcast %cst_9 : f32 to vector<128x1xf32>
    %30 = arith.addf %28, %29 : vector<128x1xf32>
    %31 = vector.broadcast %30 : vector<128x1xf32> to vector<128x128xf32>
    %32 = arith.mulf %31, %2 : vector<128x128xf32>
    %33 = arith.truncf %32 : vector<128x128xf32> to vector<128x128xbf16>
    %c0_10 = arith.constant 0 : index
    %c0_11 = arith.constant 0 : index
    %34 = vector.load %arg3[%c0_10, %c0_11] : memref<128x128xbf16, #tpu.memory_space<vmem>>, vector<128x128xbf16>
    %cst_12 = arith.constant dense<0.000000e+00> : vector<128x128xf32>
    %35 = tpu.matmul %33, %34, %cst_12 {dimension_numbers = #tpu.dot_dimension_numbers<[1], [0], [0], [1], [0, 0, 1, 1], [], []>} : vector<128x128xbf16>, vector<128x128xbf16>, vector<128x128xf32> -> vector<128x128xf32>
    %c0_13 = arith.constant 0 : index
    %c0_14 = arith.constant 0 : index
    %36 = vector.load %arg4[%c0_13, %c0_14] : memref<128x128xbf16, #tpu.memory_space<vmem>>, vector<128x128xbf16>
    %cst_15 = arith.constant dense<0.000000e+00> : vector<128x128xf32>
    %37 = tpu.matmul %1, %36, %cst_15 {dimension_numbers = #tpu.dot_dimension_numbers<[1], [0], [0], [1], [0, 0, 1, 1], [], []>} : vector<128x128xbf16>, vector<128x128xbf16>, vector<128x128xf32> -> vector<128x128xf32>
    %38 = arith.addf %35, %37 : vector<128x128xf32>
    %c0_16 = arith.constant 0 : index
    %c0_17 = arith.constant 0 : index
    %39 = vector.load %arg5[%c0_16, %c0_17] : memref<1x128xf32, #tpu.memory_space<vmem>>, vector<1x128xf32>
    %40 = vector.broadcast %39 : vector<1x128xf32> to vector<128x128xf32>
    %41 = arith.addf %38, %40 : vector<128x128xf32>
    %cst_18 = arith.constant 0.000000e+00 : f32
    %42 = vector.broadcast %cst_18 : f32 to vector<128x128xf32>
    %43 = arith.cmpf ogt, %41, %42 : vector<128x128xf32>
    %cst_19 = arith.constant 0.000000e+00 : f32
    %44 = vector.broadcast %cst_19 : f32 to vector<128x128xf32>
    %45 = arith.minimumf %41, %44 : vector<128x128xf32>
    %46 = math.exp %45 : vector<128x128xf32>
    %cst_20 = arith.constant 1.000000e+00 : f32
    %47 = vector.broadcast %cst_20 : f32 to vector<128x128xf32>
    %48 = arith.subf %46, %47 : vector<128x128xf32>
    %49 = arith.select %43, %41, %48 : vector<128x128xi1>, vector<128x128xf32>
    %c0_21 = arith.constant 0 : index
    %c0_22 = arith.constant 0 : index
    %50 = vector.load %arg6[%c0_21, %c0_22] : memref<1x128xf32, #tpu.memory_space<vmem>>, vector<1x128xf32>
    %c0_23 = arith.constant 0 : index
    %c0_24 = arith.constant 0 : index
    %51 = vector.load %arg7[%c0_23, %c0_24] : memref<1x128xf32, #tpu.memory_space<vmem>>, vector<1x128xf32>
    %52 = tpu.iota {dimensions = array<i32: 1>} : vector<1x128xi32>
    %c32_i32 = arith.constant 32 : i32
    %53 = vector.broadcast %c32_i32 : i32 to vector<1x128xi32>
    %54 = arith.cmpi slt, %52, %53 : vector<1x128xi32>
    %cst_25 = arith.constant dense<0.000000e+00> : vector<128xf32>
    %55 = vector.multi_reduction <add>, %49, %cst_25 [1] : vector<128x128xf32> to vector<128xf32>
    %56 = vector.shape_cast %55 : vector<128xf32> to vector<128x1xf32>
    %cst_26 = arith.constant 3.125000e-02 : f32
    %57 = vector.broadcast %cst_26 : f32 to vector<128x1xf32>
    %58 = arith.mulf %56, %57 : vector<128x1xf32>
    %59 = vector.broadcast %58 : vector<128x1xf32> to vector<128x128xf32>
    %60 = arith.subf %49, %59 : vector<128x128xf32>
    %cst_27 = arith.constant 0.000000e+00 : f32
    %61 = vector.shape_cast %54 : vector<1x128xi1> to vector<1x128xi1>
    %62 = vector.broadcast %61 : vector<1x128xi1> to vector<128x128xi1>
    %63 = vector.broadcast %cst_27 : f32 to vector<128x128xf32>
    %64 = arith.select %62, %60, %63 : vector<128x128xi1>, vector<128x128xf32>
    %65 = arith.mulf %64, %64 : vector<128x128xf32>
    %cst_28 = arith.constant dense<0.000000e+00> : vector<128xf32>
    %66 = vector.multi_reduction <add>, %65, %cst_28 [1] : vector<128x128xf32> to vector<128xf32>
    %67 = vector.shape_cast %66 : vector<128xf32> to vector<128x1xf32>
    %cst_29 = arith.constant 3.125000e-02 : f32
    %68 = vector.broadcast %cst_29 : f32 to vector<128x1xf32>
    %69 = arith.mulf %67, %68 : vector<128x1xf32>
    %cst_30 = arith.constant 9.99999974E-6 : f32
    %70 = vector.broadcast %cst_30 : f32 to vector<128x1xf32>
    %71 = arith.addf %69, %70 : vector<128x1xf32>
    %72 = math.rsqrt %71 : vector<128x1xf32>
    %73 = vector.broadcast %72 : vector<128x1xf32> to vector<128x128xf32>
    %74 = arith.mulf %64, %73 : vector<128x128xf32>
    %75 = vector.broadcast %50 : vector<1x128xf32> to vector<128x128xf32>
    %76 = arith.mulf %74, %75 : vector<128x128xf32>
    %77 = vector.broadcast %51 : vector<1x128xf32> to vector<128x128xf32>
    %78 = arith.addf %76, %77 : vector<128x128xf32>
    %79 = arith.truncf %78 : vector<128x128xf32> to vector<128x128xbf16>
    %c0_31 = arith.constant 0 : index
    %c0_32 = arith.constant 0 : index
    %80 = vector.load %arg8[%c0_31, %c0_32] : memref<128x128xbf16, #tpu.memory_space<vmem>>, vector<128x128xbf16>
    %cst_33 = arith.constant dense<0.000000e+00> : vector<128x128xf32>
    %81 = tpu.matmul %79, %80, %cst_33 {dimension_numbers = #tpu.dot_dimension_numbers<[1], [0], [0], [1], [0, 0, 1, 1], [], []>} : vector<128x128xbf16>, vector<128x128xbf16>, vector<128x128xf32> -> vector<128x128xf32>
    %c0_34 = arith.constant 0 : index
    %c0_35 = arith.constant 0 : index
    %82 = vector.load %arg9[%c0_34, %c0_35] : memref<1x128xf32, #tpu.memory_space<vmem>>, vector<1x128xf32>
    %83 = vector.broadcast %82 : vector<1x128xf32> to vector<128x128xf32>
    %84 = arith.addf %81, %83 : vector<128x128xf32>
    %cst_36 = arith.constant 0.000000e+00 : f32
    %85 = vector.broadcast %cst_36 : f32 to vector<128x128xf32>
    %86 = arith.cmpf ogt, %84, %85 : vector<128x128xf32>
    %cst_37 = arith.constant 0.000000e+00 : f32
    %87 = vector.broadcast %cst_37 : f32 to vector<128x128xf32>
    %88 = arith.minimumf %84, %87 : vector<128x128xf32>
    %89 = math.exp %88 : vector<128x128xf32>
    %cst_38 = arith.constant 1.000000e+00 : f32
    %90 = vector.broadcast %cst_38 : f32 to vector<128x128xf32>
    %91 = arith.subf %89, %90 : vector<128x128xf32>
    %92 = arith.select %86, %84, %91 : vector<128x128xi1>, vector<128x128xf32>
    %cst_39 = arith.constant 0.999994993 : f32
    %93 = vector.broadcast %cst_39 : f32 to vector<128x128xf32>
    %94 = arith.mulf %92, %93 : vector<128x128xf32>
    %95 = arith.truncf %94 : vector<128x128xf32> to vector<128x128xbf16>
    %c0_40 = arith.constant 0 : index
    %c0_41 = arith.constant 0 : index
    %96 = vector.load %arg10[%c0_40, %c0_41] : memref<128x128xbf16, #tpu.memory_space<vmem>>, vector<128x128xbf16>
    tpu.vector_store %arg10[%c0_40, %c0_41], %95 {strides = array<i32>} : memref<128x128xbf16, #tpu.memory_space<vmem>>, vector<128x128xbf16>,
    return
  }
  func.func @transform_0(%arg0: i32) -> (i32, i32) {
    %c0_i32 = arith.constant 0 : i32
    %c0_i32_0 = arith.constant 0 : i32
    return %arg0, %c0_i32 : i32, i32
  }
  func.func @transform_1(%arg0: i32) -> (i32, i32) {
    %c0_i32 = arith.constant 0 : i32
    %c0_i32_0 = arith.constant 0 : i32
    return %arg0, %c0_i32 : i32, i32
  }
  func.func @transform_2(%arg0: i32) -> (i32, i32) {
    %c0_i32 = arith.constant 0 : i32
    %c0_i32_0 = arith.constant 0 : i32
    %c0_i32_1 = arith.constant 0 : i32
    return %c0_i32, %c0_i32_0 : i32, i32
  }
  func.func @transform_3(%arg0: i32) -> (i32, i32) {
    %c0_i32 = arith.constant 0 : i32
    %c0_i32_0 = arith.constant 0 : i32
    %c0_i32_1 = arith.constant 0 : i32
    return %c0_i32, %c0_i32_0 : i32, i32
  }
  func.func @transform_4(%arg0: i32) -> (i32, i32) {
    %c0_i32 = arith.constant 0 : i32
    %c0_i32_0 = arith.constant 0 : i32
    %c0_i32_1 = arith.constant 0 : i32
    return %c0_i32, %c0_i32_0 : i32, i32
  }
  func.func @transform_5(%arg0: i32) -> (i32, i32) {
    %c0_i32 = arith.constant 0 : i32
    %c0_i32_0 = arith.constant 0 : i32
    %c0_i32_1 = arith.constant 0 : i32
    return %c0_i32, %c0_i32_0 : i32, i32
  }
  func.func @transform_6(%arg0: i32) -> (i32, i32) {
    %c0_i32 = arith.constant 0 : i32
    %c0_i32_0 = arith.constant 0 : i32
    %c0_i32_1 = arith.constant 0 : i32
    return %c0_i32, %c0_i32_0 : i32, i32
  }
  func.func @transform_7(%arg0: i32) -> (i32, i32) {
    %c0_i32 = arith.constant 0 : i32
    %c0_i32_0 = arith.constant 0 : i32
    %c0_i32_1 = arith.constant 0 : i32
    return %c0_i32, %c0_i32_0 : i32, i32
  }
  func.func @transform_8(%arg0: i32) -> (i32, i32) {
    %c0_i32 = arith.constant 0 : i32
    %c0_i32_0 = arith.constant 0 : i32
    %c0_i32_1 = arith.constant 0 : i32
    return %c0_i32, %c0_i32_0 : i32, i32
  }
  func.func @transform_9(%arg0: i32) -> (i32, i32) {
    %c0_i32 = arith.constant 0 : i32
    %c0_i32_0 = arith.constant 0 : i32
    return %arg0, %c0_i32 : i32, i32
  }
}

module attributes {stable_mosaic.version = 11 : i64} {
  func.func @_outlin_kernel(%arg0: i32, %arg1: memref<8x128xbf16, #tpu.memory_space<vmem>>, %arg2: memref<8x128xf32, #tpu.memory_space<vmem>>, %arg3: memref<128x128xbf16, #tpu.memory_space<vmem>>, %arg4: memref<128x128xbf16, #tpu.memory_space<vmem>>, %arg5: memref<1x128xf32, #tpu.memory_space<vmem>>, %arg6: memref<128x128xbf16, #tpu.memory_space<vmem>>, %arg7: memref<8x128xf32, #tpu.memory_space<vmem>>) attributes {dimension_semantics = [#tpu.dimension_semantics<parallel>], iteration_bounds = array<i64: 1>, scalar_prefetch = 0 : i64, scratch_operands = 0 : i64, tpu.core_type = #tpu.core_type<tc>, window_params = [{transform_indices = @transform_0, window_bounds = array<i64: 8, 128>}, {transform_indices = @transform_1, window_bounds = array<i64: 8, 128>}, {pipeline_mode = #tpu.pipeline_mode<synchronous>, transform_indices = @transform_2, window_bounds = array<i64: 128, 128>}, {pipeline_mode = #tpu.pipeline_mode<synchronous>, transform_indices = @transform_3, window_bounds = array<i64: 128, 128>}, {pipeline_mode = #tpu.pipeline_mode<synchronous>, transform_indices = @transform_4, window_bounds = array<i64: 1, 128>}, {pipeline_mode = #tpu.pipeline_mode<synchronous>, transform_indices = @transform_5, window_bounds = array<i64: 128, 128>}, {transform_indices = @transform_6, window_bounds = array<i64: 8, 128>}]} {
    %c0 = arith.constant 0 : index
    %c0_0 = arith.constant 0 : index
    %0 = vector.load %arg2[%c0, %c0_0] : memref<8x128xf32, #tpu.memory_space<vmem>>, vector<8x128xf32>
    %cst = arith.constant 0.999994993 : f32
    %1 = vector.broadcast %cst : f32 to vector<8x128xf32>
    %2 = arith.mulf %0, %1 : vector<8x128xf32>
    %cst_1 = arith.constant 0.000000e+00 : f32
    %3 = vector.broadcast %cst_1 : f32 to vector<8x128xf32>
    %4 = arith.cmpf ogt, %2, %3 : vector<8x128xf32>
    %cst_2 = arith.constant 0.000000e+00 : f32
    %5 = vector.broadcast %cst_2 : f32 to vector<8x128xf32>
    %6 = arith.minimumf %2, %5 : vector<8x128xf32>
    %7 = math.exp %6 : vector<8x128xf32>
    %cst_3 = arith.constant 1.000000e+00 : f32
    %8 = vector.broadcast %cst_3 : f32 to vector<8x128xf32>
    %9 = arith.subf %7, %8 : vector<8x128xf32>
    %cst_4 = arith.constant 1.67326319 : f32
    %10 = vector.broadcast %cst_4 : f32 to vector<8x128xf32>
    %11 = arith.mulf %10, %9 : vector<8x128xf32>
    %12 = arith.select %4, %2, %11 : vector<8x128xi1>, vector<8x128xf32>
    %cst_5 = arith.constant 1.05070102 : f32
    %13 = vector.broadcast %cst_5 : f32 to vector<8x128xf32>
    %14 = arith.mulf %13, %12 : vector<8x128xf32>
    %15 = arith.truncf %14 : vector<8x128xf32> to vector<8x128xbf16>
    %c0_6 = arith.constant 0 : index
    %c0_7 = arith.constant 0 : index
    %16 = vector.load %arg1[%c0_6, %c0_7] : memref<8x128xbf16, #tpu.memory_space<vmem>>, vector<8x128xbf16>
    %c0_8 = arith.constant 0 : index
    %c0_9 = arith.constant 0 : index
    %17 = vector.load %arg3[%c0_8, %c0_9] : memref<128x128xbf16, #tpu.memory_space<vmem>>, vector<128x128xbf16>
    %cst_10 = arith.constant dense<0.000000e+00> : vector<8x128xf32>
    %18 = tpu.matmul %16, %17, %cst_10 {dimension_numbers = #tpu.dot_dimension_numbers<[1], [0], [0], [1], [0, 0, 1, 1], [], []>} : vector<8x128xbf16>, vector<128x128xbf16>, vector<8x128xf32> -> vector<8x128xf32>
    %c0_11 = arith.constant 0 : index
    %c0_12 = arith.constant 0 : index
    %19 = vector.load %arg4[%c0_11, %c0_12] : memref<128x128xbf16, #tpu.memory_space<vmem>>, vector<128x128xbf16>
    %cst_13 = arith.constant dense<0.000000e+00> : vector<8x128xf32>
    %20 = tpu.matmul %15, %19, %cst_13 {dimension_numbers = #tpu.dot_dimension_numbers<[1], [0], [0], [1], [0, 0, 1, 1], [], []>} : vector<8x128xbf16>, vector<128x128xbf16>, vector<8x128xf32> -> vector<8x128xf32>
    %21 = arith.addf %18, %20 : vector<8x128xf32>
    %c0_14 = arith.constant 0 : index
    %c0_15 = arith.constant 0 : index
    %22 = vector.load %arg5[%c0_14, %c0_15] : memref<1x128xf32, #tpu.memory_space<vmem>>, vector<1x128xf32>
    %23 = vector.broadcast %22 : vector<1x128xf32> to vector<8x128xf32>
    %24 = arith.addf %21, %23 : vector<8x128xf32>
    %25 = arith.truncf %24 : vector<8x128xf32> to vector<8x128xbf16>
    %c0_16 = arith.constant 0 : index
    %c0_17 = arith.constant 0 : index
    %26 = vector.load %arg6[%c0_16, %c0_17] : memref<128x128xbf16, #tpu.memory_space<vmem>>, vector<128x128xbf16>
    %cst_18 = arith.constant dense<0.000000e+00> : vector<8x128xf32>
    %27 = tpu.matmul %25, %26, %cst_18 {dimension_numbers = #tpu.dot_dimension_numbers<[1], [0], [0], [1], [0, 0, 1, 1], [], []>} : vector<8x128xbf16>, vector<128x128xbf16>, vector<8x128xf32> -> vector<8x128xf32>
    %c0_19 = arith.constant 0 : index
    %c0_20 = arith.constant 0 : index
    %28 = vector.load %arg7[%c0_19, %c0_20] : memref<8x128xf32, #tpu.memory_space<vmem>>, vector<8x128xf32>
    tpu.vector_store %arg7[%c0_19, %c0_20], %27 {strides = array<i32>} : memref<8x128xf32, #tpu.memory_space<vmem>>, vector<8x128xf32>,
    return
  }
  func.func @transform_0(%arg0: i32) -> (i32, i32) {
    %c0_i32 = arith.constant 0 : i32
    %c0_i32_0 = arith.constant 0 : i32
    return %arg0, %c0_i32 : i32, i32
  }
  func.func @transform_1(%arg0: i32) -> (i32, i32) {
    %c0_i32 = arith.constant 0 : i32
    %c0_i32_0 = arith.constant 0 : i32
    return %arg0, %c0_i32 : i32, i32
  }
  func.func @transform_2(%arg0: i32) -> (i32, i32) {
    %c0_i32 = arith.constant 0 : i32
    %c0_i32_0 = arith.constant 0 : i32
    %c0_i32_1 = arith.constant 0 : i32
    return %c0_i32, %c0_i32_0 : i32, i32
  }
  func.func @transform_3(%arg0: i32) -> (i32, i32) {
    %c0_i32 = arith.constant 0 : i32
    %c0_i32_0 = arith.constant 0 : i32
    %c0_i32_1 = arith.constant 0 : i32
    return %c0_i32, %c0_i32_0 : i32, i32
  }
  func.func @transform_4(%arg0: i32) -> (i32, i32) {
    %c0_i32 = arith.constant 0 : i32
    %c0_i32_0 = arith.constant 0 : i32
    %c0_i32_1 = arith.constant 0 : i32
    return %c0_i32, %c0_i32_0 : i32, i32
  }
  func.func @transform_5(%arg0: i32) -> (i32, i32) {
    %c0_i32 = arith.constant 0 : i32
    %c0_i32_0 = arith.constant 0 : i32
    %c0_i32_1 = arith.constant 0 : i32
    return %c0_i32, %c0_i32_0 : i32, i32
  }
  func.func @transform_6(%arg0: i32) -> (i32, i32) {
    %c0_i32 = arith.constant 0 : i32
    %c0_i32_0 = arith.constant 0 : i32
    return %arg0, %c0_i32 : i32, i32
  }
}

module attributes {stable_mosaic.version = 11 : i64} {
  func.func @_edge_msg_kernel(%arg0: i32, %arg1: memref<128x128xbf16, #tpu.memory_space<vmem>>, %arg2: memref<128x128xbf16, #tpu.memory_space<vmem>>, %arg3: memref<128x128xbf16, #tpu.memory_space<vmem>>, %arg4: memref<128x128xbf16, #tpu.memory_space<vmem>>, %arg5: memref<1x128xf32, #tpu.memory_space<vmem>>, %arg6: memref<1x128xf32, #tpu.memory_space<vmem>>, %arg7: memref<1x128xf32, #tpu.memory_space<vmem>>, %arg8: memref<128x128xbf16, #tpu.memory_space<vmem>>, %arg9: memref<1x128xf32, #tpu.memory_space<vmem>>, %arg10: memref<128x128xbf16, #tpu.memory_space<vmem>>) attributes {dimension_semantics = [#tpu.dimension_semantics<parallel>], iteration_bounds = array<i64: 1>, scalar_prefetch = 0 : i64, scratch_operands = 0 : i64, tpu.core_type = #tpu.core_type<tc>, window_params = [{transform_indices = @transform_0, window_bounds = array<i64: 128, 128>}, {transform_indices = @transform_1, window_bounds = array<i64: 128, 128>}, {pipeline_mode = #tpu.pipeline_mode<synchronous>, transform_indices = @transform_2, window_bounds = array<i64: 128, 128>}, {pipeline_mode = #tpu.pipeline_mode<synchronous>, transform_indices = @transform_3, window_bounds = array<i64: 128, 128>}, {pipeline_mode = #tpu.pipeline_mode<synchronous>, transform_indices = @transform_4, window_bounds = array<i64: 1, 128>}, {pipeline_mode = #tpu.pipeline_mode<synchronous>, transform_indices = @transform_5, window_bounds = array<i64: 1, 128>}, {pipeline_mode = #tpu.pipeline_mode<synchronous>, transform_indices = @transform_6, window_bounds = array<i64: 1, 128>}, {pipeline_mode = #tpu.pipeline_mode<synchronous>, transform_indices = @transform_7, window_bounds = array<i64: 128, 128>}, {pipeline_mode = #tpu.pipeline_mode<synchronous>, transform_indices = @transform_8, window_bounds = array<i64: 1, 128>}, {transform_indices = @transform_9, window_bounds = array<i64: 128, 128>}]} {
    %c0 = arith.constant 0 : index
    %c0_0 = arith.constant 0 : index
    %0 = vector.load %arg1[%c0, %c0_0] : memref<128x128xbf16, #tpu.memory_space<vmem>>, vector<128x128xbf16>
    %c0_1 = arith.constant 0 : index
    %c0_2 = arith.constant 0 : index
    %1 = vector.load %arg2[%c0_1, %c0_2] : memref<128x128xbf16, #tpu.memory_space<vmem>>, vector<128x128xbf16>
    %2 = arith.extf %0 : vector<128x128xbf16> to vector<128x128xf32>
    %3 = arith.extf %1 : vector<128x128xbf16> to vector<128x128xf32>
    %4 = arith.subf %2, %3 : vector<128x128xf32>
    %5 = arith.mulf %4, %4 : vector<128x128xf32>
    %cst = arith.constant dense<0.000000e+00> : vector<128xf32>
    %6 = vector.multi_reduction <add>, %5, %cst [1] : vector<128x128xf32> to vector<128xf32>
    %7 = vector.shape_cast %6 : vector<128xf32> to vector<128x1xf32>
    %8 = math.sqrt %7 : vector<128x1xf32>
    %9 = arith.mulf %2, %3 : vector<128x128xf32>
    %cst_3 = arith.constant dense<0.000000e+00> : vector<128xf32>
    %10 = vector.multi_reduction <add>, %9, %cst_3 [1] : vector<128x128xf32> to vector<128xf32>
    %11 = vector.shape_cast %10 : vector<128xf32> to vector<128x1xf32>
    %cst_4 = arith.constant 2.000000e+00 : f32
    %12 = vector.broadcast %cst_4 : f32 to vector<128x1xf32>
    %13 = arith.mulf %12, %8 : vector<128x1xf32>
    %14 = arith.mulf %8, %8 : vector<128x1xf32>
    %15 = arith.mulf %14, %8 : vector<128x1xf32>
    %cst_5 = arith.constant 0.333333343 : f32
    %16 = vector.broadcast %cst_5 : f32 to vector<128x1xf32>
    %17 = arith.mulf %15, %16 : vector<128x1xf32>
    %18 = arith.mulf %11, %8 : vector<128x1xf32>
    %19 = arith.mulf %18, %8 : vector<128x1xf32>
    %20 = arith.addf %17, %19 : vector<128x1xf32>
    %cst_6 = arith.constant 1.800000e+00 : f32
    %21 = vector.broadcast %cst_6 : f32 to vector<128x1xf32>
    %22 = arith.mulf %21, %20 : vector<128x1xf32>
    %23 = arith.subf %13, %22 : vector<128x1xf32>
    %24 = math.exp %23 : vector<128x1xf32>
    %cst_7 = arith.constant 1.000000e+00 : f32
    %25 = vector.broadcast %cst_7 : f32 to vector<128x1xf32>
    %26 = arith.addf %25, %24 : vector<128x1xf32>
    %cst_8 = arith.constant 1.000000e+00 : f32
    %27 = vector.broadcast %cst_8 : f32 to vector<128x1xf32>
    %28 = arith.divf %27, %26 : vector<128x1xf32>
    %cst_9 = arith.constant 1.000000e+00 : f32
    %29 = vector.broadcast %cst_9 : f32 to vector<128x1xf32>
    %30 = arith.addf %28, %29 : vector<128x1xf32>
    %31 = vector.broadcast %30 : vector<128x1xf32> to vector<128x128xf32>
    %32 = arith.mulf %31, %2 : vector<128x128xf32>
    %33 = arith.truncf %32 : vector<128x128xf32> to vector<128x128xbf16>
    %c0_10 = arith.constant 0 : index
    %c0_11 = arith.constant 0 : index
    %34 = vector.load %arg3[%c0_10, %c0_11] : memref<128x128xbf16, #tpu.memory_space<vmem>>, vector<128x128xbf16>
    %cst_12 = arith.constant dense<0.000000e+00> : vector<128x128xf32>
    %35 = tpu.matmul %33, %34, %cst_12 {dimension_numbers = #tpu.dot_dimension_numbers<[1], [0], [0], [1], [0, 0, 1, 1], [], []>} : vector<128x128xbf16>, vector<128x128xbf16>, vector<128x128xf32> -> vector<128x128xf32>
    %c0_13 = arith.constant 0 : index
    %c0_14 = arith.constant 0 : index
    %36 = vector.load %arg4[%c0_13, %c0_14] : memref<128x128xbf16, #tpu.memory_space<vmem>>, vector<128x128xbf16>
    %cst_15 = arith.constant dense<0.000000e+00> : vector<128x128xf32>
    %37 = tpu.matmul %1, %36, %cst_15 {dimension_numbers = #tpu.dot_dimension_numbers<[1], [0], [0], [1], [0, 0, 1, 1], [], []>} : vector<128x128xbf16>, vector<128x128xbf16>, vector<128x128xf32> -> vector<128x128xf32>
    %38 = arith.addf %35, %37 : vector<128x128xf32>
    %c0_16 = arith.constant 0 : index
    %c0_17 = arith.constant 0 : index
    %39 = vector.load %arg5[%c0_16, %c0_17] : memref<1x128xf32, #tpu.memory_space<vmem>>, vector<1x128xf32>
    %40 = vector.broadcast %39 : vector<1x128xf32> to vector<128x128xf32>
    %41 = arith.addf %38, %40 : vector<128x128xf32>
    %cst_18 = arith.constant 0.000000e+00 : f32
    %42 = vector.broadcast %cst_18 : f32 to vector<128x128xf32>
    %43 = arith.cmpf ogt, %41, %42 : vector<128x128xf32>
    %cst_19 = arith.constant 0.000000e+00 : f32
    %44 = vector.broadcast %cst_19 : f32 to vector<128x128xf32>
    %45 = arith.minimumf %41, %44 : vector<128x128xf32>
    %46 = math.exp %45 : vector<128x128xf32>
    %cst_20 = arith.constant 1.000000e+00 : f32
    %47 = vector.broadcast %cst_20 : f32 to vector<128x128xf32>
    %48 = arith.subf %46, %47 : vector<128x128xf32>
    %49 = arith.select %43, %41, %48 : vector<128x128xi1>, vector<128x128xf32>
    %c0_21 = arith.constant 0 : index
    %c0_22 = arith.constant 0 : index
    %50 = vector.load %arg6[%c0_21, %c0_22] : memref<1x128xf32, #tpu.memory_space<vmem>>, vector<1x128xf32>
    %c0_23 = arith.constant 0 : index
    %c0_24 = arith.constant 0 : index
    %51 = vector.load %arg7[%c0_23, %c0_24] : memref<1x128xf32, #tpu.memory_space<vmem>>, vector<1x128xf32>
    %52 = tpu.iota {dimensions = array<i32: 1>} : vector<1x128xi32>
    %c32_i32 = arith.constant 32 : i32
    %53 = vector.broadcast %c32_i32 : i32 to vector<1x128xi32>
    %54 = arith.cmpi slt, %52, %53 : vector<1x128xi32>
    %cst_25 = arith.constant dense<0.000000e+00> : vector<128xf32>
    %55 = vector.multi_reduction <add>, %49, %cst_25 [1] : vector<128x128xf32> to vector<128xf32>
    %56 = vector.shape_cast %55 : vector<128xf32> to vector<128x1xf32>
    %cst_26 = arith.constant 3.125000e-02 : f32
    %57 = vector.broadcast %cst_26 : f32 to vector<128x1xf32>
    %58 = arith.mulf %56, %57 : vector<128x1xf32>
    %59 = vector.broadcast %58 : vector<128x1xf32> to vector<128x128xf32>
    %60 = arith.subf %49, %59 : vector<128x128xf32>
    %cst_27 = arith.constant 0.000000e+00 : f32
    %61 = vector.shape_cast %54 : vector<1x128xi1> to vector<1x128xi1>
    %62 = vector.broadcast %61 : vector<1x128xi1> to vector<128x128xi1>
    %63 = vector.broadcast %cst_27 : f32 to vector<128x128xf32>
    %64 = arith.select %62, %60, %63 : vector<128x128xi1>, vector<128x128xf32>
    %65 = arith.mulf %64, %64 : vector<128x128xf32>
    %cst_28 = arith.constant dense<0.000000e+00> : vector<128xf32>
    %66 = vector.multi_reduction <add>, %65, %cst_28 [1] : vector<128x128xf32> to vector<128xf32>
    %67 = vector.shape_cast %66 : vector<128xf32> to vector<128x1xf32>
    %cst_29 = arith.constant 3.125000e-02 : f32
    %68 = vector.broadcast %cst_29 : f32 to vector<128x1xf32>
    %69 = arith.mulf %67, %68 : vector<128x1xf32>
    %cst_30 = arith.constant 9.99999974E-6 : f32
    %70 = vector.broadcast %cst_30 : f32 to vector<128x1xf32>
    %71 = arith.addf %69, %70 : vector<128x1xf32>
    %72 = math.rsqrt %71 : vector<128x1xf32>
    %73 = vector.broadcast %72 : vector<128x1xf32> to vector<128x128xf32>
    %74 = arith.mulf %64, %73 : vector<128x128xf32>
    %75 = vector.broadcast %50 : vector<1x128xf32> to vector<128x128xf32>
    %76 = arith.mulf %74, %75 : vector<128x128xf32>
    %77 = vector.broadcast %51 : vector<1x128xf32> to vector<128x128xf32>
    %78 = arith.addf %76, %77 : vector<128x128xf32>
    %79 = arith.truncf %78 : vector<128x128xf32> to vector<128x128xbf16>
    %c0_31 = arith.constant 0 : index
    %c0_32 = arith.constant 0 : index
    %80 = vector.load %arg8[%c0_31, %c0_32] : memref<128x128xbf16, #tpu.memory_space<vmem>>, vector<128x128xbf16>
    %cst_33 = arith.constant dense<0.000000e+00> : vector<128x128xf32>
    %81 = tpu.matmul %79, %80, %cst_33 {dimension_numbers = #tpu.dot_dimension_numbers<[1], [0], [0], [1], [0, 0, 1, 1], [], []>} : vector<128x128xbf16>, vector<128x128xbf16>, vector<128x128xf32> -> vector<128x128xf32>
    %c0_34 = arith.constant 0 : index
    %c0_35 = arith.constant 0 : index
    %82 = vector.load %arg9[%c0_34, %c0_35] : memref<1x128xf32, #tpu.memory_space<vmem>>, vector<1x128xf32>
    %83 = vector.broadcast %82 : vector<1x128xf32> to vector<128x128xf32>
    %84 = arith.addf %81, %83 : vector<128x128xf32>
    %cst_36 = arith.constant 0.000000e+00 : f32
    %85 = vector.broadcast %cst_36 : f32 to vector<128x128xf32>
    %86 = arith.cmpf ogt, %84, %85 : vector<128x128xf32>
    %cst_37 = arith.constant 0.000000e+00 : f32
    %87 = vector.broadcast %cst_37 : f32 to vector<128x128xf32>
    %88 = arith.minimumf %84, %87 : vector<128x128xf32>
    %89 = math.exp %88 : vector<128x128xf32>
    %cst_38 = arith.constant 1.000000e+00 : f32
    %90 = vector.broadcast %cst_38 : f32 to vector<128x128xf32>
    %91 = arith.subf %89, %90 : vector<128x128xf32>
    %92 = arith.select %86, %84, %91 : vector<128x128xi1>, vector<128x128xf32>
    %cst_39 = arith.constant 0.999994993 : f32
    %93 = vector.broadcast %cst_39 : f32 to vector<128x128xf32>
    %94 = arith.mulf %92, %93 : vector<128x128xf32>
    %95 = arith.truncf %94 : vector<128x128xf32> to vector<128x128xbf16>
    %c0_40 = arith.constant 0 : index
    %c0_41 = arith.constant 0 : index
    %96 = vector.load %arg10[%c0_40, %c0_41] : memref<128x128xbf16, #tpu.memory_space<vmem>>, vector<128x128xbf16>
    tpu.vector_store %arg10[%c0_40, %c0_41], %95 {strides = array<i32>} : memref<128x128xbf16, #tpu.memory_space<vmem>>, vector<128x128xbf16>,
    return
  }
  func.func @transform_0(%arg0: i32) -> (i32, i32) {
    %c0_i32 = arith.constant 0 : i32
    %c0_i32_0 = arith.constant 0 : i32
    return %arg0, %c0_i32 : i32, i32
  }
  func.func @transform_1(%arg0: i32) -> (i32, i32) {
    %c0_i32 = arith.constant 0 : i32
    %c0_i32_0 = arith.constant 0 : i32
    return %arg0, %c0_i32 : i32, i32
  }
  func.func @transform_2(%arg0: i32) -> (i32, i32) {
    %c0_i32 = arith.constant 0 : i32
    %c0_i32_0 = arith.constant 0 : i32
    %c0_i32_1 = arith.constant 0 : i32
    return %c0_i32, %c0_i32_0 : i32, i32
  }
  func.func @transform_3(%arg0: i32) -> (i32, i32) {
    %c0_i32 = arith.constant 0 : i32
    %c0_i32_0 = arith.constant 0 : i32
    %c0_i32_1 = arith.constant 0 : i32
    return %c0_i32, %c0_i32_0 : i32, i32
  }
  func.func @transform_4(%arg0: i32) -> (i32, i32) {
    %c0_i32 = arith.constant 0 : i32
    %c0_i32_0 = arith.constant 0 : i32
    %c0_i32_1 = arith.constant 0 : i32
    return %c0_i32, %c0_i32_0 : i32, i32
  }
  func.func @transform_5(%arg0: i32) -> (i32, i32) {
    %c0_i32 = arith.constant 0 : i32
    %c0_i32_0 = arith.constant 0 : i32
    %c0_i32_1 = arith.constant 0 : i32
    return %c0_i32, %c0_i32_0 : i32, i32
  }
  func.func @transform_6(%arg0: i32) -> (i32, i32) {
    %c0_i32 = arith.constant 0 : i32
    %c0_i32_0 = arith.constant 0 : i32
    %c0_i32_1 = arith.constant 0 : i32
    return %c0_i32, %c0_i32_0 : i32, i32
  }
  func.func @transform_7(%arg0: i32) -> (i32, i32) {
    %c0_i32 = arith.constant 0 : i32
    %c0_i32_0 = arith.constant 0 : i32
    %c0_i32_1 = arith.constant 0 : i32
    return %c0_i32, %c0_i32_0 : i32, i32
  }
  func.func @transform_8(%arg0: i32) -> (i32, i32) {
    %c0_i32 = arith.constant 0 : i32
    %c0_i32_0 = arith.constant 0 : i32
    %c0_i32_1 = arith.constant 0 : i32
    return %c0_i32, %c0_i32_0 : i32, i32
  }
  func.func @transform_9(%arg0: i32) -> (i32, i32) {
    %c0_i32 = arith.constant 0 : i32
    %c0_i32_0 = arith.constant 0 : i32
    return %arg0, %c0_i32 : i32, i32
  }
}

module attributes {stable_mosaic.version = 11 : i64} {
  func.func @_final_kernel(%arg0: i32, %arg1: memref<8x128xf32, #tpu.memory_space<vmem>>, %arg2: memref<1x128xf32, #tpu.memory_space<vmem>>, %arg3: memref<8x128xf32, #tpu.memory_space<vmem>>) attributes {dimension_semantics = [#tpu.dimension_semantics<parallel>], iteration_bounds = array<i64: 1>, scalar_prefetch = 0 : i64, scratch_operands = 0 : i64, tpu.core_type = #tpu.core_type<tc>, window_params = [{transform_indices = @transform_0, window_bounds = array<i64: 8, 128>}, {pipeline_mode = #tpu.pipeline_mode<synchronous>, transform_indices = @transform_1, window_bounds = array<i64: 1, 128>}, {transform_indices = @transform_2, window_bounds = array<i64: 8, 128>}]} {
    %c0 = arith.constant 0 : index
    %c0_0 = arith.constant 0 : index
    %0 = vector.load %arg1[%c0, %c0_0] : memref<8x128xf32, #tpu.memory_space<vmem>>, vector<8x128xf32>
    %c0_1 = arith.constant 0 : index
    %c0_2 = arith.constant 0 : index
    %1 = vector.load %arg2[%c0_1, %c0_2] : memref<1x128xf32, #tpu.memory_space<vmem>>, vector<1x128xf32>
    %2 = vector.broadcast %1 : vector<1x128xf32> to vector<8x128xf32>
    %3 = arith.addf %0, %2 : vector<8x128xf32>
    %4 = tpu.iota {dimensions = array<i32: 1>} : vector<1x128xi32>
    %c8_i32 = arith.constant 8 : i32
    %5 = vector.broadcast %c8_i32 : i32 to vector<1x128xi32>
    %6 = arith.cmpi slt, %4, %5 : vector<1x128xi32>
    %cst = arith.constant -1.000000e+30 : f32
    %7 = vector.shape_cast %6 : vector<1x128xi1> to vector<1x128xi1>
    %8 = vector.broadcast %7 : vector<1x128xi1> to vector<8x128xi1>
    %9 = vector.broadcast %cst : f32 to vector<8x128xf32>
    %10 = arith.select %8, %3, %9 : vector<8x128xi1>, vector<8x128xf32>
    %cst_3 = arith.constant dense<0xFF800000> : vector<8xf32>
    %11 = vector.multi_reduction <maximumf>, %10, %cst_3 [1] : vector<8x128xf32> to vector<8xf32>
    %12 = vector.shape_cast %11 : vector<8xf32> to vector<8x1xf32>
    %13 = vector.broadcast %12 : vector<8x1xf32> to vector<8x128xf32>
    %14 = arith.subf %10, %13 : vector<8x128xf32>
    %15 = math.exp %14 : vector<8x128xf32>
    %cst_4 = arith.constant dense<0.000000e+00> : vector<8xf32>
    %16 = vector.multi_reduction <add>, %15, %cst_4 [1] : vector<8x128xf32> to vector<8xf32>
    %17 = vector.shape_cast %16 : vector<8xf32> to vector<8x1xf32>
    %18 = math.log %17 : vector<8x1xf32>
    %19 = vector.broadcast %18 : vector<8x1xf32> to vector<8x128xf32>
    %20 = arith.subf %14, %19 : vector<8x128xf32>
    %c0_5 = arith.constant 0 : index
    %c0_6 = arith.constant 0 : index
    %21 = vector.load %arg3[%c0_5, %c0_6] : memref<8x128xf32, #tpu.memory_space<vmem>>, vector<8x128xf32>
    tpu.vector_store %arg3[%c0_5, %c0_6], %20 {strides = array<i32>} : memref<8x128xf32, #tpu.memory_space<vmem>>, vector<8x128xf32>,
    return
  }
  func.func @transform_0(%arg0: i32) -> (i32, i32) {
    %c0_i32 = arith.constant 0 : i32
    %c0_i32_0 = arith.constant 0 : i32
    return %arg0, %c0_i32 : i32, i32
  }
  func.func @transform_1(%arg0: i32) -> (i32, i32) {
    %c0_i32 = arith.constant 0 : i32
    %c0_i32_0 = arith.constant 0 : i32
    %c0_i32_1 = arith.constant 0 : i32
    return %c0_i32, %c0_i32_0 : i32, i32
  }
  func.func @transform_2(%arg0: i32) -> (i32, i32) {
    %c0_i32 = arith.constant 0 : i32
    %c0_i32_0 = arith.constant 0 : i32
    return %arg0, %c0_i32 : i32, i32
  }
}

module attributes {stable_mosaic.version = 11 : i64} {
  func.func @_edge_msg_kernel(%arg0: i32, %arg1: memref<128x128xbf16, #tpu.memory_space<vmem>>, %arg2: memref<128x128xbf16, #tpu.memory_space<vmem>>, %arg3: memref<128x128xbf16, #tpu.memory_space<vmem>>, %arg4: memref<128x128xbf16, #tpu.memory_space<vmem>>, %arg5: memref<1x128xf32, #tpu.memory_space<vmem>>, %arg6: memref<1x128xf32, #tpu.memory_space<vmem>>, %arg7: memref<1x128xf32, #tpu.memory_space<vmem>>, %arg8: memref<128x128xbf16, #tpu.memory_space<vmem>>, %arg9: memref<1x128xf32, #tpu.memory_space<vmem>>, %arg10: memref<128x128xbf16, #tpu.memory_space<vmem>>) attributes {dimension_semantics = [#tpu.dimension_semantics<parallel>], iteration_bounds = array<i64: 1>, scalar_prefetch = 0 : i64, scratch_operands = 0 : i64, tpu.core_type = #tpu.core_type<tc>, window_params = [{transform_indices = @transform_0, window_bounds = array<i64: 128, 128>}, {transform_indices = @transform_1, window_bounds = array<i64: 128, 128>}, {pipeline_mode = #tpu.pipeline_mode<synchronous>, transform_indices = @transform_2, window_bounds = array<i64: 128, 128>}, {pipeline_mode = #tpu.pipeline_mode<synchronous>, transform_indices = @transform_3, window_bounds = array<i64: 128, 128>}, {pipeline_mode = #tpu.pipeline_mode<synchronous>, transform_indices = @transform_4, window_bounds = array<i64: 1, 128>}, {pipeline_mode = #tpu.pipeline_mode<synchronous>, transform_indices = @transform_5, window_bounds = array<i64: 1, 128>}, {pipeline_mode = #tpu.pipeline_mode<synchronous>, transform_indices = @transform_6, window_bounds = array<i64: 1, 128>}, {pipeline_mode = #tpu.pipeline_mode<synchronous>, transform_indices = @transform_7, window_bounds = array<i64: 128, 128>}, {pipeline_mode = #tpu.pipeline_mode<synchronous>, transform_indices = @transform_8, window_bounds = array<i64: 1, 128>}, {transform_indices = @transform_9, window_bounds = array<i64: 128, 128>}]} {
    %c0 = arith.constant 0 : index
    %c0_0 = arith.constant 0 : index
    %0 = vector.load %arg1[%c0, %c0_0] : memref<128x128xbf16, #tpu.memory_space<vmem>>, vector<128x128xbf16>
    %c0_1 = arith.constant 0 : index
    %c0_2 = arith.constant 0 : index
    %1 = vector.load %arg2[%c0_1, %c0_2] : memref<128x128xbf16, #tpu.memory_space<vmem>>, vector<128x128xbf16>
    %2 = arith.extf %0 : vector<128x128xbf16> to vector<128x128xf32>
    %3 = arith.extf %1 : vector<128x128xbf16> to vector<128x128xf32>
    %4 = arith.subf %2, %3 : vector<128x128xf32>
    %5 = arith.mulf %4, %4 : vector<128x128xf32>
    %cst = arith.constant dense<0.000000e+00> : vector<128xf32>
    %6 = vector.multi_reduction <add>, %5, %cst [1] : vector<128x128xf32> to vector<128xf32>
    %7 = vector.shape_cast %6 : vector<128xf32> to vector<128x1xf32>
    %8 = math.sqrt %7 : vector<128x1xf32>
    %9 = arith.mulf %2, %3 : vector<128x128xf32>
    %cst_3 = arith.constant dense<0.000000e+00> : vector<128xf32>
    %10 = vector.multi_reduction <add>, %9, %cst_3 [1] : vector<128x128xf32> to vector<128xf32>
    %11 = vector.shape_cast %10 : vector<128xf32> to vector<128x1xf32>
    %cst_4 = arith.constant 2.000000e+00 : f32
    %12 = vector.broadcast %cst_4 : f32 to vector<128x1xf32>
    %13 = arith.mulf %12, %8 : vector<128x1xf32>
    %14 = arith.mulf %8, %8 : vector<128x1xf32>
    %15 = arith.mulf %14, %8 : vector<128x1xf32>
    %cst_5 = arith.constant 0.333333343 : f32
    %16 = vector.broadcast %cst_5 : f32 to vector<128x1xf32>
    %17 = arith.mulf %15, %16 : vector<128x1xf32>
    %18 = arith.mulf %11, %8 : vector<128x1xf32>
    %19 = arith.mulf %18, %8 : vector<128x1xf32>
    %20 = arith.addf %17, %19 : vector<128x1xf32>
    %cst_6 = arith.constant -1.000000e+00 : f32
    %21 = vector.broadcast %cst_6 : f32 to vector<128x1xf32>
    %22 = arith.mulf %21, %20 : vector<128x1xf32>
    %23 = arith.subf %13, %22 : vector<128x1xf32>
    %24 = math.exp %23 : vector<128x1xf32>
    %cst_7 = arith.constant 1.000000e+00 : f32
    %25 = vector.broadcast %cst_7 : f32 to vector<128x1xf32>
    %26 = arith.addf %25, %24 : vector<128x1xf32>
    %cst_8 = arith.constant 1.000000e+00 : f32
    %27 = vector.broadcast %cst_8 : f32 to vector<128x1xf32>
    %28 = arith.divf %27, %26 : vector<128x1xf32>
    %cst_9 = arith.constant 1.000000e+00 : f32
    %29 = vector.broadcast %cst_9 : f32 to vector<128x1xf32>
    %30 = arith.addf %28, %29 : vector<128x1xf32>
    %31 = vector.broadcast %30 : vector<128x1xf32> to vector<128x128xf32>
    %32 = arith.mulf %31, %2 : vector<128x128xf32>
    %33 = arith.truncf %32 : vector<128x128xf32> to vector<128x128xbf16>
    %c0_10 = arith.constant 0 : index
    %c0_11 = arith.constant 0 : index
    %34 = vector.load %arg3[%c0_10, %c0_11] : memref<128x128xbf16, #tpu.memory_space<vmem>>, vector<128x128xbf16>
    %cst_12 = arith.constant dense<0.000000e+00> : vector<128x128xf32>
    %35 = tpu.matmul %33, %34, %cst_12 {dimension_numbers = #tpu.dot_dimension_numbers<[1], [0], [0], [1], [0, 0, 1, 1], [], []>} : vector<128x128xbf16>, vector<128x128xbf16>, vector<128x128xf32> -> vector<128x128xf32>
    %c0_13 = arith.constant 0 : index
    %c0_14 = arith.constant 0 : index
    %36 = vector.load %arg4[%c0_13, %c0_14] : memref<128x128xbf16, #tpu.memory_space<vmem>>, vector<128x128xbf16>
    %cst_15 = arith.constant dense<0.000000e+00> : vector<128x128xf32>
    %37 = tpu.matmul %1, %36, %cst_15 {dimension_numbers = #tpu.dot_dimension_numbers<[1], [0], [0], [1], [0, 0, 1, 1], [], []>} : vector<128x128xbf16>, vector<128x128xbf16>, vector<128x128xf32> -> vector<128x128xf32>
    %38 = arith.addf %35, %37 : vector<128x128xf32>
    %c0_16 = arith.constant 0 : index
    %c0_17 = arith.constant 0 : index
    %39 = vector.load %arg5[%c0_16, %c0_17] : memref<1x128xf32, #tpu.memory_space<vmem>>, vector<1x128xf32>
    %40 = vector.broadcast %39 : vector<1x128xf32> to vector<128x128xf32>
    %41 = arith.addf %38, %40 : vector<128x128xf32>
    %cst_18 = arith.constant 0.000000e+00 : f32
    %42 = vector.broadcast %cst_18 : f32 to vector<128x128xf32>
    %43 = arith.cmpf ogt, %41, %42 : vector<128x128xf32>
    %cst_19 = arith.constant 0.000000e+00 : f32
    %44 = vector.broadcast %cst_19 : f32 to vector<128x128xf32>
    %45 = arith.minimumf %41, %44 : vector<128x128xf32>
    %46 = math.exp %45 : vector<128x128xf32>
    %cst_20 = arith.constant 1.000000e+00 : f32
    %47 = vector.broadcast %cst_20 : f32 to vector<128x128xf32>
    %48 = arith.subf %46, %47 : vector<128x128xf32>
    %49 = arith.select %43, %41, %48 : vector<128x128xi1>, vector<128x128xf32>
    %c0_21 = arith.constant 0 : index
    %c0_22 = arith.constant 0 : index
    %50 = vector.load %arg6[%c0_21, %c0_22] : memref<1x128xf32, #tpu.memory_space<vmem>>, vector<1x128xf32>
    %c0_23 = arith.constant 0 : index
    %c0_24 = arith.constant 0 : index
    %51 = vector.load %arg7[%c0_23, %c0_24] : memref<1x128xf32, #tpu.memory_space<vmem>>, vector<1x128xf32>
    %52 = tpu.iota {dimensions = array<i32: 1>} : vector<1x128xi32>
    %c32_i32 = arith.constant 32 : i32
    %53 = vector.broadcast %c32_i32 : i32 to vector<1x128xi32>
    %54 = arith.cmpi slt, %52, %53 : vector<1x128xi32>
    %cst_25 = arith.constant dense<0.000000e+00> : vector<128xf32>
    %55 = vector.multi_reduction <add>, %49, %cst_25 [1] : vector<128x128xf32> to vector<128xf32>
    %56 = vector.shape_cast %55 : vector<128xf32> to vector<128x1xf32>
    %cst_26 = arith.constant 3.125000e-02 : f32
    %57 = vector.broadcast %cst_26 : f32 to vector<128x1xf32>
    %58 = arith.mulf %56, %57 : vector<128x1xf32>
    %59 = vector.broadcast %58 : vector<128x1xf32> to vector<128x128xf32>
    %60 = arith.subf %49, %59 : vector<128x128xf32>
    %cst_27 = arith.constant 0.000000e+00 : f32
    %61 = vector.shape_cast %54 : vector<1x128xi1> to vector<1x128xi1>
    %62 = vector.broadcast %61 : vector<1x128xi1> to vector<128x128xi1>
    %63 = vector.broadcast %cst_27 : f32 to vector<128x128xf32>
    %64 = arith.select %62, %60, %63 : vector<128x128xi1>, vector<128x128xf32>
    %65 = arith.mulf %64, %64 : vector<128x128xf32>
    %cst_28 = arith.constant dense<0.000000e+00> : vector<128xf32>
    %66 = vector.multi_reduction <add>, %65, %cst_28 [1] : vector<128x128xf32> to vector<128xf32>
    %67 = vector.shape_cast %66 : vector<128xf32> to vector<128x1xf32>
    %cst_29 = arith.constant 3.125000e-02 : f32
    %68 = vector.broadcast %cst_29 : f32 to vector<128x1xf32>
    %69 = arith.mulf %67, %68 : vector<128x1xf32>
    %cst_30 = arith.constant 9.99999974E-6 : f32
    %70 = vector.broadcast %cst_30 : f32 to vector<128x1xf32>
    %71 = arith.addf %69, %70 : vector<128x1xf32>
    %72 = math.rsqrt %71 : vector<128x1xf32>
    %73 = vector.broadcast %72 : vector<128x1xf32> to vector<128x128xf32>
    %74 = arith.mulf %64, %73 : vector<128x128xf32>
    %75 = vector.broadcast %50 : vector<1x128xf32> to vector<128x128xf32>
    %76 = arith.mulf %74, %75 : vector<128x128xf32>
    %77 = vector.broadcast %51 : vector<1x128xf32> to vector<128x128xf32>
    %78 = arith.addf %76, %77 : vector<128x128xf32>
    %79 = arith.truncf %78 : vector<128x128xf32> to vector<128x128xbf16>
    %c0_31 = arith.constant 0 : index
    %c0_32 = arith.constant 0 : index
    %80 = vector.load %arg8[%c0_31, %c0_32] : memref<128x128xbf16, #tpu.memory_space<vmem>>, vector<128x128xbf16>
    %cst_33 = arith.constant dense<0.000000e+00> : vector<128x128xf32>
    %81 = tpu.matmul %79, %80, %cst_33 {dimension_numbers = #tpu.dot_dimension_numbers<[1], [0], [0], [1], [0, 0, 1, 1], [], []>} : vector<128x128xbf16>, vector<128x128xbf16>, vector<128x128xf32> -> vector<128x128xf32>
    %c0_34 = arith.constant 0 : index
    %c0_35 = arith.constant 0 : index
    %82 = vector.load %arg9[%c0_34, %c0_35] : memref<1x128xf32, #tpu.memory_space<vmem>>, vector<1x128xf32>
    %83 = vector.broadcast %82 : vector<1x128xf32> to vector<128x128xf32>
    %84 = arith.addf %81, %83 : vector<128x128xf32>
    %cst_36 = arith.constant 0.000000e+00 : f32
    %85 = vector.broadcast %cst_36 : f32 to vector<128x128xf32>
    %86 = arith.cmpf ogt, %84, %85 : vector<128x128xf32>
    %cst_37 = arith.constant 0.000000e+00 : f32
    %87 = vector.broadcast %cst_37 : f32 to vector<128x128xf32>
    %88 = arith.minimumf %84, %87 : vector<128x128xf32>
    %89 = math.exp %88 : vector<128x128xf32>
    %cst_38 = arith.constant 1.000000e+00 : f32
    %90 = vector.broadcast %cst_38 : f32 to vector<128x128xf32>
    %91 = arith.subf %89, %90 : vector<128x128xf32>
    %92 = arith.select %86, %84, %91 : vector<128x128xi1>, vector<128x128xf32>
    %cst_39 = arith.constant 0.999994993 : f32
    %93 = vector.broadcast %cst_39 : f32 to vector<128x128xf32>
    %94 = arith.mulf %92, %93 : vector<128x128xf32>
    %95 = arith.truncf %94 : vector<128x128xf32> to vector<128x128xbf16>
    %c0_40 = arith.constant 0 : index
    %c0_41 = arith.constant 0 : index
    %96 = vector.load %arg10[%c0_40, %c0_41] : memref<128x128xbf16, #tpu.memory_space<vmem>>, vector<128x128xbf16>
    tpu.vector_store %arg10[%c0_40, %c0_41], %95 {strides = array<i32>} : memref<128x128xbf16, #tpu.memory_space<vmem>>, vector<128x128xbf16>,
    return
  }
  func.func @transform_0(%arg0: i32) -> (i32, i32) {
    %c0_i32 = arith.constant 0 : i32
    %c0_i32_0 = arith.constant 0 : i32
    return %arg0, %c0_i32 : i32, i32
  }
  func.func @transform_1(%arg0: i32) -> (i32, i32) {
    %c0_i32 = arith.constant 0 : i32
    %c0_i32_0 = arith.constant 0 : i32
    return %arg0, %c0_i32 : i32, i32
  }
  func.func @transform_2(%arg0: i32) -> (i32, i32) {
    %c0_i32 = arith.constant 0 : i32
    %c0_i32_0 = arith.constant 0 : i32
    %c0_i32_1 = arith.constant 0 : i32
    return %c0_i32, %c0_i32_0 : i32, i32
  }
  func.func @transform_3(%arg0: i32) -> (i32, i32) {
    %c0_i32 = arith.constant 0 : i32
    %c0_i32_0 = arith.constant 0 : i32
    %c0_i32_1 = arith.constant 0 : i32
    return %c0_i32, %c0_i32_0 : i32, i32
  }
  func.func @transform_4(%arg0: i32) -> (i32, i32) {
    %c0_i32 = arith.constant 0 : i32
    %c0_i32_0 = arith.constant 0 : i32
    %c0_i32_1 = arith.constant 0 : i32
    return %c0_i32, %c0_i32_0 : i32, i32
  }
  func.func @transform_5(%arg0: i32) -> (i32, i32) {
    %c0_i32 = arith.constant 0 : i32
    %c0_i32_0 = arith.constant 0 : i32
    %c0_i32_1 = arith.constant 0 : i32
    return %c0_i32, %c0_i32_0 : i32, i32
  }
  func.func @transform_6(%arg0: i32) -> (i32, i32) {
    %c0_i32 = arith.constant 0 : i32
    %c0_i32_0 = arith.constant 0 : i32
    %c0_i32_1 = arith.constant 0 : i32
    return %c0_i32, %c0_i32_0 : i32, i32
  }
  func.func @transform_7(%arg0: i32) -> (i32, i32) {
    %c0_i32 = arith.constant 0 : i32
    %c0_i32_0 = arith.constant 0 : i32
    %c0_i32_1 = arith.constant 0 : i32
    return %c0_i32, %c0_i32_0 : i32, i32
  }
  func.func @transform_8(%arg0: i32) -> (i32, i32) {
    %c0_i32 = arith.constant 0 : i32
    %c0_i32_0 = arith.constant 0 : i32
    %c0_i32_1 = arith.constant 0 : i32
    return %c0_i32, %c0_i32_0 : i32, i32
  }
  func.func @transform_9(%arg0: i32) -> (i32, i32) {
    %c0_i32 = arith.constant 0 : i32
    %c0_i32_0 = arith.constant 0 : i32
    return %arg0, %c0_i32 : i32, i32
  }
}

module attributes {stable_mosaic.version = 11 : i64} {
  func.func @_edge_msg_kernel(%arg0: i32, %arg1: memref<128x128xbf16, #tpu.memory_space<vmem>>, %arg2: memref<128x128xbf16, #tpu.memory_space<vmem>>, %arg3: memref<128x128xbf16, #tpu.memory_space<vmem>>, %arg4: memref<128x128xbf16, #tpu.memory_space<vmem>>, %arg5: memref<1x128xf32, #tpu.memory_space<vmem>>, %arg6: memref<1x128xf32, #tpu.memory_space<vmem>>, %arg7: memref<1x128xf32, #tpu.memory_space<vmem>>, %arg8: memref<128x128xbf16, #tpu.memory_space<vmem>>, %arg9: memref<1x128xf32, #tpu.memory_space<vmem>>, %arg10: memref<128x128xbf16, #tpu.memory_space<vmem>>) attributes {dimension_semantics = [#tpu.dimension_semantics<parallel>], iteration_bounds = array<i64: 1>, scalar_prefetch = 0 : i64, scratch_operands = 0 : i64, tpu.core_type = #tpu.core_type<tc>, window_params = [{transform_indices = @transform_0, window_bounds = array<i64: 128, 128>}, {transform_indices = @transform_1, window_bounds = array<i64: 128, 128>}, {pipeline_mode = #tpu.pipeline_mode<synchronous>, transform_indices = @transform_2, window_bounds = array<i64: 128, 128>}, {pipeline_mode = #tpu.pipeline_mode<synchronous>, transform_indices = @transform_3, window_bounds = array<i64: 128, 128>}, {pipeline_mode = #tpu.pipeline_mode<synchronous>, transform_indices = @transform_4, window_bounds = array<i64: 1, 128>}, {pipeline_mode = #tpu.pipeline_mode<synchronous>, transform_indices = @transform_5, window_bounds = array<i64: 1, 128>}, {pipeline_mode = #tpu.pipeline_mode<synchronous>, transform_indices = @transform_6, window_bounds = array<i64: 1, 128>}, {pipeline_mode = #tpu.pipeline_mode<synchronous>, transform_indices = @transform_7, window_bounds = array<i64: 128, 128>}, {pipeline_mode = #tpu.pipeline_mode<synchronous>, transform_indices = @transform_8, window_bounds = array<i64: 1, 128>}, {transform_indices = @transform_9, window_bounds = array<i64: 128, 128>}]} {
    %c0 = arith.constant 0 : index
    %c0_0 = arith.constant 0 : index
    %0 = vector.load %arg1[%c0, %c0_0] : memref<128x128xbf16, #tpu.memory_space<vmem>>, vector<128x128xbf16>
    %c0_1 = arith.constant 0 : index
    %c0_2 = arith.constant 0 : index
    %1 = vector.load %arg2[%c0_1, %c0_2] : memref<128x128xbf16, #tpu.memory_space<vmem>>, vector<128x128xbf16>
    %2 = arith.extf %0 : vector<128x128xbf16> to vector<128x128xf32>
    %3 = arith.extf %1 : vector<128x128xbf16> to vector<128x128xf32>
    %4 = arith.subf %2, %3 : vector<128x128xf32>
    %5 = arith.mulf %4, %4 : vector<128x128xf32>
    %cst = arith.constant dense<0.000000e+00> : vector<128xf32>
    %6 = vector.multi_reduction <add>, %5, %cst [1] : vector<128x128xf32> to vector<128xf32>
    %7 = vector.shape_cast %6 : vector<128xf32> to vector<128x1xf32>
    %8 = math.sqrt %7 : vector<128x1xf32>
    %9 = arith.mulf %2, %3 : vector<128x128xf32>
    %cst_3 = arith.constant dense<0.000000e+00> : vector<128xf32>
    %10 = vector.multi_reduction <add>, %9, %cst_3 [1] : vector<128x128xf32> to vector<128xf32>
    %11 = vector.shape_cast %10 : vector<128xf32> to vector<128x1xf32>
    %cst_4 = arith.constant 2.000000e+00 : f32
    %12 = vector.broadcast %cst_4 : f32 to vector<128x1xf32>
    %13 = arith.mulf %12, %8 : vector<128x1xf32>
    %14 = arith.mulf %8, %8 : vector<128x1xf32>
    %15 = arith.mulf %14, %8 : vector<128x1xf32>
    %cst_5 = arith.constant 0.333333343 : f32
    %16 = vector.broadcast %cst_5 : f32 to vector<128x1xf32>
    %17 = arith.mulf %15, %16 : vector<128x1xf32>
    %18 = arith.mulf %11, %8 : vector<128x1xf32>
    %19 = arith.mulf %18, %8 : vector<128x1xf32>
    %20 = arith.addf %17, %19 : vector<128x1xf32>
    %cst_6 = arith.constant -2.000000e+00 : f32
    %21 = vector.broadcast %cst_6 : f32 to vector<128x1xf32>
    %22 = arith.mulf %21, %20 : vector<128x1xf32>
    %23 = arith.subf %13, %22 : vector<128x1xf32>
    %24 = math.exp %23 : vector<128x1xf32>
    %cst_7 = arith.constant 1.000000e+00 : f32
    %25 = vector.broadcast %cst_7 : f32 to vector<128x1xf32>
    %26 = arith.addf %25, %24 : vector<128x1xf32>
    %cst_8 = arith.constant 1.000000e+00 : f32
    %27 = vector.broadcast %cst_8 : f32 to vector<128x1xf32>
    %28 = arith.divf %27, %26 : vector<128x1xf32>
    %cst_9 = arith.constant 1.000000e+00 : f32
    %29 = vector.broadcast %cst_9 : f32 to vector<128x1xf32>
    %30 = arith.addf %28, %29 : vector<128x1xf32>
    %31 = vector.broadcast %30 : vector<128x1xf32> to vector<128x128xf32>
    %32 = arith.mulf %31, %2 : vector<128x128xf32>
    %33 = arith.truncf %32 : vector<128x128xf32> to vector<128x128xbf16>
    %c0_10 = arith.constant 0 : index
    %c0_11 = arith.constant 0 : index
    %34 = vector.load %arg3[%c0_10, %c0_11] : memref<128x128xbf16, #tpu.memory_space<vmem>>, vector<128x128xbf16>
    %cst_12 = arith.constant dense<0.000000e+00> : vector<128x128xf32>
    %35 = tpu.matmul %33, %34, %cst_12 {dimension_numbers = #tpu.dot_dimension_numbers<[1], [0], [0], [1], [0, 0, 1, 1], [], []>} : vector<128x128xbf16>, vector<128x128xbf16>, vector<128x128xf32> -> vector<128x128xf32>
    %c0_13 = arith.constant 0 : index
    %c0_14 = arith.constant 0 : index
    %36 = vector.load %arg4[%c0_13, %c0_14] : memref<128x128xbf16, #tpu.memory_space<vmem>>, vector<128x128xbf16>
    %cst_15 = arith.constant dense<0.000000e+00> : vector<128x128xf32>
    %37 = tpu.matmul %1, %36, %cst_15 {dimension_numbers = #tpu.dot_dimension_numbers<[1], [0], [0], [1], [0, 0, 1, 1], [], []>} : vector<128x128xbf16>, vector<128x128xbf16>, vector<128x128xf32> -> vector<128x128xf32>
    %38 = arith.addf %35, %37 : vector<128x128xf32>
    %c0_16 = arith.constant 0 : index
    %c0_17 = arith.constant 0 : index
    %39 = vector.load %arg5[%c0_16, %c0_17] : memref<1x128xf32, #tpu.memory_space<vmem>>, vector<1x128xf32>
    %40 = vector.broadcast %39 : vector<1x128xf32> to vector<128x128xf32>
    %41 = arith.addf %38, %40 : vector<128x128xf32>
    %cst_18 = arith.constant 0.000000e+00 : f32
    %42 = vector.broadcast %cst_18 : f32 to vector<128x128xf32>
    %43 = arith.cmpf ogt, %41, %42 : vector<128x128xf32>
    %cst_19 = arith.constant 0.000000e+00 : f32
    %44 = vector.broadcast %cst_19 : f32 to vector<128x128xf32>
    %45 = arith.minimumf %41, %44 : vector<128x128xf32>
    %46 = math.exp %45 : vector<128x128xf32>
    %cst_20 = arith.constant 1.000000e+00 : f32
    %47 = vector.broadcast %cst_20 : f32 to vector<128x128xf32>
    %48 = arith.subf %46, %47 : vector<128x128xf32>
    %49 = arith.select %43, %41, %48 : vector<128x128xi1>, vector<128x128xf32>
    %c0_21 = arith.constant 0 : index
    %c0_22 = arith.constant 0 : index
    %50 = vector.load %arg6[%c0_21, %c0_22] : memref<1x128xf32, #tpu.memory_space<vmem>>, vector<1x128xf32>
    %c0_23 = arith.constant 0 : index
    %c0_24 = arith.constant 0 : index
    %51 = vector.load %arg7[%c0_23, %c0_24] : memref<1x128xf32, #tpu.memory_space<vmem>>, vector<1x128xf32>
    %52 = tpu.iota {dimensions = array<i32: 1>} : vector<1x128xi32>
    %c32_i32 = arith.constant 32 : i32
    %53 = vector.broadcast %c32_i32 : i32 to vector<1x128xi32>
    %54 = arith.cmpi slt, %52, %53 : vector<1x128xi32>
    %cst_25 = arith.constant dense<0.000000e+00> : vector<128xf32>
    %55 = vector.multi_reduction <add>, %49, %cst_25 [1] : vector<128x128xf32> to vector<128xf32>
    %56 = vector.shape_cast %55 : vector<128xf32> to vector<128x1xf32>
    %cst_26 = arith.constant 3.125000e-02 : f32
    %57 = vector.broadcast %cst_26 : f32 to vector<128x1xf32>
    %58 = arith.mulf %56, %57 : vector<128x1xf32>
    %59 = vector.broadcast %58 : vector<128x1xf32> to vector<128x128xf32>
    %60 = arith.subf %49, %59 : vector<128x128xf32>
    %cst_27 = arith.constant 0.000000e+00 : f32
    %61 = vector.shape_cast %54 : vector<1x128xi1> to vector<1x128xi1>
    %62 = vector.broadcast %61 : vector<1x128xi1> to vector<128x128xi1>
    %63 = vector.broadcast %cst_27 : f32 to vector<128x128xf32>
    %64 = arith.select %62, %60, %63 : vector<128x128xi1>, vector<128x128xf32>
    %65 = arith.mulf %64, %64 : vector<128x128xf32>
    %cst_28 = arith.constant dense<0.000000e+00> : vector<128xf32>
    %66 = vector.multi_reduction <add>, %65, %cst_28 [1] : vector<128x128xf32> to vector<128xf32>
    %67 = vector.shape_cast %66 : vector<128xf32> to vector<128x1xf32>
    %cst_29 = arith.constant 3.125000e-02 : f32
    %68 = vector.broadcast %cst_29 : f32 to vector<128x1xf32>
    %69 = arith.mulf %67, %68 : vector<128x1xf32>
    %cst_30 = arith.constant 9.99999974E-6 : f32
    %70 = vector.broadcast %cst_30 : f32 to vector<128x1xf32>
    %71 = arith.addf %69, %70 : vector<128x1xf32>
    %72 = math.rsqrt %71 : vector<128x1xf32>
    %73 = vector.broadcast %72 : vector<128x1xf32> to vector<128x128xf32>
    %74 = arith.mulf %64, %73 : vector<128x128xf32>
    %75 = vector.broadcast %50 : vector<1x128xf32> to vector<128x128xf32>
    %76 = arith.mulf %74, %75 : vector<128x128xf32>
    %77 = vector.broadcast %51 : vector<1x128xf32> to vector<128x128xf32>
    %78 = arith.addf %76, %77 : vector<128x128xf32>
    %79 = arith.truncf %78 : vector<128x128xf32> to vector<128x128xbf16>
    %c0_31 = arith.constant 0 : index
    %c0_32 = arith.constant 0 : index
    %80 = vector.load %arg8[%c0_31, %c0_32] : memref<128x128xbf16, #tpu.memory_space<vmem>>, vector<128x128xbf16>
    %cst_33 = arith.constant dense<0.000000e+00> : vector<128x128xf32>
    %81 = tpu.matmul %79, %80, %cst_33 {dimension_numbers = #tpu.dot_dimension_numbers<[1], [0], [0], [1], [0, 0, 1, 1], [], []>} : vector<128x128xbf16>, vector<128x128xbf16>, vector<128x128xf32> -> vector<128x128xf32>
    %c0_34 = arith.constant 0 : index
    %c0_35 = arith.constant 0 : index
    %82 = vector.load %arg9[%c0_34, %c0_35] : memref<1x128xf32, #tpu.memory_space<vmem>>, vector<1x128xf32>
    %83 = vector.broadcast %82 : vector<1x128xf32> to vector<128x128xf32>
    %84 = arith.addf %81, %83 : vector<128x128xf32>
    %cst_36 = arith.constant 0.000000e+00 : f32
    %85 = vector.broadcast %cst_36 : f32 to vector<128x128xf32>
    %86 = arith.cmpf ogt, %84, %85 : vector<128x128xf32>
    %cst_37 = arith.constant 0.000000e+00 : f32
    %87 = vector.broadcast %cst_37 : f32 to vector<128x128xf32>
    %88 = arith.minimumf %84, %87 : vector<128x128xf32>
    %89 = math.exp %88 : vector<128x128xf32>
    %cst_38 = arith.constant 1.000000e+00 : f32
    %90 = vector.broadcast %cst_38 : f32 to vector<128x128xf32>
    %91 = arith.subf %89, %90 : vector<128x128xf32>
    %92 = arith.select %86, %84, %91 : vector<128x128xi1>, vector<128x128xf32>
    %cst_39 = arith.constant 0.999994993 : f32
    %93 = vector.broadcast %cst_39 : f32 to vector<128x128xf32>
    %94 = arith.mulf %92, %93 : vector<128x128xf32>
    %95 = arith.truncf %94 : vector<128x128xf32> to vector<128x128xbf16>
    %c0_40 = arith.constant 0 : index
    %c0_41 = arith.constant 0 : index
    %96 = vector.load %arg10[%c0_40, %c0_41] : memref<128x128xbf16, #tpu.memory_space<vmem>>, vector<128x128xbf16>
    tpu.vector_store %arg10[%c0_40, %c0_41], %95 {strides = array<i32>} : memref<128x128xbf16, #tpu.memory_space<vmem>>, vector<128x128xbf16>,
    return
  }
  func.func @transform_0(%arg0: i32) -> (i32, i32) {
    %c0_i32 = arith.constant 0 : i32
    %c0_i32_0 = arith.constant 0 : i32
    return %arg0, %c0_i32 : i32, i32
  }
  func.func @transform_1(%arg0: i32) -> (i32, i32) {
    %c0_i32 = arith.constant 0 : i32
    %c0_i32_0 = arith.constant 0 : i32
    return %arg0, %c0_i32 : i32, i32
  }
  func.func @transform_2(%arg0: i32) -> (i32, i32) {
    %c0_i32 = arith.constant 0 : i32
    %c0_i32_0 = arith.constant 0 : i32
    %c0_i32_1 = arith.constant 0 : i32
    return %c0_i32, %c0_i32_0 : i32, i32
  }
  func.func @transform_3(%arg0: i32) -> (i32, i32) {
    %c0_i32 = arith.constant 0 : i32
    %c0_i32_0 = arith.constant 0 : i32
    %c0_i32_1 = arith.constant 0 : i32
    return %c0_i32, %c0_i32_0 : i32, i32
  }
  func.func @transform_4(%arg0: i32) -> (i32, i32) {
    %c0_i32 = arith.constant 0 : i32
    %c0_i32_0 = arith.constant 0 : i32
    %c0_i32_1 = arith.constant 0 : i32
    return %c0_i32, %c0_i32_0 : i32, i32
  }
  func.func @transform_5(%arg0: i32) -> (i32, i32) {
    %c0_i32 = arith.constant 0 : i32
    %c0_i32_0 = arith.constant 0 : i32
    %c0_i32_1 = arith.constant 0 : i32
    return %c0_i32, %c0_i32_0 : i32, i32
  }
  func.func @transform_6(%arg0: i32) -> (i32, i32) {
    %c0_i32 = arith.constant 0 : i32
    %c0_i32_0 = arith.constant 0 : i32
    %c0_i32_1 = arith.constant 0 : i32
    return %c0_i32, %c0_i32_0 : i32, i32
  }
  func.func @transform_7(%arg0: i32) -> (i32, i32) {
    %c0_i32 = arith.constant 0 : i32
    %c0_i32_0 = arith.constant 0 : i32
    %c0_i32_1 = arith.constant 0 : i32
    return %c0_i32, %c0_i32_0 : i32, i32
  }
  func.func @transform_8(%arg0: i32) -> (i32, i32) {
    %c0_i32 = arith.constant 0 : i32
    %c0_i32_0 = arith.constant 0 : i32
    %c0_i32_1 = arith.constant 0 : i32
    return %c0_i32, %c0_i32_0 : i32, i32
  }
  func.func @transform_9(%arg0: i32) -> (i32, i32) {
    %c0_i32 = arith.constant 0 : i32
    %c0_i32_0 = arith.constant 0 : i32
    return %arg0, %c0_i32 : i32, i32
  }
}

module attributes {stable_mosaic.version = 11 : i64} {
  func.func @_edge_msg_kernel(%arg0: i32, %arg1: memref<128x128xbf16, #tpu.memory_space<vmem>>, %arg2: memref<128x128xbf16, #tpu.memory_space<vmem>>, %arg3: memref<128x128xbf16, #tpu.memory_space<vmem>>, %arg4: memref<128x128xbf16, #tpu.memory_space<vmem>>, %arg5: memref<1x128xf32, #tpu.memory_space<vmem>>, %arg6: memref<1x128xf32, #tpu.memory_space<vmem>>, %arg7: memref<1x128xf32, #tpu.memory_space<vmem>>, %arg8: memref<128x128xbf16, #tpu.memory_space<vmem>>, %arg9: memref<1x128xf32, #tpu.memory_space<vmem>>, %arg10: memref<128x128xbf16, #tpu.memory_space<vmem>>) attributes {dimension_semantics = [#tpu.dimension_semantics<parallel>], iteration_bounds = array<i64: 1>, scalar_prefetch = 0 : i64, scratch_operands = 0 : i64, tpu.core_type = #tpu.core_type<tc>, window_params = [{transform_indices = @transform_0, window_bounds = array<i64: 128, 128>}, {transform_indices = @transform_1, window_bounds = array<i64: 128, 128>}, {pipeline_mode = #tpu.pipeline_mode<synchronous>, transform_indices = @transform_2, window_bounds = array<i64: 128, 128>}, {pipeline_mode = #tpu.pipeline_mode<synchronous>, transform_indices = @transform_3, window_bounds = array<i64: 128, 128>}, {pipeline_mode = #tpu.pipeline_mode<synchronous>, transform_indices = @transform_4, window_bounds = array<i64: 1, 128>}, {pipeline_mode = #tpu.pipeline_mode<synchronous>, transform_indices = @transform_5, window_bounds = array<i64: 1, 128>}, {pipeline_mode = #tpu.pipeline_mode<synchronous>, transform_indices = @transform_6, window_bounds = array<i64: 1, 128>}, {pipeline_mode = #tpu.pipeline_mode<synchronous>, transform_indices = @transform_7, window_bounds = array<i64: 128, 128>}, {pipeline_mode = #tpu.pipeline_mode<synchronous>, transform_indices = @transform_8, window_bounds = array<i64: 1, 128>}, {transform_indices = @transform_9, window_bounds = array<i64: 128, 128>}]} {
    %c0 = arith.constant 0 : index
    %c0_0 = arith.constant 0 : index
    %0 = vector.load %arg1[%c0, %c0_0] : memref<128x128xbf16, #tpu.memory_space<vmem>>, vector<128x128xbf16>
    %c0_1 = arith.constant 0 : index
    %c0_2 = arith.constant 0 : index
    %1 = vector.load %arg2[%c0_1, %c0_2] : memref<128x128xbf16, #tpu.memory_space<vmem>>, vector<128x128xbf16>
    %2 = arith.extf %0 : vector<128x128xbf16> to vector<128x128xf32>
    %3 = arith.extf %1 : vector<128x128xbf16> to vector<128x128xf32>
    %4 = arith.subf %2, %3 : vector<128x128xf32>
    %5 = arith.mulf %4, %4 : vector<128x128xf32>
    %cst = arith.constant dense<0.000000e+00> : vector<128xf32>
    %6 = vector.multi_reduction <add>, %5, %cst [1] : vector<128x128xf32> to vector<128xf32>
    %7 = vector.shape_cast %6 : vector<128xf32> to vector<128x1xf32>
    %8 = math.sqrt %7 : vector<128x1xf32>
    %9 = math.exp %8 : vector<128x1xf32>
    %cst_3 = arith.constant 1.000000e+00 : f32
    %10 = vector.broadcast %cst_3 : f32 to vector<128x1xf32>
    %11 = arith.addf %10, %9 : vector<128x1xf32>
    %cst_4 = arith.constant 1.000000e+00 : f32
    %12 = vector.broadcast %cst_4 : f32 to vector<128x1xf32>
    %13 = arith.divf %12, %11 : vector<128x1xf32>
    %cst_5 = arith.constant 1.000000e+00 : f32
    %14 = vector.broadcast %cst_5 : f32 to vector<128x1xf32>
    %15 = arith.addf %13, %14 : vector<128x1xf32>
    %16 = vector.broadcast %15 : vector<128x1xf32> to vector<128x128xf32>
    %17 = arith.mulf %16, %2 : vector<128x128xf32>
    %18 = arith.truncf %17 : vector<128x128xf32> to vector<128x128xbf16>
    %c0_6 = arith.constant 0 : index
    %c0_7 = arith.constant 0 : index
    %19 = vector.load %arg3[%c0_6, %c0_7] : memref<128x128xbf16, #tpu.memory_space<vmem>>, vector<128x128xbf16>
    %cst_8 = arith.constant dense<0.000000e+00> : vector<128x128xf32>
    %20 = tpu.matmul %18, %19, %cst_8 {dimension_numbers = #tpu.dot_dimension_numbers<[1], [0], [0], [1], [0, 0, 1, 1], [], []>} : vector<128x128xbf16>, vector<128x128xbf16>, vector<128x128xf32> -> vector<128x128xf32>
    %c0_9 = arith.constant 0 : index
    %c0_10 = arith.constant 0 : index
    %21 = vector.load %arg4[%c0_9, %c0_10] : memref<128x128xbf16, #tpu.memory_space<vmem>>, vector<128x128xbf16>
    %cst_11 = arith.constant dense<0.000000e+00> : vector<128x128xf32>
    %22 = tpu.matmul %1, %21, %cst_11 {dimension_numbers = #tpu.dot_dimension_numbers<[1], [0], [0], [1], [0, 0, 1, 1], [], []>} : vector<128x128xbf16>, vector<128x128xbf16>, vector<128x128xf32> -> vector<128x128xf32>
    %23 = arith.addf %20, %22 : vector<128x128xf32>
    %c0_12 = arith.constant 0 : index
    %c0_13 = arith.constant 0 : index
    %24 = vector.load %arg5[%c0_12, %c0_13] : memref<1x128xf32, #tpu.memory_space<vmem>>, vector<1x128xf32>
    %25 = vector.broadcast %24 : vector<1x128xf32> to vector<128x128xf32>
    %26 = arith.addf %23, %25 : vector<128x128xf32>
    %cst_14 = arith.constant 0.000000e+00 : f32
    %27 = vector.broadcast %cst_14 : f32 to vector<128x128xf32>
    %28 = arith.cmpf ogt, %26, %27 : vector<128x128xf32>
    %cst_15 = arith.constant 0.000000e+00 : f32
    %29 = vector.broadcast %cst_15 : f32 to vector<128x128xf32>
    %30 = arith.minimumf %26, %29 : vector<128x128xf32>
    %31 = math.exp %30 : vector<128x128xf32>
    %cst_16 = arith.constant 1.000000e+00 : f32
    %32 = vector.broadcast %cst_16 : f32 to vector<128x128xf32>
    %33 = arith.subf %31, %32 : vector<128x128xf32>
    %34 = arith.select %28, %26, %33 : vector<128x128xi1>, vector<128x128xf32>
    %c0_17 = arith.constant 0 : index
    %c0_18 = arith.constant 0 : index
    %35 = vector.load %arg6[%c0_17, %c0_18] : memref<1x128xf32, #tpu.memory_space<vmem>>, vector<1x128xf32>
    %c0_19 = arith.constant 0 : index
    %c0_20 = arith.constant 0 : index
    %36 = vector.load %arg7[%c0_19, %c0_20] : memref<1x128xf32, #tpu.memory_space<vmem>>, vector<1x128xf32>
    %37 = tpu.iota {dimensions = array<i32: 1>} : vector<1x128xi32>
    %c32_i32 = arith.constant 32 : i32
    %38 = vector.broadcast %c32_i32 : i32 to vector<1x128xi32>
    %39 = arith.cmpi slt, %37, %38 : vector<1x128xi32>
    %cst_21 = arith.constant dense<0.000000e+00> : vector<128xf32>
    %40 = vector.multi_reduction <add>, %34, %cst_21 [1] : vector<128x128xf32> to vector<128xf32>
    %41 = vector.shape_cast %40 : vector<128xf32> to vector<128x1xf32>
    %cst_22 = arith.constant 3.125000e-02 : f32
    %42 = vector.broadcast %cst_22 : f32 to vector<128x1xf32>
    %43 = arith.mulf %41, %42 : vector<128x1xf32>
    %44 = vector.broadcast %43 : vector<128x1xf32> to vector<128x128xf32>
    %45 = arith.subf %34, %44 : vector<128x128xf32>
    %cst_23 = arith.constant 0.000000e+00 : f32
    %46 = vector.shape_cast %39 : vector<1x128xi1> to vector<1x128xi1>
    %47 = vector.broadcast %46 : vector<1x128xi1> to vector<128x128xi1>
    %48 = vector.broadcast %cst_23 : f32 to vector<128x128xf32>
    %49 = arith.select %47, %45, %48 : vector<128x128xi1>, vector<128x128xf32>
    %50 = arith.mulf %49, %49 : vector<128x128xf32>
    %cst_24 = arith.constant dense<0.000000e+00> : vector<128xf32>
    %51 = vector.multi_reduction <add>, %50, %cst_24 [1] : vector<128x128xf32> to vector<128xf32>
    %52 = vector.shape_cast %51 : vector<128xf32> to vector<128x1xf32>
    %cst_25 = arith.constant 3.125000e-02 : f32
    %53 = vector.broadcast %cst_25 : f32 to vector<128x1xf32>
    %54 = arith.mulf %52, %53 : vector<128x1xf32>
    %cst_26 = arith.constant 9.99999974E-6 : f32
    %55 = vector.broadcast %cst_26 : f32 to vector<128x1xf32>
    %56 = arith.addf %54, %55 : vector<128x1xf32>
    %57 = math.rsqrt %56 : vector<128x1xf32>
    %58 = vector.broadcast %57 : vector<128x1xf32> to vector<128x128xf32>
    %59 = arith.mulf %49, %58 : vector<128x128xf32>
    %60 = vector.broadcast %35 : vector<1x128xf32> to vector<128x128xf32>
    %61 = arith.mulf %59, %60 : vector<128x128xf32>
    %62 = vector.broadcast %36 : vector<1x128xf32> to vector<128x128xf32>
    %63 = arith.addf %61, %62 : vector<128x128xf32>
    %64 = arith.truncf %63 : vector<128x128xf32> to vector<128x128xbf16>
    %c0_27 = arith.constant 0 : index
    %c0_28 = arith.constant 0 : index
    %65 = vector.load %arg8[%c0_27, %c0_28] : memref<128x128xbf16, #tpu.memory_space<vmem>>, vector<128x128xbf16>
    %cst_29 = arith.constant dense<0.000000e+00> : vector<128x128xf32>
    %66 = tpu.matmul %64, %65, %cst_29 {dimension_numbers = #tpu.dot_dimension_numbers<[1], [0], [0], [1], [0, 0, 1, 1], [], []>} : vector<128x128xbf16>, vector<128x128xbf16>, vector<128x128xf32> -> vector<128x128xf32>
    %c0_30 = arith.constant 0 : index
    %c0_31 = arith.constant 0 : index
    %67 = vector.load %arg9[%c0_30, %c0_31] : memref<1x128xf32, #tpu.memory_space<vmem>>, vector<1x128xf32>
    %68 = vector.broadcast %67 : vector<1x128xf32> to vector<128x128xf32>
    %69 = arith.addf %66, %68 : vector<128x128xf32>
    %cst_32 = arith.constant 0.000000e+00 : f32
    %70 = vector.broadcast %cst_32 : f32 to vector<128x128xf32>
    %71 = arith.cmpf ogt, %69, %70 : vector<128x128xf32>
    %cst_33 = arith.constant 0.000000e+00 : f32
    %72 = vector.broadcast %cst_33 : f32 to vector<128x128xf32>
    %73 = arith.minimumf %69, %72 : vector<128x128xf32>
    %74 = math.exp %73 : vector<128x128xf32>
    %cst_34 = arith.constant 1.000000e+00 : f32
    %75 = vector.broadcast %cst_34 : f32 to vector<128x128xf32>
    %76 = arith.subf %74, %75 : vector<128x128xf32>
    %77 = arith.select %71, %69, %76 : vector<128x128xi1>, vector<128x128xf32>
    %cst_35 = arith.constant 0.999994993 : f32
    %78 = vector.broadcast %cst_35 : f32 to vector<128x128xf32>
    %79 = arith.mulf %77, %78 : vector<128x128xf32>
    %80 = arith.truncf %79 : vector<128x128xf32> to vector<128x128xbf16>
    %c0_36 = arith.constant 0 : index
    %c0_37 = arith.constant 0 : index
    %81 = vector.load %arg10[%c0_36, %c0_37] : memref<128x128xbf16, #tpu.memory_space<vmem>>, vector<128x128xbf16>
    tpu.vector_store %arg10[%c0_36, %c0_37], %80 {strides = array<i32>} : memref<128x128xbf16, #tpu.memory_space<vmem>>, vector<128x128xbf16>,
    return
  }
  func.func @transform_0(%arg0: i32) -> (i32, i32) {
    %c0_i32 = arith.constant 0 : i32
    %c0_i32_0 = arith.constant 0 : i32
    return %arg0, %c0_i32 : i32, i32
  }
  func.func @transform_1(%arg0: i32) -> (i32, i32) {
    %c0_i32 = arith.constant 0 : i32
    %c0_i32_0 = arith.constant 0 : i32
    return %arg0, %c0_i32 : i32, i32
  }
  func.func @transform_2(%arg0: i32) -> (i32, i32) {
    %c0_i32 = arith.constant 0 : i32
    %c0_i32_0 = arith.constant 0 : i32
    %c0_i32_1 = arith.constant 0 : i32
    return %c0_i32, %c0_i32_0 : i32, i32
  }
  func.func @transform_3(%arg0: i32) -> (i32, i32) {
    %c0_i32 = arith.constant 0 : i32
    %c0_i32_0 = arith.constant 0 : i32
    %c0_i32_1 = arith.constant 0 : i32
    return %c0_i32, %c0_i32_0 : i32, i32
  }
  func.func @transform_4(%arg0: i32) -> (i32, i32) {
    %c0_i32 = arith.constant 0 : i32
    %c0_i32_0 = arith.constant 0 : i32
    %c0_i32_1 = arith.constant 0 : i32
    return %c0_i32, %c0_i32_0 : i32, i32
  }
  func.func @transform_5(%arg0: i32) -> (i32, i32) {
    %c0_i32 = arith.constant 0 : i32
    %c0_i32_0 = arith.constant 0 : i32
    %c0_i32_1 = arith.constant 0 : i32
    return %c0_i32, %c0_i32_0 : i32, i32
  }
  func.func @transform_6(%arg0: i32) -> (i32, i32) {
    %c0_i32 = arith.constant 0 : i32
    %c0_i32_0 = arith.constant 0 : i32
    %c0_i32_1 = arith.constant 0 : i32
    return %c0_i32, %c0_i32_0 : i32, i32
  }
  func.func @transform_7(%arg0: i32) -> (i32, i32) {
    %c0_i32 = arith.constant 0 : i32
    %c0_i32_0 = arith.constant 0 : i32
    %c0_i32_1 = arith.constant 0 : i32
    return %c0_i32, %c0_i32_0 : i32, i32
  }
  func.func @transform_8(%arg0: i32) -> (i32, i32) {
    %c0_i32 = arith.constant 0 : i32
    %c0_i32_0 = arith.constant 0 : i32
    %c0_i32_1 = arith.constant 0 : i32
    return %c0_i32, %c0_i32_0 : i32, i32
  }
  func.func @transform_9(%arg0: i32) -> (i32, i32) {
    %c0_i32 = arith.constant 0 : i32
    %c0_i32_0 = arith.constant 0 : i32
    return %arg0, %c0_i32 : i32, i32
  }
}

module attributes {stable_mosaic.version = 11 : i64} {
  func.func @_agg_out_kernel(%arg0: i32, %arg1: i32, %arg2: memref<1x128xi32, #tpu.memory_space<vmem>>, %arg3: memref<128x128xbf16, #tpu.memory_space<vmem>>, %arg4: memref<8x128xbf16, #tpu.memory_space<vmem>>, %arg5: memref<128x128xbf16, #tpu.memory_space<vmem>>, %arg6: memref<1x128xf32, #tpu.memory_space<vmem>>, %arg7: memref<8x128xf32, #tpu.memory_space<vmem>>, %arg8: memref<8x128xf32, #tpu.memory_space<vmem>>) attributes {dimension_semantics = [#tpu.dimension_semantics<parallel>, #tpu.dimension_semantics<arbitrary>], iteration_bounds = array<i64: 1, 1>, scalar_prefetch = 0 : i64, scratch_operands = 1 : i64, tpu.core_type = #tpu.core_type<tc>, window_params = [{transform_indices = @transform_0, window_bounds = array<i64: 1, 128>}, {transform_indices = @transform_1, window_bounds = array<i64: 128, 128>}, {transform_indices = @transform_2, window_bounds = array<i64: 8, 128>}, {pipeline_mode = #tpu.pipeline_mode<synchronous>, transform_indices = @transform_3, window_bounds = array<i64: 128, 128>}, {pipeline_mode = #tpu.pipeline_mode<synchronous>, transform_indices = @transform_4, window_bounds = array<i64: 1, 128>}, {transform_indices = @transform_5, window_bounds = array<i64: 8, 128>}]} {
    %c0_i32 = arith.constant 0 : i32
    %0 = arith.cmpi eq, %arg1, %c0_i32 : i32
    %1 = arith.extui %0 : i1 to i32
    %c0_i32_0 = arith.constant 0 : i32
    %2 = arith.cmpi ne, %1, %c0_i32_0 : i32
    scf.if %2 {
      %cst_12 = arith.constant 0.000000e+00 : f32
      %22 = vector.broadcast %cst_12 : f32 to vector<8x128xf32>
      %c0_13 = arith.constant 0 : index
      %c0_14 = arith.constant 0 : index
      %23 = vector.load %arg8[%c0_13, %c0_14] : memref<8x128xf32, #tpu.memory_space<vmem>>, vector<8x128xf32>
      tpu.vector_store %arg8[%c0_13, %c0_14], %22 {strides = array<i32>} : memref<8x128xf32, #tpu.memory_space<vmem>>, vector<8x128xf32>,
    } else {
    }
    %c0 = arith.constant 0 : index
    %c0_1 = arith.constant 0 : index
    %3 = vector.load %arg2[%c0, %c0_1] : memref<1x128xi32, #tpu.memory_space<vmem>>, vector<1x128xi32>
    %4 = tpu.iota {dimensions = array<i32: 0>} : vector<8x128xi32>
    %c8_i32 = arith.constant 8 : i32
    %5 = arith.muli %arg0, %c8_i32 : i32
    %6 = vector.broadcast %5 : i32 to vector<8x128xi32>
    %7 = arith.addi %4, %6 : vector<8x128xi32>
    %8 = vector.broadcast %3 : vector<1x128xi32> to vector<8x128xi32>
    %9 = arith.cmpi eq, %7, %8 : vector<8x128xi32>
    %cst = arith.constant 1.000000e+00 : f32
    %cst_2 = arith.constant 0.000000e+00 : f32
    %10 = vector.broadcast %cst : f32 to vector<8x128xf32>
    %11 = vector.broadcast %cst_2 : f32 to vector<8x128xf32>
    %12 = arith.select %9, %10, %11 : vector<8x128xi1>, vector<8x128xf32>
    %13 = arith.truncf %12 : vector<8x128xf32> to vector<8x128xbf16>
    %c0_3 = arith.constant 0 : index
    %c0_4 = arith.constant 0 : index
    %14 = vector.load %arg8[%c0_3, %c0_4] : memref<8x128xf32, #tpu.memory_space<vmem>>, vector<8x128xf32>
    %c0_5 = arith.constant 0 : index
    %c0_6 = arith.constant 0 : index
    %15 = vector.load %arg3[%c0_5, %c0_6] : memref<128x128xbf16, #tpu.memory_space<vmem>>, vector<128x128xbf16>
    %cst_7 = arith.constant dense<0.000000e+00> : vector<8x128xf32>
    %16 = tpu.matmul %13, %15, %cst_7 {dimension_numbers = #tpu.dot_dimension_numbers<[1], [0], [0], [1], [0, 0, 1, 1], [], []>} : vector<8x128xbf16>, vector<128x128xbf16>, vector<8x128xf32> -> vector<8x128xf32>
    %17 = arith.addf %14, %16 : vector<8x128xf32>
    %c0_8 = arith.constant 0 : index
    %c0_9 = arith.constant 0 : index
    %18 = vector.load %arg8[%c0_8, %c0_9] : memref<8x128xf32, #tpu.memory_space<vmem>>, vector<8x128xf32>
    tpu.vector_store %arg8[%c0_8, %c0_9], %17 {strides = array<i32>} : memref<8x128xf32, #tpu.memory_space<vmem>>, vector<8x128xf32>,
    %c0_i32_10 = arith.constant 0 : i32
    %19 = arith.cmpi eq, %arg1, %c0_i32_10 : i32
    %20 = arith.extui %19 : i1 to i32
    %c0_i32_11 = arith.constant 0 : i32
    %21 = arith.cmpi ne, %20, %c0_i32_11 : i32
    scf.if %21 {
      %c0_12 = arith.constant 0 : index
      %c0_13 = arith.constant 0 : index
      %22 = vector.load %arg8[%c0_12, %c0_13] : memref<8x128xf32, #tpu.memory_space<vmem>>, vector<8x128xf32>
      %23 = arith.truncf %22 : vector<8x128xf32> to vector<8x128xbf16>
      %c0_14 = arith.constant 0 : index
      %c0_15 = arith.constant 0 : index
      %24 = vector.load %arg5[%c0_14, %c0_15] : memref<128x128xbf16, #tpu.memory_space<vmem>>, vector<128x128xbf16>
      %cst_16 = arith.constant dense<0.000000e+00> : vector<8x128xf32>
      %25 = tpu.matmul %23, %24, %cst_16 {dimension_numbers = #tpu.dot_dimension_numbers<[1], [0], [0], [1], [0, 0, 1, 1], [], []>} : vector<8x128xbf16>, vector<128x128xbf16>, vector<8x128xf32> -> vector<8x128xf32>
      %c0_17 = arith.constant 0 : index
      %c0_18 = arith.constant 0 : index
      %26 = vector.load %arg6[%c0_17, %c0_18] : memref<1x128xf32, #tpu.memory_space<vmem>>, vector<1x128xf32>
      %27 = vector.broadcast %26 : vector<1x128xf32> to vector<8x128xf32>
      %28 = arith.addf %25, %27 : vector<8x128xf32>
      %c0_19 = arith.constant 0 : index
      %c0_20 = arith.constant 0 : index
      %29 = vector.load %arg4[%c0_19, %c0_20] : memref<8x128xbf16, #tpu.memory_space<vmem>>, vector<8x128xbf16>
      %30 = arith.extf %29 : vector<8x128xbf16> to vector<8x128xf32>
      %31 = arith.addf %28, %30 : vector<8x128xf32>
      %c0_21 = arith.constant 0 : index
      %c0_22 = arith.constant 0 : index
      %32 = vector.load %arg7[%c0_21, %c0_22] : memref<8x128xf32, #tpu.memory_space<vmem>>, vector<8x128xf32>
      tpu.vector_store %arg7[%c0_21, %c0_22], %31 {strides = array<i32>} : memref<8x128xf32, #tpu.memory_space<vmem>>, vector<8x128xf32>,
    } else {
    }
    return
  }
  func.func @transform_0(%arg0: i32, %arg1: i32) -> (i32, i32) {
    %c0_i32 = arith.constant 0 : i32
    %c0_i32_0 = arith.constant 0 : i32
    return %c0_i32, %arg1 : i32, i32
  }
  func.func @transform_1(%arg0: i32, %arg1: i32) -> (i32, i32) {
    %c0_i32 = arith.constant 0 : i32
    %c0_i32_0 = arith.constant 0 : i32
    return %arg1, %c0_i32 : i32, i32
  }
  func.func @transform_2(%arg0: i32, %arg1: i32) -> (i32, i32) {
    %c0_i32 = arith.constant 0 : i32
    %c0_i32_0 = arith.constant 0 : i32
    return %arg0, %c0_i32 : i32, i32
  }
  func.func @transform_3(%arg0: i32, %arg1: i32) -> (i32, i32) {
    %c0_i32 = arith.constant 0 : i32
    %c0_i32_0 = arith.constant 0 : i32
    %c0_i32_1 = arith.constant 0 : i32
    return %c0_i32, %c0_i32_0 : i32, i32
  }
  func.func @transform_4(%arg0: i32, %arg1: i32) -> (i32, i32) {
    %c0_i32 = arith.constant 0 : i32
    %c0_i32_0 = arith.constant 0 : i32
    %c0_i32_1 = arith.constant 0 : i32
    return %c0_i32, %c0_i32_0 : i32, i32
  }
  func.func @transform_5(%arg0: i32, %arg1: i32) -> (i32, i32) {
    %c0_i32 = arith.constant 0 : i32
    %c0_i32_0 = arith.constant 0 : i32
    return %arg0, %c0_i32 : i32, i32
  }
}

</mosaic_0001>

<llo_original>
// kernel: fwd.33
$region0: #{fwd.33}
  #allocation0 [shape = 'u32[]', space=smem, size = 0x4, offset = 0x4, fixed_abs, tag = 'smem constant byte address 0x4 - core index']
  #allocation1 [shape = 'u32[144,128]{1,0:T(1,128)}', space=vmem, size = 0x12000, scoped, tag = 'internal scratch']
  %s0 = inlined_call_operand.vmem [shape: bf16[16,128], index: 0, kind: input, shape index: {}]
  %s1 = inlined_call_operand.vmem [shape: bf16[3,128,128], index: 1, kind: input, shape index: {}]
  %s2 = inlined_call_operand.vmem [shape: f32[3,1,128], index: 2, kind: input, shape index: {}]
  %s3 = inlined_call_operand.vmem [shape: f32[3,1,128], index: 3, kind: input, shape index: {}]
  %s4 = inlined_call_operand.vmem [shape: f32[3,1,128], index: 4, kind: input, shape index: {}]
  %s5 = inlined_call_operand.vmem [shape: bf16[3,128,128], index: 5, kind: input, shape index: {}]
  %s6 = inlined_call_operand.vmem [shape: f32[3,1,128], index: 6, kind: input, shape index: {}]
  %s7 = inlined_call_operand.vmem [shape: bf16[3,16,128], index: 7, kind: output, shape index: {}]
  %s8 = sld [smem:[#allocation0]]
  $region61: #{fwd.33} parent=0
    _
  %s10 = ssub.s32 1, %s8
  %s11 = scalar_select 0, %s10, %s8
  loop: start=0, step=1, limit=5
  $region2: #{fwd.33} parent=0 // loop_pre_header
    _
  $region3: #{fwd.33} parent=0 // loop_header
    %s13 = sphi 0, %s17
    %p14 = scmp.ge.s32.totalorder %s13, 5
    %s20 = sphi 0, %s32
    %s21 = sphi 0, %s28
    %s22 = sphi 0, %s20
    %s23 = sphi 0, %s21
    %s24 = sphi 0, %s22
    %s25 = sphi 0, %s23
    %s35 = sphi 0, %s37
    %s38 = sphi 0, %s35
    %s39 = sphi 0, %s38
    %s55 = sphi 0, %s39
    %s61 = sphi 0, %s63
    %s64 = sphi 0, %s61
    %s65 = sphi 0, %s64
    %s81 = sphi 0, %s65
    %s87 = sphi 0, %s89
    %s90 = sphi 0, %s87
    %s91 = sphi 0, %s90
    %s107 = sphi 0, %s91
    %s113 = sphi 0, %s115
    %s116 = sphi 0, %s113
    %s117 = sphi 0, %s116
    %s133 = sphi 0, %s117
    %s139 = sphi 0, %s141
    %s142 = sphi 0, %s139
    %s143 = sphi 0, %s142
    %s159 = sphi 0, %s143
    %s165 = sphi 0, %s167
    %s168 = sphi 0, %s165
    %s169 = sphi 0, %s168
    %s185 = sphi 0, %s169
    %s191 = sphi 0, %s193
    %s194 = sphi 0, %s191
    %s195 = sphi 0, %s194
    %s211 = sphi 0, %s195
    %s219 = sphi 0, %s221
    %s222 = sphi 0, %s219
    %s223 = sphi 0, %s222
    %s239 = sphi 0, %s223
  $region4: #{fwd.33} parent=0 // loop_header_branch
    %16 = sbr.rel (%p14) target = $region8
  $region5: #{fwd.33} parent=0 // loop_body
    %s18 = ssub.s32 %s13, 1
    %s19 = ssub.s32 %s13, 2
    %s26 = sadd.s32 1, %s21
    %p27 = scmp.ge.s32.totalorder %s26, 3
    %s28 = scalar_select %p27, 0, %s26
    %s29 = sadd.s32 1, %s20
    %s30 = scalar_select %p27, %s29, %s20
    %p31 = scmp.ge.s32.totalorder %s30, 1
    %s32 = scalar_select %p31, 0, %s30
    %s33 = ssub.s32 %s20, %s32
    %p34 = scmp.eq.s32.totalorder %s33, 0
    %s36 = sadd.s32 %s35, 1
    %s37 = scalar_select %p34, %s35, %s36
    %p40 = pneg %p34
    %p41 = scmp.eq.s32.totalorder %s13, 2
    %p42 = por %p40, %p41
    %p43 = scmp.ne.s32.totalorder %s35, %s38
    %p44 = scmp.eq.s32.totalorder %s13, 0
    %p45 = por %p43, %p44
    %p46 = scmp.ne.s32.totalorder %s35, %s38
    %p47 = scmp.eq.s32.totalorder %s18, 2
    %p48 = por %p46, %p47
    %p49 = scmp.ne.s32.totalorder %s38, %s39
    %p50 = scmp.eq.s32.totalorder %s18, 0
    %p51 = por %p49, %p50
    %p52 = scmp.ne.s32.totalorder %s38, %s39
    %p53 = scmp.eq.s32.totalorder %s19, 2
    %p54 = por %p52, %p53
    %p56 = scmp.ne.s32.totalorder %s39, %s55
    %p57 = scmp.eq.s32.totalorder %s19, 0
    %p58 = por %p56, %p57
    %s59 = ssub.s32 %s21, %s28
    %p60 = scmp.eq.s32.totalorder %s59, 0
    %s62 = sadd.s32 %s61, 1
    %s63 = scalar_select %p60, %s61, %s62
    %p66 = pneg %p60
    %p67 = scmp.eq.s32.totalorder %s13, 2
    %p68 = por %p66, %p67
    %p69 = scmp.ne.s32.totalorder %s61, %s64
    %p70 = scmp.eq.s32.totalorder %s13, 0
    %p71 = por %p69, %p70
    %p72 = scmp.ne.s32.totalorder %s61, %s64
    %p73 = scmp.eq.s32.totalorder %s18, 2
    %p74 = por %p72, %p73
    %p75 = scmp.ne.s32.totalorder %s64, %s65
    %p76 = scmp.eq.s32.totalorder %s18, 0
    %p77 = por %p75, %p76
    %p78 = scmp.ne.s32.totalorder %s64, %s65
    %p79 = scmp.eq.s32.totalorder %s19, 2
    %p80 = por %p78, %p79
    %p82 = scmp.ne.s32.totalorder %s65, %s81
    %p83 = scmp.eq.s32.totalorder %s19, 0
    %p84 = por %p82, %p83
    %s85 = ssub.s32 %s21, %s28
    %p86 = scmp.eq.s32.totalorder %s85, 0
    %s88 = sadd.s32 %s87, 1
    %s89 = scalar_select %p86, %s87, %s88
    %p92 = pneg %p86
    %p93 = scmp.eq.s32.totalorder %s13, 2
    %p94 = por %p92, %p93
    %p95 = scmp.ne.s32.totalorder %s87, %s90
    %p96 = scmp.eq.s32.totalorder %s13, 0
    %p97 = por %p95, %p96
    %p98 = scmp.ne.s32.totalorder %s87, %s90
    %p99 = scmp.eq.s32.totalorder %s18, 2
    %p100 = por %p98, %p99
    %p101 = scmp.ne.s32.totalorder %s90, %s91
    %p102 = scmp.eq.s32.totalorder %s18, 0
    %p103 = por %p101, %p102
    %p104 = scmp.ne.s32.totalorder %s90, %s91
    %p105 = scmp.eq.s32.totalorder %s19, 2
    %p106 = por %p104, %p105
    %p108 = scmp.ne.s32.totalorder %s91, %s107
    %p109 = scmp.eq.s32.totalorder %s19, 0
    %p110 = por %p108, %p109
    %s111 = ssub.s32 %s21, %s28
    %p112 = scmp.eq.s32.totalorder %s111, 0
    %s114 = sadd.s32 %s113, 1
    %s115 = scalar_select %p112, %s113, %s114
    %p118 = pneg %p112
    %p119 = scmp.eq.s32.totalorder %s13, 2
    %p120 = por %p118, %p119
    %p121 = scmp.ne.s32.totalorder %s113, %s116
    %p122 = scmp.eq.s32.totalorder %s13, 0
    %p123 = por %p121, %p122
    %p124 = scmp.ne.s32.totalorder %s113, %s116
    %p125 = scmp.eq.s32.totalorder %s18, 2
    %p126 = por %p124, %p125
    %p127 = scmp.ne.s32.totalorder %s116, %s117
    %p128 = scmp.eq.s32.totalorder %s18, 0
    %p129 = por %p127, %p128
    %p130 = scmp.ne.s32.totalorder %s116, %s117
    %p131 = scmp.eq.s32.totalorder %s19, 2
    %p132 = por %p130, %p131
    %p134 = scmp.ne.s32.totalorder %s117, %s133
    %p135 = scmp.eq.s32.totalorder %s19, 0
    %p136 = por %p134, %p135
    %s137 = ssub.s32 %s21, %s28
    %p138 = scmp.eq.s32.totalorder %s137, 0
    %s140 = sadd.s32 %s139, 1
    %s141 = scalar_select %p138, %s139, %s140
    %p144 = pneg %p138
    %p145 = scmp.eq.s32.totalorder %s13, 2
    %p146 = por %p144, %p145
    %p147 = scmp.ne.s32.totalorder %s139, %s142
    %p148 = scmp.eq.s32.totalorder %s13, 0
    %p149 = por %p147, %p148
    %p150 = scmp.ne.s32.totalorder %s139, %s142
    %p151 = scmp.eq.s32.totalorder %s18, 2
    %p152 = por %p150, %p151
    %p153 = scmp.ne.s32.totalorder %s142, %s143
    %p154 = scmp.eq.s32.totalorder %s18, 0
    %p155 = por %p153, %p154
    %p156 = scmp.ne.s32.totalorder %s142, %s143
    %p157 = scmp.eq.s32.totalorder %s19, 2
    %p158 = por %p156, %p157
    %p160 = scmp.ne.s32.totalorder %s143, %s159
    %p161 = scmp.eq.s32.totalorder %s19, 0
    %p162 = por %p160, %p161
    %s163 = ssub.s32 %s21, %s28
    %p164 = scmp.eq.s32.totalorder %s163, 0
    %s166 = sadd.s32 %s165, 1
    %s167 = scalar_select %p164, %s165, %s166
    %p170 = pneg %p164
    %p171 = scmp.eq.s32.totalorder %s13, 2
    %p172 = por %p170, %p171
    %p173 = scmp.ne.s32.totalorder %s165, %s168
    %p174 = scmp.eq.s32.totalorder %s13, 0
    %p175 = por %p173, %p174
    %p176 = scmp.ne.s32.totalorder %s165, %s168
    %p177 = scmp.eq.s32.totalorder %s18, 2
    %p178 = por %p176, %p177
    %p179 = scmp.ne.s32.totalorder %s168, %s169
    %p180 = scmp.eq.s32.totalorder %s18, 0
    %p181 = por %p179, %p180
    %p182 = scmp.ne.s32.totalorder %s168, %s169
    %p183 = scmp.eq.s32.totalorder %s19, 2
    %p184 = por %p182, %p183
    %p186 = scmp.ne.s32.totalorder %s169, %s185
    %p187 = scmp.eq.s32.totalorder %s19, 0
    %p188 = por %p186, %p187
    %s189 = ssub.s32 %s21, %s28
    %p190 = scmp.eq.s32.totalorder %s189, 0
    %s192 = sadd.s32 %s191, 1
    %s193 = scalar_select %p190, %s191, %s192
    %p196 = pneg %p190
    %p197 = scmp.eq.s32.totalorder %s13, 2
    %p198 = por %p196, %p197
    %p199 = scmp.ne.s32.totalorder %s191, %s194
    %p200 = scmp.eq.s32.totalorder %s13, 0
    %p201 = por %p199, %p200
    %p202 = scmp.ne.s32.totalorder %s191, %s194
    %p203 = scmp.eq.s32.totalorder %s18, 2
    %p204 = por %p202, %p203
    %p205 = scmp.ne.s32.totalorder %s194, %s195
    %p206 = scmp.eq.s32.totalorder %s18, 0
    %p207 = por %p205, %p206
    %p208 = scmp.ne.s32.totalorder %s194, %s195
    %p209 = scmp.eq.s32.totalorder %s19, 2
    %p210 = por %p208, %p209
    %p212 = scmp.ne.s32.totalorder %s195, %s211
    %p213 = scmp.eq.s32.totalorder %s19, 0
    %p214 = por %p212, %p213
    %s215 = ssub.s32 %s21, %s28
    %s216 = ssub.s32 %s20, %s32
    %s217 = sor.u32 %s215, %s216
    %p218 = scmp.eq.s32.totalorder %s217, 0
    %s220 = sadd.s32 %s219, 1
    %s221 = scalar_select %p218, %s219, %s220
    %p224 = pneg %p218
    %p225 = scmp.eq.s32.totalorder %s13, 2
    %p226 = por %p224, %p225
    %p227 = scmp.ne.s32.totalorder %s219, %s222
    %p228 = scmp.eq.s32.totalorder %s13, 0
    %p229 = por %p227, %p228
    %p230 = scmp.ne.s32.totalorder %s219, %s222
    %p231 = scmp.eq.s32.totalorder %s18, 2
    %p232 = por %p230, %p231
    %p233 = scmp.ne.s32.totalorder %s222, %s223
    %p234 = scmp.eq.s32.totalorder %s18, 0
    %p235 = por %p233, %p234
    %p236 = scmp.ne.s32.totalorder %s222, %s223
    %p237 = scmp.eq.s32.totalorder %s19, 2
    %p238 = por %p236, %p237
    %p240 = scmp.ne.s32.totalorder %s223, %s239
    %p241 = scmp.eq.s32.totalorder %s19, 0
    %p242 = por %p240, %p241
    %p243 = scmp.le.s32.totalorder 1, %s13
    %p244 = scmp.lt.s32.totalorder %s13, 4
    %p245 = pnand %p243, %p244
    %p246 = pneg %p245
    // Predicated region
    $region9: #{fwd.33} parent=5 // pred_check
      _
    $region10: #{fwd.33} parent=5 // pred_check_branch
      %248 = sbr.rel (%p245) target = $region12
    $region11: #{fwd.33} parent=5 // pred_region
      %s249 = ssub.s32 %s13, 1
      // Predicated region
      $region13: #{fwd.33} parent=11 // pred_check
        %p250 = pneg %p51
      $region14: #{fwd.33} parent=11 // pred_check_branch
        %252 = sbr.rel (%p250) target = $region16
      $region15: #{fwd.33} parent=11 // pred_region
        %s253 = smul.u32 2, %s22
        %p254 = scmp.lt.s32.totalorder %s253, 1
        %s255 = scalar_select %p254, %s253, 1
        %s256 = smul.addr %s255, 4
        %s257 = scalar_lea.vmem %s0, %s256
        %s258 = smul.u32 2, %s22
      $region16: #{fwd.33} parent=11 // pred_fallthru
        _
    $region12: #{fwd.33} parent=5 // pred_fallthru
      _
    %p259 = scmp.lt.s32.totalorder %s13, 3
    // Predicated region
    $region17: #{fwd.33} parent=5 // pred_check
      %p260 = pneg %p259
    $region18: #{fwd.33} parent=5 // pred_check_branch
      %262 = sbr.rel (%p260) target = $region20
    $region19: #{fwd.33} parent=5 // pred_region
      // Predicated region
      $region21: #{fwd.33} parent=19 // pred_check
        %p263 = pneg %p71
      $region22: #{fwd.33} parent=19 // pred_check_branch
        %265 = sbr.rel (%p263) target = $region24
      $region23: #{fwd.33} parent=19 // pred_region
        %p266 = scmp.lt.s32.totalorder %s21, 2
        %s267 = scalar_select %p266, %s21, 2
        %s268 = smul.addr %s267, 16
        %s269 = smul.addr %s268, 4
        %s270 = scalar_lea.vmem %s1, %s269
      $region24: #{fwd.33} parent=19 // pred_fallthru
        _
      // Predicated region
      $region25: #{fwd.33} parent=19 // pred_check
        %p271 = pneg %p97
      $region26: #{fwd.33} parent=19 // pred_check_branch
        %273 = sbr.rel (%p271) target = $region28
      $region27: #{fwd.33} parent=19 // pred_region
        %p274 = scmp.lt.s32.totalorder %s21, 2
        %s275 = scalar_select %p274, %s21, 2
        %s276 = scalar_lea.vmem %s2, %s275
      $region28: #{fwd.33} parent=19 // pred_fallthru
        _
      // Predicated region
      $region29: #{fwd.33} parent=19 // pred_check
        %p277 = pneg %p123
      $region30: #{fwd.33} parent=19 // pred_check_branch
        %279 = sbr.rel (%p277) target = $region32
      $region31: #{fwd.33} parent=19 // pred_region
        %p280 = scmp.lt.s32.totalorder %s21, 2
        %s281 = scalar_select %p280, %s21, 2
        %s282 = scalar_lea.vmem %s3, %s281
      $region32: #{fwd.33} parent=19 // pred_fallthru
        _
      // Predicated region
      $region33: #{fwd.33} parent=19 // pred_check
        %p283 = pneg %p149
      $region34: #{fwd.33} parent=19 // pred_check_branch
        %285 = sbr.rel (%p283) target = $region36
      $region35: #{fwd.33} parent=19 // pred_region
        %p286 = scmp.lt.s32.totalorder %s21, 2
        %s287 = scalar_select %p286, %s21, 2
        %s288 = scalar_lea.vmem %s4, %s287
      $region36: #{fwd.33} parent=19 // pred_fallthru
        _
      // Predicated region
      $region37: #{fwd.33} parent=19 // pred_check
        %p289 = pneg %p175
      $region38: #{fwd.33} parent=19 // pred_check_branch
        %291 = sbr.rel (%p289) target = $region40
      $region39: #{fwd.33} parent=19 // pred_region
        %p292 = scmp.lt.s32.totalorder %s21, 2
        %s293 = scalar_select %p292, %s21, 2
        %s294 = smul.addr %s293, 16
        %s295 = smul.addr %s294, 4
        %s296 = scalar_lea.vmem %s5, %s295
      $region40: #{fwd.33} parent=19 // pred_fallthru
        _
      // Predicated region
      $region41: #{fwd.33} parent=19 // pred_check
        %p297 = pneg %p201
      $region42: #{fwd.33} parent=19 // pred_check_branch
        %299 = sbr.rel (%p297) target = $region44
      $region43: #{fwd.33} parent=19 // pred_region
        %p300 = scmp.lt.s32.totalorder %s21, 2
        %s301 = scalar_select %p300, %s21, 2
        %s302 = scalar_lea.vmem %s6, %s301
      $region44: #{fwd.33} parent=19 // pred_fallthru
        _
    $region20: #{fwd.33} parent=5 // pred_fallthru
      _
    %p303 = scmp.le.s32.totalorder 1, %s13
    %p304 = scmp.lt.s32.totalorder %s13, 4
    %p305 = pnand %p303, %p304
    %p306 = pneg %p305
    // Predicated region
    $region45: #{fwd.33} parent=5 // pred_check
      _
    $region46: #{fwd.33} parent=5 // pred_check_branch
      %308 = sbr.rel (%p305) target = $region48
    $region47: #{fwd.33} parent=5 // pred_region
      %s309 = ssub.s32 %s13, 1
      %s310 = smul.u32 2, %s22
      %p311 = scmp.lt.s32.totalorder %s310, 1
      %s312 = scalar_select %p311, %s310, 1
      %s313 = smul.addr %s312, 4
      %s314 = scalar_lea.vmem %s0, %s313
      %p315 = pneg %p51
      %p316 = pneg %p48
      %p317 = scmp.lt.s32.totalorder %s23, 2
      %s318 = scalar_select %p317, %s23, 2
      %s319 = smul.addr %s318, 16
      %s320 = smul.addr %s319, 4
      %s321 = scalar_lea.vmem %s1, %s320
      %p322 = pneg %p77
      %p323 = pneg %p74
      %p324 = scmp.lt.s32.totalorder %s23, 2
      %s325 = scalar_select %p324, %s23, 2
      %s326 = scalar_lea.vmem %s2, %s325
      %p327 = pneg %p103
      %p328 = pneg %p100
      %p329 = scmp.lt.s32.totalorder %s23, 2
      %s330 = scalar_select %p329, %s23, 2
      %s331 = scalar_lea.vmem %s3, %s330
      %p332 = pneg %p129
      %p333 = pneg %p126
      %p334 = scmp.lt.s32.totalorder %s23, 2
      %s335 = scalar_select %p334, %s23, 2
      %s336 = scalar_lea.vmem %s4, %s335
      %p337 = pneg %p155
      %p338 = pneg %p152
      %p339 = scmp.lt.s32.totalorder %s23, 2
      %s340 = scalar_select %p339, %s23, 2
      %s341 = smul.addr %s340, 16
      %s342 = smul.addr %s341, 4
      %s343 = scalar_lea.vmem %s5, %s342
      %p344 = pneg %p181
      %p345 = pneg %p178
      %p346 = scmp.lt.s32.totalorder %s23, 2
      %s347 = scalar_select %p346, %s23, 2
      %s348 = scalar_lea.vmem %s6, %s347
      %p349 = pneg %p207
      %p350 = pneg %p204
      %p351 = pneg %p235
      %p352 = pneg %p232
      %s353 = smul.u32 2, %s22
      %p354 = scmp.lt.s32.totalorder %s23, 2
      %s355 = scalar_select %p354, %s23, 2
      %p356 = scmp.lt.s32.totalorder %s353, 1
      %s357 = scalar_select %p356, %s353, 1
      %s358 = smul.addr %s355, 2
      %s359 = sadd.s32 %s357, %s358
      %s360 = smul.addr %s359, 4
      %s361 = scalar_lea.vmem %s7, %s360
      %s362 = smul.u32 2, %s22
      %p363 = scmp.lt.s32.totalorder %s362, 1
      %s364 = scalar_select %p363, %s362, 1
      %s365 = smul.addr %s364, 4
      %s366 = scalar_lea.vmem %s0, %s365
      %s367 = smul.u32 2, %s22
      %p368 = scmp.lt.s32.totalorder %s23, 2
      %s369 = scalar_select %p368, %s23, 2
      %s370 = smul.addr %s369, 16
      %s371 = smul.addr %s370, 4
      %s372 = scalar_lea.vmem %s1, %s371
      %p373 = scmp.lt.s32.totalorder %s23, 2
      %s374 = scalar_select %p373, %s23, 2
      %s375 = scalar_lea.vmem %s2, %s374
      %p376 = scmp.lt.s32.totalorder %s23, 2
      %s377 = scalar_select %p376, %s23, 2
      %s378 = scalar_lea.vmem %s3, %s377
      %p379 = scmp.lt.s32.totalorder %s23, 2
      %s380 = scalar_select %p379, %s23, 2
      %s381 = scalar_lea.vmem %s4, %s380
      %p382 = scmp.lt.s32.totalorder %s23, 2
      %s383 = scalar_select %p382, %s23, 2
      %s384 = smul.addr %s383, 16
      %s385 = smul.addr %s384, 4
      %s386 = scalar_lea.vmem %s5, %s385
      %p387 = scmp.lt.s32.totalorder %s23, 2
      %s388 = scalar_select %p387, %s23, 2
      %s389 = scalar_lea.vmem %s6, %s388
      %s390 = smul.u32 2, %s22
      %p391 = scmp.lt.s32.totalorder %s23, 2
      %s392 = scalar_select %p391, %s23, 2
      %p393 = scmp.lt.s32.totalorder %s390, 1
      %s394 = scalar_select %p393, %s390, 1
      %s395 = smul.addr %s392, 2
      %s396 = sadd.s32 %s394, %s395
      %s397 = smul.addr %s396, 4
      %s398 = scalar_lea.vmem %s7, %s397
      %s399 = smul.u32 2, %s22
      %v401 = vld [vmem:[%s366] sm:$0xf]
      %v402 = vld [vmem:[%s366 + $0x4] sm:$0xf]
      %v403 = vld [vmem:[%s372] sm:$0xf]
      %v404 = vld [vmem:[%s372 + $0x4] sm:$0xf]
      %v405 = vld [vmem:[%s372 + $0x8] sm:$0xf]
      %v406 = vld [vmem:[%s372 + $0xc] sm:$0xf]
      %v407 = vld [vmem:[%s372 + $0x10] sm:$0xf]
      %v408 = vld [vmem:[%s372 + $0x14] sm:$0xf]
      %v409 = vld [vmem:[%s372 + $0x18] sm:$0xf]
      %v410 = vld [vmem:[%s372 + $0x1c] sm:$0xf]
      %v411 = vld [vmem:[%s372 + $0x20] sm:$0xf]
      %v412 = vld [vmem:[%s372 + $0x24] sm:$0xf]
      %v413 = vld [vmem:[%s372 + $0x28] sm:$0xf]
      %v414 = vld [vmem:[%s372 + $0x2c] sm:$0xf]
      %v415 = vld [vmem:[%s372 + $0x30] sm:$0xf]
      %v416 = vld [vmem:[%s372 + $0x34] sm:$0xf]
      %v417 = vld [vmem:[%s372 + $0x38] sm:$0xf]
      %v418 = vld [vmem:[%s372 + $0x3c] sm:$0xf]
      %v419 = vld [vmem:[%s375] sm:$0x1]
      %v421 = vlaneseq
      %v422 = vshrl.u32 %v421, 7
      %v423 = vsub.s32 0, %v422
      %v424 = vrot.slane %v419, %v423
      %v428 = vunpack.c.l.b16 %v401
      %v429 = vunpack.c.l.b16 %v402
      %v430 = vpack.c.b16 %v429, %v428
      %v448 = vunpack.c.l.b16 %v403
      %v449 = vunpack.c.l.b16 %v404
      %v450 = vunpack.c.l.b16 %v405
      %v451 = vunpack.c.l.b16 %v406
      %v452 = vunpack.c.l.b16 %v407
      %v453 = vunpack.c.l.b16 %v408
      %v454 = vunpack.c.l.b16 %v409
      %v455 = vunpack.c.l.b16 %v410
      %v456 = vunpack.c.l.b16 %v411
      %v457 = vunpack.c.l.b16 %v412
      %v458 = vunpack.c.l.b16 %v413
      %v459 = vunpack.c.l.b16 %v414
      %v460 = vunpack.c.l.b16 %v415
      %v461 = vunpack.c.l.b16 %v416
      %v462 = vunpack.c.l.b16 %v417
      %v463 = vunpack.c.l.b16 %v418
      %v464 = vpack.c.b16 %v449, %v448
      %v465 = vpack.c.b16 %v451, %v450
      %v466 = vpack.c.b16 %v453, %v452
      %v467 = vpack.c.b16 %v455, %v454
      %v468 = vpack.c.b16 %v457, %v456
      %v469 = vpack.c.b16 %v459, %v458
      %v470 = vpack.c.b16 %v461, %v460
      %v471 = vpack.c.b16 %v463, %v462
      %480 = vmatprep.subr.bf16.mxu0 0
      %481 = vmatpush1.bf16.msra.mxu0 %v471
      %482 = vmatprep.subr.bf16.mxu0 0
      %483 = vmatpush1.bf16.msra.mxu0 %v470
      %484 = vmatprep.subr.bf16.mxu0 0
      %485 = vmatpush1.bf16.msra.mxu0 %v469
      %486 = vmatprep.subr.bf16.mxu0 0
      %487 = vmatpush1.bf16.msra.mxu0 %v468
      %488 = vmatprep.subr.bf16.mxu0 0
      %489 = vmatpush1.bf16.msra.mxu0 %v467
      %490 = vmatprep.subr.bf16.mxu0 0
      %491 = vmatpush1.bf16.msra.mxu0 %v466
      %492 = vmatprep.subr.bf16.mxu0 0
      %493 = vmatpush1.bf16.msra.mxu0 %v465
      %494 = vmatprep.subr.bf16.mxu0 0
      %495 = vmatpush1.bf16.msra.mxu0 %v464
      %496 = vmatprep.subr.bf16.mxu0 0
      %497 = vmatpush2.bf16.msra.mxu0 0
      %498 = vmatprep.subr.bf16.mxu0 0
      %499 = vmatpush2.bf16.msra.mxu0 0
      %500 = vmatprep.subr.bf16.mxu0 0
      %501 = vmatpush2.bf16.msra.mxu0 0
      %502 = vmatprep.subr.bf16.mxu0 0
      %503 = vmatpush2.bf16.msra.mxu0 0
      %504 = vmatprep.subr.bf16.mxu0 0
      %505 = vmatpush2.bf16.msra.mxu0 0
      %506 = vmatprep.subr.bf16.mxu0 0
      %507 = vmatpush2.bf16.msra.mxu0 0
      %508 = vmatprep.subr.bf16.mxu0 0
      %509 = vmatpush2.bf16.msra.mxu0 0
      %510 = vmatprep.subr.bf16.mxu0 0
      %511 = vmatpush2.bf16.msra.mxu0 0
      %512 = vmatprep.mubr.bf16.mxu0 0
      %513 = vmatmul.mubr.bf16.gmra.mxu0 %v430
      %v514 = vpop.f32.mrf.mxu0
      %v515 = vadd.f32 %v424, %v514
      %v516 = vpop.f32.mrf.mxu0
      %v517 = vpop.f32.mrf.mxu0
      %v518 = vadd.f32 %v424, %v517
      %v519 = vpop.f32.mrf.mxu0
      %520 = vdwg.mxu0
      %vm521 = vcmp.gt.f32.partialorder %v515, 0.0
      %vm522 = vcmp.gt.f32.partialorder %v518, 0.0
      %v523 = vmin.f32 %v515, 0.0
      %v524 = vmin.f32 %v518, 0.0
      %v525 = vmul.f32 %v523, 1.442695
      %v526 = vpow.pop %v525
      %v527 = vmul.f32 %v524, 1.442695
      %v528 = vpow.pop %v527
      %v529 = vsub.f32 %v526, 1.0
      %v530 = vsub.f32 %v528, 1.0
      %v531 = vsel %vm521, %v515, %v529
      %v532 = vsel %vm522, %v518, %v530
      %v533 = vld [vmem:[%s378] sm:$0x1]
      %v534 = vld [vmem:[%s381] sm:$0x1]
      %v535 = vlaneseq
      %v536 = vand.u32 %v535, 127
      %vm537 = vcmp.lt.s32.totalorder %v536, 32
      %538 = vadd.xlane.f32.xlu0 %v531
      %v539 = vpop.xlane.xlu0 %538
      %540 = vadd.xlane.f32.xlu0 %v532
      %v541 = vpop.xlane.xlu0 %540
      %v542 = vmul.f32 %v539, 0.03125
      %v543 = vmul.f32 %v541, 0.03125
      %v544 = vsub.f32 %v531, %v542
      %v545 = vsub.f32 %v532, %v543
      %v546 = vsel %vm537, 1, 0
      %vm547 = vcmp.eq.s32.totalorder %v546, 1
      %v548 = vsel %vm547, %v544, 0.0
      %v549 = vsel %vm547, %v545, 0.0
      %v550 = vmul.f32 %v548, %v548
      %v551 = vmul.f32 %v549, %v549
      %552 = vadd.xlane.f32.xlu0 %v550
      %v553 = vpop.xlane.xlu0 %552
      %554 = vadd.xlane.f32.xlu0 %v551
      %v555 = vpop.xlane.xlu0 %554
      %v556 = vmul.f32 %v553, 0.03125
      %v557 = vmul.f32 %v555, 0.03125
      %v558 = vadd.f32 %v556, 1e-05
      %v559 = vadd.f32 %v557, 1e-05
      %v560 = vrsqrt.pop %v558
      %v561 = vrsqrt.pop %v559
      %v562 = vmul.f32 %v548, %v560
      %v563 = vmul.f32 %v549, %v561
      %v565 = vlaneseq
      %v566 = vshrl.u32 %v565, 7
      %v567 = vsub.s32 0, %v566
      %v568 = vrot.slane %v533, %v567
      %v570 = vmul.f32 %v562, %v568
      %v571 = vmul.f32 %v563, %v568
      %v573 = vlaneseq
      %v574 = vshrl.u32 %v573, 7
      %v575 = vsub.s32 0, %v574
      %v576 = vrot.slane %v534, %v575
      %v578 = vadd.f32 %v570, %v576
      %v579 = vadd.f32 %v571, %v576
      %v580 = vpack.c.bf16 %v579, %v578
      %v581 = vld [vmem:[%s386] sm:$0xf]
      %v582 = vld [vmem:[%s386 + $0x4] sm:$0xf]
      %v583 = vld [vmem:[%s386 + $0x8] sm:$0xf]
      %v584 = vld [vmem:[%s386 + $0xc] sm:$0xf]
      %v585 = vld [vmem:[%s386 + $0x10] sm:$0xf]
      %v586 = vld [vmem:[%s386 + $0x14] sm:$0xf]
      %v587 = vld [vmem:[%s386 + $0x18] sm:$0xf]
      %v588 = vld [vmem:[%s386 + $0x1c] sm:$0xf]
      %v589 = vld [vmem:[%s386 + $0x20] sm:$0xf]
      %v590 = vld [vmem:[%s386 + $0x24] sm:$0xf]
      %v591 = vld [vmem:[%s386 + $0x28] sm:$0xf]
      %v592 = vld [vmem:[%s386 + $0x2c] sm:$0xf]
      %v593 = vld [vmem:[%s386 + $0x30] sm:$0xf]
      %v594 = vld [vmem:[%s386 + $0x34] sm:$0xf]
      %v595 = vld [vmem:[%s386 + $0x38] sm:$0xf]
      %v596 = vld [vmem:[%s386 + $0x3c] sm:$0xf]
      %v597 = vld [vmem:[%s389] sm:$0x1]
      %v599 = vlaneseq
      %v600 = vshrl.u32 %v599, 7
      %v601 = vsub.s32 0, %v600
      %v602 = vrot.slane %v597, %v601
      %v620 = vunpack.c.l.b16 %v581
      %v621 = vunpack.c.l.b16 %v582
      %v622 = vunpack.c.l.b16 %v583
      %v623 = vunpack.c.l.b16 %v584
      %v624 = vunpack.c.l.b16 %v585
      %v625 = vunpack.c.l.b16 %v586
      %v626 = vunpack.c.l.b16 %v587
      %v627 = vunpack.c.l.b16 %v588
      %v628 = vunpack.c.l.b16 %v589
      %v629 = vunpack.c.l.b16 %v590
      %v630 = vunpack.c.l.b16 %v591
      %v631 = vunpack.c.l.b16 %v592
      %v632 = vunpack.c.l.b16 %v593
      %v633 = vunpack.c.l.b16 %v594
      %v634 = vunpack.c.l.b16 %v595
      %v635 = vunpack.c.l.b16 %v596
      %v636 = vpack.c.b16 %v621, %v620
      %v637 = vpack.c.b16 %v623, %v622
      %v638 = vpack.c.b16 %v625, %v624
      %v639 = vpack.c.b16 %v627, %v626
      %v640 = vpack.c.b16 %v629, %v628
      %v641 = vpack.c.b16 %v631, %v630
      %v642 = vpack.c.b16 %v633, %v632
      %v643 = vpack.c.b16 %v635, %v634
      %652 = vmatprep.subr.bf16.mxu0 0
      %653 = vmatpush1.bf16.msra.mxu0 %v643
      %654 = vmatprep.subr.bf16.mxu0 0
      %655 = vmatpush1.bf16.msra.mxu0 %v642
      %656 = vmatprep.subr.bf16.mxu0 0
      %657 = vmatpush1.bf16.msra.mxu0 %v641
      %658 = vmatprep.subr.bf16.mxu0 0
      %659 = vmatpush1.bf16.msra.mxu0 %v640
      %660 = vmatprep.subr.bf16.mxu0 0
      %661 = vmatpush1.bf16.msra.mxu0 %v639
      %662 = vmatprep.subr.bf16.mxu0 0
      %663 = vmatpush1.bf16.msra.mxu0 %v638
      %664 = vmatprep.subr.bf16.mxu0 0
      %665 = vmatpush1.bf16.msra.mxu0 %v637
      %666 = vmatprep.subr.bf16.mxu0 0
      %667 = vmatpush1.bf16.msra.mxu0 %v636
      %668 = vmatprep.subr.bf16.mxu0 0
      %669 = vmatpush2.bf16.msra.mxu0 0
      %670 = vmatprep.subr.bf16.mxu0 0
      %671 = vmatpush2.bf16.msra.mxu0 0
      %672 = vmatprep.subr.bf16.mxu0 0
      %673 = vmatpush2.bf16.msra.mxu0 0
      %674 = vmatprep.subr.bf16.mxu0 0
      %675 = vmatpush2.bf16.msra.mxu0 0
      %676 = vmatprep.subr.bf16.mxu0 0
      %677 = vmatpush2.bf16.msra.mxu0 0
      %678 = vmatprep.subr.bf16.mxu0 0
      %679 = vmatpush2.bf16.msra.mxu0 0
      %680 = vmatprep.subr.bf16.mxu0 0
      %681 = vmatpush2.bf16.msra.mxu0 0
      %682 = vmatprep.subr.bf16.mxu0 0
      %683 = vmatpush2.bf16.msra.mxu0 0
      %684 = vmatprep.mubr.bf16.mxu0 0
      %685 = vmatmul.mubr.bf16.gmra.mxu0 %v580
      %v686 = vpop.f32.mrf.mxu0
      %v687 = vadd.f32 %v602, %v686
      %v688 = vpop.f32.mrf.mxu0
      %v689 = vpop.f32.mrf.mxu0
      %v690 = vadd.f32 %v602, %v689
      %v691 = vpop.f32.mrf.mxu0
      %692 = vdwg.mxu0
      %vm693 = vcmp.gt.f32.partialorder %v687, 0.0
      %vm694 = vcmp.gt.f32.partialorder %v690, 0.0
      %v695 = vmin.f32 %v687, 0.0
      %v696 = vmin.f32 %v690, 0.0
      %v697 = vmul.f32 %v695, 1.442695
      %v698 = vpow.pop %v697
      %v699 = vmul.f32 %v696, 1.442695
      %v700 = vpow.pop %v699
      %v701 = vsub.f32 %v698, 1.0
      %v702 = vsub.f32 %v700, 1.0
      %v703 = vsel %vm693, %v687, %v701
      %v704 = vsel %vm694, %v690, %v702
      %v705 = vpack.c.bf16 %v704, %v703
      %v707 = vunpack.c.l.b16 %v705
      %v708 = vunpack.c.h.b16 %v705
      %v709 = vpack.c.b16 %v707, %v707
      %v710 = vpack.c.b16 %v708, %v708
      %713 = vst [vmem:[%s398] sm:$0xf] %v709
      %714 = vst [vmem:[%s398 + $0x4] sm:$0xf] %v710
      %s715 = smul.u32 2, %s22
      %p716 = scmp.lt.s32.totalorder %s23, 2
      %s717 = scalar_select %p716, %s23, 2
      %p718 = scmp.lt.s32.totalorder %s715, 1
      %s719 = scalar_select %p718, %s715, 1
      %s720 = smul.addr %s717, 2
      %s721 = sadd.s32 %s719, %s720
      %s722 = smul.addr %s721, 4
      %s723 = scalar_lea.vmem %s7, %s722
      // Predicated region
      $region49: #{fwd.33} parent=47 // pred_check
        %p724 = pneg %p232
      $region50: #{fwd.33} parent=47 // pred_check_branch
        %726 = sbr.rel (%p724) target = $region52
      $region51: #{fwd.33} parent=47 // pred_region
        %s727 = smul.u32 2, %s22
      $region52: #{fwd.33} parent=47 // pred_fallthru
        _
    $region48: #{fwd.33} parent=5 // pred_fallthru
      _
    %p728 = scmp.le.s32.totalorder 2, %s13
    // Predicated region
    $region53: #{fwd.33} parent=5 // pred_check
      %p729 = pneg %p728
    $region54: #{fwd.33} parent=5 // pred_check_branch
      %731 = sbr.rel (%p729) target = $region56
    $region55: #{fwd.33} parent=5 // pred_region
      %s732 = ssub.s32 %s13, 2
      // Predicated region
      $region57: #{fwd.33} parent=55 // pred_check
        %p733 = pneg %p238
      $region58: #{fwd.33} parent=55 // pred_check_branch
        %735 = sbr.rel (%p733) target = $region60
      $region59: #{fwd.33} parent=55 // pred_region
        %s736 = smul.u32 2, %s24
        %p737 = scmp.lt.s32.totalorder %s25, 2
        %s738 = scalar_select %p737, %s25, 2
        %p739 = scmp.lt.s32.totalorder %s736, 1
        %s740 = scalar_select %p739, %s736, 1
        %s741 = smul.addr %s738, 2
        %s742 = sadd.s32 %s740, %s741
        %s743 = smul.addr %s742, 4
        %s744 = scalar_lea.vmem %s7, %s743
      $region60: #{fwd.33} parent=55 // pred_fallthru
        _
    $region56: #{fwd.33} parent=5 // pred_fallthru
      _
  $region6: #{fwd.33} parent=0 // loop_footer
    %s17 = sadd.s32 1, %s13
  $region7: #{fwd.33} parent=0 // loop_footer_branch
    %12 = sbr.rel target = $region3
  $region8: #{fwd.33} parent=0 // loop_exit
    _

// kernel: fwd.38
$region0: #{fwd.38}
  #allocation0 [shape = 'u32[]', space=smem, size = 0x4, offset = 0x4, fixed_abs, tag = 'smem constant byte address 0x4 - core index']
  #allocation1 [shape = 'u32[144,128]{1,0:T(1,128)}', space=vmem, size = 0x12000, scoped, tag = 'internal scratch']
  #allocation2 [shape = 'f32[8,128]{1,0:T(8,128)}', space=vmem, size = 0x1000, scoped, tag = 'scratch operand']
  %s0 = inlined_call_operand.vmem [shape: s32[1,128], index: 0, kind: input, shape index: {}]
  %s1 = inlined_call_operand.vmem [shape: bf16[128,128], index: 1, kind: input, shape index: {}]
  %s2 = inlined_call_operand.vmem [shape: bf16[8,128], index: 2, kind: input, shape index: {}]
  %s3 = inlined_call_operand.vmem [shape: bf16[128,128], index: 3, kind: input, shape index: {}]
  %s4 = inlined_call_operand.vmem [shape: f32[1,128], index: 4, kind: input, shape index: {}]
  %s5 = inlined_call_operand.vmem [shape: f32[8,128], index: 5, kind: output, shape index: {}]
  %s6 = sld [smem:[#allocation0]]
  $region38: #{fwd.38} parent=0
    _
  %s8 = ssub.s32 1, %s6
  %s9 = scalar_select 0, %s8, %s6
  // Predicated region
  $region2: #{fwd.38} parent=0 // pred_check
    _
  $region3: #{fwd.38} parent=0 // pred_check_branch
    %11 = sbr.rel (0) target = $region5
  $region4: #{fwd.38} parent=0 // pred_region
    _
  $region5: #{fwd.38} parent=0 // pred_fallthru
    _
  // Predicated region
  $region6: #{fwd.38} parent=0 // pred_check
    _
  $region7: #{fwd.38} parent=0 // pred_check_branch
    %13 = sbr.rel (0) target = $region9
  $region8: #{fwd.38} parent=0 // pred_region
    _
  $region9: #{fwd.38} parent=0 // pred_fallthru
    _
  // Predicated region
  $region10: #{fwd.38} parent=0 // pred_check
    _
  $region11: #{fwd.38} parent=0 // pred_check_branch
    %15 = sbr.rel (0) target = $region13
  $region12: #{fwd.38} parent=0 // pred_region
    _
  $region13: #{fwd.38} parent=0 // pred_fallthru
    _
  // Predicated region
  $region14: #{fwd.38} parent=0 // pred_check
    _
  $region15: #{fwd.38} parent=0 // pred_check_branch
    %17 = sbr.rel (0) target = $region17
  $region16: #{fwd.38} parent=0 // pred_region
    _
  $region17: #{fwd.38} parent=0 // pred_fallthru
    _
  // Predicated region
  $region18: #{fwd.38} parent=0 // pred_check
    _
  $region19: #{fwd.38} parent=0 // pred_check_branch
    %19 = sbr.rel (0) target = $region21
  $region20: #{fwd.38} parent=0 // pred_region
    _
  $region21: #{fwd.38} parent=0 // pred_fallthru
    _
  %p21 = scmp.eq.s32.totalorder 0, 0
  // Predicated region
  $region22: #{fwd.38} parent=0 // pred_check
    %p22 = pneg %p21
  $region23: #{fwd.38} parent=0 // pred_check_branch
    %24 = sbr.rel (%p22) target = $region25
  $region24: #{fwd.38} parent=0 // pred_region
    %25 = vst [vmem:[#allocation2] sm:$0xff] 0.0
  $region25: #{fwd.38} parent=0 // pred_fallthru
    _
  %v26 = vld [vmem:[%s0] sm:$0x1]
  %v27 = vlaneseq
  %v28 = vshrl.u32 %v27, 7
  %s29 = smul.u32 0, 8
  %v30 = vstv %s29
  %v31 = vadd.s32 %v28, %v30
  %v32 = vlaneseq
  %v33 = vshrl.u32 %v32, 7
  %v34 = vsub.s32 0, %v33
  %v35 = vrot.slane %v26, %v34
  %vm36 = vcmp.eq.s32.totalorder %v31, %v35
  %v37 = vsel %vm36, 1.0, 0.0
  %v38 = vpack.c.bf16 %v37, %v37
  %v39 = vld [vmem:[#allocation2] sm:$0xff]
  %v40 = vld [vmem:[%s1] sm:$0xf]
  %v41 = vld [vmem:[%s1 + $0x4] sm:$0xf]
  %v42 = vld [vmem:[%s1 + $0x8] sm:$0xf]
  %v43 = vld [vmem:[%s1 + $0xc] sm:$0xf]
  %v44 = vld [vmem:[%s1 + $0x10] sm:$0xf]
  %v45 = vld [vmem:[%s1 + $0x14] sm:$0xf]
  %v46 = vld [vmem:[%s1 + $0x18] sm:$0xf]
  %v47 = vld [vmem:[%s1 + $0x1c] sm:$0xf]
  %v48 = vld [vmem:[%s1 + $0x20] sm:$0xf]
  %v49 = vld [vmem:[%s1 + $0x24] sm:$0xf]
  %v50 = vld [vmem:[%s1 + $0x28] sm:$0xf]
  %v51 = vld [vmem:[%s1 + $0x2c] sm:$0xf]
  %v52 = vld [vmem:[%s1 + $0x30] sm:$0xf]
  %v53 = vld [vmem:[%s1 + $0x34] sm:$0xf]
  %v54 = vld [vmem:[%s1 + $0x38] sm:$0xf]
  %v55 = vld [vmem:[%s1 + $0x3c] sm:$0xf]
  %v72 = vunpack.c.l.b16 %v40
  %v73 = vunpack.c.l.b16 %v41
  %v74 = vunpack.c.l.b16 %v42
  %v75 = vunpack.c.l.b16 %v43
  %v76 = vunpack.c.l.b16 %v44
  %v77 = vunpack.c.l.b16 %v45
  %v78 = vunpack.c.l.b16 %v46
  %v79 = vunpack.c.l.b16 %v47
  %v80 = vunpack.c.l.b16 %v48
  %v81 = vunpack.c.l.b16 %v49
  %v82 = vunpack.c.l.b16 %v50
  %v83 = vunpack.c.l.b16 %v51
  %v84 = vunpack.c.l.b16 %v52
  %v85 = vunpack.c.l.b16 %v53
  %v86 = vunpack.c.l.b16 %v54
  %v87 = vunpack.c.l.b16 %v55
  %v88 = vpack.c.b16 %v73, %v72
  %v89 = vpack.c.b16 %v75, %v74
  %v90 = vpack.c.b16 %v77, %v76
  %v91 = vpack.c.b16 %v79, %v78
  %v92 = vpack.c.b16 %v81, %v80
  %v93 = vpack.c.b16 %v83, %v82
  %v94 = vpack.c.b16 %v85, %v84
  %v95 = vpack.c.b16 %v87, %v86
  %104 = vmatprep.subr.bf16.mxu0 0
  %105 = vmatpush1.bf16.msra.mxu0 %v95
  %106 = vmatprep.subr.bf16.mxu0 0
  %107 = vmatpush1.bf16.msra.mxu0 %v94
  %108 = vmatprep.subr.bf16.mxu0 0
  %109 = vmatpush1.bf16.msra.mxu0 %v93
  %110 = vmatprep.subr.bf16.mxu0 0
  %111 = vmatpush1.bf16.msra.mxu0 %v92
  %112 = vmatprep.subr.bf16.mxu0 0
  %113 = vmatpush1.bf16.msra.mxu0 %v91
  %114 = vmatprep.subr.bf16.mxu0 0
  %115 = vmatpush1.bf16.msra.mxu0 %v90
  %116 = vmatprep.subr.bf16.mxu0 0
  %117 = vmatpush1.bf16.msra.mxu0 %v89
  %118 = vmatprep.subr.bf16.mxu0 0
  %119 = vmatpush1.bf16.msra.mxu0 %v88
  %120 = vmatprep.subr.bf16.mxu0 0
  %121 = vmatpush2.bf16.msra.mxu0 0
  %122 = vmatprep.subr.bf16.mxu0 0
  %123 = vmatpush2.bf16.msra.mxu0 0
  %124 = vmatprep.subr.bf16.mxu0 0
  %125 = vmatpush2.bf16.msra.mxu0 0
  %126 = vmatprep.subr.bf16.mxu0 0
  %127 = vmatpush2.bf16.msra.mxu0 0
  %128 = vmatprep.subr.bf16.mxu0 0
  %129 = vmatpush2.bf16.msra.mxu0 0
  %130 = vmatprep.subr.bf16.mxu0 0
  %131 = vmatpush2.bf16.msra.mxu0 0
  %132 = vmatprep.subr.bf16.mxu0 0
  %133 = vmatpush2.bf16.msra.mxu0 0
  %134 = vmatprep.subr.bf16.mxu0 0
  %135 = vmatpush2.bf16.msra.mxu0 0
  %136 = vmatprep.mubr.bf16.mxu0 0
  %137 = vmatmul.mubr.bf16.gmra.mxu0 %v38
  %v138 = vpop.f32.mrf.mxu0
  %v139 = vadd.f32 0.0, %v138
  %v140 = vpop.f32.mrf.mxu0
  %v141 = vpop.f32.mrf.mxu0
  %v142 = vpop.f32.mrf.mxu0
  %143 = vdwg.mxu0
  %v144 = vadd.f32 %v39, %v139
  %145 = vst [vmem:[#allocation2] sm:$0xff] %v144
  // Predicated region
  $region26: #{fwd.38} parent=0 // pred_check
    %p146 = pneg %p21
  $region27: #{fwd.38} parent=0 // pred_check_branch
    %148 = sbr.rel (%p146) target = $region29
  $region28: #{fwd.38} parent=0 // pred_region
    %v149 = vld [vmem:[#allocation2] sm:$0xff]
    %v150 = vpack.c.bf16 %v149, %v149
    %v151 = vld [vmem:[%s3] sm:$0xf]
    %v152 = vld [vmem:[%s3 + $0x4] sm:$0xf]
    %v153 = vld [vmem:[%s3 + $0x8] sm:$0xf]
    %v154 = vld [vmem:[%s3 + $0xc] sm:$0xf]
    %v155 = vld [vmem:[%s3 + $0x10] sm:$0xf]
    %v156 = vld [vmem:[%s3 + $0x14] sm:$0xf]
    %v157 = vld [vmem:[%s3 + $0x18] sm:$0xf]
    %v158 = vld [vmem:[%s3 + $0x1c] sm:$0xf]
    %v159 = vld [vmem:[%s3 + $0x20] sm:$0xf]
    %v160 = vld [vmem:[%s3 + $0x24] sm:$0xf]
    %v161 = vld [vmem:[%s3 + $0x28] sm:$0xf]
    %v162 = vld [vmem:[%s3 + $0x2c] sm:$0xf]
    %v163 = vld [vmem:[%s3 + $0x30] sm:$0xf]
    %v164 = vld [vmem:[%s3 + $0x34] sm:$0xf]
    %v165 = vld [vmem:[%s3 + $0x38] sm:$0xf]
    %v166 = vld [vmem:[%s3 + $0x3c] sm:$0xf]
    %v167 = vld [vmem:[%s4] sm:$0x1]
    %v169 = vlaneseq
    %v170 = vshrl.u32 %v169, 7
    %v171 = vsub.s32 0, %v170
    %v172 = vrot.slane %v167, %v171
    %v190 = vunpack.c.l.b16 %v151
    %v191 = vunpack.c.l.b16 %v152
    %v192 = vunpack.c.l.b16 %v153
    %v193 = vunpack.c.l.b16 %v154
    %v194 = vunpack.c.l.b16 %v155
    %v195 = vunpack.c.l.b16 %v156
    %v196 = vunpack.c.l.b16 %v157
    %v197 = vunpack.c.l.b16 %v158
    %v198 = vunpack.c.l.b16 %v159
    %v199 = vunpack.c.l.b16 %v160
    %v200 = vunpack.c.l.b16 %v161
    %v201 = vunpack.c.l.b16 %v162
    %v202 = vunpack.c.l.b16 %v163
    %v203 = vunpack.c.l.b16 %v164
    %v204 = vunpack.c.l.b16 %v165
    %v205 = vunpack.c.l.b16 %v166
    %v206 = vpack.c.b16 %v191, %v190
    %v207 = vpack.c.b16 %v193, %v192
    %v208 = vpack.c.b16 %v195, %v194
    %v209 = vpack.c.b16 %v197, %v196
    %v210 = vpack.c.b16 %v199, %v198
    %v211 = vpack.c.b16 %v201, %v200
    %v212 = vpack.c.b16 %v203, %v202
    %v213 = vpack.c.b16 %v205, %v204
    %222 = vmatprep.subr.bf16.mxu0 0
    %223 = vmatpush1.bf16.msra.mxu0 %v213
    %224 = vmatprep.subr.bf16.mxu0 0
    %225 = vmatpush1.bf16.msra.mxu0 %v212
    %226 = vmatprep.subr.bf16.mxu0 0
    %227 = vmatpush1.bf16.msra.mxu0 %v211
    %228 = vmatprep.subr.bf16.mxu0 0
    %229 = vmatpush1.bf16.msra.mxu0 %v210
    %230 = vmatprep.subr.bf16.mxu0 0
    %231 = vmatpush1.bf16.msra.mxu0 %v209
    %232 = vmatprep.subr.bf16.mxu0 0
    %233 = vmatpush1.bf16.msra.mxu0 %v208
    %234 = vmatprep.subr.bf16.mxu0 0
    %235 = vmatpush1.bf16.msra.mxu0 %v207
    %236 = vmatprep.subr.bf16.mxu0 0
    %237 = vmatpush1.bf16.msra.mxu0 %v206
    %238 = vmatprep.subr.bf16.mxu0 0
    %239 = vmatpush2.bf16.msra.mxu0 0
    %240 = vmatprep.subr.bf16.mxu0 0
    %241 = vmatpush2.bf16.msra.mxu0 0
    %242 = vmatprep.subr.bf16.mxu0 0
    %243 = vmatpush2.bf16.msra.mxu0 0
    %244 = vmatprep.subr.bf16.mxu0 0
    %245 = vmatpush2.bf16.msra.mxu0 0
    %246 = vmatprep.subr.bf16.mxu0 0
    %247 = vmatpush2.bf16.msra.mxu0 0
    %248 = vmatprep.subr.bf16.mxu0 0
    %249 = vmatpush2.bf16.msra.mxu0 0
    %250 = vmatprep.subr.bf16.mxu0 0
    %251 = vmatpush2.bf16.msra.mxu0 0
    %252 = vmatprep.subr.bf16.mxu0 0
    %253 = vmatpush2.bf16.msra.mxu0 0
    %254 = vmatprep.mubr.bf16.mxu0 0
    %255 = vmatmul.mubr.bf16.gmra.mxu0 %v150
    %v256 = vpop.f32.mrf.mxu0
    %v257 = vadd.f32 %v172, %v256
    %v258 = vpop.f32.mrf.mxu0
    %v259 = vpop.f32.mrf.mxu0
    %v260 = vpop.f32.mrf.mxu0
    %261 = vdwg.mxu0
    %262 = vst [vmem:[%s5] sm:$0xff] %v257
  $region29: #{fwd.38} parent=0 // pred_fallthru
    _
  // Predicated region
  $region30: #{fwd.38} parent=0 // pred_check
    _
  $region31: #{fwd.38} parent=0 // pred_check_branch
    %264 = sbr.rel (0) target = $region33
  $region32: #{fwd.38} parent=0 // pred_region
    _
  $region33: #{fwd.38} parent=0 // pred_fallthru
    _
  // Predicated region
  $region34: #{fwd.38} parent=0 // pred_check
    _
  $region35: #{fwd.38} parent=0 // pred_check_branch
    %266 = sbr.rel (0) target = $region37
  $region36: #{fwd.38} parent=0 // pred_region
    _
  $region37: #{fwd.38} parent=0 // pred_fallthru
    _

// kernel: fwd.39
$region0: #{fwd.39}
  #allocation0 [shape = 'u32[]', space=smem, size = 0x4, offset = 0x4, fixed_abs, tag = 'smem constant byte address 0x4 - core index']
  #allocation1 [shape = 'u32[144,128]{1,0:T(1,128)}', space=vmem, size = 0x12000, scoped, tag = 'internal scratch']
  %s0 = inlined_call_operand.vmem [shape: bf16[8,128], index: 0, kind: input, shape index: {}]
  %s1 = inlined_call_operand.vmem [shape: f32[8,128], index: 1, kind: input, shape index: {}]
  %s2 = inlined_call_operand.vmem [shape: bf16[128,128], index: 2, kind: input, shape index: {}]
  %s3 = inlined_call_operand.vmem [shape: bf16[128,128], index: 3, kind: input, shape index: {}]
  %s4 = inlined_call_operand.vmem [shape: f32[1,128], index: 4, kind: input, shape index: {}]
  %s5 = inlined_call_operand.vmem [shape: bf16[128,128], index: 5, kind: input, shape index: {}]
  %s6 = inlined_call_operand.vmem [shape: f32[8,128], index: 6, kind: output, shape index: {}]
  %s7 = sld [smem:[#allocation0]]
  $region34: #{fwd.39} parent=0
    _
  %s9 = ssub.s32 1, %s7
  %s10 = scalar_select 0, %s9, %s7
  // Predicated region
  $region2: #{fwd.39} parent=0 // pred_check
    _
  $region3: #{fwd.39} parent=0 // pred_check_branch
    %12 = sbr.rel (0) target = $region5
  $region4: #{fwd.39} parent=0 // pred_region
    _
  $region5: #{fwd.39} parent=0 // pred_fallthru
    _
  // Predicated region
  $region6: #{fwd.39} parent=0 // pred_check
    _
  $region7: #{fwd.39} parent=0 // pred_check_branch
    %14 = sbr.rel (0) target = $region9
  $region8: #{fwd.39} parent=0 // pred_region
    _
  $region9: #{fwd.39} parent=0 // pred_fallthru
    _
  // Predicated region
  $region10: #{fwd.39} parent=0 // pred_check
    _
  $region11: #{fwd.39} parent=0 // pred_check_branch
    %16 = sbr.rel (0) target = $region13
  $region12: #{fwd.39} parent=0 // pred_region
    _
  $region13: #{fwd.39} parent=0 // pred_fallthru
    _
  // Predicated region
  $region14: #{fwd.39} parent=0 // pred_check
    _
  $region15: #{fwd.39} parent=0 // pred_check_branch
    %18 = sbr.rel (0) target = $region17
  $region16: #{fwd.39} parent=0 // pred_region
    _
  $region17: #{fwd.39} parent=0 // pred_fallthru
    _
  // Predicated region
  $region18: #{fwd.39} parent=0 // pred_check
    _
  $region19: #{fwd.39} parent=0 // pred_check_branch
    %20 = sbr.rel (0) target = $region21
  $region20: #{fwd.39} parent=0 // pred_region
    _
  $region21: #{fwd.39} parent=0 // pred_fallthru
    _
  // Predicated region
  $region22: #{fwd.39} parent=0 // pred_check
    _
  $region23: #{fwd.39} parent=0 // pred_check_branch
    %22 = sbr.rel (0) target = $region25
  $region24: #{fwd.39} parent=0 // pred_region
    _
  $region25: #{fwd.39} parent=0 // pred_fallthru
    _
  %v24 = vld [vmem:[%s1] sm:$0xff]
  %v25 = vmul.f32 %v24, 0.999995
  %vm26 = vcmp.gt.f32.partialorder %v25, 0.0
  %v27 = vmin.f32 %v25, 0.0
  %v28 = vmul.f32 %v27, 1.442695
  %v29 = vpow.pop %v28
  %v30 = vsub.f32 %v29, 1.0
  %v31 = vmul.f32 %v30, 1.6732632
  %v32 = vsel %vm26, %v25, %v31
  %v33 = vmul.f32 %v32, 1.050701
  %v34 = vpack.c.bf16 %v33, %v33
  %v35 = vld [vmem:[%s0] sm:$0xf]
  %v36 = vld [vmem:[%s2] sm:$0xf]
  %v37 = vld [vmem:[%s2 + $0x4] sm:$0xf]
  %v38 = vld [vmem:[%s2 + $0x8] sm:$0xf]
  %v39 = vld [vmem:[%s2 + $0xc] sm:$0xf]
  %v40 = vld [vmem:[%s2 + $0x10] sm:$0xf]
  %v41 = vld [vmem:[%s2 + $0x14] sm:$0xf]
  %v42 = vld [vmem:[%s2 + $0x18] sm:$0xf]
  %v43 = vld [vmem:[%s2 + $0x1c] sm:$0xf]
  %v44 = vld [vmem:[%s2 + $0x20] sm:$0xf]
  %v45 = vld [vmem:[%s2 + $0x24] sm:$0xf]
  %v46 = vld [vmem:[%s2 + $0x28] sm:$0xf]
  %v47 = vld [vmem:[%s2 + $0x2c] sm:$0xf]
  %v48 = vld [vmem:[%s2 + $0x30] sm:$0xf]
  %v49 = vld [vmem:[%s2 + $0x34] sm:$0xf]
  %v50 = vld [vmem:[%s2 + $0x38] sm:$0xf]
  %v51 = vld [vmem:[%s2 + $0x3c] sm:$0xf]
  %v52 = vld [vmem:[%s3] sm:$0xf]
  %v53 = vld [vmem:[%s3 + $0x4] sm:$0xf]
  %v54 = vld [vmem:[%s3 + $0x8] sm:$0xf]
  %v55 = vld [vmem:[%s3 + $0xc] sm:$0xf]
  %v56 = vld [vmem:[%s3 + $0x10] sm:$0xf]
  %v57 = vld [vmem:[%s3 + $0x14] sm:$0xf]
  %v58 = vld [vmem:[%s3 + $0x18] sm:$0xf]
  %v59 = vld [vmem:[%s3 + $0x1c] sm:$0xf]
  %v60 = vld [vmem:[%s3 + $0x20] sm:$0xf]
  %v61 = vld [vmem:[%s3 + $0x24] sm:$0xf]
  %v62 = vld [vmem:[%s3 + $0x28] sm:$0xf]
  %v63 = vld [vmem:[%s3 + $0x2c] sm:$0xf]
  %v64 = vld [vmem:[%s3 + $0x30] sm:$0xf]
  %v65 = vld [vmem:[%s3 + $0x34] sm:$0xf]
  %v66 = vld [vmem:[%s3 + $0x38] sm:$0xf]
  %v67 = vld [vmem:[%s3 + $0x3c] sm:$0xf]
  %v84 = vunpack.c.l.b16 %v52
  %v85 = vunpack.c.l.b16 %v53
  %v86 = vunpack.c.l.b16 %v54
  %v87 = vunpack.c.l.b16 %v55
  %v88 = vunpack.c.l.b16 %v56
  %v89 = vunpack.c.l.b16 %v57
  %v90 = vunpack.c.l.b16 %v58
  %v91 = vunpack.c.l.b16 %v59
  %v92 = vunpack.c.l.b16 %v60
  %v93 = vunpack.c.l.b16 %v61
  %v94 = vunpack.c.l.b16 %v62
  %v95 = vunpack.c.l.b16 %v63
  %v96 = vunpack.c.l.b16 %v64
  %v97 = vunpack.c.l.b16 %v65
  %v98 = vunpack.c.l.b16 %v66
  %v99 = vunpack.c.l.b16 %v67
  %v100 = vpack.c.b16 %v85, %v84
  %v101 = vpack.c.b16 %v87, %v86
  %v102 = vpack.c.b16 %v89, %v88
  %v103 = vpack.c.b16 %v91, %v90
  %v104 = vpack.c.b16 %v93, %v92
  %v105 = vpack.c.b16 %v95, %v94
  %v106 = vpack.c.b16 %v97, %v96
  %v107 = vpack.c.b16 %v99, %v98
  %116 = vmatprep.subr.bf16.mxu0 0
  %117 = vmatpush1.bf16.msra.mxu0 %v107
  %118 = vmatprep.subr.bf16.mxu0 0
  %119 = vmatpush1.bf16.msra.mxu0 %v106
  %120 = vmatprep.subr.bf16.mxu0 0
  %121 = vmatpush1.bf16.msra.mxu0 %v105
  %122 = vmatprep.subr.bf16.mxu0 0
  %123 = vmatpush1.bf16.msra.mxu0 %v104
  %124 = vmatprep.subr.bf16.mxu0 0
  %125 = vmatpush1.bf16.msra.mxu0 %v103
  %126 = vmatprep.subr.bf16.mxu0 0
  %127 = vmatpush1.bf16.msra.mxu0 %v102
  %128 = vmatprep.subr.bf16.mxu0 0
  %129 = vmatpush1.bf16.msra.mxu0 %v101
  %130 = vmatprep.subr.bf16.mxu0 0
  %131 = vmatpush1.bf16.msra.mxu0 %v100
  %132 = vmatprep.subr.bf16.mxu0 0
  %133 = vmatpush2.bf16.msra.mxu0 0
  %134 = vmatprep.subr.bf16.mxu0 0
  %135 = vmatpush2.bf16.msra.mxu0 0
  %136 = vmatprep.subr.bf16.mxu0 0
  %137 = vmatpush2.bf16.msra.mxu0 0
  %138 = vmatprep.subr.bf16.mxu0 0
  %139 = vmatpush2.bf16.msra.mxu0 0
  %140 = vmatprep.subr.bf16.mxu0 0
  %141 = vmatpush2.bf16.msra.mxu0 0
  %142 = vmatprep.subr.bf16.mxu0 0
  %143 = vmatpush2.bf16.msra.mxu0 0
  %144 = vmatprep.subr.bf16.mxu0 0
  %145 = vmatpush2.bf16.msra.mxu0 0
  %146 = vmatprep.subr.bf16.mxu0 0
  %147 = vmatpush2.bf16.msra.mxu0 0
  %148 = vmatprep.mubr.bf16.mxu0 0
  %149 = vmatmul.mubr.bf16.gmra.mxu0 %v34
  %v150 = vpop.f32.mrf.mxu0
  %v151 = vadd.f32 0.0, %v150
  %v152 = vpop.f32.mrf.mxu0
  %v153 = vpop.f32.mrf.mxu0
  %v154 = vpop.f32.mrf.mxu0
  %155 = vdwg.mxu0
  %v172 = vunpack.c.l.b16 %v36
  %v173 = vunpack.c.l.b16 %v37
  %v174 = vunpack.c.l.b16 %v38
  %v175 = vunpack.c.l.b16 %v39
  %v176 = vunpack.c.l.b16 %v40
  %v177 = vunpack.c.l.b16 %v41
  %v178 = vunpack.c.l.b16 %v42
  %v179 = vunpack.c.l.b16 %v43
  %v180 = vunpack.c.l.b16 %v44
  %v181 = vunpack.c.l.b16 %v45
  %v182 = vunpack.c.l.b16 %v46
  %v183 = vunpack.c.l.b16 %v47
  %v184 = vunpack.c.l.b16 %v48
  %v185 = vunpack.c.l.b16 %v49
  %v186 = vunpack.c.l.b16 %v50
  %v187 = vunpack.c.l.b16 %v51
  %v188 = vpack.c.b16 %v173, %v172
  %v189 = vpack.c.b16 %v175, %v174
  %v190 = vpack.c.b16 %v177, %v176
  %v191 = vpack.c.b16 %v179, %v178
  %v192 = vpack.c.b16 %v181, %v180
  %v193 = vpack.c.b16 %v183, %v182
  %v194 = vpack.c.b16 %v185, %v184
  %v195 = vpack.c.b16 %v187, %v186
  %204 = vmatprep.subr.bf16.mxu0 0
  %205 = vmatpush1.bf16.msra.mxu0 %v195
  %206 = vmatprep.subr.bf16.mxu0 0
  %207 = vmatpush1.bf16.msra.mxu0 %v194
  %208 = vmatprep.subr.bf16.mxu0 0
  %209 = vmatpush1.bf16.msra.mxu0 %v193
  %210 = vmatprep.subr.bf16.mxu0 0
  %211 = vmatpush1.bf16.msra.mxu0 %v192
  %212 = vmatprep.subr.bf16.mxu0 0
  %213 = vmatpush1.bf16.msra.mxu0 %v191
  %214 = vmatprep.subr.bf16.mxu0 0
  %215 = vmatpush1.bf16.msra.mxu0 %v190
  %216 = vmatprep.subr.bf16.mxu0 0
  %217 = vmatpush1.bf16.msra.mxu0 %v189
  %218 = vmatprep.subr.bf16.mxu0 0
  %219 = vmatpush1.bf16.msra.mxu0 %v188
  %220 = vmatprep.subr.bf16.mxu0 0
  %221 = vmatpush2.bf16.msra.mxu0 0
  %222 = vmatprep.subr.bf16.mxu0 0
  %223 = vmatpush2.bf16.msra.mxu0 0
  %224 = vmatprep.subr.bf16.mxu0 0
  %225 = vmatpush2.bf16.msra.mxu0 0
  %226 = vmatprep.subr.bf16.mxu0 0
  %227 = vmatpush2.bf16.msra.mxu0 0
  %228 = vmatprep.subr.bf16.mxu0 0
  %229 = vmatpush2.bf16.msra.mxu0 0
  %230 = vmatprep.subr.bf16.mxu0 0
  %231 = vmatpush2.bf16.msra.mxu0 0
  %232 = vmatprep.subr.bf16.mxu0 0
  %233 = vmatpush2.bf16.msra.mxu0 0
  %234 = vmatprep.subr.bf16.mxu0 0
  %235 = vmatpush2.bf16.msra.mxu0 0
  %236 = vmatprep.mubr.bf16.mxu0 0
  %237 = vmatmul.mubr.bf16.gmra.mxu0 %v35
  %v238 = vpop.f32.mrf.mxu0
  %v239 = vadd.f32 %v151, %v238
  %v240 = vpop.f32.mrf.mxu0
  %v241 = vpop.f32.mrf.mxu0
  %v242 = vpop.f32.mrf.mxu0
  %243 = vdwg.mxu0
  %v244 = vld [vmem:[%s4] sm:$0x1]
  %v246 = vlaneseq
  %v247 = vshrl.u32 %v246, 7
  %v248 = vsub.s32 0, %v247
  %v249 = vrot.slane %v244, %v248
  %v251 = vadd.f32 %v239, %v249
  %v252 = vpack.c.bf16 %v251, %v251
  %v253 = vld [vmem:[%s5] sm:$0xf]
  %v254 = vld [vmem:[%s5 + $0x4] sm:$0xf]
  %v255 = vld [vmem:[%s5 + $0x8] sm:$0xf]
  %v256 = vld [vmem:[%s5 + $0xc] sm:$0xf]
  %v257 = vld [vmem:[%s5 + $0x10] sm:$0xf]
  %v258 = vld [vmem:[%s5 + $0x14] sm:$0xf]
  %v259 = vld [vmem:[%s5 + $0x18] sm:$0xf]
  %v260 = vld [vmem:[%s5 + $0x1c] sm:$0xf]
  %v261 = vld [vmem:[%s5 + $0x20] sm:$0xf]
  %v262 = vld [vmem:[%s5 + $0x24] sm:$0xf]
  %v263 = vld [vmem:[%s5 + $0x28] sm:$0xf]
  %v264 = vld [vmem:[%s5 + $0x2c] sm:$0xf]
  %v265 = vld [vmem:[%s5 + $0x30] sm:$0xf]
  %v266 = vld [vmem:[%s5 + $0x34] sm:$0xf]
  %v267 = vld [vmem:[%s5 + $0x38] sm:$0xf]
  %v268 = vld [vmem:[%s5 + $0x3c] sm:$0xf]
  %v285 = vunpack.c.l.b16 %v253
  %v286 = vunpack.c.l.b16 %v254
  %v287 = vunpack.c.l.b16 %v255
  %v288 = vunpack.c.l.b16 %v256
  %v289 = vunpack.c.l.b16 %v257
  %v290 = vunpack.c.l.b16 %v258
  %v291 = vunpack.c.l.b16 %v259
  %v292 = vunpack.c.l.b16 %v260
  %v293 = vunpack.c.l.b16 %v261
  %v294 = vunpack.c.l.b16 %v262
  %v295 = vunpack.c.l.b16 %v263
  %v296 = vunpack.c.l.b16 %v264
  %v297 = vunpack.c.l.b16 %v265
  %v298 = vunpack.c.l.b16 %v266
  %v299 = vunpack.c.l.b16 %v267
  %v300 = vunpack.c.l.b16 %v268
  %v301 = vpack.c.b16 %v286, %v285
  %v302 = vpack.c.b16 %v288, %v287
  %v303 = vpack.c.b16 %v290, %v289
  %v304 = vpack.c.b16 %v292, %v291
  %v305 = vpack.c.b16 %v294, %v293
  %v306 = vpack.c.b16 %v296, %v295
  %v307 = vpack.c.b16 %v298, %v297
  %v308 = vpack.c.b16 %v300, %v299
  %317 = vmatprep.subr.bf16.mxu0 0
  %318 = vmatpush1.bf16.msra.mxu0 %v308
  %319 = vmatprep.subr.bf16.mxu0 0
  %320 = vmatpush1.bf16.msra.mxu0 %v307
  %321 = vmatprep.subr.bf16.mxu0 0
  %322 = vmatpush1.bf16.msra.mxu0 %v306
  %323 = vmatprep.subr.bf16.mxu0 0
  %324 = vmatpush1.bf16.msra.mxu0 %v305
  %325 = vmatprep.subr.bf16.mxu0 0
  %326 = vmatpush1.bf16.msra.mxu0 %v304
  %327 = vmatprep.subr.bf16.mxu0 0
  %328 = vmatpush1.bf16.msra.mxu0 %v303
  %329 = vmatprep.subr.bf16.mxu0 0
  %330 = vmatpush1.bf16.msra.mxu0 %v302
  %331 = vmatprep.subr.bf16.mxu0 0
  %332 = vmatpush1.bf16.msra.mxu0 %v301
  %333 = vmatprep.subr.bf16.mxu0 0
  %334 = vmatpush2.bf16.msra.mxu0 0
  %335 = vmatprep.subr.bf16.mxu0 0
  %336 = vmatpush2.bf16.msra.mxu0 0
  %337 = vmatprep.subr.bf16.mxu0 0
  %338 = vmatpush2.bf16.msra.mxu0 0
  %339 = vmatprep.subr.bf16.mxu0 0
  %340 = vmatpush2.bf16.msra.mxu0 0
  %341 = vmatprep.subr.bf16.mxu0 0
  %342 = vmatpush2.bf16.msra.mxu0 0
  %343 = vmatprep.subr.bf16.mxu0 0
  %344 = vmatpush2.bf16.msra.mxu0 0
  %345 = vmatprep.subr.bf16.mxu0 0
  %346 = vmatpush2.bf16.msra.mxu0 0
  %347 = vmatprep.subr.bf16.mxu0 0
  %348 = vmatpush2.bf16.msra.mxu0 0
  %349 = vmatprep.mubr.bf16.mxu0 0
  %350 = vmatmul.mubr.bf16.gmra.mxu0 %v252
  %v351 = vpop.f32.mrf.mxu0
  %v352 = vadd.f32 0.0, %v351
  %v353 = vpop.f32.mrf.mxu0
  %v354 = vpop.f32.mrf.mxu0
  %v355 = vpop.f32.mrf.mxu0
  %356 = vdwg.mxu0
  %357 = vst [vmem:[%s6] sm:$0xff] %v352
  // Predicated region
  $region26: #{fwd.39} parent=0 // pred_check
    _
  $region27: #{fwd.39} parent=0 // pred_check_branch
    %359 = sbr.rel (0) target = $region29
  $region28: #{fwd.39} parent=0 // pred_region
    _
  $region29: #{fwd.39} parent=0 // pred_fallthru
    _
  // Predicated region
  $region30: #{fwd.39} parent=0 // pred_check
    _
  $region31: #{fwd.39} parent=0 // pred_check_branch
    %361 = sbr.rel (0) target = $region33
  $region32: #{fwd.39} parent=0 // pred_region
    _
  $region33: #{fwd.39} parent=0 // pred_fallthru
    _

// kernel: fwd.37
$region0: #{fwd.37}
  #allocation0 [shape = 'u32[]', space=smem, size = 0x4, offset = 0x4, fixed_abs, tag = 'smem constant byte address 0x4 - core index']
  #allocation1 [shape = 'u32[144,128]{1,0:T(1,128)}', space=vmem, size = 0x12000, scoped, tag = 'internal scratch']
  %s0 = inlined_call_operand.vmem [shape: bf16[128,128], index: 0, kind: input, shape index: {}]
  %s1 = inlined_call_operand.vmem [shape: bf16[128,128], index: 1, kind: input, shape index: {}]
  %s2 = inlined_call_operand.vmem [shape: bf16[128,128], index: 2, kind: input, shape index: {}]
  %s3 = inlined_call_operand.vmem [shape: bf16[128,128], index: 3, kind: input, shape index: {}]
  %s4 = inlined_call_operand.vmem [shape: f32[1,128], index: 4, kind: input, shape index: {}]
  %s5 = inlined_call_operand.vmem [shape: f32[1,128], index: 5, kind: input, shape index: {}]
  %s6 = inlined_call_operand.vmem [shape: f32[1,128], index: 6, kind: input, shape index: {}]
  %s7 = inlined_call_operand.vmem [shape: bf16[128,128], index: 7, kind: input, shape index: {}]
  %s8 = inlined_call_operand.vmem [shape: f32[1,128], index: 8, kind: input, shape index: {}]
  %s9 = inlined_call_operand.vmem [shape: bf16[128,128], index: 9, kind: output, shape index: {}]
  %s10 = sld [smem:[#allocation0]]
  $region46: #{fwd.37} parent=0
    _
  %s12 = ssub.s32 1, %s10
  %s13 = scalar_select 0, %s12, %s10
  // Predicated region
  $region2: #{fwd.37} parent=0 // pred_check
    _
  $region3: #{fwd.37} parent=0 // pred_check_branch
    %15 = sbr.rel (0) target = $region5
  $region4: #{fwd.37} parent=0 // pred_region
    _
  $region5: #{fwd.37} parent=0 // pred_fallthru
    _
  // Predicated region
  $region6: #{fwd.37} parent=0 // pred_check
    _
  $region7: #{fwd.37} parent=0 // pred_check_branch
    %17 = sbr.rel (0) target = $region9
  $region8: #{fwd.37} parent=0 // pred_region
    _
  $region9: #{fwd.37} parent=0 // pred_fallthru
    _
  // Predicated region
  $region10: #{fwd.37} parent=0 // pred_check
    _
  $region11: #{fwd.37} parent=0 // pred_check_branch
    %19 = sbr.rel (0) target = $region13
  $region12: #{fwd.37} parent=0 // pred_region
    _
  $region13: #{fwd.37} parent=0 // pred_fallthru
    _
  // Predicated region
  $region14: #{fwd.37} parent=0 // pred_check
    _
  $region15: #{fwd.37} parent=0 // pred_check_branch
    %21 = sbr.rel (0) target = $region17
  $region16: #{fwd.37} parent=0 // pred_region
    _
  $region17: #{fwd.37} parent=0 // pred_fallthru
    _
  // Predicated region
  $region18: #{fwd.37} parent=0 // pred_check
    _
  $region19: #{fwd.37} parent=0 // pred_check_branch
    %23 = sbr.rel (0) target = $region21
  $region20: #{fwd.37} parent=0 // pred_region
    _
  $region21: #{fwd.37} parent=0 // pred_fallthru
    _
  // Predicated region
  $region22: #{fwd.37} parent=0 // pred_check
    _
  $region23: #{fwd.37} parent=0 // pred_check_branch
    %25 = sbr.rel (0) target = $region25
  $region24: #{fwd.37} parent=0 // pred_region
    _
  $region25: #{fwd.37} parent=0 // pred_fallthru
    _
  // Predicated region
  $region26: #{fwd.37} parent=0 // pred_check
    _
  $region27: #{fwd.37} parent=0 // pred_check_branch
    %27 = sbr.rel (0) target = $region29
  $region28: #{fwd.37} parent=0 // pred_region
    _
  $region29: #{fwd.37} parent=0 // pred_fallthru
    _
  // Predicated region
  $region30: #{fwd.37} parent=0 // pred_check
    _
  $region31: #{fwd.37} parent=0 // pred_check_branch
    %29 = sbr.rel (0) target = $region33
  $region32: #{fwd.37} parent=0 // pred_region
    _
  $region33: #{fwd.37} parent=0 // pred_fallthru
    _
  // Predicated region
  $region34: #{fwd.37} parent=0 // pred_check
    _
  $region35: #{fwd.37} parent=0 // pred_check_branch
    %31 = sbr.rel (0) target = $region37
  $region36: #{fwd.37} parent=0 // pred_region
    _
  $region37: #{fwd.37} parent=0 // pred_fallthru
    _
  %v33 = vld [vmem:[%s0] sm:$0xf]
  %v34 = vld [vmem:[%s0 + $0x4] sm:$0xf]
  %v35 = vld [vmem:[%s0 + $0x8] sm:$0xf]
  %v36 = vld [vmem:[%s0 + $0xc] sm:$0xf]
  %v37 = vld [vmem:[%s0 + $0x10] sm:$0xf]
  %v38 = vld [vmem:[%s0 + $0x14] sm:$0xf]
  %v39 = vld [vmem:[%s0 + $0x18] sm:$0xf]
  %v40 = vld [vmem:[%s0 + $0x1c] sm:$0xf]
  %v41 = vld [vmem:[%s0 + $0x20] sm:$0xf]
  %v42 = vld [vmem:[%s0 + $0x24] sm:$0xf]
  %v43 = vld [vmem:[%s0 + $0x28] sm:$0xf]
  %v44 = vld [vmem:[%s0 + $0x2c] sm:$0xf]
  %v45 = vld [vmem:[%s0 + $0x30] sm:$0xf]
  %v46 = vld [vmem:[%s0 + $0x34] sm:$0xf]
  %v47 = vld [vmem:[%s0 + $0x38] sm:$0xf]
  %v48 = vld [vmem:[%s0 + $0x3c] sm:$0xf]
  %v49 = vld [vmem:[%s1] sm:$0xf]
  %v50 = vld [vmem:[%s1 + $0x4] sm:$0xf]
  %v51 = vld [vmem:[%s1 + $0x8] sm:$0xf]
  %v52 = vld [vmem:[%s1 + $0xc] sm:$0xf]
  %v53 = vld [vmem:[%s1 + $0x10] sm:$0xf]
  %v54 = vld [vmem:[%s1 + $0x14] sm:$0xf]
  %v55 = vld [vmem:[%s1 + $0x18] sm:$0xf]
  %v56 = vld [vmem:[%s1 + $0x1c] sm:$0xf]
  %v57 = vld [vmem:[%s1 + $0x20] sm:$0xf]
  %v58 = vld [vmem:[%s1 + $0x24] sm:$0xf]
  %v59 = vld [vmem:[%s1 + $0x28] sm:$0xf]
  %v60 = vld [vmem:[%s1 + $0x2c] sm:$0xf]
  %v61 = vld [vmem:[%s1 + $0x30] sm:$0xf]
  %v62 = vld [vmem:[%s1 + $0x34] sm:$0xf]
  %v63 = vld [vmem:[%s1 + $0x38] sm:$0xf]
  %v64 = vld [vmem:[%s1 + $0x3c] sm:$0xf]
  %v65 = vunpack.c.l.bf16 %v33
  %v66 = vunpack.c.l.bf16 %v34
  %v67 = vunpack.c.l.bf16 %v35
  %v68 = vunpack.c.l.bf16 %v36
  %v69 = vunpack.c.l.bf16 %v37
  %v70 = vunpack.c.l.bf16 %v38
  %v71 = vunpack.c.l.bf16 %v39
  %v72 = vunpack.c.l.bf16 %v40
  %v73 = vunpack.c.l.bf16 %v41
  %v74 = vunpack.c.l.bf16 %v42
  %v75 = vunpack.c.l.bf16 %v43
  %v76 = vunpack.c.l.bf16 %v44
  %v77 = vunpack.c.l.bf16 %v45
  %v78 = vunpack.c.l.bf16 %v46
  %v79 = vunpack.c.l.bf16 %v47
  %v80 = vunpack.c.l.bf16 %v48
  %v81 = vunpack.c.l.bf16 %v49
  %v82 = vunpack.c.l.bf16 %v50
  %v83 = vunpack.c.l.bf16 %v51
  %v84 = vunpack.c.l.bf16 %v52
  %v85 = vunpack.c.l.bf16 %v53
  %v86 = vunpack.c.l.bf16 %v54
  %v87 = vunpack.c.l.bf16 %v55
  %v88 = vunpack.c.l.bf16 %v56
  %v89 = vunpack.c.l.bf16 %v57
  %v90 = vunpack.c.l.bf16 %v58
  %v91 = vunpack.c.l.bf16 %v59
  %v92 = vunpack.c.l.bf16 %v60
  %v93 = vunpack.c.l.bf16 %v61
  %v94 = vunpack.c.l.bf16 %v62
  %v95 = vunpack.c.l.bf16 %v63
  %v96 = vunpack.c.l.bf16 %v64
  %v97 = vsub.f32 %v65, %v81
  %v98 = vsub.f32 %v66, %v82
  %v99 = vsub.f32 %v67, %v83
  %v100 = vsub.f32 %v68, %v84
  %v101 = vsub.f32 %v69, %v85
  %v102 = vsub.f32 %v70, %v86
  %v103 = vsub.f32 %v71, %v87
  %v104 = vsub.f32 %v72, %v88
  %v105 = vsub.f32 %v73, %v89
  %v106 = vsub.f32 %v74, %v90
  %v107 = vsub.f32 %v75, %v91
  %v108 = vsub.f32 %v76, %v92
  %v109 = vsub.f32 %v77, %v93
  %v110 = vsub.f32 %v78, %v94
  %v111 = vsub.f32 %v79, %v95
  %v112 = vsub.f32 %v80, %v96
  %v113 = vmul.f32 %v97, %v97
  %v114 = vmul.f32 %v98, %v98
  %v115 = vmul.f32 %v99, %v99
  %v116 = vmul.f32 %v100, %v100
  %v117 = vmul.f32 %v101, %v101
  %v118 = vmul.f32 %v102, %v102
  %v119 = vmul.f32 %v103, %v103
  %v120 = vmul.f32 %v104, %v104
  %v121 = vmul.f32 %v105, %v105
  %v122 = vmul.f32 %v106, %v106
  %v123 = vmul.f32 %v107, %v107
  %v124 = vmul.f32 %v108, %v108
  %v125 = vmul.f32 %v109, %v109
  %v126 = vmul.f32 %v110, %v110
  %v127 = vmul.f32 %v111, %v111
  %v128 = vmul.f32 %v112, %v112
  %129 = vadd.xlane.f32.xlu0 %v113
  %v130 = vpop.xlane.xlu0 %129
  %131 = vadd.xlane.f32.xlu0 %v114
  %v132 = vpop.xlane.xlu0 %131
  %133 = vadd.xlane.f32.xlu0 %v115
  %v134 = vpop.xlane.xlu0 %133
  %135 = vadd.xlane.f32.xlu0 %v116
  %v136 = vpop.xlane.xlu0 %135
  %137 = vadd.xlane.f32.xlu0 %v117
  %v138 = vpop.xlane.xlu0 %137
  %139 = vadd.xlane.f32.xlu0 %v118
  %v140 = vpop.xlane.xlu0 %139
  %141 = vadd.xlane.f32.xlu0 %v119
  %v142 = vpop.xlane.xlu0 %141
  %143 = vadd.xlane.f32.xlu0 %v120
  %v144 = vpop.xlane.xlu0 %143
  %145 = vadd.xlane.f32.xlu0 %v121
  %v146 = vpop.xlane.xlu0 %145
  %147 = vadd.xlane.f32.xlu0 %v122
  %v148 = vpop.xlane.xlu0 %147
  %149 = vadd.xlane.f32.xlu0 %v123
  %v150 = vpop.xlane.xlu0 %149
  %151 = vadd.xlane.f32.xlu0 %v124
  %v152 = vpop.xlane.xlu0 %151
  %153 = vadd.xlane.f32.xlu0 %v125
  %v154 = vpop.xlane.xlu0 %153
  %155 = vadd.xlane.f32.xlu0 %v126
  %v156 = vpop.xlane.xlu0 %155
  %157 = vadd.xlane.f32.xlu0 %v127
  %v158 = vpop.xlane.xlu0 %157
  %159 = vadd.xlane.f32.xlu0 %v128
  %v160 = vpop.xlane.xlu0 %159
  %v161 = vrsqrt.pop %v130
  %v162 = vmul.f32 %v130, %v161
  %vm163 = vcmp.eq.f32.partialorder %v130, inf
  %v164 = vsel %vm163, %v130, %v162
  %vm165 = vcmp.eq.f32.partialorder %v130, 0.0
  %v166 = vand.u32 %v130, 2147483648
  %v167 = vsel %vm165, %v166, %v164
  %v168 = vrsqrt.pop %v132
  %v169 = vmul.f32 %v132, %v168
  %vm170 = vcmp.eq.f32.partialorder %v132, inf
  %v171 = vsel %vm170, %v132, %v169
  %vm172 = vcmp.eq.f32.partialorder %v132, 0.0
  %v173 = vand.u32 %v132, 2147483648
  %v174 = vsel %vm172, %v173, %v171
  %v175 = vrsqrt.pop %v134
  %v176 = vmul.f32 %v134, %v175
  %vm177 = vcmp.eq.f32.partialorder %v134, inf
  %v178 = vsel %vm177, %v134, %v176
  %vm179 = vcmp.eq.f32.partialorder %v134, 0.0
  %v180 = vand.u32 %v134, 2147483648
  %v181 = vsel %vm179, %v180, %v178
  %v182 = vrsqrt.pop %v136
  %v183 = vmul.f32 %v136, %v182
  %vm184 = vcmp.eq.f32.partialorder %v136, inf
  %v185 = vsel %vm184, %v136, %v183
  %vm186 = vcmp.eq.f32.partialorder %v136, 0.0
  %v187 = vand.u32 %v136, 2147483648
  %v188 = vsel %vm186, %v187, %v185
  %v189 = vrsqrt.pop %v138
  %v190 = vmul.f32 %v138, %v189
  %vm191 = vcmp.eq.f32.partialorder %v138, inf
  %v192 = vsel %vm191, %v138, %v190
  %vm193 = vcmp.eq.f32.partialorder %v138, 0.0
  %v194 = vand.u32 %v138, 2147483648
  %v195 = vsel %vm193, %v194, %v192
  %v196 = vrsqrt.pop %v140
  %v197 = vmul.f32 %v140, %v196
  %vm198 = vcmp.eq.f32.partialorder %v140, inf
  %v199 = vsel %vm198, %v140, %v197
  %vm200 = vcmp.eq.f32.partialorder %v140, 0.0
  %v201 = vand.u32 %v140, 2147483648
  %v202 = vsel %vm200, %v201, %v199
  %v203 = vrsqrt.pop %v142
  %v204 = vmul.f32 %v142, %v203
  %vm205 = vcmp.eq.f32.partialorder %v142, inf
  %v206 = vsel %vm205, %v142, %v204
  %vm207 = vcmp.eq.f32.partialorder %v142, 0.0
  %v208 = vand.u32 %v142, 2147483648
  %v209 = vsel %vm207, %v208, %v206
  %v210 = vrsqrt.pop %v144
  %v211 = vmul.f32 %v144, %v210
  %vm212 = vcmp.eq.f32.partialorder %v144, inf
  %v213 = vsel %vm212, %v144, %v211
  %vm214 = vcmp.eq.f32.partialorder %v144, 0.0
  %v215 = vand.u32 %v144, 2147483648
  %v216 = vsel %vm214, %v215, %v213
  %v217 = vrsqrt.pop %v146
  %v218 = vmul.f32 %v146, %v217
  %vm219 = vcmp.eq.f32.partialorder %v146, inf
  %v220 = vsel %vm219, %v146, %v218
  %vm221 = vcmp.eq.f32.partialorder %v146, 0.0
  %v222 = vand.u32 %v146, 2147483648
  %v223 = vsel %vm221, %v222, %v220
  %v224 = vrsqrt.pop %v148
  %v225 = vmul.f32 %v148, %v224
  %vm226 = vcmp.eq.f32.partialorder %v148, inf
  %v227 = vsel %vm226, %v148, %v225
  %vm228 = vcmp.eq.f32.partialorder %v148, 0.0
  %v229 = vand.u32 %v148, 2147483648
  %v230 = vsel %vm228, %v229, %v227
  %v231 = vrsqrt.pop %v150
  %v232 = vmul.f32 %v150, %v231
  %vm233 = vcmp.eq.f32.partialorder %v150, inf
  %v234 = vsel %vm233, %v150, %v232
  %vm235 = vcmp.eq.f32.partialorder %v150, 0.0
  %v236 = vand.u32 %v150, 2147483648
  %v237 = vsel %vm235, %v236, %v234
  %v238 = vrsqrt.pop %v152
  %v239 = vmul.f32 %v152, %v238
  %vm240 = vcmp.eq.f32.partialorder %v152, inf
  %v241 = vsel %vm240, %v152, %v239
  %vm242 = vcmp.eq.f32.partialorder %v152, 0.0
  %v243 = vand.u32 %v152, 2147483648
  %v244 = vsel %vm242, %v243, %v241
  %v245 = vrsqrt.pop %v154
  %v246 = vmul.f32 %v154, %v245
  %vm247 = vcmp.eq.f32.partialorder %v154, inf
  %v248 = vsel %vm247, %v154, %v246
  %vm249 = vcmp.eq.f32.partialorder %v154, 0.0
  %v250 = vand.u32 %v154, 2147483648
  %v251 = vsel %vm249, %v250, %v248
  %v252 = vrsqrt.pop %v156
  %v253 = vmul.f32 %v156, %v252
  %vm254 = vcmp.eq.f32.partialorder %v156, inf
  %v255 = vsel %vm254, %v156, %v253
  %vm256 = vcmp.eq.f32.partialorder %v156, 0.0
  %v257 = vand.u32 %v156, 2147483648
  %v258 = vsel %vm256, %v257, %v255
  %v259 = vrsqrt.pop %v158
  %v260 = vmul.f32 %v158, %v259
  %vm261 = vcmp.eq.f32.partialorder %v158, inf
  %v262 = vsel %vm261, %v158, %v260
  %vm263 = vcmp.eq.f32.partialorder %v158, 0.0
  %v264 = vand.u32 %v158, 2147483648
  %v265 = vsel %vm263, %v264, %v262
  %v266 = vrsqrt.pop %v160
  %v267 = vmul.f32 %v160, %v266
  %vm268 = vcmp.eq.f32.partialorder %v160, inf
  %v269 = vsel %vm268, %v160, %v267
  %vm270 = vcmp.eq.f32.partialorder %v160, 0.0
  %v271 = vand.u32 %v160, 2147483648
  %v272 = vsel %vm270, %v271, %v269
  %v273 = vmul.f32 %v65, %v81
  %v274 = vmul.f32 %v66, %v82
  %v275 = vmul.f32 %v67, %v83
  %v276 = vmul.f32 %v68, %v84
  %v277 = vmul.f32 %v69, %v85
  %v278 = vmul.f32 %v70, %v86
  %v279 = vmul.f32 %v71, %v87
  %v280 = vmul.f32 %v72, %v88
  %v281 = vmul.f32 %v73, %v89
  %v282 = vmul.f32 %v74, %v90
  %v283 = vmul.f32 %v75, %v91
  %v284 = vmul.f32 %v76, %v92
  %v285 = vmul.f32 %v77, %v93
  %v286 = vmul.f32 %v78, %v94
  %v287 = vmul.f32 %v79, %v95
  %v288 = vmul.f32 %v80, %v96
  %289 = vadd.xlane.f32.xlu0 %v273
  %v290 = vpop.xlane.xlu0 %289
  %291 = vadd.xlane.f32.xlu0 %v274
  %v292 = vpop.xlane.xlu0 %291
  %293 = vadd.xlane.f32.xlu0 %v275
  %v294 = vpop.xlane.xlu0 %293
  %295 = vadd.xlane.f32.xlu0 %v276
  %v296 = vpop.xlane.xlu0 %295
  %297 = vadd.xlane.f32.xlu0 %v277
  %v298 = vpop.xlane.xlu0 %297
  %299 = vadd.xlane.f32.xlu0 %v278
  %v300 = vpop.xlane.xlu0 %299
  %301 = vadd.xlane.f32.xlu0 %v279
  %v302 = vpop.xlane.xlu0 %301
  %303 = vadd.xlane.f32.xlu0 %v280
  %v304 = vpop.xlane.xlu0 %303
  %305 = vadd.xlane.f32.xlu0 %v281
  %v306 = vpop.xlane.xlu0 %305
  %307 = vadd.xlane.f32.xlu0 %v282
  %v308 = vpop.xlane.xlu0 %307
  %309 = vadd.xlane.f32.xlu0 %v283
  %v310 = vpop.xlane.xlu0 %309
  %311 = vadd.xlane.f32.xlu0 %v284
  %v312 = vpop.xlane.xlu0 %311
  %313 = vadd.xlane.f32.xlu0 %v285
  %v314 = vpop.xlane.xlu0 %313
  %315 = vadd.xlane.f32.xlu0 %v286
  %v316 = vpop.xlane.xlu0 %315
  %317 = vadd.xlane.f32.xlu0 %v287
  %v318 = vpop.xlane.xlu0 %317
  %319 = vadd.xlane.f32.xlu0 %v288
  %v320 = vpop.xlane.xlu0 %319
  %v321 = vmul.f32 %v167, 2.0
  %v322 = vmul.f32 %v174, 2.0
  %v323 = vmul.f32 %v181, 2.0
  %v324 = vmul.f32 %v188, 2.0
  %v325 = vmul.f32 %v195, 2.0
  %v326 = vmul.f32 %v202, 2.0
  %v327 = vmul.f32 %v209, 2.0
  %v328 = vmul.f32 %v216, 2.0
  %v329 = vmul.f32 %v223, 2.0
  %v330 = vmul.f32 %v230, 2.0
  %v331 = vmul.f32 %v237, 2.0
  %v332 = vmul.f32 %v244, 2.0
  %v333 = vmul.f32 %v251, 2.0
  %v334 = vmul.f32 %v258, 2.0
  %v335 = vmul.f32 %v265, 2.0
  %v336 = vmul.f32 %v272, 2.0
  %v337 = vmul.f32 %v167, %v167
  %v338 = vmul.f32 %v174, %v174
  %v339 = vmul.f32 %v181, %v181
  %v340 = vmul.f32 %v188, %v188
  %v341 = vmul.f32 %v195, %v195
  %v342 = vmul.f32 %v202, %v202
  %v343 = vmul.f32 %v209, %v209
  %v344 = vmul.f32 %v216, %v216
  %v345 = vmul.f32 %v223, %v223
  %v346 = vmul.f32 %v230, %v230
  %v347 = vmul.f32 %v237, %v237
  %v348 = vmul.f32 %v244, %v244
  %v349 = vmul.f32 %v251, %v251
  %v350 = vmul.f32 %v258, %v258
  %v351 = vmul.f32 %v265, %v265
  %v352 = vmul.f32 %v272, %v272
  %v353 = vmul.f32 %v337, %v167
  %v354 = vmul.f32 %v338, %v174
  %v355 = vmul.f32 %v339, %v181
  %v356 = vmul.f32 %v340, %v188
  %v357 = vmul.f32 %v341, %v195
  %v358 = vmul.f32 %v342, %v202
  %v359 = vmul.f32 %v343, %v209
  %v360 = vmul.f32 %v344, %v216
  %v361 = vmul.f32 %v345, %v223
  %v362 = vmul.f32 %v346, %v230
  %v363 = vmul.f32 %v347, %v237
  %v364 = vmul.f32 %v348, %v244
  %v365 = vmul.f32 %v349, %v251
  %v366 = vmul.f32 %v350, %v258
  %v367 = vmul.f32 %v351, %v265
  %v368 = vmul.f32 %v352, %v272
  %v369 = vmul.f32 %v353, 0.33333334
  %v370 = vmul.f32 %v354, 0.33333334
  %v371 = vmul.f32 %v355, 0.33333334
  %v372 = vmul.f32 %v356, 0.33333334
  %v373 = vmul.f32 %v357, 0.33333334
  %v374 = vmul.f32 %v358, 0.33333334
  %v375 = vmul.f32 %v359, 0.33333334
  %v376 = vmul.f32 %v360, 0.33333334
  %v377 = vmul.f32 %v361, 0.33333334
  %v378 = vmul.f32 %v362, 0.33333334
  %v379 = vmul.f32 %v363, 0.33333334
  %v380 = vmul.f32 %v364, 0.33333334
  %v381 = vmul.f32 %v365, 0.33333334
  %v382 = vmul.f32 %v366, 0.33333334
  %v383 = vmul.f32 %v367, 0.33333334
  %v384 = vmul.f32 %v368, 0.33333334
  %v385 = vmul.f32 %v290, %v167
  %v386 = vmul.f32 %v292, %v174
  %v387 = vmul.f32 %v294, %v181
  %v388 = vmul.f32 %v296, %v188
  %v389 = vmul.f32 %v298, %v195
  %v390 = vmul.f32 %v300, %v202
  %v391 = vmul.f32 %v302, %v209
  %v392 = vmul.f32 %v304, %v216
  %v393 = vmul.f32 %v306, %v223
  %v394 = vmul.f32 %v308, %v230
  %v395 = vmul.f32 %v310, %v237
  %v396 = vmul.f32 %v312, %v244
  %v397 = vmul.f32 %v314, %v251
  %v398 = vmul.f32 %v316, %v258
  %v399 = vmul.f32 %v318, %v265
  %v400 = vmul.f32 %v320, %v272
  %v401 = vmul.f32 %v385, %v167
  %v402 = vmul.f32 %v386, %v174
  %v403 = vmul.f32 %v387, %v181
  %v404 = vmul.f32 %v388, %v188
  %v405 = vmul.f32 %v389, %v195
  %v406 = vmul.f32 %v390, %v202
  %v407 = vmul.f32 %v391, %v209
  %v408 = vmul.f32 %v392, %v216
  %v409 = vmul.f32 %v393, %v223
  %v410 = vmul.f32 %v394, %v230
  %v411 = vmul.f32 %v395, %v237
  %v412 = vmul.f32 %v396, %v244
  %v413 = vmul.f32 %v397, %v251
  %v414 = vmul.f32 %v398, %v258
  %v415 = vmul.f32 %v399, %v265
  %v416 = vmul.f32 %v400, %v272
  %v417 = vadd.f32 %v369, %v401
  %v418 = vadd.f32 %v370, %v402
  %v419 = vadd.f32 %v371, %v403
  %v420 = vadd.f32 %v372, %v404
  %v421 = vadd.f32 %v373, %v405
  %v422 = vadd.f32 %v374, %v406
  %v423 = vadd.f32 %v375, %v407
  %v424 = vadd.f32 %v376, %v408
  %v425 = vadd.f32 %v377, %v409
  %v426 = vadd.f32 %v378, %v410
  %v427 = vadd.f32 %v379, %v411
  %v428 = vadd.f32 %v380, %v412
  %v429 = vadd.f32 %v381, %v413
  %v430 = vadd.f32 %v382, %v414
  %v431 = vadd.f32 %v383, %v415
  %v432 = vadd.f32 %v384, %v416
  %v433 = vsub.f32 %v321, %v417
  %v434 = vsub.f32 %v322, %v418
  %v435 = vsub.f32 %v323, %v419
  %v436 = vsub.f32 %v324, %v420
  %v437 = vsub.f32 %v325, %v421
  %v438 = vsub.f32 %v326, %v422
  %v439 = vsub.f32 %v327, %v423
  %v440 = vsub.f32 %v328, %v424
  %v441 = vsub.f32 %v329, %v425
  %v442 = vsub.f32 %v330, %v426
  %v443 = vsub.f32 %v331, %v427
  %v444 = vsub.f32 %v332, %v428
  %v445 = vsub.f32 %v333, %v429
  %v446 = vsub.f32 %v334, %v430
  %v447 = vsub.f32 %v335, %v431
  %v448 = vsub.f32 %v336, %v432
  %v449 = vmul.f32 %v433, 1.442695
  %v450 = vpow.pop %v449
  %v451 = vmul.f32 %v434, 1.442695
  %v452 = vpow.pop %v451
  %v453 = vmul.f32 %v435, 1.442695
  %v454 = vpow.pop %v453
  %v455 = vmul.f32 %v436, 1.442695
  %v456 = vpow.pop %v455
  %v457 = vmul.f32 %v437, 1.442695
  %v458 = vpow.pop %v457
  %v459 = vmul.f32 %v438, 1.442695
  %v460 = vpow.pop %v459
  %v461 = vmul.f32 %v439, 1.442695
  %v462 = vpow.pop %v461
  %v463 = vmul.f32 %v440, 1.442695
  %v464 = vpow.pop %v463
  %v465 = vmul.f32 %v441, 1.442695
  %v466 = vpow.pop %v465
  %v467 = vmul.f32 %v442, 1.442695
  %v468 = vpow.pop %v467
  %v469 = vmul.f32 %v443, 1.442695
  %v470 = vpow.pop %v469
  %v471 = vmul.f32 %v444, 1.442695
  %v472 = vpow.pop %v471
  %v473 = vmul.f32 %v445, 1.442695
  %v474 = vpow.pop %v473
  %v475 = vmul.f32 %v446, 1.442695
  %v476 = vpow.pop %v475
  %v477 = vmul.f32 %v447, 1.442695
  %v478 = vpow.pop %v477
  %v479 = vmul.f32 %v448, 1.442695
  %v480 = vpow.pop %v479
  %v481 = vadd.f32 %v450, 1.0
  %v482 = vadd.f32 %v452, 1.0
  %v483 = vadd.f32 %v454, 1.0
  %v484 = vadd.f32 %v456, 1.0
  %v485 = vadd.f32 %v458, 1.0
  %v486 = vadd.f32 %v460, 1.0
  %v487 = vadd.f32 %v462, 1.0
  %v488 = vadd.f32 %v464, 1.0
  %v489 = vadd.f32 %v466, 1.0
  %v490 = vadd.f32 %v468, 1.0
  %v491 = vadd.f32 %v470, 1.0
  %v492 = vadd.f32 %v472, 1.0
  %v493 = vadd.f32 %v474, 1.0
  %v494 = vadd.f32 %v476, 1.0
  %v495 = vadd.f32 %v478, 1.0
  %v496 = vadd.f32 %v480, 1.0
  %v497 = vrcp.pop %v481
  %v498 = vmul.f32 1.0, %v497
  %v499 = vrcp.pop %v482
  %v500 = vmul.f32 1.0, %v499
  %v501 = vrcp.pop %v483
  %v502 = vmul.f32 1.0, %v501
  %v503 = vrcp.pop %v484
  %v504 = vmul.f32 1.0, %v503
  %v505 = vrcp.pop %v485
  %v506 = vmul.f32 1.0, %v505
  %v507 = vrcp.pop %v486
  %v508 = vmul.f32 1.0, %v507
  %v509 = vrcp.pop %v487
  %v510 = vmul.f32 1.0, %v509
  %v511 = vrcp.pop %v488
  %v512 = vmul.f32 1.0, %v511
  %v513 = vrcp.pop %v489
  %v514 = vmul.f32 1.0, %v513
  %v515 = vrcp.pop %v490
  %v516 = vmul.f32 1.0, %v515
  %v517 = vrcp.pop %v491
  %v518 = vmul.f32 1.0, %v517
  %v519 = vrcp.pop %v492
  %v520 = vmul.f32 1.0, %v519
  %v521 = vrcp.pop %v493
  %v522 = vmul.f32 1.0, %v521
  %v523 = vrcp.pop %v494
  %v524 = vmul.f32 1.0, %v523
  %v525 = vrcp.pop %v495
  %v526 = vmul.f32 1.0, %v525
  %v527 = vrcp.pop %v496
  %v528 = vmul.f32 1.0, %v527
  %v529 = vadd.f32 %v498, 1.0
  %v530 = vadd.f32 %v500, 1.0
  %v531 = vadd.f32 %v502, 1.0
  %v532 = vadd.f32 %v504, 1.0
  %v533 = vadd.f32 %v506, 1.0
  %v534 = vadd.f32 %v508, 1.0
  %v535 = vadd.f32 %v510, 1.0
  %v536 = vadd.f32 %v512, 1.0
  %v537 = vadd.f32 %v514, 1.0
  %v538 = vadd.f32 %v516, 1.0
  %v539 = vadd.f32 %v518, 1.0
  %v540 = vadd.f32 %v520, 1.0
  %v541 = vadd.f32 %v522, 1.0
  %v542 = vadd.f32 %v524, 1.0
  %v543 = vadd.f32 %v526, 1.0
  %v544 = vadd.f32 %v528, 1.0
  %v545 = vmul.f32 %v529, %v65
  %v546 = vmul.f32 %v530, %v66
  %v547 = vmul.f32 %v531, %v67
  %v548 = vmul.f32 %v532, %v68
  %v549 = vmul.f32 %v533, %v69
  %v550 = vmul.f32 %v534, %v70
  %v551 = vmul.f32 %v535, %v71
  %v552 = vmul.f32 %v536, %v72
  %v553 = vmul.f32 %v537, %v73
  %v554 = vmul.f32 %v538, %v74
  %v555 = vmul.f32 %v539, %v75
  %v556 = vmul.f32 %v540, %v76
  %v557 = vmul.f32 %v541, %v77
  %v558 = vmul.f32 %v542, %v78
  %v559 = vmul.f32 %v543, %v79
  %v560 = vmul.f32 %v544, %v80
  %v561 = vpack.c.bf16 %v546, %v545
  %v562 = vpack.c.bf16 %v548, %v547
  %v563 = vpack.c.bf16 %v550, %v549
  %v564 = vpack.c.bf16 %v552, %v551
  %v565 = vpack.c.bf16 %v554, %v553
  %v566 = vpack.c.bf16 %v556, %v555
  %v567 = vpack.c.bf16 %v558, %v557
  %v568 = vpack.c.bf16 %v560, %v559
  %v569 = vld [vmem:[%s2] sm:$0xf]
  %v570 = vld [vmem:[%s2 + $0x4] sm:$0xf]
  %v571 = vld [vmem:[%s2 + $0x8] sm:$0xf]
  %v572 = vld [vmem:[%s2 + $0xc] sm:$0xf]
  %v573 = vld [vmem:[%s2 + $0x10] sm:$0xf]
  %v574 = vld [vmem:[%s2 + $0x14] sm:$0xf]
  %v575 = vld [vmem:[%s2 + $0x18] sm:$0xf]
  %v576 = vld [vmem:[%s2 + $0x1c] sm:$0xf]
  %v577 = vld [vmem:[%s2 + $0x20] sm:$0xf]
  %v578 = vld [vmem:[%s2 + $0x24] sm:$0xf]
  %v579 = vld [vmem:[%s2 + $0x28] sm:$0xf]
  %v580 = vld [vmem:[%s2 + $0x2c] sm:$0xf]
  %v581 = vld [vmem:[%s2 + $0x30] sm:$0xf]
  %v582 = vld [vmem:[%s2 + $0x34] sm:$0xf]
  %v583 = vld [vmem:[%s2 + $0x38] sm:$0xf]
  %v584 = vld [vmem:[%s2 + $0x3c] sm:$0xf]
  %v585 = vld [vmem:[%s3] sm:$0xf]
  %v586 = vld [vmem:[%s3 + $0x4] sm:$0xf]
  %v587 = vld [vmem:[%s3 + $0x8] sm:$0xf]
  %v588 = vld [vmem:[%s3 + $0xc] sm:$0xf]
  %v589 = vld [vmem:[%s3 + $0x10] sm:$0xf]
  %v590 = vld [vmem:[%s3 + $0x14] sm:$0xf]
  %v591 = vld [vmem:[%s3 + $0x18] sm:$0xf]
  %v592 = vld [vmem:[%s3 + $0x1c] sm:$0xf]
  %v593 = vld [vmem:[%s3 + $0x20] sm:$0xf]
  %v594 = vld [vmem:[%s3 + $0x24] sm:$0xf]
  %v595 = vld [vmem:[%s3 + $0x28] sm:$0xf]
  %v596 = vld [vmem:[%s3 + $0x2c] sm:$0xf]
  %v597 = vld [vmem:[%s3 + $0x30] sm:$0xf]
  %v598 = vld [vmem:[%s3 + $0x34] sm:$0xf]
  %v599 = vld [vmem:[%s3 + $0x38] sm:$0xf]
  %v600 = vld [vmem:[%s3 + $0x3c] sm:$0xf]
  %v617 = vunpack.c.l.b16 %v49
  %v618 = vunpack.c.l.b16 %v50
  %v619 = vunpack.c.l.b16 %v51
  %v620 = vunpack.c.l.b16 %v52
  %v621 = vunpack.c.l.b16 %v53
  %v622 = vunpack.c.l.b16 %v54
  %v623 = vunpack.c.l.b16 %v55
  %v624 = vunpack.c.l.b16 %v56
  %v625 = vunpack.c.l.b16 %v57
  %v626 = vunpack.c.l.b16 %v58
  %v627 = vunpack.c.l.b16 %v59
  %v628 = vunpack.c.l.b16 %v60
  %v629 = vunpack.c.l.b16 %v61
  %v630 = vunpack.c.l.b16 %v62
  %v631 = vunpack.c.l.b16 %v63
  %v632 = vunpack.c.l.b16 %v64
  %v633 = vpack.c.b16 %v618, %v617
  %v634 = vpack.c.b16 %v620, %v619
  %v635 = vpack.c.b16 %v622, %v621
  %v636 = vpack.c.b16 %v624, %v623
  %v637 = vpack.c.b16 %v626, %v625
  %v638 = vpack.c.b16 %v628, %v627
  %v639 = vpack.c.b16 %v630, %v629
  %v640 = vpack.c.b16 %v632, %v631
  %v665 = vunpack.c.l.b16 %v585
  %v666 = vunpack.c.l.b16 %v586
  %v667 = vunpack.c.l.b16 %v587
  %v668 = vunpack.c.l.b16 %v588
  %v669 = vunpack.c.l.b16 %v589
  %v670 = vunpack.c.l.b16 %v590
  %v671 = vunpack.c.l.b16 %v591
  %v672 = vunpack.c.l.b16 %v592
  %v673 = vunpack.c.l.b16 %v593
  %v674 = vunpack.c.l.b16 %v594
  %v675 = vunpack.c.l.b16 %v595
  %v676 = vunpack.c.l.b16 %v596
  %v677 = vunpack.c.l.b16 %v597
  %v678 = vunpack.c.l.b16 %v598
  %v679 = vunpack.c.l.b16 %v599
  %v680 = vunpack.c.l.b16 %v600
  %v681 = vpack.c.b16 %v666, %v665
  %v682 = vpack.c.b16 %v668, %v667
  %v683 = vpack.c.b16 %v670, %v669
  %v684 = vpack.c.b16 %v672, %v671
  %v685 = vpack.c.b16 %v674, %v673
  %v686 = vpack.c.b16 %v676, %v675
  %v687 = vpack.c.b16 %v678, %v677
  %v688 = vpack.c.b16 %v680, %v679
  %697 = vmatprep.subr.bf16.mxu0 0
  %698 = vmatpush1.bf16.msra.mxu0 %v688
  %699 = vmatprep.subr.bf16.mxu0 0
  %700 = vmatpush1.bf16.msra.mxu0 %v687
  %701 = vmatprep.subr.bf16.mxu0 0
  %702 = vmatpush1.bf16.msra.mxu0 %v686
  %703 = vmatprep.subr.bf16.mxu0 0
  %704 = vmatpush1.bf16.msra.mxu0 %v685
  %705 = vmatprep.subr.bf16.mxu0 0
  %706 = vmatpush1.bf16.msra.mxu0 %v684
  %707 = vmatprep.subr.bf16.mxu0 0
  %708 = vmatpush1.bf16.msra.mxu0 %v683
  %709 = vmatprep.subr.bf16.mxu0 0
  %710 = vmatpush1.bf16.msra.mxu0 %v682
  %711 = vmatprep.subr.bf16.mxu0 0
  %712 = vmatpush1.bf16.msra.mxu0 %v681
  %713 = vmatprep.subr.bf16.mxu0 0
  %714 = vmatpush2.bf16.msra.mxu0 0
  %715 = vmatprep.subr.bf16.mxu0 0
  %716 = vmatpush2.bf16.msra.mxu0 0
  %717 = vmatprep.subr.bf16.mxu0 0
  %718 = vmatpush2.bf16.msra.mxu0 0
  %719 = vmatprep.subr.bf16.mxu0 0
  %720 = vmatpush2.bf16.msra.mxu0 0
  %721 = vmatprep.subr.bf16.mxu0 0
  %722 = vmatpush2.bf16.msra.mxu0 0
  %723 = vmatprep.subr.bf16.mxu0 0
  %724 = vmatpush2.bf16.msra.mxu0 0
  %725 = vmatprep.subr.bf16.mxu0 0
  %726 = vmatpush2.bf16.msra.mxu0 0
  %727 = vmatprep.subr.bf16.mxu0 0
  %728 = vmatpush2.bf16.msra.mxu0 0
  %729 = vmatprep.mubr.bf16.mxu0 0
  %730 = vmatmul.mubr.bf16.gmra.mxu0 %v633
  %v731 = vpop.f32.mrf.mxu0
  %v732 = vadd.f32 0.0, %v731
  %v733 = vpop.f32.mrf.mxu0
  %v734 = vpop.f32.mrf.mxu0
  %v735 = vadd.f32 0.0, %v734
  %v736 = vpop.f32.mrf.mxu0
  %737 = vmatprep.mubr.bf16.mxu0 0
  %738 = vmatmul.mubr.bf16.gmra.mxu0 %v634
  %v739 = vpop.f32.mrf.mxu0
  %v740 = vadd.f32 0.0, %v739
  %v741 = vpop.f32.mrf.mxu0
  %v742 = vpop.f32.mrf.mxu0
  %v743 = vadd.f32 0.0, %v742
  %v744 = vpop.f32.mrf.mxu0
  %745 = vmatprep.mubr.bf16.mxu0 0
  %746 = vmatmul.mubr.bf16.gmra.mxu0 %v635
  %v747 = vpop.f32.mrf.mxu0
  %v748 = vadd.f32 0.0, %v747
  %v749 = vpop.f32.mrf.mxu0
  %v750 = vpop.f32.mrf.mxu0
  %v751 = vadd.f32 0.0, %v750
  %v752 = vpop.f32.mrf.mxu0
  %753 = vmatprep.mubr.bf16.mxu0 0
  %754 = vmatmul.mubr.bf16.gmra.mxu0 %v636
  %v755 = vpop.f32.mrf.mxu0
  %v756 = vadd.f32 0.0, %v755
  %v757 = vpop.f32.mrf.mxu0
  %v758 = vpop.f32.mrf.mxu0
  %v759 = vadd.f32 0.0, %v758
  %v760 = vpop.f32.mrf.mxu0
  %761 = vmatprep.mubr.bf16.mxu0 0
  %762 = vmatmul.mubr.bf16.gmra.mxu0 %v637
  %v763 = vpop.f32.mrf.mxu0
  %v764 = vadd.f32 0.0, %v763
  %v765 = vpop.f32.mrf.mxu0
  %v766 = vpop.f32.mrf.mxu0
  %v767 = vadd.f32 0.0, %v766
  %v768 = vpop.f32.mrf.mxu0
  %769 = vmatprep.mubr.bf16.mxu0 0
  %770 = vmatmul.mubr.bf16.gmra.mxu0 %v638
  %v771 = vpop.f32.mrf.mxu0
  %v772 = vadd.f32 0.0, %v771
  %v773 = vpop.f32.mrf.mxu0
  %v774 = vpop.f32.mrf.mxu0
  %v775 = vadd.f32 0.0, %v774
  %v776 = vpop.f32.mrf.mxu0
  %777 = vmatprep.mubr.bf16.mxu0 0
  %778 = vmatmul.mubr.bf16.gmra.mxu0 %v639
  %v779 = vpop.f32.mrf.mxu0
  %v780 = vadd.f32 0.0, %v779
  %v781 = vpop.f32.mrf.mxu0
  %v782 = vpop.f32.mrf.mxu0
  %v783 = vadd.f32 0.0, %v782
  %v784 = vpop.f32.mrf.mxu0
  %785 = vmatprep.mubr.bf16.mxu0 0
  %786 = vmatmul.mubr.bf16.gmra.mxu0 %v640
  %v787 = vpop.f32.mrf.mxu0
  %v788 = vadd.f32 0.0, %v787
  %v789 = vpop.f32.mrf.mxu0
  %v790 = vpop.f32.mrf.mxu0
  %v791 = vadd.f32 0.0, %v790
  %v792 = vpop.f32.mrf.mxu0
  %793 = vdwg.mxu0
  %v810 = vunpack.c.l.b16 %v569
  %v811 = vunpack.c.l.b16 %v570
  %v812 = vunpack.c.l.b16 %v571
  %v813 = vunpack.c.l.b16 %v572
  %v814 = vunpack.c.l.b16 %v573
  %v815 = vunpack.c.l.b16 %v574
  %v816 = vunpack.c.l.b16 %v575
  %v817 = vunpack.c.l.b16 %v576
  %v818 = vunpack.c.l.b16 %v577
  %v819 = vunpack.c.l.b16 %v578
  %v820 = vunpack.c.l.b16 %v579
  %v821 = vunpack.c.l.b16 %v580
  %v822 = vunpack.c.l.b16 %v581
  %v823 = vunpack.c.l.b16 %v582
  %v824 = vunpack.c.l.b16 %v583
  %v825 = vunpack.c.l.b16 %v584
  %v826 = vpack.c.b16 %v811, %v810
  %v827 = vpack.c.b16 %v813, %v812
  %v828 = vpack.c.b16 %v815, %v814
  %v829 = vpack.c.b16 %v817, %v816
  %v830 = vpack.c.b16 %v819, %v818
  %v831 = vpack.c.b16 %v821, %v820
  %v832 = vpack.c.b16 %v823, %v822
  %v833 = vpack.c.b16 %v825, %v824
  %842 = vmatprep.subr.bf16.mxu0 0
  %843 = vmatpush1.bf16.msra.mxu0 %v833
  %844 = vmatprep.subr.bf16.mxu0 0
  %845 = vmatpush1.bf16.msra.mxu0 %v832
  %846 = vmatprep.subr.bf16.mxu0 0
  %847 = vmatpush1.bf16.msra.mxu0 %v831
  %848 = vmatprep.subr.bf16.mxu0 0
  %849 = vmatpush1.bf16.msra.mxu0 %v830
  %850 = vmatprep.subr.bf16.mxu0 0
  %851 = vmatpush1.bf16.msra.mxu0 %v829
  %852 = vmatprep.subr.bf16.mxu0 0
  %853 = vmatpush1.bf16.msra.mxu0 %v828
  %854 = vmatprep.subr.bf16.mxu0 0
  %855 = vmatpush1.bf16.msra.mxu0 %v827
  %856 = vmatprep.subr.bf16.mxu0 0
  %857 = vmatpush1.bf16.msra.mxu0 %v826
  %858 = vmatprep.subr.bf16.mxu0 0
  %859 = vmatpush2.bf16.msra.mxu0 0
  %860 = vmatprep.subr.bf16.mxu0 0
  %861 = vmatpush2.bf16.msra.mxu0 0
  %862 = vmatprep.subr.bf16.mxu0 0
  %863 = vmatpush2.bf16.msra.mxu0 0
  %864 = vmatprep.subr.bf16.mxu0 0
  %865 = vmatpush2.bf16.msra.mxu0 0
  %866 = vmatprep.subr.bf16.mxu0 0
  %867 = vmatpush2.bf16.msra.mxu0 0
  %868 = vmatprep.subr.bf16.mxu0 0
  %869 = vmatpush2.bf16.msra.mxu0 0
  %870 = vmatprep.subr.bf16.mxu0 0
  %871 = vmatpush2.bf16.msra.mxu0 0
  %872 = vmatprep.subr.bf16.mxu0 0
  %873 = vmatpush2.bf16.msra.mxu0 0
  %874 = vmatprep.mubr.bf16.mxu0 0
  %875 = vmatmul.mubr.bf16.gmra.mxu0 %v561
  %v876 = vpop.f32.mrf.mxu0
  %v877 = vadd.f32 %v732, %v876
  %v878 = vpop.f32.mrf.mxu0
  %v879 = vpop.f32.mrf.mxu0
  %v880 = vadd.f32 %v735, %v879
  %v881 = vpop.f32.mrf.mxu0
  %882 = vmatprep.mubr.bf16.mxu0 0
  %883 = vmatmul.mubr.bf16.gmra.mxu0 %v562
  %v884 = vpop.f32.mrf.mxu0
  %v885 = vadd.f32 %v740, %v884
  %v886 = vpop.f32.mrf.mxu0
  %v887 = vpop.f32.mrf.mxu0
  %v888 = vadd.f32 %v743, %v887
  %v889 = vpop.f32.mrf.mxu0
  %890 = vmatprep.mubr.bf16.mxu0 0
  %891 = vmatmul.mubr.bf16.gmra.mxu0 %v563
  %v892 = vpop.f32.mrf.mxu0
  %v893 = vadd.f32 %v748, %v892
  %v894 = vpop.f32.mrf.mxu0
  %v895 = vpop.f32.mrf.mxu0
  %v896 = vadd.f32 %v751, %v895
  %v897 = vpop.f32.mrf.mxu0
  %898 = vmatprep.mubr.bf16.mxu0 0
  %899 = vmatmul.mubr.bf16.gmra.mxu0 %v564
  %v900 = vpop.f32.mrf.mxu0
  %v901 = vadd.f32 %v756, %v900
  %v902 = vpop.f32.mrf.mxu0
  %v903 = vpop.f32.mrf.mxu0
  %v904 = vadd.f32 %v759, %v903
  %v905 = vpop.f32.mrf.mxu0
  %906 = vmatprep.mubr.bf16.mxu0 0
  %907 = vmatmul.mubr.bf16.gmra.mxu0 %v565
  %v908 = vpop.f32.mrf.mxu0
  %v909 = vadd.f32 %v764, %v908
  %v910 = vpop.f32.mrf.mxu0
  %v911 = vpop.f32.mrf.mxu0
  %v912 = vadd.f32 %v767, %v911
  %v913 = vpop.f32.mrf.mxu0
  %914 = vmatprep.mubr.bf16.mxu0 0
  %915 = vmatmul.mubr.bf16.gmra.mxu0 %v566
  %v916 = vpop.f32.mrf.mxu0
  %v917 = vadd.f32 %v772, %v916
  %v918 = vpop.f32.mrf.mxu0
  %v919 = vpop.f32.mrf.mxu0
  %v920 = vadd.f32 %v775, %v919
  %v921 = vpop.f32.mrf.mxu0
  %922 = vmatprep.mubr.bf16.mxu0 0
  %923 = vmatmul.mubr.bf16.gmra.mxu0 %v567
  %v924 = vpop.f32.mrf.mxu0
  %v925 = vadd.f32 %v780, %v924
  %v926 = vpop.f32.mrf.mxu0
  %v927 = vpop.f32.mrf.mxu0
  %v928 = vadd.f32 %v783, %v927
  %v929 = vpop.f32.mrf.mxu0
  %930 = vmatprep.mubr.bf16.mxu0 0
  %931 = vmatmul.mubr.bf16.gmra.mxu0 %v568
  %v932 = vpop.f32.mrf.mxu0
  %v933 = vadd.f32 %v788, %v932
  %v934 = vpop.f32.mrf.mxu0
  %v935 = vpop.f32.mrf.mxu0
  %v936 = vadd.f32 %v791, %v935
  %v937 = vpop.f32.mrf.mxu0
  %938 = vdwg.mxu0
  %v939 = vld [vmem:[%s4] sm:$0x1]
  %v941 = vlaneseq
  %v942 = vshrl.u32 %v941, 7
  %v943 = vsub.s32 0, %v942
  %v944 = vrot.slane %v939, %v943
  %v946 = vadd.f32 %v877, %v944
  %v947 = vadd.f32 %v880, %v944
  %v948 = vadd.f32 %v885, %v944
  %v949 = vadd.f32 %v888, %v944
  %v950 = vadd.f32 %v893, %v944
  %v951 = vadd.f32 %v896, %v944
  %v952 = vadd.f32 %v901, %v944
  %v953 = vadd.f32 %v904, %v944
  %v954 = vadd.f32 %v909, %v944
  %v955 = vadd.f32 %v912, %v944
  %v956 = vadd.f32 %v917, %v944
  %v957 = vadd.f32 %v920, %v944
  %v958 = vadd.f32 %v925, %v944
  %v959 = vadd.f32 %v928, %v944
  %v960 = vadd.f32 %v933, %v944
  %v961 = vadd.f32 %v936, %v944
  %vm962 = vcmp.gt.f32.partialorder %v946, 0.0
  %vm963 = vcmp.gt.f32.partialorder %v947, 0.0
  %vm964 = vcmp.gt.f32.partialorder %v948, 0.0
  %vm965 = vcmp.gt.f32.partialorder %v949, 0.0
  %vm966 = vcmp.gt.f32.partialorder %v950, 0.0
  %vm967 = vcmp.gt.f32.partialorder %v951, 0.0
  %vm968 = vcmp.gt.f32.partialorder %v952, 0.0
  %vm969 = vcmp.gt.f32.partialorder %v953, 0.0
  %vm970 = vcmp.gt.f32.partialorder %v954, 0.0
  %vm971 = vcmp.gt.f32.partialorder %v955, 0.0
  %vm972 = vcmp.gt.f32.partialorder %v956, 0.0
  %vm973 = vcmp.gt.f32.partialorder %v957, 0.0
  %vm974 = vcmp.gt.f32.partialorder %v958, 0.0
  %vm975 = vcmp.gt.f32.partialorder %v959, 0.0
  %vm976 = vcmp.gt.f32.partialorder %v960, 0.0
  %vm977 = vcmp.gt.f32.partialorder %v961, 0.0
  %v978 = vmin.f32 %v946, 0.0
  %v979 = vmin.f32 %v947, 0.0
  %v980 = vmin.f32 %v948, 0.0
  %v981 = vmin.f32 %v949, 0.0
  %v982 = vmin.f32 %v950, 0.0
  %v983 = vmin.f32 %v951, 0.0
  %v984 = vmin.f32 %v952, 0.0
  %v985 = vmin.f32 %v953, 0.0
  %v986 = vmin.f32 %v954, 0.0
  %v987 = vmin.f32 %v955, 0.0
  %v988 = vmin.f32 %v956, 0.0
  %v989 = vmin.f32 %v957, 0.0
  %v990 = vmin.f32 %v958, 0.0
  %v991 = vmin.f32 %v959, 0.0
  %v992 = vmin.f32 %v960, 0.0
  %v993 = vmin.f32 %v961, 0.0
  %v994 = vmul.f32 %v978, 1.442695
  %v995 = vpow.pop %v994
  %v996 = vmul.f32 %v979, 1.442695
  %v997 = vpow.pop %v996
  %v998 = vmul.f32 %v980, 1.442695
  %v999 = vpow.pop %v998
  %v1000 = vmul.f32 %v981, 1.442695
  %v1001 = vpow.pop %v1000
  %v1002 = vmul.f32 %v982, 1.442695
  %v1003 = vpow.pop %v1002
  %v1004 = vmul.f32 %v983, 1.442695
  %v1005 = vpow.pop %v1004
  %v1006 = vmul.f32 %v984, 1.442695
  %v1007 = vpow.pop %v1006
  %v1008 = vmul.f32 %v985, 1.442695
  %v1009 = vpow.pop %v1008
  %v1010 = vmul.f32 %v986, 1.442695
  %v1011 = vpow.pop %v1010
  %v1012 = vmul.f32 %v987, 1.442695
  %v1013 = vpow.pop %v1012
  %v1014 = vmul.f32 %v988, 1.442695
  %v1015 = vpow.pop %v1014
  %v1016 = vmul.f32 %v989, 1.442695
  %v1017 = vpow.pop %v1016
  %v1018 = vmul.f32 %v990, 1.442695
  %v1019 = vpow.pop %v1018
  %v1020 = vmul.f32 %v991, 1.442695
  %v1021 = vpow.pop %v1020
  %v1022 = vmul.f32 %v992, 1.442695
  %v1023 = vpow.pop %v1022
  %v1024 = vmul.f32 %v993, 1.442695
  %v1025 = vpow.pop %v1024
  %v1026 = vsub.f32 %v995, 1.0
  %v1027 = vsub.f32 %v997, 1.0
  %v1028 = vsub.f32 %v999, 1.0
  %v1029 = vsub.f32 %v1001, 1.0
  %v1030 = vsub.f32 %v1003, 1.0
  %v1031 = vsub.f32 %v1005, 1.0
  %v1032 = vsub.f32 %v1007, 1.0
  %v1033 = vsub.f32 %v1009, 1.0
  %v1034 = vsub.f32 %v1011, 1.0
  %v1035 = vsub.f32 %v1013, 1.0
  %v1036 = vsub.f32 %v1015, 1.0
  %v1037 = vsub.f32 %v1017, 1.0
  %v1038 = vsub.f32 %v1019, 1.0
  %v1039 = vsub.f32 %v1021, 1.0
  %v1040 = vsub.f32 %v1023, 1.0
  %v1041 = vsub.f32 %v1025, 1.0
  %v1042 = vsel %vm962, %v946, %v1026
  %v1043 = vsel %vm963, %v947, %v1027
  %v1044 = vsel %vm964, %v948, %v1028
  %v1045 = vsel %vm965, %v949, %v1029
  %v1046 = vsel %vm966, %v950, %v1030
  %v1047 = vsel %vm967, %v951, %v1031
  %v1048 = vsel %vm968, %v952, %v1032
  %v1049 = vsel %vm969, %v953, %v1033
  %v1050 = vsel %vm970, %v954, %v1034
  %v1051 = vsel %vm971, %v955, %v1035
  %v1052 = vsel %vm972, %v956, %v1036
  %v1053 = vsel %vm973, %v957, %v1037
  %v1054 = vsel %vm974, %v958, %v1038
  %v1055 = vsel %vm975, %v959, %v1039
  %v1056 = vsel %vm976, %v960, %v1040
  %v1057 = vsel %vm977, %v961, %v1041
  %v1058 = vld [vmem:[%s5] sm:$0x1]
  %v1059 = vld [vmem:[%s6] sm:$0x1]
  %v1060 = vlaneseq
  %v1061 = vand.u32 %v1060, 127
  %vm1062 = vcmp.lt.s32.totalorder %v1061, 32
  %1063 = vadd.xlane.f32.xlu0 %v1042
  %v1064 = vpop.xlane.xlu0 %1063
  %1065 = vadd.xlane.f32.xlu0 %v1043
  %v1066 = vpop.xlane.xlu0 %1065
  %1067 = vadd.xlane.f32.xlu0 %v1044
  %v1068 = vpop.xlane.xlu0 %1067
  %1069 = vadd.xlane.f32.xlu0 %v1045
  %v1070 = vpop.xlane.xlu0 %1069
  %1071 = vadd.xlane.f32.xlu0 %v1046
  %v1072 = vpop.xlane.xlu0 %1071
  %1073 = vadd.xlane.f32.xlu0 %v1047
  %v1074 = vpop.xlane.xlu0 %1073
  %1075 = vadd.xlane.f32.xlu0 %v1048
  %v1076 = vpop.xlane.xlu0 %1075
  %1077 = vadd.xlane.f32.xlu0 %v1049
  %v1078 = vpop.xlane.xlu0 %1077
  %1079 = vadd.xlane.f32.xlu0 %v1050
  %v1080 = vpop.xlane.xlu0 %1079
  %1081 = vadd.xlane.f32.xlu0 %v1051
  %v1082 = vpop.xlane.xlu0 %1081
  %1083 = vadd.xlane.f32.xlu0 %v1052
  %v1084 = vpop.xlane.xlu0 %1083
  %1085 = vadd.xlane.f32.xlu0 %v1053
  %v1086 = vpop.xlane.xlu0 %1085
  %1087 = vadd.xlane.f32.xlu0 %v1054
  %v1088 = vpop.xlane.xlu0 %1087
  %1089 = vadd.xlane.f32.xlu0 %v1055
  %v1090 = vpop.xlane.xlu0 %1089
  %1091 = vadd.xlane.f32.xlu0 %v1056
  %v1092 = vpop.xlane.xlu0 %1091
  %1093 = vadd.xlane.f32.xlu0 %v1057
  %v1094 = vpop.xlane.xlu0 %1093
  %v1095 = vmul.f32 %v1064, 0.03125
  %v1096 = vmul.f32 %v1066, 0.03125
  %v1097 = vmul.f32 %v1068, 0.03125
  %v1098 = vmul.f32 %v1070, 0.03125
  %v1099 = vmul.f32 %v1072, 0.03125
  %v1100 = vmul.f32 %v1074, 0.03125
  %v1101 = vmul.f32 %v1076, 0.03125
  %v1102 = vmul.f32 %v1078, 0.03125
  %v1103 = vmul.f32 %v1080, 0.03125
  %v1104 = vmul.f32 %v1082, 0.03125
  %v1105 = vmul.f32 %v1084, 0.03125
  %v1106 = vmul.f32 %v1086, 0.03125
  %v1107 = vmul.f32 %v1088, 0.03125
  %v1108 = vmul.f32 %v1090, 0.03125
  %v1109 = vmul.f32 %v1092, 0.03125
  %v1110 = vmul.f32 %v1094, 0.03125
  %v1111 = vsub.f32 %v1042, %v1095
  %v1112 = vsub.f32 %v1043, %v1096
  %v1113 = vsub.f32 %v1044, %v1097
  %v1114 = vsub.f32 %v1045, %v1098
  %v1115 = vsub.f32 %v1046, %v1099
  %v1116 = vsub.f32 %v1047, %v1100
  %v1117 = vsub.f32 %v1048, %v1101
  %v1118 = vsub.f32 %v1049, %v1102
  %v1119 = vsub.f32 %v1050, %v1103
  %v1120 = vsub.f32 %v1051, %v1104
  %v1121 = vsub.f32 %v1052, %v1105
  %v1122 = vsub.f32 %v1053, %v1106
  %v1123 = vsub.f32 %v1054, %v1107
  %v1124 = vsub.f32 %v1055, %v1108
  %v1125 = vsub.f32 %v1056, %v1109
  %v1126 = vsub.f32 %v1057, %v1110
  %v1127 = vsel %vm1062, 1, 0
  %vm1128 = vcmp.eq.s32.totalorder %v1127, 1
  %v1129 = vsel %vm1128, %v1111, 0.0
  %v1130 = vsel %vm1128, %v1112, 0.0
  %v1131 = vsel %vm1128, %v1113, 0.0
  %v1132 = vsel %vm1128, %v1114, 0.0
  %v1133 = vsel %vm1128, %v1115, 0.0
  %v1134 = vsel %vm1128, %v1116, 0.0
  %v1135 = vsel %vm1128, %v1117, 0.0
  %v1136 = vsel %vm1128, %v1118, 0.0
  %v1137 = vsel %vm1128, %v1119, 0.0
  %v1138 = vsel %vm1128, %v1120, 0.0
  %v1139 = vsel %vm1128, %v1121, 0.0
  %v1140 = vsel %vm1128, %v1122, 0.0
  %v1141 = vsel %vm1128, %v1123, 0.0
  %v1142 = vsel %vm1128, %v1124, 0.0
  %v1143 = vsel %vm1128, %v1125, 0.0
  %v1144 = vsel %vm1128, %v1126, 0.0
  %v1145 = vmul.f32 %v1129, %v1129
  %v1146 = vmul.f32 %v1130, %v1130
  %v1147 = vmul.f32 %v1131, %v1131
  %v1148 = vmul.f32 %v1132, %v1132
  %v1149 = vmul.f32 %v1133, %v1133
  %v1150 = vmul.f32 %v1134, %v1134
  %v1151 = vmul.f32 %v1135, %v1135
  %v1152 = vmul.f32 %v1136, %v1136
  %v1153 = vmul.f32 %v1137, %v1137
  %v1154 = vmul.f32 %v1138, %v1138
  %v1155 = vmul.f32 %v1139, %v1139
  %v1156 = vmul.f32 %v1140, %v1140
  %v1157 = vmul.f32 %v1141, %v1141
  %v1158 = vmul.f32 %v1142, %v1142
  %v1159 = vmul.f32 %v1143, %v1143
  %v1160 = vmul.f32 %v1144, %v1144
  %1161 = vadd.xlane.f32.xlu0 %v1145
  %v1162 = vpop.xlane.xlu0 %1161
  %1163 = vadd.xlane.f32.xlu0 %v1146
  %v1164 = vpop.xlane.xlu0 %1163
  %1165 = vadd.xlane.f32.xlu0 %v1147
  %v1166 = vpop.xlane.xlu0 %1165
  %1167 = vadd.xlane.f32.xlu0 %v1148
  %v1168 = vpop.xlane.xlu0 %1167
  %1169 = vadd.xlane.f32.xlu0 %v1149
  %v1170 = vpop.xlane.xlu0 %1169
  %1171 = vadd.xlane.f32.xlu0 %v1150
  %v1172 = vpop.xlane.xlu0 %1171
  %1173 = vadd.xlane.f32.xlu0 %v1151
  %v1174 = vpop.xlane.xlu0 %1173
  %1175 = vadd.xlane.f32.xlu0 %v1152
  %v1176 = vpop.xlane.xlu0 %1175
  %1177 = vadd.xlane.f32.xlu0 %v1153
  %v1178 = vpop.xlane.xlu0 %1177
  %1179 = vadd.xlane.f32.xlu0 %v1154
  %v1180 = vpop.xlane.xlu0 %1179
  %1181 = vadd.xlane.f32.xlu0 %v1155
  %v1182 = vpop.xlane.xlu0 %1181
  %1183 = vadd.xlane.f32.xlu0 %v1156
  %v1184 = vpop.xlane.xlu0 %1183
  %1185 = vadd.xlane.f32.xlu0 %v1157
  %v1186 = vpop.xlane.xlu0 %1185
  %1187 = vadd.xlane.f32.xlu0 %v1158
  %v1188 = vpop.xlane.xlu0 %1187
  %1189 = vadd.xlane.f32.xlu0 %v1159
  %v1190 = vpop.xlane.xlu0 %1189
  %1191 = vadd.xlane.f32.xlu0 %v1160
  %v1192 = vpop.xlane.xlu0 %1191
  %v1193 = vmul.f32 %v1162, 0.03125
  %v1194 = vmul.f32 %v1164, 0.03125
  %v1195 = vmul.f32 %v1166, 0.03125
  %v1196 = vmul.f32 %v1168, 0.03125
  %v1197 = vmul.f32 %v1170, 0.03125
  %v1198 = vmul.f32 %v1172, 0.03125
  %v1199 = vmul.f32 %v1174, 0.03125
  %v1200 = vmul.f32 %v1176, 0.03125
  %v1201 = vmul.f32 %v1178, 0.03125
  %v1202 = vmul.f32 %v1180, 0.03125
  %v1203 = vmul.f32 %v1182, 0.03125
  %v1204 = vmul.f32 %v1184, 0.03125
  %v1205 = vmul.f32 %v1186, 0.03125
  %v1206 = vmul.f32 %v1188, 0.03125
  %v1207 = vmul.f32 %v1190, 0.03125
  %v1208 = vmul.f32 %v1192, 0.03125
  %v1209 = vadd.f32 %v1193, 1e-05
  %v1210 = vadd.f32 %v1194, 1e-05
  %v1211 = vadd.f32 %v1195, 1e-05
  %v1212 = vadd.f32 %v1196, 1e-05
  %v1213 = vadd.f32 %v1197, 1e-05
  %v1214 = vadd.f32 %v1198, 1e-05
  %v1215 = vadd.f32 %v1199, 1e-05
  %v1216 = vadd.f32 %v1200, 1e-05
  %v1217 = vadd.f32 %v1201, 1e-05
  %v1218 = vadd.f32 %v1202, 1e-05
  %v1219 = vadd.f32 %v1203, 1e-05
  %v1220 = vadd.f32 %v1204, 1e-05
  %v1221 = vadd.f32 %v1205, 1e-05
  %v1222 = vadd.f32 %v1206, 1e-05
  %v1223 = vadd.f32 %v1207, 1e-05
  %v1224 = vadd.f32 %v1208, 1e-05
  %v1225 = vrsqrt.pop %v1209
  %v1226 = vrsqrt.pop %v1210
  %v1227 = vrsqrt.pop %v1211
  %v1228 = vrsqrt.pop %v1212
  %v1229 = vrsqrt.pop %v1213
  %v1230 = vrsqrt.pop %v1214
  %v1231 = vrsqrt.pop %v1215
  %v1232 = vrsqrt.pop %v1216
  %v1233 = vrsqrt.pop %v1217
  %v1234 = vrsqrt.pop %v1218
  %v1235 = vrsqrt.pop %v1219
  %v1236 = vrsqrt.pop %v1220
  %v1237 = vrsqrt.pop %v1221
  %v1238 = vrsqrt.pop %v1222
  %v1239 = vrsqrt.pop %v1223
  %v1240 = vrsqrt.pop %v1224
  %v1241 = vmul.f32 %v1129, %v1225
  %v1242 = vmul.f32 %v1130, %v1226
  %v1243 = vmul.f32 %v1131, %v1227
  %v1244 = vmul.f32 %v1132, %v1228
  %v1245 = vmul.f32 %v1133, %v1229
  %v1246 = vmul.f32 %v1134, %v1230
  %v1247 = vmul.f32 %v1135, %v1231
  %v1248 = vmul.f32 %v1136, %v1232
  %v1249 = vmul.f32 %v1137, %v1233
  %v1250 = vmul.f32 %v1138, %v1234
  %v1251 = vmul.f32 %v1139, %v1235
  %v1252 = vmul.f32 %v1140, %v1236
  %v1253 = vmul.f32 %v1141, %v1237
  %v1254 = vmul.f32 %v1142, %v1238
  %v1255 = vmul.f32 %v1143, %v1239
  %v1256 = vmul.f32 %v1144, %v1240
  %v1258 = vlaneseq
  %v1259 = vshrl.u32 %v1258, 7
  %v1260 = vsub.s32 0, %v1259
  %v1261 = vrot.slane %v1058, %v1260
  %v1263 = vmul.f32 %v1241, %v1261
  %v1264 = vmul.f32 %v1242, %v1261
  %v1265 = vmul.f32 %v1243, %v1261
  %v1266 = vmul.f32 %v1244, %v1261
  %v1267 = vmul.f32 %v1245, %v1261
  %v1268 = vmul.f32 %v1246, %v1261
  %v1269 = vmul.f32 %v1247, %v1261
  %v1270 = vmul.f32 %v1248, %v1261
  %v1271 = vmul.f32 %v1249, %v1261
  %v1272 = vmul.f32 %v1250, %v1261
  %v1273 = vmul.f32 %v1251, %v1261
  %v1274 = vmul.f32 %v1252, %v1261
  %v1275 = vmul.f32 %v1253, %v1261
  %v1276 = vmul.f32 %v1254, %v1261
  %v1277 = vmul.f32 %v1255, %v1261
  %v1278 = vmul.f32 %v1256, %v1261
  %v1280 = vlaneseq
  %v1281 = vshrl.u32 %v1280, 7
  %v1282 = vsub.s32 0, %v1281
  %v1283 = vrot.slane %v1059, %v1282
  %v1285 = vadd.f32 %v1263, %v1283
  %v1286 = vadd.f32 %v1264, %v1283
  %v1287 = vadd.f32 %v1265, %v1283
  %v1288 = vadd.f32 %v1266, %v1283
  %v1289 = vadd.f32 %v1267, %v1283
  %v1290 = vadd.f32 %v1268, %v1283
  %v1291 = vadd.f32 %v1269, %v1283
  %v1292 = vadd.f32 %v1270, %v1283
  %v1293 = vadd.f32 %v1271, %v1283
  %v1294 = vadd.f32 %v1272, %v1283
  %v1295 = vadd.f32 %v1273, %v1283
  %v1296 = vadd.f32 %v1274, %v1283
  %v1297 = vadd.f32 %v1275, %v1283
  %v1298 = vadd.f32 %v1276, %v1283
  %v1299 = vadd.f32 %v1277, %v1283
  %v1300 = vadd.f32 %v1278, %v1283
  %v1301 = vpack.c.bf16 %v1286, %v1285
  %v1302 = vpack.c.bf16 %v1288, %v1287
  %v1303 = vpack.c.bf16 %v1290, %v1289
  %v1304 = vpack.c.bf16 %v1292, %v1291
  %v1305 = vpack.c.bf16 %v1294, %v1293
  %v1306 = vpack.c.bf16 %v1296, %v1295
  %v1307 = vpack.c.bf16 %v1298, %v1297
  %v1308 = vpack.c.bf16 %v1300, %v1299
  %v1309 = vld [vmem:[%s7] sm:$0xf]
  %v1310 = vld [vmem:[%s7 + $0x4] sm:$0xf]
  %v1311 = vld [vmem:[%s7 + $0x8] sm:$0xf]
  %v1312 = vld [vmem:[%s7 + $0xc] sm:$0xf]
  %v1313 = vld [vmem:[%s7 + $0x10] sm:$0xf]
  %v1314 = vld [vmem:[%s7 + $0x14] sm:$0xf]
  %v1315 = vld [vmem:[%s7 + $0x18] sm:$0xf]
  %v1316 = vld [vmem:[%s7 + $0x1c] sm:$0xf]
  %v1317 = vld [vmem:[%s7 + $0x20] sm:$0xf]
  %v1318 = vld [vmem:[%s7 + $0x24] sm:$0xf]
  %v1319 = vld [vmem:[%s7 + $0x28] sm:$0xf]
  %v1320 = vld [vmem:[%s7 + $0x2c] sm:$0xf]
  %v1321 = vld [vmem:[%s7 + $0x30] sm:$0xf]
  %v1322 = vld [vmem:[%s7 + $0x34] sm:$0xf]
  %v1323 = vld [vmem:[%s7 + $0x38] sm:$0xf]
  %v1324 = vld [vmem:[%s7 + $0x3c] sm:$0xf]
  %v1325 = vld [vmem:[%s8] sm:$0x1]
  %v1327 = vlaneseq
  %v1328 = vshrl.u32 %v1327, 7
  %v1329 = vsub.s32 0, %v1328
  %v1330 = vrot.slane %v1325, %v1329
  %v1348 = vunpack.c.l.b16 %v1309
  %v1349 = vunpack.c.l.b16 %v1310
  %v1350 = vunpack.c.l.b16 %v1311
  %v1351 = vunpack.c.l.b16 %v1312
  %v1352 = vunpack.c.l.b16 %v1313
  %v1353 = vunpack.c.l.b16 %v1314
  %v1354 = vunpack.c.l.b16 %v1315
  %v1355 = vunpack.c.l.b16 %v1316
  %v1356 = vunpack.c.l.b16 %v1317
  %v1357 = vunpack.c.l.b16 %v1318
  %v1358 = vunpack.c.l.b16 %v1319
  %v1359 = vunpack.c.l.b16 %v1320
  %v1360 = vunpack.c.l.b16 %v1321
  %v1361 = vunpack.c.l.b16 %v1322
  %v1362 = vunpack.c.l.b16 %v1323
  %v1363 = vunpack.c.l.b16 %v1324
  %v1364 = vpack.c.b16 %v1349, %v1348
  %v1365 = vpack.c.b16 %v1351, %v1350
  %v1366 = vpack.c.b16 %v1353, %v1352
  %v1367 = vpack.c.b16 %v1355, %v1354
  %v1368 = vpack.c.b16 %v1357, %v1356
  %v1369 = vpack.c.b16 %v1359, %v1358
  %v1370 = vpack.c.b16 %v1361, %v1360
  %v1371 = vpack.c.b16 %v1363, %v1362
  %1380 = vmatprep.subr.bf16.mxu0 0
  %1381 = vmatpush1.bf16.msra.mxu0 %v1371
  %1382 = vmatprep.subr.bf16.mxu0 0
  %1383 = vmatpush1.bf16.msra.mxu0 %v1370
  %1384 = vmatprep.subr.bf16.mxu0 0
  %1385 = vmatpush1.bf16.msra.mxu0 %v1369
  %1386 = vmatprep.subr.bf16.mxu0 0
  %1387 = vmatpush1.bf16.msra.mxu0 %v1368
  %1388 = vmatprep.subr.bf16.mxu0 0
  %1389 = vmatpush1.bf16.msra.mxu0 %v1367
  %1390 = vmatprep.subr.bf16.mxu0 0
  %1391 = vmatpush1.bf16.msra.mxu0 %v1366
  %1392 = vmatprep.subr.bf16.mxu0 0
  %1393 = vmatpush1.bf16.msra.mxu0 %v1365
  %1394 = vmatprep.subr.bf16.mxu0 0
  %1395 = vmatpush1.bf16.msra.mxu0 %v1364
  %1396 = vmatprep.subr.bf16.mxu0 0
  %1397 = vmatpush2.bf16.msra.mxu0 0
  %1398 = vmatprep.subr.bf16.mxu0 0
  %1399 = vmatpush2.bf16.msra.mxu0 0
  %1400 = vmatprep.subr.bf16.mxu0 0
  %1401 = vmatpush2.bf16.msra.mxu0 0
  %1402 = vmatprep.subr.bf16.mxu0 0
  %1403 = vmatpush2.bf16.msra.mxu0 0
  %1404 = vmatprep.subr.bf16.mxu0 0
  %1405 = vmatpush2.bf16.msra.mxu0 0
  %1406 = vmatprep.subr.bf16.mxu0 0
  %1407 = vmatpush2.bf16.msra.mxu0 0
  %1408 = vmatprep.subr.bf16.mxu0 0
  %1409 = vmatpush2.bf16.msra.mxu0 0
  %1410 = vmatprep.subr.bf16.mxu0 0
  %1411 = vmatpush2.bf16.msra.mxu0 0
  %1412 = vmatprep.mubr.bf16.mxu0 0
  %1413 = vmatmul.mubr.bf16.gmra.mxu0 %v1301
  %v1414 = vpop.f32.mrf.mxu0
  %v1415 = vadd.f32 %v1330, %v1414
  %v1416 = vpop.f32.mrf.mxu0
  %v1417 = vpop.f32.mrf.mxu0
  %v1418 = vadd.f32 %v1330, %v1417
  %v1419 = vpop.f32.mrf.mxu0
  %1420 = vmatprep.mubr.bf16.mxu0 0
  %1421 = vmatmul.mubr.bf16.gmra.mxu0 %v1302
  %v1422 = vpop.f32.mrf.mxu0
  %v1423 = vadd.f32 %v1330, %v1422
  %v1424 = vpop.f32.mrf.mxu0
  %v1425 = vpop.f32.mrf.mxu0
  %v1426 = vadd.f32 %v1330, %v1425
  %v1427 = vpop.f32.mrf.mxu0
  %1428 = vmatprep.mubr.bf16.mxu0 0
  %1429 = vmatmul.mubr.bf16.gmra.mxu0 %v1303
  %v1430 = vpop.f32.mrf.mxu0
  %v1431 = vadd.f32 %v1330, %v1430
  %v1432 = vpop.f32.mrf.mxu0
  %v1433 = vpop.f32.mrf.mxu0
  %v1434 = vadd.f32 %v1330, %v1433
  %v1435 = vpop.f32.mrf.mxu0
  %1436 = vmatprep.mubr.bf16.mxu0 0
  %1437 = vmatmul.mubr.bf16.gmra.mxu0 %v1304
  %v1438 = vpop.f32.mrf.mxu0
  %v1439 = vadd.f32 %v1330, %v1438
  %v1440 = vpop.f32.mrf.mxu0
  %v1441 = vpop.f32.mrf.mxu0
  %v1442 = vadd.f32 %v1330, %v1441
  %v1443 = vpop.f32.mrf.mxu0
  %1444 = vmatprep.mubr.bf16.mxu0 0
  %1445 = vmatmul.mubr.bf16.gmra.mxu0 %v1305
  %v1446 = vpop.f32.mrf.mxu0
  %v1447 = vadd.f32 %v1330, %v1446
  %v1448 = vpop.f32.mrf.mxu0
  %v1449 = vpop.f32.mrf.mxu0
  %v1450 = vadd.f32 %v1330, %v1449
  %v1451 = vpop.f32.mrf.mxu0
  %1452 = vmatprep.mubr.bf16.mxu0 0
  %1453 = vmatmul.mubr.bf16.gmra.mxu0 %v1306
  %v1454 = vpop.f32.mrf.mxu0
  %v1455 = vadd.f32 %v1330, %v1454
  %v1456 = vpop.f32.mrf.mxu0
  %v1457 = vpop.f32.mrf.mxu0
  %v1458 = vadd.f32 %v1330, %v1457
  %v1459 = vpop.f32.mrf.mxu0
  %1460 = vmatprep.mubr.bf16.mxu0 0
  %1461 = vmatmul.mubr.bf16.gmra.mxu0 %v1307
  %v1462 = vpop.f32.mrf.mxu0
  %v1463 = vadd.f32 %v1330, %v1462
  %v1464 = vpop.f32.mrf.mxu0
  %v1465 = vpop.f32.mrf.mxu0
  %v1466 = vadd.f32 %v1330, %v1465
  %v1467 = vpop.f32.mrf.mxu0
  %1468 = vmatprep.mubr.bf16.mxu0 0
  %1469 = vmatmul.mubr.bf16.gmra.mxu0 %v1308
  %v1470 = vpop.f32.mrf.mxu0
  %v1471 = vadd.f32 %v1330, %v1470
  %v1472 = vpop.f32.mrf.mxu0
  %v1473 = vpop.f32.mrf.mxu0
  %v1474 = vadd.f32 %v1330, %v1473
  %v1475 = vpop.f32.mrf.mxu0
  %1476 = vdwg.mxu0
  %vm1477 = vcmp.gt.f32.partialorder %v1415, 0.0
  %vm1478 = vcmp.gt.f32.partialorder %v1418, 0.0
  %vm1479 = vcmp.gt.f32.partialorder %v1423, 0.0
  %vm1480 = vcmp.gt.f32.partialorder %v1426, 0.0
  %vm1481 = vcmp.gt.f32.partialorder %v1431, 0.0
  %vm1482 = vcmp.gt.f32.partialorder %v1434, 0.0
  %vm1483 = vcmp.gt.f32.partialorder %v1439, 0.0
  %vm1484 = vcmp.gt.f32.partialorder %v1442, 0.0
  %vm1485 = vcmp.gt.f32.partialorder %v1447, 0.0
  %vm1486 = vcmp.gt.f32.partialorder %v1450, 0.0
  %vm1487 = vcmp.gt.f32.partialorder %v1455, 0.0
  %vm1488 = vcmp.gt.f32.partialorder %v1458, 0.0
  %vm1489 = vcmp.gt.f32.partialorder %v1463, 0.0
  %vm1490 = vcmp.gt.f32.partialorder %v1466, 0.0
  %vm1491 = vcmp.gt.f32.partialorder %v1471, 0.0
  %vm1492 = vcmp.gt.f32.partialorder %v1474, 0.0
  %v1493 = vmin.f32 %v1415, 0.0
  %v1494 = vmin.f32 %v1418, 0.0
  %v1495 = vmin.f32 %v1423, 0.0
  %v1496 = vmin.f32 %v1426, 0.0
  %v1497 = vmin.f32 %v1431, 0.0
  %v1498 = vmin.f32 %v1434, 0.0
  %v1499 = vmin.f32 %v1439, 0.0
  %v1500 = vmin.f32 %v1442, 0.0
  %v1501 = vmin.f32 %v1447, 0.0
  %v1502 = vmin.f32 %v1450, 0.0
  %v1503 = vmin.f32 %v1455, 0.0
  %v1504 = vmin.f32 %v1458, 0.0
  %v1505 = vmin.f32 %v1463, 0.0
  %v1506 = vmin.f32 %v1466, 0.0
  %v1507 = vmin.f32 %v1471, 0.0
  %v1508 = vmin.f32 %v1474, 0.0
  %v1509 = vmul.f32 %v1493, 1.442695
  %v1510 = vpow.pop %v1509
  %v1511 = vmul.f32 %v1494, 1.442695
  %v1512 = vpow.pop %v1511
  %v1513 = vmul.f32 %v1495, 1.442695
  %v1514 = vpow.pop %v1513
  %v1515 = vmul.f32 %v1496, 1.442695
  %v1516 = vpow.pop %v1515
  %v1517 = vmul.f32 %v1497, 1.442695
  %v1518 = vpow.pop %v1517
  %v1519 = vmul.f32 %v1498, 1.442695
  %v1520 = vpow.pop %v1519
  %v1521 = vmul.f32 %v1499, 1.442695
  %v1522 = vpow.pop %v1521
  %v1523 = vmul.f32 %v1500, 1.442695
  %v1524 = vpow.pop %v1523
  %v1525 = vmul.f32 %v1501, 1.442695
  %v1526 = vpow.pop %v1525
  %v1527 = vmul.f32 %v1502, 1.442695
  %v1528 = vpow.pop %v1527
  %v1529 = vmul.f32 %v1503, 1.442695
  %v1530 = vpow.pop %v1529
  %v1531 = vmul.f32 %v1504, 1.442695
  %v1532 = vpow.pop %v1531
  %v1533 = vmul.f32 %v1505, 1.442695
  %v1534 = vpow.pop %v1533
  %v1535 = vmul.f32 %v1506, 1.442695
  %v1536 = vpow.pop %v1535
  %v1537 = vmul.f32 %v1507, 1.442695
  %v1538 = vpow.pop %v1537
  %v1539 = vmul.f32 %v1508, 1.442695
  %v1540 = vpow.pop %v1539
  %v1541 = vsub.f32 %v1510, 1.0
  %v1542 = vsub.f32 %v1512, 1.0
  %v1543 = vsub.f32 %v1514, 1.0
  %v1544 = vsub.f32 %v1516, 1.0
  %v1545 = vsub.f32 %v1518, 1.0
  %v1546 = vsub.f32 %v1520, 1.0
  %v1547 = vsub.f32 %v1522, 1.0
  %v1548 = vsub.f32 %v1524, 1.0
  %v1549 = vsub.f32 %v1526, 1.0
  %v1550 = vsub.f32 %v1528, 1.0
  %v1551 = vsub.f32 %v1530, 1.0
  %v1552 = vsub.f32 %v1532, 1.0
  %v1553 = vsub.f32 %v1534, 1.0
  %v1554 = vsub.f32 %v1536, 1.0
  %v1555 = vsub.f32 %v1538, 1.0
  %v1556 = vsub.f32 %v1540, 1.0
  %v1557 = vsel %vm1477, %v1415, %v1541
  %v1558 = vsel %vm1478, %v1418, %v1542
  %v1559 = vsel %vm1479, %v1423, %v1543
  %v1560 = vsel %vm1480, %v1426, %v1544
  %v1561 = vsel %vm1481, %v1431, %v1545
  %v1562 = vsel %vm1482, %v1434, %v1546
  %v1563 = vsel %vm1483, %v1439, %v1547
  %v1564 = vsel %vm1484, %v1442, %v1548
  %v1565 = vsel %vm1485, %v1447, %v1549
  %v1566 = vsel %vm1486, %v1450, %v1550
  %v1567 = vsel %vm1487, %v1455, %v1551
  %v1568 = vsel %vm1488, %v1458, %v1552
  %v1569 = vsel %vm1489, %v1463, %v1553
  %v1570 = vsel %vm1490, %v1466, %v1554
  %v1571 = vsel %vm1491, %v1471, %v1555
  %v1572 = vsel %vm1492, %v1474, %v1556
  %v1573 = vmul.f32 %v1557, 0.999995
  %v1574 = vmul.f32 %v1558, 0.999995
  %v1575 = vmul.f32 %v1559, 0.999995
  %v1576 = vmul.f32 %v1560, 0.999995
  %v1577 = vmul.f32 %v1561, 0.999995
  %v1578 = vmul.f32 %v1562, 0.999995
  %v1579 = vmul.f32 %v1563, 0.999995
  %v1580 = vmul.f32 %v1564, 0.999995
  %v1581 = vmul.f32 %v1565, 0.999995
  %v1582 = vmul.f32 %v1566, 0.999995
  %v1583 = vmul.f32 %v1567, 0.999995
  %v1584 = vmul.f32 %v1568, 0.999995
  %v1585 = vmul.f32 %v1569, 0.999995
  %v1586 = vmul.f32 %v1570, 0.999995
  %v1587 = vmul.f32 %v1571, 0.999995
  %v1588 = vmul.f32 %v1572, 0.999995
  %v1589 = vpack.c.bf16 %v1574, %v1573
  %v1590 = vpack.c.bf16 %v1576, %v1575
  %v1591 = vpack.c.bf16 %v1578, %v1577
  %v1592 = vpack.c.bf16 %v1580, %v1579
  %v1593 = vpack.c.bf16 %v1582, %v1581
  %v1594 = vpack.c.bf16 %v1584, %v1583
  %v1595 = vpack.c.bf16 %v1586, %v1585
  %v1596 = vpack.c.bf16 %v1588, %v1587
  %v1605 = vunpack.c.l.b16 %v1589
  %v1606 = vunpack.c.h.b16 %v1589
  %v1607 = vunpack.c.l.b16 %v1590
  %v1608 = vunpack.c.h.b16 %v1590
  %v1609 = vunpack.c.l.b16 %v1591
  %v1610 = vunpack.c.h.b16 %v1591
  %v1611 = vunpack.c.l.b16 %v1592
  %v1612 = vunpack.c.h.b16 %v1592
  %v1613 = vunpack.c.l.b16 %v1593
  %v1614 = vunpack.c.h.b16 %v1593
  %v1615 = vunpack.c.l.b16 %v1594
  %v1616 = vunpack.c.h.b16 %v1594
  %v1617 = vunpack.c.l.b16 %v1595
  %v1618 = vunpack.c.h.b16 %v1595
  %v1619 = vunpack.c.l.b16 %v1596
  %v1620 = vunpack.c.h.b16 %v1596
  %v1621 = vpack.c.b16 %v1605, %v1605
  %v1622 = vpack.c.b16 %v1606, %v1606
  %v1623 = vpack.c.b16 %v1607, %v1607
  %v1624 = vpack.c.b16 %v1608, %v1608
  %v1625 = vpack.c.b16 %v1609, %v1609
  %v1626 = vpack.c.b16 %v1610, %v1610
  %v1627 = vpack.c.b16 %v1611, %v1611
  %v1628 = vpack.c.b16 %v1612, %v1612
  %v1629 = vpack.c.b16 %v1613, %v1613
  %v1630 = vpack.c.b16 %v1614, %v1614
  %v1631 = vpack.c.b16 %v1615, %v1615
  %v1632 = vpack.c.b16 %v1616, %v1616
  %v1633 = vpack.c.b16 %v1617, %v1617
  %v1634 = vpack.c.b16 %v1618, %v1618
  %v1635 = vpack.c.b16 %v1619, %v1619
  %v1636 = vpack.c.b16 %v1620, %v1620
  %1653 = vst [vmem:[%s9] sm:$0xf] %v1621
  %1654 = vst [vmem:[%s9 + $0x4] sm:$0xf] %v1622
  %1655 = vst [vmem:[%s9 + $0x8] sm:$0xf] %v1623
  %1656 = vst [vmem:[%s9 + $0xc] sm:$0xf] %v1624
  %1657 = vst [vmem:[%s9 + $0x10] sm:$0xf] %v1625
  %1658 = vst [vmem:[%s9 + $0x14] sm:$0xf] %v1626
  %1659 = vst [vmem:[%s9 + $0x18] sm:$0xf] %v1627
  %1660 = vst [vmem:[%s9 + $0x1c] sm:$0xf] %v1628
  %1661 = vst [vmem:[%s9 + $0x20] sm:$0xf] %v1629
  %1662 = vst [vmem:[%s9 + $0x24] sm:$0xf] %v1630
  %1663 = vst [vmem:[%s9 + $0x28] sm:$0xf] %v1631
  %1664 = vst [vmem:[%s9 + $0x2c] sm:$0xf] %v1632
  %1665 = vst [vmem:[%s9 + $0x30] sm:$0xf] %v1633
  %1666 = vst [vmem:[%s9 + $0x34] sm:$0xf] %v1634
  %1667 = vst [vmem:[%s9 + $0x38] sm:$0xf] %v1635
  %1668 = vst [vmem:[%s9 + $0x3c] sm:$0xf] %v1636
  // Predicated region
  $region38: #{fwd.37} parent=0 // pred_check
    _
  $region39: #{fwd.37} parent=0 // pred_check_branch
    %1670 = sbr.rel (0) target = $region41
  $region40: #{fwd.37} parent=0 // pred_region
    _
  $region41: #{fwd.37} parent=0 // pred_fallthru
    _
  // Predicated region
  $region42: #{fwd.37} parent=0 // pred_check
    _
  $region43: #{fwd.37} parent=0 // pred_check_branch
    %1672 = sbr.rel (0) target = $region45
  $region44: #{fwd.37} parent=0 // pred_region
    _
  $region45: #{fwd.37} parent=0 // pred_fallthru
    _

// kernel: fwd.44
$region0: #{fwd.44}
  #allocation0 [shape = 'u32[]', space=smem, size = 0x4, offset = 0x4, fixed_abs, tag = 'smem constant byte address 0x4 - core index']
  #allocation1 [shape = 'u32[144,128]{1,0:T(1,128)}', space=vmem, size = 0x12000, scoped, tag = 'internal scratch']
  %s0 = inlined_call_operand.vmem [shape: f32[8,128], index: 0, kind: input, shape index: {}]
  %s1 = inlined_call_operand.vmem [shape: f32[1,128], index: 1, kind: input, shape index: {}]
  %s2 = inlined_call_operand.hbm [shape: f32[8,128], index: 2, kind: output, shape index: {}]
  %s3 = sld [smem:[#allocation0]]
  $region18: #{fwd.44} parent=0
    _
  %s5 = ssub.s32 1, %s3
  %s6 = scalar_select 0, %s5, %s3
  $region1: #{fwd.44} parent=0
    #allocation2 [shape = 'u8[4096]{0}', space=vmem, size = 0x1000, scoped, tag = 'output window, operand 0, single buffered']
    #allocation3 [shape = 's32[1]{0}', space=sflag, size = 0x4, scoped, tag = 'scoped memory for fwd.44']
    %7 = vsyncpa [#allocation3], 0
    // Predicated region
    $region2: #{fwd.44} parent=1 // pred_check
      _
    $region3: #{fwd.44} parent=1 // pred_check_branch
      %9 = sbr.rel (0) target = $region5
    $region4: #{fwd.44} parent=1 // pred_region
      _
    $region5: #{fwd.44} parent=1 // pred_fallthru
      _
    // Predicated region
    $region6: #{fwd.44} parent=1 // pred_check
      _
    $region7: #{fwd.44} parent=1 // pred_check_branch
      %11 = sbr.rel (0) target = $region9
    $region8: #{fwd.44} parent=1 // pred_region
      _
    $region9: #{fwd.44} parent=1 // pred_fallthru
      _
    %v12 = vld [vmem:[%s0] sm:$0xff]
    %v13 = vld [vmem:[%s1] sm:$0x1]
    %v15 = vlaneseq
    %v16 = vshrl.u32 %v15, 7
    %v17 = vsub.s32 0, %v16
    %v18 = vrot.slane %v13, %v17
    %v20 = vadd.f32 %v12, %v18
    %v21 = vlaneseq
    %v22 = vand.u32 %v21, 127
    %vm23 = vcmp.lt.s32.totalorder %v22, 8
    %v24 = vsel %vm23, 1, 0
    %vm25 = vcmp.eq.s32.totalorder %v24, 1
    %v26 = vsel %vm25, %v20, -1e+30
    %27 = vmax.xlane.f32.xlu0 %v26
    %v28 = vpop.xlane.xlu0 %27
    %v29 = vsub.f32 %v26, %v28
    %v30 = vmul.f32 %v29, 1.442695
    %v31 = vpow.pop %v30
    %32 = vadd.xlane.f32.xlu0 %v31
    %v33 = vpop.xlane.xlu0 %32
    %v34 = vlog2.pop %v33
    %v35 = vmul.f32 %v34, 0.6931472
    %v36 = vsub.f32 %v29, %v35
    %37 = vst [vmem:[#allocation2] sm:$0xff] %v36
    // Predicated region
    $region10: #{fwd.44} parent=1 // pred_check
      _
    $region11: #{fwd.44} parent=1 // pred_check_branch
      %39 = sbr.rel (0) target = $region13
    $region12: #{fwd.44} parent=1 // pred_region
      %s41 = ssub.s32 128, 128
      %42 = vsyncadd [#allocation3], %s41
      %s44 = sshll.u32 [#allocation2], 4
      %s45 = int_to_ptr.vmem [resolvable:$true] %s44
      %47 = dma.vmem_to_hbm [thread:$0]  %s45, 128, %s2, [#allocation3]
    $region13: #{fwd.44} parent=1 // pred_fallthru
      _
    // Predicated region
    $region14: #{fwd.44} parent=1 // pred_check
      _
    $region15: #{fwd.44} parent=1 // pred_check_branch
      %49 = sbr.rel (0) target = $region17
    $region16: #{fwd.44} parent=1 // pred_region
      %50 = dma.done [#allocation3], 128
    $region17: #{fwd.44} parent=1 // pred_fallthru
      _
    %51 = vsyncpa [#allocation3], 1

// kernel: fwd.27
$region0: #{fwd.27}
  #allocation0 [shape = 'u32[]', space=smem, size = 0x4, offset = 0x4, fixed_abs, tag = 'smem constant byte address 0x4 - core index']
  #allocation1 [shape = 'u32[144,128]{1,0:T(1,128)}', space=vmem, size = 0x12000, scoped, tag = 'internal scratch']
  %s0 = inlined_call_operand.vmem [shape: bf16[128,128], index: 0, kind: input, shape index: {}]
  %s1 = inlined_call_operand.vmem [shape: bf16[128,128], index: 1, kind: input, shape index: {}]
  %s2 = inlined_call_operand.vmem [shape: bf16[128,128], index: 2, kind: input, shape index: {}]
  %s3 = inlined_call_operand.vmem [shape: bf16[128,128], index: 3, kind: input, shape index: {}]
  %s4 = inlined_call_operand.vmem [shape: f32[1,128], index: 4, kind: input, shape index: {}]
  %s5 = inlined_call_operand.vmem [shape: f32[1,128], index: 5, kind: input, shape index: {}]
  %s6 = inlined_call_operand.vmem [shape: f32[1,128], index: 6, kind: input, shape index: {}]
  %s7 = inlined_call_operand.vmem [shape: bf16[128,128], index: 7, kind: input, shape index: {}]
  %s8 = inlined_call_operand.vmem [shape: f32[1,128], index: 8, kind: input, shape index: {}]
  %s9 = inlined_call_operand.vmem [shape: bf16[128,128], index: 9, kind: output, shape index: {}]
  %s10 = sld [smem:[#allocation0]]
  $region46: #{fwd.27} parent=0
    _
  %s12 = ssub.s32 1, %s10
  %s13 = scalar_select 0, %s12, %s10
  // Predicated region
  $region2: #{fwd.27} parent=0 // pred_check
    _
  $region3: #{fwd.27} parent=0 // pred_check_branch
    %15 = sbr.rel (0) target = $region5
  $region4: #{fwd.27} parent=0 // pred_region
    _
  $region5: #{fwd.27} parent=0 // pred_fallthru
    _
  // Predicated region
  $region6: #{fwd.27} parent=0 // pred_check
    _
  $region7: #{fwd.27} parent=0 // pred_check_branch
    %17 = sbr.rel (0) target = $region9
  $region8: #{fwd.27} parent=0 // pred_region
    _
  $region9: #{fwd.27} parent=0 // pred_fallthru
    _
  // Predicated region
  $region10: #{fwd.27} parent=0 // pred_check
    _
  $region11: #{fwd.27} parent=0 // pred_check_branch
    %19 = sbr.rel (0) target = $region13
  $region12: #{fwd.27} parent=0 // pred_region
    _
  $region13: #{fwd.27} parent=0 // pred_fallthru
    _
  // Predicated region
  $region14: #{fwd.27} parent=0 // pred_check
    _
  $region15: #{fwd.27} parent=0 // pred_check_branch
    %21 = sbr.rel (0) target = $region17
  $region16: #{fwd.27} parent=0 // pred_region
    _
  $region17: #{fwd.27} parent=0 // pred_fallthru
    _
  // Predicated region
  $region18: #{fwd.27} parent=0 // pred_check
    _
  $region19: #{fwd.27} parent=0 // pred_check_branch
    %23 = sbr.rel (0) target = $region21
  $region20: #{fwd.27} parent=0 // pred_region
    _
  $region21: #{fwd.27} parent=0 // pred_fallthru
    _
  // Predicated region
  $region22: #{fwd.27} parent=0 // pred_check
    _
  $region23: #{fwd.27} parent=0 // pred_check_branch
    %25 = sbr.rel (0) target = $region25
  $region24: #{fwd.27} parent=0 // pred_region
    _
  $region25: #{fwd.27} parent=0 // pred_fallthru
    _
  // Predicated region
  $region26: #{fwd.27} parent=0 // pred_check
    _
  $region27: #{fwd.27} parent=0 // pred_check_branch
    %27 = sbr.rel (0) target = $region29
  $region28: #{fwd.27} parent=0 // pred_region
    _
  $region29: #{fwd.27} parent=0 // pred_fallthru
    _
  // Predicated region
  $region30: #{fwd.27} parent=0 // pred_check
    _
  $region31: #{fwd.27} parent=0 // pred_check_branch
    %29 = sbr.rel (0) target = $region33
  $region32: #{fwd.27} parent=0 // pred_region
    _
  $region33: #{fwd.27} parent=0 // pred_fallthru
    _
  // Predicated region
  $region34: #{fwd.27} parent=0 // pred_check
    _
  $region35: #{fwd.27} parent=0 // pred_check_branch
    %31 = sbr.rel (0) target = $region37
  $region36: #{fwd.27} parent=0 // pred_region
    _
  $region37: #{fwd.27} parent=0 // pred_fallthru
    _
  %v33 = vld [vmem:[%s0] sm:$0xf]
  %v34 = vld [vmem:[%s0 + $0x4] sm:$0xf]
  %v35 = vld [vmem:[%s0 + $0x8] sm:$0xf]
  %v36 = vld [vmem:[%s0 + $0xc] sm:$0xf]
  %v37 = vld [vmem:[%s0 + $0x10] sm:$0xf]
  %v38 = vld [vmem:[%s0 + $0x14] sm:$0xf]
  %v39 = vld [vmem:[%s0 + $0x18] sm:$0xf]
  %v40 = vld [vmem:[%s0 + $0x1c] sm:$0xf]
  %v41 = vld [vmem:[%s0 + $0x20] sm:$0xf]
  %v42 = vld [vmem:[%s0 + $0x24] sm:$0xf]
  %v43 = vld [vmem:[%s0 + $0x28] sm:$0xf]
  %v44 = vld [vmem:[%s0 + $0x2c] sm:$0xf]
  %v45 = vld [vmem:[%s0 + $0x30] sm:$0xf]
  %v46 = vld [vmem:[%s0 + $0x34] sm:$0xf]
  %v47 = vld [vmem:[%s0 + $0x38] sm:$0xf]
  %v48 = vld [vmem:[%s0 + $0x3c] sm:$0xf]
  %v49 = vld [vmem:[%s1] sm:$0xf]
  %v50 = vld [vmem:[%s1 + $0x4] sm:$0xf]
  %v51 = vld [vmem:[%s1 + $0x8] sm:$0xf]
  %v52 = vld [vmem:[%s1 + $0xc] sm:$0xf]
  %v53 = vld [vmem:[%s1 + $0x10] sm:$0xf]
  %v54 = vld [vmem:[%s1 + $0x14] sm:$0xf]
  %v55 = vld [vmem:[%s1 + $0x18] sm:$0xf]
  %v56 = vld [vmem:[%s1 + $0x1c] sm:$0xf]
  %v57 = vld [vmem:[%s1 + $0x20] sm:$0xf]
  %v58 = vld [vmem:[%s1 + $0x24] sm:$0xf]
  %v59 = vld [vmem:[%s1 + $0x28] sm:$0xf]
  %v60 = vld [vmem:[%s1 + $0x2c] sm:$0xf]
  %v61 = vld [vmem:[%s1 + $0x30] sm:$0xf]
  %v62 = vld [vmem:[%s1 + $0x34] sm:$0xf]
  %v63 = vld [vmem:[%s1 + $0x38] sm:$0xf]
  %v64 = vld [vmem:[%s1 + $0x3c] sm:$0xf]
  %v65 = vunpack.c.l.bf16 %v33
  %v66 = vunpack.c.l.bf16 %v34
  %v67 = vunpack.c.l.bf16 %v35
  %v68 = vunpack.c.l.bf16 %v36
  %v69 = vunpack.c.l.bf16 %v37
  %v70 = vunpack.c.l.bf16 %v38
  %v71 = vunpack.c.l.bf16 %v39
  %v72 = vunpack.c.l.bf16 %v40
  %v73 = vunpack.c.l.bf16 %v41
  %v74 = vunpack.c.l.bf16 %v42
  %v75 = vunpack.c.l.bf16 %v43
  %v76 = vunpack.c.l.bf16 %v44
  %v77 = vunpack.c.l.bf16 %v45
  %v78 = vunpack.c.l.bf16 %v46
  %v79 = vunpack.c.l.bf16 %v47
  %v80 = vunpack.c.l.bf16 %v48
  %v81 = vunpack.c.l.bf16 %v49
  %v82 = vunpack.c.l.bf16 %v50
  %v83 = vunpack.c.l.bf16 %v51
  %v84 = vunpack.c.l.bf16 %v52
  %v85 = vunpack.c.l.bf16 %v53
  %v86 = vunpack.c.l.bf16 %v54
  %v87 = vunpack.c.l.bf16 %v55
  %v88 = vunpack.c.l.bf16 %v56
  %v89 = vunpack.c.l.bf16 %v57
  %v90 = vunpack.c.l.bf16 %v58
  %v91 = vunpack.c.l.bf16 %v59
  %v92 = vunpack.c.l.bf16 %v60
  %v93 = vunpack.c.l.bf16 %v61
  %v94 = vunpack.c.l.bf16 %v62
  %v95 = vunpack.c.l.bf16 %v63
  %v96 = vunpack.c.l.bf16 %v64
  %v97 = vsub.f32 %v65, %v81
  %v98 = vsub.f32 %v66, %v82
  %v99 = vsub.f32 %v67, %v83
  %v100 = vsub.f32 %v68, %v84
  %v101 = vsub.f32 %v69, %v85
  %v102 = vsub.f32 %v70, %v86
  %v103 = vsub.f32 %v71, %v87
  %v104 = vsub.f32 %v72, %v88
  %v105 = vsub.f32 %v73, %v89
  %v106 = vsub.f32 %v74, %v90
  %v107 = vsub.f32 %v75, %v91
  %v108 = vsub.f32 %v76, %v92
  %v109 = vsub.f32 %v77, %v93
  %v110 = vsub.f32 %v78, %v94
  %v111 = vsub.f32 %v79, %v95
  %v112 = vsub.f32 %v80, %v96
  %v113 = vmul.f32 %v97, %v97
  %v114 = vmul.f32 %v98, %v98
  %v115 = vmul.f32 %v99, %v99
  %v116 = vmul.f32 %v100, %v100
  %v117 = vmul.f32 %v101, %v101
  %v118 = vmul.f32 %v102, %v102
  %v119 = vmul.f32 %v103, %v103
  %v120 = vmul.f32 %v104, %v104
  %v121 = vmul.f32 %v105, %v105
  %v122 = vmul.f32 %v106, %v106
  %v123 = vmul.f32 %v107, %v107
  %v124 = vmul.f32 %v108, %v108
  %v125 = vmul.f32 %v109, %v109
  %v126 = vmul.f32 %v110, %v110
  %v127 = vmul.f32 %v111, %v111
  %v128 = vmul.f32 %v112, %v112
  %129 = vadd.xlane.f32.xlu0 %v113
  %v130 = vpop.xlane.xlu0 %129
  %131 = vadd.xlane.f32.xlu0 %v114
  %v132 = vpop.xlane.xlu0 %131
  %133 = vadd.xlane.f32.xlu0 %v115
  %v134 = vpop.xlane.xlu0 %133
  %135 = vadd.xlane.f32.xlu0 %v116
  %v136 = vpop.xlane.xlu0 %135
  %137 = vadd.xlane.f32.xlu0 %v117
  %v138 = vpop.xlane.xlu0 %137
  %139 = vadd.xlane.f32.xlu0 %v118
  %v140 = vpop.xlane.xlu0 %139
  %141 = vadd.xlane.f32.xlu0 %v119
  %v142 = vpop.xlane.xlu0 %141
  %143 = vadd.xlane.f32.xlu0 %v120
  %v144 = vpop.xlane.xlu0 %143
  %145 = vadd.xlane.f32.xlu0 %v121
  %v146 = vpop.xlane.xlu0 %145
  %147 = vadd.xlane.f32.xlu0 %v122
  %v148 = vpop.xlane.xlu0 %147
  %149 = vadd.xlane.f32.xlu0 %v123
  %v150 = vpop.xlane.xlu0 %149
  %151 = vadd.xlane.f32.xlu0 %v124
  %v152 = vpop.xlane.xlu0 %151
  %153 = vadd.xlane.f32.xlu0 %v125
  %v154 = vpop.xlane.xlu0 %153
  %155 = vadd.xlane.f32.xlu0 %v126
  %v156 = vpop.xlane.xlu0 %155
  %157 = vadd.xlane.f32.xlu0 %v127
  %v158 = vpop.xlane.xlu0 %157
  %159 = vadd.xlane.f32.xlu0 %v128
  %v160 = vpop.xlane.xlu0 %159
  %v161 = vrsqrt.pop %v130
  %v162 = vmul.f32 %v130, %v161
  %vm163 = vcmp.eq.f32.partialorder %v130, inf
  %v164 = vsel %vm163, %v130, %v162
  %vm165 = vcmp.eq.f32.partialorder %v130, 0.0
  %v166 = vand.u32 %v130, 2147483648
  %v167 = vsel %vm165, %v166, %v164
  %v168 = vrsqrt.pop %v132
  %v169 = vmul.f32 %v132, %v168
  %vm170 = vcmp.eq.f32.partialorder %v132, inf
  %v171 = vsel %vm170, %v132, %v169
  %vm172 = vcmp.eq.f32.partialorder %v132, 0.0
  %v173 = vand.u32 %v132, 2147483648
  %v174 = vsel %vm172, %v173, %v171
  %v175 = vrsqrt.pop %v134
  %v176 = vmul.f32 %v134, %v175
  %vm177 = vcmp.eq.f32.partialorder %v134, inf
  %v178 = vsel %vm177, %v134, %v176
  %vm179 = vcmp.eq.f32.partialorder %v134, 0.0
  %v180 = vand.u32 %v134, 2147483648
  %v181 = vsel %vm179, %v180, %v178
  %v182 = vrsqrt.pop %v136
  %v183 = vmul.f32 %v136, %v182
  %vm184 = vcmp.eq.f32.partialorder %v136, inf
  %v185 = vsel %vm184, %v136, %v183
  %vm186 = vcmp.eq.f32.partialorder %v136, 0.0
  %v187 = vand.u32 %v136, 2147483648
  %v188 = vsel %vm186, %v187, %v185
  %v189 = vrsqrt.pop %v138
  %v190 = vmul.f32 %v138, %v189
  %vm191 = vcmp.eq.f32.partialorder %v138, inf
  %v192 = vsel %vm191, %v138, %v190
  %vm193 = vcmp.eq.f32.partialorder %v138, 0.0
  %v194 = vand.u32 %v138, 2147483648
  %v195 = vsel %vm193, %v194, %v192
  %v196 = vrsqrt.pop %v140
  %v197 = vmul.f32 %v140, %v196
  %vm198 = vcmp.eq.f32.partialorder %v140, inf
  %v199 = vsel %vm198, %v140, %v197
  %vm200 = vcmp.eq.f32.partialorder %v140, 0.0
  %v201 = vand.u32 %v140, 2147483648
  %v202 = vsel %vm200, %v201, %v199
  %v203 = vrsqrt.pop %v142
  %v204 = vmul.f32 %v142, %v203
  %vm205 = vcmp.eq.f32.partialorder %v142, inf
  %v206 = vsel %vm205, %v142, %v204
  %vm207 = vcmp.eq.f32.partialorder %v142, 0.0
  %v208 = vand.u32 %v142, 2147483648
  %v209 = vsel %vm207, %v208, %v206
  %v210 = vrsqrt.pop %v144
  %v211 = vmul.f32 %v144, %v210
  %vm212 = vcmp.eq.f32.partialorder %v144, inf
  %v213 = vsel %vm212, %v144, %v211
  %vm214 = vcmp.eq.f32.partialorder %v144, 0.0
  %v215 = vand.u32 %v144, 2147483648
  %v216 = vsel %vm214, %v215, %v213
  %v217 = vrsqrt.pop %v146
  %v218 = vmul.f32 %v146, %v217
  %vm219 = vcmp.eq.f32.partialorder %v146, inf
  %v220 = vsel %vm219, %v146, %v218
  %vm221 = vcmp.eq.f32.partialorder %v146, 0.0
  %v222 = vand.u32 %v146, 2147483648
  %v223 = vsel %vm221, %v222, %v220
  %v224 = vrsqrt.pop %v148
  %v225 = vmul.f32 %v148, %v224
  %vm226 = vcmp.eq.f32.partialorder %v148, inf
  %v227 = vsel %vm226, %v148, %v225
  %vm228 = vcmp.eq.f32.partialorder %v148, 0.0
  %v229 = vand.u32 %v148, 2147483648
  %v230 = vsel %vm228, %v229, %v227
  %v231 = vrsqrt.pop %v150
  %v232 = vmul.f32 %v150, %v231
  %vm233 = vcmp.eq.f32.partialorder %v150, inf
  %v234 = vsel %vm233, %v150, %v232
  %vm235 = vcmp.eq.f32.partialorder %v150, 0.0
  %v236 = vand.u32 %v150, 2147483648
  %v237 = vsel %vm235, %v236, %v234
  %v238 = vrsqrt.pop %v152
  %v239 = vmul.f32 %v152, %v238
  %vm240 = vcmp.eq.f32.partialorder %v152, inf
  %v241 = vsel %vm240, %v152, %v239
  %vm242 = vcmp.eq.f32.partialorder %v152, 0.0
  %v243 = vand.u32 %v152, 2147483648
  %v244 = vsel %vm242, %v243, %v241
  %v245 = vrsqrt.pop %v154
  %v246 = vmul.f32 %v154, %v245
  %vm247 = vcmp.eq.f32.partialorder %v154, inf
  %v248 = vsel %vm247, %v154, %v246
  %vm249 = vcmp.eq.f32.partialorder %v154, 0.0
  %v250 = vand.u32 %v154, 2147483648
  %v251 = vsel %vm249, %v250, %v248
  %v252 = vrsqrt.pop %v156
  %v253 = vmul.f32 %v156, %v252
  %vm254 = vcmp.eq.f32.partialorder %v156, inf
  %v255 = vsel %vm254, %v156, %v253
  %vm256 = vcmp.eq.f32.partialorder %v156, 0.0
  %v257 = vand.u32 %v156, 2147483648
  %v258 = vsel %vm256, %v257, %v255
  %v259 = vrsqrt.pop %v158
  %v260 = vmul.f32 %v158, %v259
  %vm261 = vcmp.eq.f32.partialorder %v158, inf
  %v262 = vsel %vm261, %v158, %v260
  %vm263 = vcmp.eq.f32.partialorder %v158, 0.0
  %v264 = vand.u32 %v158, 2147483648
  %v265 = vsel %vm263, %v264, %v262
  %v266 = vrsqrt.pop %v160
  %v267 = vmul.f32 %v160, %v266
  %vm268 = vcmp.eq.f32.partialorder %v160, inf
  %v269 = vsel %vm268, %v160, %v267
  %vm270 = vcmp.eq.f32.partialorder %v160, 0.0
  %v271 = vand.u32 %v160, 2147483648
  %v272 = vsel %vm270, %v271, %v269
  %v273 = vmul.f32 %v65, %v81
  %v274 = vmul.f32 %v66, %v82
  %v275 = vmul.f32 %v67, %v83
  %v276 = vmul.f32 %v68, %v84
  %v277 = vmul.f32 %v69, %v85
  %v278 = vmul.f32 %v70, %v86
  %v279 = vmul.f32 %v71, %v87
  %v280 = vmul.f32 %v72, %v88
  %v281 = vmul.f32 %v73, %v89
  %v282 = vmul.f32 %v74, %v90
  %v283 = vmul.f32 %v75, %v91
  %v284 = vmul.f32 %v76, %v92
  %v285 = vmul.f32 %v77, %v93
  %v286 = vmul.f32 %v78, %v94
  %v287 = vmul.f32 %v79, %v95
  %v288 = vmul.f32 %v80, %v96
  %289 = vadd.xlane.f32.xlu0 %v273
  %v290 = vpop.xlane.xlu0 %289
  %291 = vadd.xlane.f32.xlu0 %v274
  %v292 = vpop.xlane.xlu0 %291
  %293 = vadd.xlane.f32.xlu0 %v275
  %v294 = vpop.xlane.xlu0 %293
  %295 = vadd.xlane.f32.xlu0 %v276
  %v296 = vpop.xlane.xlu0 %295
  %297 = vadd.xlane.f32.xlu0 %v277
  %v298 = vpop.xlane.xlu0 %297
  %299 = vadd.xlane.f32.xlu0 %v278
  %v300 = vpop.xlane.xlu0 %299
  %301 = vadd.xlane.f32.xlu0 %v279
  %v302 = vpop.xlane.xlu0 %301
  %303 = vadd.xlane.f32.xlu0 %v280
  %v304 = vpop.xlane.xlu0 %303
  %305 = vadd.xlane.f32.xlu0 %v281
  %v306 = vpop.xlane.xlu0 %305
  %307 = vadd.xlane.f32.xlu0 %v282
  %v308 = vpop.xlane.xlu0 %307
  %309 = vadd.xlane.f32.xlu0 %v283
  %v310 = vpop.xlane.xlu0 %309
  %311 = vadd.xlane.f32.xlu0 %v284
  %v312 = vpop.xlane.xlu0 %311
  %313 = vadd.xlane.f32.xlu0 %v285
  %v314 = vpop.xlane.xlu0 %313
  %315 = vadd.xlane.f32.xlu0 %v286
  %v316 = vpop.xlane.xlu0 %315
  %317 = vadd.xlane.f32.xlu0 %v287
  %v318 = vpop.xlane.xlu0 %317
  %319 = vadd.xlane.f32.xlu0 %v288
  %v320 = vpop.xlane.xlu0 %319
  %v321 = vmul.f32 %v167, 2.0
  %v322 = vmul.f32 %v174, 2.0
  %v323 = vmul.f32 %v181, 2.0
  %v324 = vmul.f32 %v188, 2.0
  %v325 = vmul.f32 %v195, 2.0
  %v326 = vmul.f32 %v202, 2.0
  %v327 = vmul.f32 %v209, 2.0
  %v328 = vmul.f32 %v216, 2.0
  %v329 = vmul.f32 %v223, 2.0
  %v330 = vmul.f32 %v230, 2.0
  %v331 = vmul.f32 %v237, 2.0
  %v332 = vmul.f32 %v244, 2.0
  %v333 = vmul.f32 %v251, 2.0
  %v334 = vmul.f32 %v258, 2.0
  %v335 = vmul.f32 %v265, 2.0
  %v336 = vmul.f32 %v272, 2.0
  %v337 = vmul.f32 %v167, %v167
  %v338 = vmul.f32 %v174, %v174
  %v339 = vmul.f32 %v181, %v181
  %v340 = vmul.f32 %v188, %v188
  %v341 = vmul.f32 %v195, %v195
  %v342 = vmul.f32 %v202, %v202
  %v343 = vmul.f32 %v209, %v209
  %v344 = vmul.f32 %v216, %v216
  %v345 = vmul.f32 %v223, %v223
  %v346 = vmul.f32 %v230, %v230
  %v347 = vmul.f32 %v237, %v237
  %v348 = vmul.f32 %v244, %v244
  %v349 = vmul.f32 %v251, %v251
  %v350 = vmul.f32 %v258, %v258
  %v351 = vmul.f32 %v265, %v265
  %v352 = vmul.f32 %v272, %v272
  %v353 = vmul.f32 %v337, %v167
  %v354 = vmul.f32 %v338, %v174
  %v355 = vmul.f32 %v339, %v181
  %v356 = vmul.f32 %v340, %v188
  %v357 = vmul.f32 %v341, %v195
  %v358 = vmul.f32 %v342, %v202
  %v359 = vmul.f32 %v343, %v209
  %v360 = vmul.f32 %v344, %v216
  %v361 = vmul.f32 %v345, %v223
  %v362 = vmul.f32 %v346, %v230
  %v363 = vmul.f32 %v347, %v237
  %v364 = vmul.f32 %v348, %v244
  %v365 = vmul.f32 %v349, %v251
  %v366 = vmul.f32 %v350, %v258
  %v367 = vmul.f32 %v351, %v265
  %v368 = vmul.f32 %v352, %v272
  %v369 = vmul.f32 %v353, 0.33333334
  %v370 = vmul.f32 %v354, 0.33333334
  %v371 = vmul.f32 %v355, 0.33333334
  %v372 = vmul.f32 %v356, 0.33333334
  %v373 = vmul.f32 %v357, 0.33333334
  %v374 = vmul.f32 %v358, 0.33333334
  %v375 = vmul.f32 %v359, 0.33333334
  %v376 = vmul.f32 %v360, 0.33333334
  %v377 = vmul.f32 %v361, 0.33333334
  %v378 = vmul.f32 %v362, 0.33333334
  %v379 = vmul.f32 %v363, 0.33333334
  %v380 = vmul.f32 %v364, 0.33333334
  %v381 = vmul.f32 %v365, 0.33333334
  %v382 = vmul.f32 %v366, 0.33333334
  %v383 = vmul.f32 %v367, 0.33333334
  %v384 = vmul.f32 %v368, 0.33333334
  %v385 = vmul.f32 %v290, %v167
  %v386 = vmul.f32 %v292, %v174
  %v387 = vmul.f32 %v294, %v181
  %v388 = vmul.f32 %v296, %v188
  %v389 = vmul.f32 %v298, %v195
  %v390 = vmul.f32 %v300, %v202
  %v391 = vmul.f32 %v302, %v209
  %v392 = vmul.f32 %v304, %v216
  %v393 = vmul.f32 %v306, %v223
  %v394 = vmul.f32 %v308, %v230
  %v395 = vmul.f32 %v310, %v237
  %v396 = vmul.f32 %v312, %v244
  %v397 = vmul.f32 %v314, %v251
  %v398 = vmul.f32 %v316, %v258
  %v399 = vmul.f32 %v318, %v265
  %v400 = vmul.f32 %v320, %v272
  %v401 = vmul.f32 %v385, %v167
  %v402 = vmul.f32 %v386, %v174
  %v403 = vmul.f32 %v387, %v181
  %v404 = vmul.f32 %v388, %v188
  %v405 = vmul.f32 %v389, %v195
  %v406 = vmul.f32 %v390, %v202
  %v407 = vmul.f32 %v391, %v209
  %v408 = vmul.f32 %v392, %v216
  %v409 = vmul.f32 %v393, %v223
  %v410 = vmul.f32 %v394, %v230
  %v411 = vmul.f32 %v395, %v237
  %v412 = vmul.f32 %v396, %v244
  %v413 = vmul.f32 %v397, %v251
  %v414 = vmul.f32 %v398, %v258
  %v415 = vmul.f32 %v399, %v265
  %v416 = vmul.f32 %v400, %v272
  %v417 = vadd.f32 %v369, %v401
  %v418 = vadd.f32 %v370, %v402
  %v419 = vadd.f32 %v371, %v403
  %v420 = vadd.f32 %v372, %v404
  %v421 = vadd.f32 %v373, %v405
  %v422 = vadd.f32 %v374, %v406
  %v423 = vadd.f32 %v375, %v407
  %v424 = vadd.f32 %v376, %v408
  %v425 = vadd.f32 %v377, %v409
  %v426 = vadd.f32 %v378, %v410
  %v427 = vadd.f32 %v379, %v411
  %v428 = vadd.f32 %v380, %v412
  %v429 = vadd.f32 %v381, %v413
  %v430 = vadd.f32 %v382, %v414
  %v431 = vadd.f32 %v383, %v415
  %v432 = vadd.f32 %v384, %v416
  %v433 = vmul.f32 %v417, 1.8
  %v434 = vmul.f32 %v418, 1.8
  %v435 = vmul.f32 %v419, 1.8
  %v436 = vmul.f32 %v420, 1.8
  %v437 = vmul.f32 %v421, 1.8
  %v438 = vmul.f32 %v422, 1.8
  %v439 = vmul.f32 %v423, 1.8
  %v440 = vmul.f32 %v424, 1.8
  %v441 = vmul.f32 %v425, 1.8
  %v442 = vmul.f32 %v426, 1.8
  %v443 = vmul.f32 %v427, 1.8
  %v444 = vmul.f32 %v428, 1.8
  %v445 = vmul.f32 %v429, 1.8
  %v446 = vmul.f32 %v430, 1.8
  %v447 = vmul.f32 %v431, 1.8
  %v448 = vmul.f32 %v432, 1.8
  %v449 = vsub.f32 %v321, %v433
  %v450 = vsub.f32 %v322, %v434
  %v451 = vsub.f32 %v323, %v435
  %v452 = vsub.f32 %v324, %v436
  %v453 = vsub.f32 %v325, %v437
  %v454 = vsub.f32 %v326, %v438
  %v455 = vsub.f32 %v327, %v439
  %v456 = vsub.f32 %v328, %v440
  %v457 = vsub.f32 %v329, %v441
  %v458 = vsub.f32 %v330, %v442
  %v459 = vsub.f32 %v331, %v443
  %v460 = vsub.f32 %v332, %v444
  %v461 = vsub.f32 %v333, %v445
  %v462 = vsub.f32 %v334, %v446
  %v463 = vsub.f32 %v335, %v447
  %v464 = vsub.f32 %v336, %v448
  %v465 = vmul.f32 %v449, 1.442695
  %v466 = vpow.pop %v465
  %v467 = vmul.f32 %v450, 1.442695
  %v468 = vpow.pop %v467
  %v469 = vmul.f32 %v451, 1.442695
  %v470 = vpow.pop %v469
  %v471 = vmul.f32 %v452, 1.442695
  %v472 = vpow.pop %v471
  %v473 = vmul.f32 %v453, 1.442695
  %v474 = vpow.pop %v473
  %v475 = vmul.f32 %v454, 1.442695
  %v476 = vpow.pop %v475
  %v477 = vmul.f32 %v455, 1.442695
  %v478 = vpow.pop %v477
  %v479 = vmul.f32 %v456, 1.442695
  %v480 = vpow.pop %v479
  %v481 = vmul.f32 %v457, 1.442695
  %v482 = vpow.pop %v481
  %v483 = vmul.f32 %v458, 1.442695
  %v484 = vpow.pop %v483
  %v485 = vmul.f32 %v459, 1.442695
  %v486 = vpow.pop %v485
  %v487 = vmul.f32 %v460, 1.442695
  %v488 = vpow.pop %v487
  %v489 = vmul.f32 %v461, 1.442695
  %v490 = vpow.pop %v489
  %v491 = vmul.f32 %v462, 1.442695
  %v492 = vpow.pop %v491
  %v493 = vmul.f32 %v463, 1.442695
  %v494 = vpow.pop %v493
  %v495 = vmul.f32 %v464, 1.442695
  %v496 = vpow.pop %v495
  %v497 = vadd.f32 %v466, 1.0
  %v498 = vadd.f32 %v468, 1.0
  %v499 = vadd.f32 %v470, 1.0
  %v500 = vadd.f32 %v472, 1.0
  %v501 = vadd.f32 %v474, 1.0
  %v502 = vadd.f32 %v476, 1.0
  %v503 = vadd.f32 %v478, 1.0
  %v504 = vadd.f32 %v480, 1.0
  %v505 = vadd.f32 %v482, 1.0
  %v506 = vadd.f32 %v484, 1.0
  %v507 = vadd.f32 %v486, 1.0
  %v508 = vadd.f32 %v488, 1.0
  %v509 = vadd.f32 %v490, 1.0
  %v510 = vadd.f32 %v492, 1.0
  %v511 = vadd.f32 %v494, 1.0
  %v512 = vadd.f32 %v496, 1.0
  %v513 = vrcp.pop %v497
  %v514 = vmul.f32 1.0, %v513
  %v515 = vrcp.pop %v498
  %v516 = vmul.f32 1.0, %v515
  %v517 = vrcp.pop %v499
  %v518 = vmul.f32 1.0, %v517
  %v519 = vrcp.pop %v500
  %v520 = vmul.f32 1.0, %v519
  %v521 = vrcp.pop %v501
  %v522 = vmul.f32 1.0, %v521
  %v523 = vrcp.pop %v502
  %v524 = vmul.f32 1.0, %v523
  %v525 = vrcp.pop %v503
  %v526 = vmul.f32 1.0, %v525
  %v527 = vrcp.pop %v504
  %v528 = vmul.f32 1.0, %v527
  %v529 = vrcp.pop %v505
  %v530 = vmul.f32 1.0, %v529
  %v531 = vrcp.pop %v506
  %v532 = vmul.f32 1.0, %v531
  %v533 = vrcp.pop %v507
  %v534 = vmul.f32 1.0, %v533
  %v535 = vrcp.pop %v508
  %v536 = vmul.f32 1.0, %v535
  %v537 = vrcp.pop %v509
  %v538 = vmul.f32 1.0, %v537
  %v539 = vrcp.pop %v510
  %v540 = vmul.f32 1.0, %v539
  %v541 = vrcp.pop %v511
  %v542 = vmul.f32 1.0, %v541
  %v543 = vrcp.pop %v512
  %v544 = vmul.f32 1.0, %v543
  %v545 = vadd.f32 %v514, 1.0
  %v546 = vadd.f32 %v516, 1.0
  %v547 = vadd.f32 %v518, 1.0
  %v548 = vadd.f32 %v520, 1.0
  %v549 = vadd.f32 %v522, 1.0
  %v550 = vadd.f32 %v524, 1.0
  %v551 = vadd.f32 %v526, 1.0
  %v552 = vadd.f32 %v528, 1.0
  %v553 = vadd.f32 %v530, 1.0
  %v554 = vadd.f32 %v532, 1.0
  %v555 = vadd.f32 %v534, 1.0
  %v556 = vadd.f32 %v536, 1.0
  %v557 = vadd.f32 %v538, 1.0
  %v558 = vadd.f32 %v540, 1.0
  %v559 = vadd.f32 %v542, 1.0
  %v560 = vadd.f32 %v544, 1.0
  %v561 = vmul.f32 %v545, %v65
  %v562 = vmul.f32 %v546, %v66
  %v563 = vmul.f32 %v547, %v67
  %v564 = vmul.f32 %v548, %v68
  %v565 = vmul.f32 %v549, %v69
  %v566 = vmul.f32 %v550, %v70
  %v567 = vmul.f32 %v551, %v71
  %v568 = vmul.f32 %v552, %v72
  %v569 = vmul.f32 %v553, %v73
  %v570 = vmul.f32 %v554, %v74
  %v571 = vmul.f32 %v555, %v75
  %v572 = vmul.f32 %v556, %v76
  %v573 = vmul.f32 %v557, %v77
  %v574 = vmul.f32 %v558, %v78
  %v575 = vmul.f32 %v559, %v79
  %v576 = vmul.f32 %v560, %v80
  %v577 = vpack.c.bf16 %v562, %v561
  %v578 = vpack.c.bf16 %v564, %v563
  %v579 = vpack.c.bf16 %v566, %v565
  %v580 = vpack.c.bf16 %v568, %v567
  %v581 = vpack.c.bf16 %v570, %v569
  %v582 = vpack.c.bf16 %v572, %v571
  %v583 = vpack.c.bf16 %v574, %v573
  %v584 = vpack.c.bf16 %v576, %v575
  %v585 = vld [vmem:[%s2] sm:$0xf]
  %v586 = vld [vmem:[%s2 + $0x4] sm:$0xf]
  %v587 = vld [vmem:[%s2 + $0x8] sm:$0xf]
  %v588 = vld [vmem:[%s2 + $0xc] sm:$0xf]
  %v589 = vld [vmem:[%s2 + $0x10] sm:$0xf]
  %v590 = vld [vmem:[%s2 + $0x14] sm:$0xf]
  %v591 = vld [vmem:[%s2 + $0x18] sm:$0xf]
  %v592 = vld [vmem:[%s2 + $0x1c] sm:$0xf]
  %v593 = vld [vmem:[%s2 + $0x20] sm:$0xf]
  %v594 = vld [vmem:[%s2 + $0x24] sm:$0xf]
  %v595 = vld [vmem:[%s2 + $0x28] sm:$0xf]
  %v596 = vld [vmem:[%s2 + $0x2c] sm:$0xf]
  %v597 = vld [vmem:[%s2 + $0x30] sm:$0xf]
  %v598 = vld [vmem:[%s2 + $0x34] sm:$0xf]
  %v599 = vld [vmem:[%s2 + $0x38] sm:$0xf]
  %v600 = vld [vmem:[%s2 + $0x3c] sm:$0xf]
  %v601 = vld [vmem:[%s3] sm:$0xf]
  %v602 = vld [vmem:[%s3 + $0x4] sm:$0xf]
  %v603 = vld [vmem:[%s3 + $0x8] sm:$0xf]
  %v604 = vld [vmem:[%s3 + $0xc] sm:$0xf]
  %v605 = vld [vmem:[%s3 + $0x10] sm:$0xf]
  %v606 = vld [vmem:[%s3 + $0x14] sm:$0xf]
  %v607 = vld [vmem:[%s3 + $0x18] sm:$0xf]
  %v608 = vld [vmem:[%s3 + $0x1c] sm:$0xf]
  %v609 = vld [vmem:[%s3 + $0x20] sm:$0xf]
  %v610 = vld [vmem:[%s3 + $0x24] sm:$0xf]
  %v611 = vld [vmem:[%s3 + $0x28] sm:$0xf]
  %v612 = vld [vmem:[%s3 + $0x2c] sm:$0xf]
  %v613 = vld [vmem:[%s3 + $0x30] sm:$0xf]
  %v614 = vld [vmem:[%s3 + $0x34] sm:$0xf]
  %v615 = vld [vmem:[%s3 + $0x38] sm:$0xf]
  %v616 = vld [vmem:[%s3 + $0x3c] sm:$0xf]
  %v633 = vunpack.c.l.b16 %v49
  %v634 = vunpack.c.l.b16 %v50
  %v635 = vunpack.c.l.b16 %v51
  %v636 = vunpack.c.l.b16 %v52
  %v637 = vunpack.c.l.b16 %v53
  %v638 = vunpack.c.l.b16 %v54
  %v639 = vunpack.c.l.b16 %v55
  %v640 = vunpack.c.l.b16 %v56
  %v641 = vunpack.c.l.b16 %v57
  %v642 = vunpack.c.l.b16 %v58
  %v643 = vunpack.c.l.b16 %v59
  %v644 = vunpack.c.l.b16 %v60
  %v645 = vunpack.c.l.b16 %v61
  %v646 = vunpack.c.l.b16 %v62
  %v647 = vunpack.c.l.b16 %v63
  %v648 = vunpack.c.l.b16 %v64
  %v649 = vpack.c.b16 %v634, %v633
  %v650 = vpack.c.b16 %v636, %v635
  %v651 = vpack.c.b16 %v638, %v637
  %v652 = vpack.c.b16 %v640, %v639
  %v653 = vpack.c.b16 %v642, %v641
  %v654 = vpack.c.b16 %v644, %v643
  %v655 = vpack.c.b16 %v646, %v645
  %v656 = vpack.c.b16 %v648, %v647
  %v681 = vunpack.c.l.b16 %v601
  %v682 = vunpack.c.l.b16 %v602
  %v683 = vunpack.c.l.b16 %v603
  %v684 = vunpack.c.l.b16 %v604
  %v685 = vunpack.c.l.b16 %v605
  %v686 = vunpack.c.l.b16 %v606
  %v687 = vunpack.c.l.b16 %v607
  %v688 = vunpack.c.l.b16 %v608
  %v689 = vunpack.c.l.b16 %v609
  %v690 = vunpack.c.l.b16 %v610
  %v691 = vunpack.c.l.b16 %v611
  %v692 = vunpack.c.l.b16 %v612
  %v693 = vunpack.c.l.b16 %v613
  %v694 = vunpack.c.l.b16 %v614
  %v695 = vunpack.c.l.b16 %v615
  %v696 = vunpack.c.l.b16 %v616
  %v697 = vpack.c.b16 %v682, %v681
  %v698 = vpack.c.b16 %v684, %v683
  %v699 = vpack.c.b16 %v686, %v685
  %v700 = vpack.c.b16 %v688, %v687
  %v701 = vpack.c.b16 %v690, %v689
  %v702 = vpack.c.b16 %v692, %v691
  %v703 = vpack.c.b16 %v694, %v693
  %v704 = vpack.c.b16 %v696, %v695
  %713 = vmatprep.subr.bf16.mxu0 0
  %714 = vmatpush1.bf16.msra.mxu0 %v704
  %715 = vmatprep.subr.bf16.mxu0 0
  %716 = vmatpush1.bf16.msra.mxu0 %v703
  %717 = vmatprep.subr.bf16.mxu0 0
  %718 = vmatpush1.bf16.msra.mxu0 %v702
  %719 = vmatprep.subr.bf16.mxu0 0
  %720 = vmatpush1.bf16.msra.mxu0 %v701
  %721 = vmatprep.subr.bf16.mxu0 0
  %722 = vmatpush1.bf16.msra.mxu0 %v700
  %723 = vmatprep.subr.bf16.mxu0 0
  %724 = vmatpush1.bf16.msra.mxu0 %v699
  %725 = vmatprep.subr.bf16.mxu0 0
  %726 = vmatpush1.bf16.msra.mxu0 %v698
  %727 = vmatprep.subr.bf16.mxu0 0
  %728 = vmatpush1.bf16.msra.mxu0 %v697
  %729 = vmatprep.subr.bf16.mxu0 0
  %730 = vmatpush2.bf16.msra.mxu0 0
  %731 = vmatprep.subr.bf16.mxu0 0
  %732 = vmatpush2.bf16.msra.mxu0 0
  %733 = vmatprep.subr.bf16.mxu0 0
  %734 = vmatpush2.bf16.msra.mxu0 0
  %735 = vmatprep.subr.bf16.mxu0 0
  %736 = vmatpush2.bf16.msra.mxu0 0
  %737 = vmatprep.subr.bf16.mxu0 0
  %738 = vmatpush2.bf16.msra.mxu0 0
  %739 = vmatprep.subr.bf16.mxu0 0
  %740 = vmatpush2.bf16.msra.mxu0 0
  %741 = vmatprep.subr.bf16.mxu0 0
  %742 = vmatpush2.bf16.msra.mxu0 0
  %743 = vmatprep.subr.bf16.mxu0 0
  %744 = vmatpush2.bf16.msra.mxu0 0
  %745 = vmatprep.mubr.bf16.mxu0 0
  %746 = vmatmul.mubr.bf16.gmra.mxu0 %v649
  %v747 = vpop.f32.mrf.mxu0
  %v748 = vadd.f32 0.0, %v747
  %v749 = vpop.f32.mrf.mxu0
  %v750 = vpop.f32.mrf.mxu0
  %v751 = vadd.f32 0.0, %v750
  %v752 = vpop.f32.mrf.mxu0
  %753 = vmatprep.mubr.bf16.mxu0 0
  %754 = vmatmul.mubr.bf16.gmra.mxu0 %v650
  %v755 = vpop.f32.mrf.mxu0
  %v756 = vadd.f32 0.0, %v755
  %v757 = vpop.f32.mrf.mxu0
  %v758 = vpop.f32.mrf.mxu0
  %v759 = vadd.f32 0.0, %v758
  %v760 = vpop.f32.mrf.mxu0
  %761 = vmatprep.mubr.bf16.mxu0 0
  %762 = vmatmul.mubr.bf16.gmra.mxu0 %v651
  %v763 = vpop.f32.mrf.mxu0
  %v764 = vadd.f32 0.0, %v763
  %v765 = vpop.f32.mrf.mxu0
  %v766 = vpop.f32.mrf.mxu0
  %v767 = vadd.f32 0.0, %v766
  %v768 = vpop.f32.mrf.mxu0
  %769 = vmatprep.mubr.bf16.mxu0 0
  %770 = vmatmul.mubr.bf16.gmra.mxu0 %v652
  %v771 = vpop.f32.mrf.mxu0
  %v772 = vadd.f32 0.0, %v771
  %v773 = vpop.f32.mrf.mxu0
  %v774 = vpop.f32.mrf.mxu0
  %v775 = vadd.f32 0.0, %v774
  %v776 = vpop.f32.mrf.mxu0
  %777 = vmatprep.mubr.bf16.mxu0 0
  %778 = vmatmul.mubr.bf16.gmra.mxu0 %v653
  %v779 = vpop.f32.mrf.mxu0
  %v780 = vadd.f32 0.0, %v779
  %v781 = vpop.f32.mrf.mxu0
  %v782 = vpop.f32.mrf.mxu0
  %v783 = vadd.f32 0.0, %v782
  %v784 = vpop.f32.mrf.mxu0
  %785 = vmatprep.mubr.bf16.mxu0 0
  %786 = vmatmul.mubr.bf16.gmra.mxu0 %v654
  %v787 = vpop.f32.mrf.mxu0
  %v788 = vadd.f32 0.0, %v787
  %v789 = vpop.f32.mrf.mxu0
  %v790 = vpop.f32.mrf.mxu0
  %v791 = vadd.f32 0.0, %v790
  %v792 = vpop.f32.mrf.mxu0
  %793 = vmatprep.mubr.bf16.mxu0 0
  %794 = vmatmul.mubr.bf16.gmra.mxu0 %v655
  %v795 = vpop.f32.mrf.mxu0
  %v796 = vadd.f32 0.0, %v795
  %v797 = vpop.f32.mrf.mxu0
  %v798 = vpop.f32.mrf.mxu0
  %v799 = vadd.f32 0.0, %v798
  %v800 = vpop.f32.mrf.mxu0
  %801 = vmatprep.mubr.bf16.mxu0 0
  %802 = vmatmul.mubr.bf16.gmra.mxu0 %v656
  %v803 = vpop.f32.mrf.mxu0
  %v804 = vadd.f32 0.0, %v803
  %v805 = vpop.f32.mrf.mxu0
  %v806 = vpop.f32.mrf.mxu0
  %v807 = vadd.f32 0.0, %v806
  %v808 = vpop.f32.mrf.mxu0
  %809 = vdwg.mxu0
  %v826 = vunpack.c.l.b16 %v585
  %v827 = vunpack.c.l.b16 %v586
  %v828 = vunpack.c.l.b16 %v587
  %v829 = vunpack.c.l.b16 %v588
  %v830 = vunpack.c.l.b16 %v589
  %v831 = vunpack.c.l.b16 %v590
  %v832 = vunpack.c.l.b16 %v591
  %v833 = vunpack.c.l.b16 %v592
  %v834 = vunpack.c.l.b16 %v593
  %v835 = vunpack.c.l.b16 %v594
  %v836 = vunpack.c.l.b16 %v595
  %v837 = vunpack.c.l.b16 %v596
  %v838 = vunpack.c.l.b16 %v597
  %v839 = vunpack.c.l.b16 %v598
  %v840 = vunpack.c.l.b16 %v599
  %v841 = vunpack.c.l.b16 %v600
  %v842 = vpack.c.b16 %v827, %v826
  %v843 = vpack.c.b16 %v829, %v828
  %v844 = vpack.c.b16 %v831, %v830
  %v845 = vpack.c.b16 %v833, %v832
  %v846 = vpack.c.b16 %v835, %v834
  %v847 = vpack.c.b16 %v837, %v836
  %v848 = vpack.c.b16 %v839, %v838
  %v849 = vpack.c.b16 %v841, %v840
  %858 = vmatprep.subr.bf16.mxu0 0
  %859 = vmatpush1.bf16.msra.mxu0 %v849
  %860 = vmatprep.subr.bf16.mxu0 0
  %861 = vmatpush1.bf16.msra.mxu0 %v848
  %862 = vmatprep.subr.bf16.mxu0 0
  %863 = vmatpush1.bf16.msra.mxu0 %v847
  %864 = vmatprep.subr.bf16.mxu0 0
  %865 = vmatpush1.bf16.msra.mxu0 %v846
  %866 = vmatprep.subr.bf16.mxu0 0
  %867 = vmatpush1.bf16.msra.mxu0 %v845
  %868 = vmatprep.subr.bf16.mxu0 0
  %869 = vmatpush1.bf16.msra.mxu0 %v844
  %870 = vmatprep.subr.bf16.mxu0 0
  %871 = vmatpush1.bf16.msra.mxu0 %v843
  %872 = vmatprep.subr.bf16.mxu0 0
  %873 = vmatpush1.bf16.msra.mxu0 %v842
  %874 = vmatprep.subr.bf16.mxu0 0
  %875 = vmatpush2.bf16.msra.mxu0 0
  %876 = vmatprep.subr.bf16.mxu0 0
  %877 = vmatpush2.bf16.msra.mxu0 0
  %878 = vmatprep.subr.bf16.mxu0 0
  %879 = vmatpush2.bf16.msra.mxu0 0
  %880 = vmatprep.subr.bf16.mxu0 0
  %881 = vmatpush2.bf16.msra.mxu0 0
  %882 = vmatprep.subr.bf16.mxu0 0
  %883 = vmatpush2.bf16.msra.mxu0 0
  %884 = vmatprep.subr.bf16.mxu0 0
  %885 = vmatpush2.bf16.msra.mxu0 0
  %886 = vmatprep.subr.bf16.mxu0 0
  %887 = vmatpush2.bf16.msra.mxu0 0
  %888 = vmatprep.subr.bf16.mxu0 0
  %889 = vmatpush2.bf16.msra.mxu0 0
  %890 = vmatprep.mubr.bf16.mxu0 0
  %891 = vmatmul.mubr.bf16.gmra.mxu0 %v577
  %v892 = vpop.f32.mrf.mxu0
  %v893 = vadd.f32 %v748, %v892
  %v894 = vpop.f32.mrf.mxu0
  %v895 = vpop.f32.mrf.mxu0
  %v896 = vadd.f32 %v751, %v895
  %v897 = vpop.f32.mrf.mxu0
  %898 = vmatprep.mubr.bf16.mxu0 0
  %899 = vmatmul.mubr.bf16.gmra.mxu0 %v578
  %v900 = vpop.f32.mrf.mxu0
  %v901 = vadd.f32 %v756, %v900
  %v902 = vpop.f32.mrf.mxu0
  %v903 = vpop.f32.mrf.mxu0
  %v904 = vadd.f32 %v759, %v903
  %v905 = vpop.f32.mrf.mxu0
  %906 = vmatprep.mubr.bf16.mxu0 0
  %907 = vmatmul.mubr.bf16.gmra.mxu0 %v579
  %v908 = vpop.f32.mrf.mxu0
  %v909 = vadd.f32 %v764, %v908
  %v910 = vpop.f32.mrf.mxu0
  %v911 = vpop.f32.mrf.mxu0
  %v912 = vadd.f32 %v767, %v911
  %v913 = vpop.f32.mrf.mxu0
  %914 = vmatprep.mubr.bf16.mxu0 0
  %915 = vmatmul.mubr.bf16.gmra.mxu0 %v580
  %v916 = vpop.f32.mrf.mxu0
  %v917 = vadd.f32 %v772, %v916
  %v918 = vpop.f32.mrf.mxu0
  %v919 = vpop.f32.mrf.mxu0
  %v920 = vadd.f32 %v775, %v919
  %v921 = vpop.f32.mrf.mxu0
  %922 = vmatprep.mubr.bf16.mxu0 0
  %923 = vmatmul.mubr.bf16.gmra.mxu0 %v581
  %v924 = vpop.f32.mrf.mxu0
  %v925 = vadd.f32 %v780, %v924
  %v926 = vpop.f32.mrf.mxu0
  %v927 = vpop.f32.mrf.mxu0
  %v928 = vadd.f32 %v783, %v927
  %v929 = vpop.f32.mrf.mxu0
  %930 = vmatprep.mubr.bf16.mxu0 0
  %931 = vmatmul.mubr.bf16.gmra.mxu0 %v582
  %v932 = vpop.f32.mrf.mxu0
  %v933 = vadd.f32 %v788, %v932
  %v934 = vpop.f32.mrf.mxu0
  %v935 = vpop.f32.mrf.mxu0
  %v936 = vadd.f32 %v791, %v935
  %v937 = vpop.f32.mrf.mxu0
  %938 = vmatprep.mubr.bf16.mxu0 0
  %939 = vmatmul.mubr.bf16.gmra.mxu0 %v583
  %v940 = vpop.f32.mrf.mxu0
  %v941 = vadd.f32 %v796, %v940
  %v942 = vpop.f32.mrf.mxu0
  %v943 = vpop.f32.mrf.mxu0
  %v944 = vadd.f32 %v799, %v943
  %v945 = vpop.f32.mrf.mxu0
  %946 = vmatprep.mubr.bf16.mxu0 0
  %947 = vmatmul.mubr.bf16.gmra.mxu0 %v584
  %v948 = vpop.f32.mrf.mxu0
  %v949 = vadd.f32 %v804, %v948
  %v950 = vpop.f32.mrf.mxu0
  %v951 = vpop.f32.mrf.mxu0
  %v952 = vadd.f32 %v807, %v951
  %v953 = vpop.f32.mrf.mxu0
  %954 = vdwg.mxu0
  %v955 = vld [vmem:[%s4] sm:$0x1]
  %v957 = vlaneseq
  %v958 = vshrl.u32 %v957, 7
  %v959 = vsub.s32 0, %v958
  %v960 = vrot.slane %v955, %v959
  %v962 = vadd.f32 %v893, %v960
  %v963 = vadd.f32 %v896, %v960
  %v964 = vadd.f32 %v901, %v960
  %v965 = vadd.f32 %v904, %v960
  %v966 = vadd.f32 %v909, %v960
  %v967 = vadd.f32 %v912, %v960
  %v968 = vadd.f32 %v917, %v960
  %v969 = vadd.f32 %v920, %v960
  %v970 = vadd.f32 %v925, %v960
  %v971 = vadd.f32 %v928, %v960
  %v972 = vadd.f32 %v933, %v960
  %v973 = vadd.f32 %v936, %v960
  %v974 = vadd.f32 %v941, %v960
  %v975 = vadd.f32 %v944, %v960
  %v976 = vadd.f32 %v949, %v960
  %v977 = vadd.f32 %v952, %v960
  %vm978 = vcmp.gt.f32.partialorder %v962, 0.0
  %vm979 = vcmp.gt.f32.partialorder %v963, 0.0
  %vm980 = vcmp.gt.f32.partialorder %v964, 0.0
  %vm981 = vcmp.gt.f32.partialorder %v965, 0.0
  %vm982 = vcmp.gt.f32.partialorder %v966, 0.0
  %vm983 = vcmp.gt.f32.partialorder %v967, 0.0
  %vm984 = vcmp.gt.f32.partialorder %v968, 0.0
  %vm985 = vcmp.gt.f32.partialorder %v969, 0.0
  %vm986 = vcmp.gt.f32.partialorder %v970, 0.0
  %vm987 = vcmp.gt.f32.partialorder %v971, 0.0
  %vm988 = vcmp.gt.f32.partialorder %v972, 0.0
  %vm989 = vcmp.gt.f32.partialorder %v973, 0.0
  %vm990 = vcmp.gt.f32.partialorder %v974, 0.0
  %vm991 = vcmp.gt.f32.partialorder %v975, 0.0
  %vm992 = vcmp.gt.f32.partialorder %v976, 0.0
  %vm993 = vcmp.gt.f32.partialorder %v977, 0.0
  %v994 = vmin.f32 %v962, 0.0
  %v995 = vmin.f32 %v963, 0.0
  %v996 = vmin.f32 %v964, 0.0
  %v997 = vmin.f32 %v965, 0.0
  %v998 = vmin.f32 %v966, 0.0
  %v999 = vmin.f32 %v967, 0.0
  %v1000 = vmin.f32 %v968, 0.0
  %v1001 = vmin.f32 %v969, 0.0
  %v1002 = vmin.f32 %v970, 0.0
  %v1003 = vmin.f32 %v971, 0.0
  %v1004 = vmin.f32 %v972, 0.0
  %v1005 = vmin.f32 %v973, 0.0
  %v1006 = vmin.f32 %v974, 0.0
  %v1007 = vmin.f32 %v975, 0.0
  %v1008 = vmin.f32 %v976, 0.0
  %v1009 = vmin.f32 %v977, 0.0
  %v1010 = vmul.f32 %v994, 1.442695
  %v1011 = vpow.pop %v1010
  %v1012 = vmul.f32 %v995, 1.442695
  %v1013 = vpow.pop %v1012
  %v1014 = vmul.f32 %v996, 1.442695
  %v1015 = vpow.pop %v1014
  %v1016 = vmul.f32 %v997, 1.442695
  %v1017 = vpow.pop %v1016
  %v1018 = vmul.f32 %v998, 1.442695
  %v1019 = vpow.pop %v1018
  %v1020 = vmul.f32 %v999, 1.442695
  %v1021 = vpow.pop %v1020
  %v1022 = vmul.f32 %v1000, 1.442695
  %v1023 = vpow.pop %v1022
  %v1024 = vmul.f32 %v1001, 1.442695
  %v1025 = vpow.pop %v1024
  %v1026 = vmul.f32 %v1002, 1.442695
  %v1027 = vpow.pop %v1026
  %v1028 = vmul.f32 %v1003, 1.442695
  %v1029 = vpow.pop %v1028
  %v1030 = vmul.f32 %v1004, 1.442695
  %v1031 = vpow.pop %v1030
  %v1032 = vmul.f32 %v1005, 1.442695
  %v1033 = vpow.pop %v1032
  %v1034 = vmul.f32 %v1006, 1.442695
  %v1035 = vpow.pop %v1034
  %v1036 = vmul.f32 %v1007, 1.442695
  %v1037 = vpow.pop %v1036
  %v1038 = vmul.f32 %v1008, 1.442695
  %v1039 = vpow.pop %v1038
  %v1040 = vmul.f32 %v1009, 1.442695
  %v1041 = vpow.pop %v1040
  %v1042 = vsub.f32 %v1011, 1.0
  %v1043 = vsub.f32 %v1013, 1.0
  %v1044 = vsub.f32 %v1015, 1.0
  %v1045 = vsub.f32 %v1017, 1.0
  %v1046 = vsub.f32 %v1019, 1.0
  %v1047 = vsub.f32 %v1021, 1.0
  %v1048 = vsub.f32 %v1023, 1.0
  %v1049 = vsub.f32 %v1025, 1.0
  %v1050 = vsub.f32 %v1027, 1.0
  %v1051 = vsub.f32 %v1029, 1.0
  %v1052 = vsub.f32 %v1031, 1.0
  %v1053 = vsub.f32 %v1033, 1.0
  %v1054 = vsub.f32 %v1035, 1.0
  %v1055 = vsub.f32 %v1037, 1.0
  %v1056 = vsub.f32 %v1039, 1.0
  %v1057 = vsub.f32 %v1041, 1.0
  %v1058 = vsel %vm978, %v962, %v1042
  %v1059 = vsel %vm979, %v963, %v1043
  %v1060 = vsel %vm980, %v964, %v1044
  %v1061 = vsel %vm981, %v965, %v1045
  %v1062 = vsel %vm982, %v966, %v1046
  %v1063 = vsel %vm983, %v967, %v1047
  %v1064 = vsel %vm984, %v968, %v1048
  %v1065 = vsel %vm985, %v969, %v1049
  %v1066 = vsel %vm986, %v970, %v1050
  %v1067 = vsel %vm987, %v971, %v1051
  %v1068 = vsel %vm988, %v972, %v1052
  %v1069 = vsel %vm989, %v973, %v1053
  %v1070 = vsel %vm990, %v974, %v1054
  %v1071 = vsel %vm991, %v975, %v1055
  %v1072 = vsel %vm992, %v976, %v1056
  %v1073 = vsel %vm993, %v977, %v1057
  %v1074 = vld [vmem:[%s5] sm:$0x1]
  %v1075 = vld [vmem:[%s6] sm:$0x1]
  %v1076 = vlaneseq
  %v1077 = vand.u32 %v1076, 127
  %vm1078 = vcmp.lt.s32.totalorder %v1077, 32
  %1079 = vadd.xlane.f32.xlu0 %v1058
  %v1080 = vpop.xlane.xlu0 %1079
  %1081 = vadd.xlane.f32.xlu0 %v1059
  %v1082 = vpop.xlane.xlu0 %1081
  %1083 = vadd.xlane.f32.xlu0 %v1060
  %v1084 = vpop.xlane.xlu0 %1083
  %1085 = vadd.xlane.f32.xlu0 %v1061
  %v1086 = vpop.xlane.xlu0 %1085
  %1087 = vadd.xlane.f32.xlu0 %v1062
  %v1088 = vpop.xlane.xlu0 %1087
  %1089 = vadd.xlane.f32.xlu0 %v1063
  %v1090 = vpop.xlane.xlu0 %1089
  %1091 = vadd.xlane.f32.xlu0 %v1064
  %v1092 = vpop.xlane.xlu0 %1091
  %1093 = vadd.xlane.f32.xlu0 %v1065
  %v1094 = vpop.xlane.xlu0 %1093
  %1095 = vadd.xlane.f32.xlu0 %v1066
  %v1096 = vpop.xlane.xlu0 %1095
  %1097 = vadd.xlane.f32.xlu0 %v1067
  %v1098 = vpop.xlane.xlu0 %1097
  %1099 = vadd.xlane.f32.xlu0 %v1068
  %v1100 = vpop.xlane.xlu0 %1099
  %1101 = vadd.xlane.f32.xlu0 %v1069
  %v1102 = vpop.xlane.xlu0 %1101
  %1103 = vadd.xlane.f32.xlu0 %v1070
  %v1104 = vpop.xlane.xlu0 %1103
  %1105 = vadd.xlane.f32.xlu0 %v1071
  %v1106 = vpop.xlane.xlu0 %1105
  %1107 = vadd.xlane.f32.xlu0 %v1072
  %v1108 = vpop.xlane.xlu0 %1107
  %1109 = vadd.xlane.f32.xlu0 %v1073
  %v1110 = vpop.xlane.xlu0 %1109
  %v1111 = vmul.f32 %v1080, 0.03125
  %v1112 = vmul.f32 %v1082, 0.03125
  %v1113 = vmul.f32 %v1084, 0.03125
  %v1114 = vmul.f32 %v1086, 0.03125
  %v1115 = vmul.f32 %v1088, 0.03125
  %v1116 = vmul.f32 %v1090, 0.03125
  %v1117 = vmul.f32 %v1092, 0.03125
  %v1118 = vmul.f32 %v1094, 0.03125
  %v1119 = vmul.f32 %v1096, 0.03125
  %v1120 = vmul.f32 %v1098, 0.03125
  %v1121 = vmul.f32 %v1100, 0.03125
  %v1122 = vmul.f32 %v1102, 0.03125
  %v1123 = vmul.f32 %v1104, 0.03125
  %v1124 = vmul.f32 %v1106, 0.03125
  %v1125 = vmul.f32 %v1108, 0.03125
  %v1126 = vmul.f32 %v1110, 0.03125
  %v1127 = vsub.f32 %v1058, %v1111
  %v1128 = vsub.f32 %v1059, %v1112
  %v1129 = vsub.f32 %v1060, %v1113
  %v1130 = vsub.f32 %v1061, %v1114
  %v1131 = vsub.f32 %v1062, %v1115
  %v1132 = vsub.f32 %v1063, %v1116
  %v1133 = vsub.f32 %v1064, %v1117
  %v1134 = vsub.f32 %v1065, %v1118
  %v1135 = vsub.f32 %v1066, %v1119
  %v1136 = vsub.f32 %v1067, %v1120
  %v1137 = vsub.f32 %v1068, %v1121
  %v1138 = vsub.f32 %v1069, %v1122
  %v1139 = vsub.f32 %v1070, %v1123
  %v1140 = vsub.f32 %v1071, %v1124
  %v1141 = vsub.f32 %v1072, %v1125
  %v1142 = vsub.f32 %v1073, %v1126
  %v1143 = vsel %vm1078, 1, 0
  %vm1144 = vcmp.eq.s32.totalorder %v1143, 1
  %v1145 = vsel %vm1144, %v1127, 0.0
  %v1146 = vsel %vm1144, %v1128, 0.0
  %v1147 = vsel %vm1144, %v1129, 0.0
  %v1148 = vsel %vm1144, %v1130, 0.0
  %v1149 = vsel %vm1144, %v1131, 0.0
  %v1150 = vsel %vm1144, %v1132, 0.0
  %v1151 = vsel %vm1144, %v1133, 0.0
  %v1152 = vsel %vm1144, %v1134, 0.0
  %v1153 = vsel %vm1144, %v1135, 0.0
  %v1154 = vsel %vm1144, %v1136, 0.0
  %v1155 = vsel %vm1144, %v1137, 0.0
  %v1156 = vsel %vm1144, %v1138, 0.0
  %v1157 = vsel %vm1144, %v1139, 0.0
  %v1158 = vsel %vm1144, %v1140, 0.0
  %v1159 = vsel %vm1144, %v1141, 0.0
  %v1160 = vsel %vm1144, %v1142, 0.0
  %v1161 = vmul.f32 %v1145, %v1145
  %v1162 = vmul.f32 %v1146, %v1146
  %v1163 = vmul.f32 %v1147, %v1147
  %v1164 = vmul.f32 %v1148, %v1148
  %v1165 = vmul.f32 %v1149, %v1149
  %v1166 = vmul.f32 %v1150, %v1150
  %v1167 = vmul.f32 %v1151, %v1151
  %v1168 = vmul.f32 %v1152, %v1152
  %v1169 = vmul.f32 %v1153, %v1153
  %v1170 = vmul.f32 %v1154, %v1154
  %v1171 = vmul.f32 %v1155, %v1155
  %v1172 = vmul.f32 %v1156, %v1156
  %v1173 = vmul.f32 %v1157, %v1157
  %v1174 = vmul.f32 %v1158, %v1158
  %v1175 = vmul.f32 %v1159, %v1159
  %v1176 = vmul.f32 %v1160, %v1160
  %1177 = vadd.xlane.f32.xlu0 %v1161
  %v1178 = vpop.xlane.xlu0 %1177
  %1179 = vadd.xlane.f32.xlu0 %v1162
  %v1180 = vpop.xlane.xlu0 %1179
  %1181 = vadd.xlane.f32.xlu0 %v1163
  %v1182 = vpop.xlane.xlu0 %1181
  %1183 = vadd.xlane.f32.xlu0 %v1164
  %v1184 = vpop.xlane.xlu0 %1183
  %1185 = vadd.xlane.f32.xlu0 %v1165
  %v1186 = vpop.xlane.xlu0 %1185
  %1187 = vadd.xlane.f32.xlu0 %v1166
  %v1188 = vpop.xlane.xlu0 %1187
  %1189 = vadd.xlane.f32.xlu0 %v1167
  %v1190 = vpop.xlane.xlu0 %1189
  %1191 = vadd.xlane.f32.xlu0 %v1168
  %v1192 = vpop.xlane.xlu0 %1191
  %1193 = vadd.xlane.f32.xlu0 %v1169
  %v1194 = vpop.xlane.xlu0 %1193
  %1195 = vadd.xlane.f32.xlu0 %v1170
  %v1196 = vpop.xlane.xlu0 %1195
  %1197 = vadd.xlane.f32.xlu0 %v1171
  %v1198 = vpop.xlane.xlu0 %1197
  %1199 = vadd.xlane.f32.xlu0 %v1172
  %v1200 = vpop.xlane.xlu0 %1199
  %1201 = vadd.xlane.f32.xlu0 %v1173
  %v1202 = vpop.xlane.xlu0 %1201
  %1203 = vadd.xlane.f32.xlu0 %v1174
  %v1204 = vpop.xlane.xlu0 %1203
  %1205 = vadd.xlane.f32.xlu0 %v1175
  %v1206 = vpop.xlane.xlu0 %1205
  %1207 = vadd.xlane.f32.xlu0 %v1176
  %v1208 = vpop.xlane.xlu0 %1207
  %v1209 = vmul.f32 %v1178, 0.03125
  %v1210 = vmul.f32 %v1180, 0.03125
  %v1211 = vmul.f32 %v1182, 0.03125
  %v1212 = vmul.f32 %v1184, 0.03125
  %v1213 = vmul.f32 %v1186, 0.03125
  %v1214 = vmul.f32 %v1188, 0.03125
  %v1215 = vmul.f32 %v1190, 0.03125
  %v1216 = vmul.f32 %v1192, 0.03125
  %v1217 = vmul.f32 %v1194, 0.03125
  %v1218 = vmul.f32 %v1196, 0.03125
  %v1219 = vmul.f32 %v1198, 0.03125
  %v1220 = vmul.f32 %v1200, 0.03125
  %v1221 = vmul.f32 %v1202, 0.03125
  %v1222 = vmul.f32 %v1204, 0.03125
  %v1223 = vmul.f32 %v1206, 0.03125
  %v1224 = vmul.f32 %v1208, 0.03125
  %v1225 = vadd.f32 %v1209, 1e-05
  %v1226 = vadd.f32 %v1210, 1e-05
  %v1227 = vadd.f32 %v1211, 1e-05
  %v1228 = vadd.f32 %v1212, 1e-05
  %v1229 = vadd.f32 %v1213, 1e-05
  %v1230 = vadd.f32 %v1214, 1e-05
  %v1231 = vadd.f32 %v1215, 1e-05
  %v1232 = vadd.f32 %v1216, 1e-05
  %v1233 = vadd.f32 %v1217, 1e-05
  %v1234 = vadd.f32 %v1218, 1e-05
  %v1235 = vadd.f32 %v1219, 1e-05
  %v1236 = vadd.f32 %v1220, 1e-05
  %v1237 = vadd.f32 %v1221, 1e-05
  %v1238 = vadd.f32 %v1222, 1e-05
  %v1239 = vadd.f32 %v1223, 1e-05
  %v1240 = vadd.f32 %v1224, 1e-05
  %v1241 = vrsqrt.pop %v1225
  %v1242 = vrsqrt.pop %v1226
  %v1243 = vrsqrt.pop %v1227
  %v1244 = vrsqrt.pop %v1228
  %v1245 = vrsqrt.pop %v1229
  %v1246 = vrsqrt.pop %v1230
  %v1247 = vrsqrt.pop %v1231
  %v1248 = vrsqrt.pop %v1232
  %v1249 = vrsqrt.pop %v1233
  %v1250 = vrsqrt.pop %v1234
  %v1251 = vrsqrt.pop %v1235
  %v1252 = vrsqrt.pop %v1236
  %v1253 = vrsqrt.pop %v1237
  %v1254 = vrsqrt.pop %v1238
  %v1255 = vrsqrt.pop %v1239
  %v1256 = vrsqrt.pop %v1240
  %v1257 = vmul.f32 %v1145, %v1241
  %v1258 = vmul.f32 %v1146, %v1242
  %v1259 = vmul.f32 %v1147, %v1243
  %v1260 = vmul.f32 %v1148, %v1244
  %v1261 = vmul.f32 %v1149, %v1245
  %v1262 = vmul.f32 %v1150, %v1246
  %v1263 = vmul.f32 %v1151, %v1247
  %v1264 = vmul.f32 %v1152, %v1248
  %v1265 = vmul.f32 %v1153, %v1249
  %v1266 = vmul.f32 %v1154, %v1250
  %v1267 = vmul.f32 %v1155, %v1251
  %v1268 = vmul.f32 %v1156, %v1252
  %v1269 = vmul.f32 %v1157, %v1253
  %v1270 = vmul.f32 %v1158, %v1254
  %v1271 = vmul.f32 %v1159, %v1255
  %v1272 = vmul.f32 %v1160, %v1256
  %v1274 = vlaneseq
  %v1275 = vshrl.u32 %v1274, 7
  %v1276 = vsub.s32 0, %v1275
  %v1277 = vrot.slane %v1074, %v1276
  %v1279 = vmul.f32 %v1257, %v1277
  %v1280 = vmul.f32 %v1258, %v1277
  %v1281 = vmul.f32 %v1259, %v1277
  %v1282 = vmul.f32 %v1260, %v1277
  %v1283 = vmul.f32 %v1261, %v1277
  %v1284 = vmul.f32 %v1262, %v1277
  %v1285 = vmul.f32 %v1263, %v1277
  %v1286 = vmul.f32 %v1264, %v1277
  %v1287 = vmul.f32 %v1265, %v1277
  %v1288 = vmul.f32 %v1266, %v1277
  %v1289 = vmul.f32 %v1267, %v1277
  %v1290 = vmul.f32 %v1268, %v1277
  %v1291 = vmul.f32 %v1269, %v1277
  %v1292 = vmul.f32 %v1270, %v1277
  %v1293 = vmul.f32 %v1271, %v1277
  %v1294 = vmul.f32 %v1272, %v1277
  %v1296 = vlaneseq
  %v1297 = vshrl.u32 %v1296, 7
  %v1298 = vsub.s32 0, %v1297
  %v1299 = vrot.slane %v1075, %v1298
  %v1301 = vadd.f32 %v1279, %v1299
  %v1302 = vadd.f32 %v1280, %v1299
  %v1303 = vadd.f32 %v1281, %v1299
  %v1304 = vadd.f32 %v1282, %v1299
  %v1305 = vadd.f32 %v1283, %v1299
  %v1306 = vadd.f32 %v1284, %v1299
  %v1307 = vadd.f32 %v1285, %v1299
  %v1308 = vadd.f32 %v1286, %v1299
  %v1309 = vadd.f32 %v1287, %v1299
  %v1310 = vadd.f32 %v1288, %v1299
  %v1311 = vadd.f32 %v1289, %v1299
  %v1312 = vadd.f32 %v1290, %v1299
  %v1313 = vadd.f32 %v1291, %v1299
  %v1314 = vadd.f32 %v1292, %v1299
  %v1315 = vadd.f32 %v1293, %v1299
  %v1316 = vadd.f32 %v1294, %v1299
  %v1317 = vpack.c.bf16 %v1302, %v1301
  %v1318 = vpack.c.bf16 %v1304, %v1303
  %v1319 = vpack.c.bf16 %v1306, %v1305
  %v1320 = vpack.c.bf16 %v1308, %v1307
  %v1321 = vpack.c.bf16 %v1310, %v1309
  %v1322 = vpack.c.bf16 %v1312, %v1311
  %v1323 = vpack.c.bf16 %v1314, %v1313
  %v1324 = vpack.c.bf16 %v1316, %v1315
  %v1325 = vld [vmem:[%s7] sm:$0xf]
  %v1326 = vld [vmem:[%s7 + $0x4] sm:$0xf]
  %v1327 = vld [vmem:[%s7 + $0x8] sm:$0xf]
  %v1328 = vld [vmem:[%s7 + $0xc] sm:$0xf]
  %v1329 = vld [vmem:[%s7 + $0x10] sm:$0xf]
  %v1330 = vld [vmem:[%s7 + $0x14] sm:$0xf]
  %v1331 = vld [vmem:[%s7 + $0x18] sm:$0xf]
  %v1332 = vld [vmem:[%s7 + $0x1c] sm:$0xf]
  %v1333 = vld [vmem:[%s7 + $0x20] sm:$0xf]
  %v1334 = vld [vmem:[%s7 + $0x24] sm:$0xf]
  %v1335 = vld [vmem:[%s7 + $0x28] sm:$0xf]
  %v1336 = vld [vmem:[%s7 + $0x2c] sm:$0xf]
  %v1337 = vld [vmem:[%s7 + $0x30] sm:$0xf]
  %v1338 = vld [vmem:[%s7 + $0x34] sm:$0xf]
  %v1339 = vld [vmem:[%s7 + $0x38] sm:$0xf]
  %v1340 = vld [vmem:[%s7 + $0x3c] sm:$0xf]
  %v1341 = vld [vmem:[%s8] sm:$0x1]
  %v1343 = vlaneseq
  %v1344 = vshrl.u32 %v1343, 7
  %v1345 = vsub.s32 0, %v1344
  %v1346 = vrot.slane %v1341, %v1345
  %v1364 = vunpack.c.l.b16 %v1325
  %v1365 = vunpack.c.l.b16 %v1326
  %v1366 = vunpack.c.l.b16 %v1327
  %v1367 = vunpack.c.l.b16 %v1328
  %v1368 = vunpack.c.l.b16 %v1329
  %v1369 = vunpack.c.l.b16 %v1330
  %v1370 = vunpack.c.l.b16 %v1331
  %v1371 = vunpack.c.l.b16 %v1332
  %v1372 = vunpack.c.l.b16 %v1333
  %v1373 = vunpack.c.l.b16 %v1334
  %v1374 = vunpack.c.l.b16 %v1335
  %v1375 = vunpack.c.l.b16 %v1336
  %v1376 = vunpack.c.l.b16 %v1337
  %v1377 = vunpack.c.l.b16 %v1338
  %v1378 = vunpack.c.l.b16 %v1339
  %v1379 = vunpack.c.l.b16 %v1340
  %v1380 = vpack.c.b16 %v1365, %v1364
  %v1381 = vpack.c.b16 %v1367, %v1366
  %v1382 = vpack.c.b16 %v1369, %v1368
  %v1383 = vpack.c.b16 %v1371, %v1370
  %v1384 = vpack.c.b16 %v1373, %v1372
  %v1385 = vpack.c.b16 %v1375, %v1374
  %v1386 = vpack.c.b16 %v1377, %v1376
  %v1387 = vpack.c.b16 %v1379, %v1378
  %1396 = vmatprep.subr.bf16.mxu0 0
  %1397 = vmatpush1.bf16.msra.mxu0 %v1387
  %1398 = vmatprep.subr.bf16.mxu0 0
  %1399 = vmatpush1.bf16.msra.mxu0 %v1386
  %1400 = vmatprep.subr.bf16.mxu0 0
  %1401 = vmatpush1.bf16.msra.mxu0 %v1385
  %1402 = vmatprep.subr.bf16.mxu0 0
  %1403 = vmatpush1.bf16.msra.mxu0 %v1384
  %1404 = vmatprep.subr.bf16.mxu0 0
  %1405 = vmatpush1.bf16.msra.mxu0 %v1383
  %1406 = vmatprep.subr.bf16.mxu0 0
  %1407 = vmatpush1.bf16.msra.mxu0 %v1382
  %1408 = vmatprep.subr.bf16.mxu0 0
  %1409 = vmatpush1.bf16.msra.mxu0 %v1381
  %1410 = vmatprep.subr.bf16.mxu0 0
  %1411 = vmatpush1.bf16.msra.mxu0 %v1380
  %1412 = vmatprep.subr.bf16.mxu0 0
  %1413 = vmatpush2.bf16.msra.mxu0 0
  %1414 = vmatprep.subr.bf16.mxu0 0
  %1415 = vmatpush2.bf16.msra.mxu0 0
  %1416 = vmatprep.subr.bf16.mxu0 0
  %1417 = vmatpush2.bf16.msra.mxu0 0
  %1418 = vmatprep.subr.bf16.mxu0 0
  %1419 = vmatpush2.bf16.msra.mxu0 0
  %1420 = vmatprep.subr.bf16.mxu0 0
  %1421 = vmatpush2.bf16.msra.mxu0 0
  %1422 = vmatprep.subr.bf16.mxu0 0
  %1423 = vmatpush2.bf16.msra.mxu0 0
  %1424 = vmatprep.subr.bf16.mxu0 0
  %1425 = vmatpush2.bf16.msra.mxu0 0
  %1426 = vmatprep.subr.bf16.mxu0 0
  %1427 = vmatpush2.bf16.msra.mxu0 0
  %1428 = vmatprep.mubr.bf16.mxu0 0
  %1429 = vmatmul.mubr.bf16.gmra.mxu0 %v1317
  %v1430 = vpop.f32.mrf.mxu0
  %v1431 = vadd.f32 %v1346, %v1430
  %v1432 = vpop.f32.mrf.mxu0
  %v1433 = vpop.f32.mrf.mxu0
  %v1434 = vadd.f32 %v1346, %v1433
  %v1435 = vpop.f32.mrf.mxu0
  %1436 = vmatprep.mubr.bf16.mxu0 0
  %1437 = vmatmul.mubr.bf16.gmra.mxu0 %v1318
  %v1438 = vpop.f32.mrf.mxu0
  %v1439 = vadd.f32 %v1346, %v1438
  %v1440 = vpop.f32.mrf.mxu0
  %v1441 = vpop.f32.mrf.mxu0
  %v1442 = vadd.f32 %v1346, %v1441
  %v1443 = vpop.f32.mrf.mxu0
  %1444 = vmatprep.mubr.bf16.mxu0 0
  %1445 = vmatmul.mubr.bf16.gmra.mxu0 %v1319
  %v1446 = vpop.f32.mrf.mxu0
  %v1447 = vadd.f32 %v1346, %v1446
  %v1448 = vpop.f32.mrf.mxu0
  %v1449 = vpop.f32.mrf.mxu0
  %v1450 = vadd.f32 %v1346, %v1449
  %v1451 = vpop.f32.mrf.mxu0
  %1452 = vmatprep.mubr.bf16.mxu0 0
  %1453 = vmatmul.mubr.bf16.gmra.mxu0 %v1320
  %v1454 = vpop.f32.mrf.mxu0
  %v1455 = vadd.f32 %v1346, %v1454
  %v1456 = vpop.f32.mrf.mxu0
  %v1457 = vpop.f32.mrf.mxu0
  %v1458 = vadd.f32 %v1346, %v1457
  %v1459 = vpop.f32.mrf.mxu0
  %1460 = vmatprep.mubr.bf16.mxu0 0
  %1461 = vmatmul.mubr.bf16.gmra.mxu0 %v1321
  %v1462 = vpop.f32.mrf.mxu0
  %v1463 = vadd.f32 %v1346, %v1462
  %v1464 = vpop.f32.mrf.mxu0
  %v1465 = vpop.f32.mrf.mxu0
  %v1466 = vadd.f32 %v1346, %v1465
  %v1467 = vpop.f32.mrf.mxu0
  %1468 = vmatprep.mubr.bf16.mxu0 0
  %1469 = vmatmul.mubr.bf16.gmra.mxu0 %v1322
  %v1470 = vpop.f32.mrf.mxu0
  %v1471 = vadd.f32 %v1346, %v1470
  %v1472 = vpop.f32.mrf.mxu0
  %v1473 = vpop.f32.mrf.mxu0
  %v1474 = vadd.f32 %v1346, %v1473
  %v1475 = vpop.f32.mrf.mxu0
  %1476 = vmatprep.mubr.bf16.mxu0 0
  %1477 = vmatmul.mubr.bf16.gmra.mxu0 %v1323
  %v1478 = vpop.f32.mrf.mxu0
  %v1479 = vadd.f32 %v1346, %v1478
  %v1480 = vpop.f32.mrf.mxu0
  %v1481 = vpop.f32.mrf.mxu0
  %v1482 = vadd.f32 %v1346, %v1481
  %v1483 = vpop.f32.mrf.mxu0
  %1484 = vmatprep.mubr.bf16.mxu0 0
  %1485 = vmatmul.mubr.bf16.gmra.mxu0 %v1324
  %v1486 = vpop.f32.mrf.mxu0
  %v1487 = vadd.f32 %v1346, %v1486
  %v1488 = vpop.f32.mrf.mxu0
  %v1489 = vpop.f32.mrf.mxu0
  %v1490 = vadd.f32 %v1346, %v1489
  %v1491 = vpop.f32.mrf.mxu0
  %1492 = vdwg.mxu0
  %vm1493 = vcmp.gt.f32.partialorder %v1431, 0.0
  %vm1494 = vcmp.gt.f32.partialorder %v1434, 0.0
  %vm1495 = vcmp.gt.f32.partialorder %v1439, 0.0
  %vm1496 = vcmp.gt.f32.partialorder %v1442, 0.0
  %vm1497 = vcmp.gt.f32.partialorder %v1447, 0.0
  %vm1498 = vcmp.gt.f32.partialorder %v1450, 0.0
  %vm1499 = vcmp.gt.f32.partialorder %v1455, 0.0
  %vm1500 = vcmp.gt.f32.partialorder %v1458, 0.0
  %vm1501 = vcmp.gt.f32.partialorder %v1463, 0.0
  %vm1502 = vcmp.gt.f32.partialorder %v1466, 0.0
  %vm1503 = vcmp.gt.f32.partialorder %v1471, 0.0
  %vm1504 = vcmp.gt.f32.partialorder %v1474, 0.0
  %vm1505 = vcmp.gt.f32.partialorder %v1479, 0.0
  %vm1506 = vcmp.gt.f32.partialorder %v1482, 0.0
  %vm1507 = vcmp.gt.f32.partialorder %v1487, 0.0
  %vm1508 = vcmp.gt.f32.partialorder %v1490, 0.0
  %v1509 = vmin.f32 %v1431, 0.0
  %v1510 = vmin.f32 %v1434, 0.0
  %v1511 = vmin.f32 %v1439, 0.0
  %v1512 = vmin.f32 %v1442, 0.0
  %v1513 = vmin.f32 %v1447, 0.0
  %v1514 = vmin.f32 %v1450, 0.0
  %v1515 = vmin.f32 %v1455, 0.0
  %v1516 = vmin.f32 %v1458, 0.0
  %v1517 = vmin.f32 %v1463, 0.0
  %v1518 = vmin.f32 %v1466, 0.0
  %v1519 = vmin.f32 %v1471, 0.0
  %v1520 = vmin.f32 %v1474, 0.0
  %v1521 = vmin.f32 %v1479, 0.0
  %v1522 = vmin.f32 %v1482, 0.0
  %v1523 = vmin.f32 %v1487, 0.0
  %v1524 = vmin.f32 %v1490, 0.0
  %v1525 = vmul.f32 %v1509, 1.442695
  %v1526 = vpow.pop %v1525
  %v1527 = vmul.f32 %v1510, 1.442695
  %v1528 = vpow.pop %v1527
  %v1529 = vmul.f32 %v1511, 1.442695
  %v1530 = vpow.pop %v1529
  %v1531 = vmul.f32 %v1512, 1.442695
  %v1532 = vpow.pop %v1531
  %v1533 = vmul.f32 %v1513, 1.442695
  %v1534 = vpow.pop %v1533
  %v1535 = vmul.f32 %v1514, 1.442695
  %v1536 = vpow.pop %v1535
  %v1537 = vmul.f32 %v1515, 1.442695
  %v1538 = vpow.pop %v1537
  %v1539 = vmul.f32 %v1516, 1.442695
  %v1540 = vpow.pop %v1539
  %v1541 = vmul.f32 %v1517, 1.442695
  %v1542 = vpow.pop %v1541
  %v1543 = vmul.f32 %v1518, 1.442695
  %v1544 = vpow.pop %v1543
  %v1545 = vmul.f32 %v1519, 1.442695
  %v1546 = vpow.pop %v1545
  %v1547 = vmul.f32 %v1520, 1.442695
  %v1548 = vpow.pop %v1547
  %v1549 = vmul.f32 %v1521, 1.442695
  %v1550 = vpow.pop %v1549
  %v1551 = vmul.f32 %v1522, 1.442695
  %v1552 = vpow.pop %v1551
  %v1553 = vmul.f32 %v1523, 1.442695
  %v1554 = vpow.pop %v1553
  %v1555 = vmul.f32 %v1524, 1.442695
  %v1556 = vpow.pop %v1555
  %v1557 = vsub.f32 %v1526, 1.0
  %v1558 = vsub.f32 %v1528, 1.0
  %v1559 = vsub.f32 %v1530, 1.0
  %v1560 = vsub.f32 %v1532, 1.0
  %v1561 = vsub.f32 %v1534, 1.0
  %v1562 = vsub.f32 %v1536, 1.0
  %v1563 = vsub.f32 %v1538, 1.0
  %v1564 = vsub.f32 %v1540, 1.0
  %v1565 = vsub.f32 %v1542, 1.0
  %v1566 = vsub.f32 %v1544, 1.0
  %v1567 = vsub.f32 %v1546, 1.0
  %v1568 = vsub.f32 %v1548, 1.0
  %v1569 = vsub.f32 %v1550, 1.0
  %v1570 = vsub.f32 %v1552, 1.0
  %v1571 = vsub.f32 %v1554, 1.0
  %v1572 = vsub.f32 %v1556, 1.0
  %v1573 = vsel %vm1493, %v1431, %v1557
  %v1574 = vsel %vm1494, %v1434, %v1558
  %v1575 = vsel %vm1495, %v1439, %v1559
  %v1576 = vsel %vm1496, %v1442, %v1560
  %v1577 = vsel %vm1497, %v1447, %v1561
  %v1578 = vsel %vm1498, %v1450, %v1562
  %v1579 = vsel %vm1499, %v1455, %v1563
  %v1580 = vsel %vm1500, %v1458, %v1564
  %v1581 = vsel %vm1501, %v1463, %v1565
  %v1582 = vsel %vm1502, %v1466, %v1566
  %v1583 = vsel %vm1503, %v1471, %v1567
  %v1584 = vsel %vm1504, %v1474, %v1568
  %v1585 = vsel %vm1505, %v1479, %v1569
  %v1586 = vsel %vm1506, %v1482, %v1570
  %v1587 = vsel %vm1507, %v1487, %v1571
  %v1588 = vsel %vm1508, %v1490, %v1572
  %v1589 = vmul.f32 %v1573, 0.999995
  %v1590 = vmul.f32 %v1574, 0.999995
  %v1591 = vmul.f32 %v1575, 0.999995
  %v1592 = vmul.f32 %v1576, 0.999995
  %v1593 = vmul.f32 %v1577, 0.999995
  %v1594 = vmul.f32 %v1578, 0.999995
  %v1595 = vmul.f32 %v1579, 0.999995
  %v1596 = vmul.f32 %v1580, 0.999995
  %v1597 = vmul.f32 %v1581, 0.999995
  %v1598 = vmul.f32 %v1582, 0.999995
  %v1599 = vmul.f32 %v1583, 0.999995
  %v1600 = vmul.f32 %v1584, 0.999995
  %v1601 = vmul.f32 %v1585, 0.999995
  %v1602 = vmul.f32 %v1586, 0.999995
  %v1603 = vmul.f32 %v1587, 0.999995
  %v1604 = vmul.f32 %v1588, 0.999995
  %v1605 = vpack.c.bf16 %v1590, %v1589
  %v1606 = vpack.c.bf16 %v1592, %v1591
  %v1607 = vpack.c.bf16 %v1594, %v1593
  %v1608 = vpack.c.bf16 %v1596, %v1595
  %v1609 = vpack.c.bf16 %v1598, %v1597
  %v1610 = vpack.c.bf16 %v1600, %v1599
  %v1611 = vpack.c.bf16 %v1602, %v1601
  %v1612 = vpack.c.bf16 %v1604, %v1603
  %v1621 = vunpack.c.l.b16 %v1605
  %v1622 = vunpack.c.h.b16 %v1605
  %v1623 = vunpack.c.l.b16 %v1606
  %v1624 = vunpack.c.h.b16 %v1606
  %v1625 = vunpack.c.l.b16 %v1607
  %v1626 = vunpack.c.h.b16 %v1607
  %v1627 = vunpack.c.l.b16 %v1608
  %v1628 = vunpack.c.h.b16 %v1608
  %v1629 = vunpack.c.l.b16 %v1609
  %v1630 = vunpack.c.h.b16 %v1609
  %v1631 = vunpack.c.l.b16 %v1610
  %v1632 = vunpack.c.h.b16 %v1610
  %v1633 = vunpack.c.l.b16 %v1611
  %v1634 = vunpack.c.h.b16 %v1611
  %v1635 = vunpack.c.l.b16 %v1612
  %v1636 = vunpack.c.h.b16 %v1612
  %v1637 = vpack.c.b16 %v1621, %v1621
  %v1638 = vpack.c.b16 %v1622, %v1622
  %v1639 = vpack.c.b16 %v1623, %v1623
  %v1640 = vpack.c.b16 %v1624, %v1624
  %v1641 = vpack.c.b16 %v1625, %v1625
  %v1642 = vpack.c.b16 %v1626, %v1626
  %v1643 = vpack.c.b16 %v1627, %v1627
  %v1644 = vpack.c.b16 %v1628, %v1628
  %v1645 = vpack.c.b16 %v1629, %v1629
  %v1646 = vpack.c.b16 %v1630, %v1630
  %v1647 = vpack.c.b16 %v1631, %v1631
  %v1648 = vpack.c.b16 %v1632, %v1632
  %v1649 = vpack.c.b16 %v1633, %v1633
  %v1650 = vpack.c.b16 %v1634, %v1634
  %v1651 = vpack.c.b16 %v1635, %v1635
  %v1652 = vpack.c.b16 %v1636, %v1636
  %1669 = vst [vmem:[%s9] sm:$0xf] %v1637
  %1670 = vst [vmem:[%s9 + $0x4] sm:$0xf] %v1638
  %1671 = vst [vmem:[%s9 + $0x8] sm:$0xf] %v1639
  %1672 = vst [vmem:[%s9 + $0xc] sm:$0xf] %v1640
  %1673 = vst [vmem:[%s9 + $0x10] sm:$0xf] %v1641
  %1674 = vst [vmem:[%s9 + $0x14] sm:$0xf] %v1642
  %1675 = vst [vmem:[%s9 + $0x18] sm:$0xf] %v1643
  %1676 = vst [vmem:[%s9 + $0x1c] sm:$0xf] %v1644
  %1677 = vst [vmem:[%s9 + $0x20] sm:$0xf] %v1645
  %1678 = vst [vmem:[%s9 + $0x24] sm:$0xf] %v1646
  %1679 = vst [vmem:[%s9 + $0x28] sm:$0xf] %v1647
  %1680 = vst [vmem:[%s9 + $0x2c] sm:$0xf] %v1648
  %1681 = vst [vmem:[%s9 + $0x30] sm:$0xf] %v1649
  %1682 = vst [vmem:[%s9 + $0x34] sm:$0xf] %v1650
  %1683 = vst [vmem:[%s9 + $0x38] sm:$0xf] %v1651
  %1684 = vst [vmem:[%s9 + $0x3c] sm:$0xf] %v1652
  // Predicated region
  $region38: #{fwd.27} parent=0 // pred_check
    _
  $region39: #{fwd.27} parent=0 // pred_check_branch
    %1686 = sbr.rel (0) target = $region41
  $region40: #{fwd.27} parent=0 // pred_region
    _
  $region41: #{fwd.27} parent=0 // pred_fallthru
    _
  // Predicated region
  $region42: #{fwd.27} parent=0 // pred_check
    _
  $region43: #{fwd.27} parent=0 // pred_check_branch
    %1688 = sbr.rel (0) target = $region45
  $region44: #{fwd.27} parent=0 // pred_region
    _
  $region45: #{fwd.27} parent=0 // pred_fallthru
    _

// kernel: fwd.34
$region0: #{fwd.34}
  #allocation0 [shape = 'u32[]', space=smem, size = 0x4, offset = 0x4, fixed_abs, tag = 'smem constant byte address 0x4 - core index']
  #allocation1 [shape = 'u32[144,128]{1,0:T(1,128)}', space=vmem, size = 0x12000, scoped, tag = 'internal scratch']
  %s0 = inlined_call_operand.vmem [shape: bf16[128,128], index: 0, kind: input, shape index: {}]
  %s1 = inlined_call_operand.vmem [shape: bf16[128,128], index: 1, kind: input, shape index: {}]
  %s2 = inlined_call_operand.vmem [shape: bf16[128,128], index: 2, kind: input, shape index: {}]
  %s3 = inlined_call_operand.vmem [shape: bf16[128,128], index: 3, kind: input, shape index: {}]
  %s4 = inlined_call_operand.vmem [shape: f32[1,128], index: 4, kind: input, shape index: {}]
  %s5 = inlined_call_operand.vmem [shape: f32[1,128], index: 5, kind: input, shape index: {}]
  %s6 = inlined_call_operand.vmem [shape: f32[1,128], index: 6, kind: input, shape index: {}]
  %s7 = inlined_call_operand.vmem [shape: bf16[128,128], index: 7, kind: input, shape index: {}]
  %s8 = inlined_call_operand.vmem [shape: f32[1,128], index: 8, kind: input, shape index: {}]
  %s9 = inlined_call_operand.vmem [shape: bf16[128,128], index: 9, kind: output, shape index: {}]
  %s10 = sld [smem:[#allocation0]]
  $region46: #{fwd.34} parent=0
    _
  %s12 = ssub.s32 1, %s10
  %s13 = scalar_select 0, %s12, %s10
  // Predicated region
  $region2: #{fwd.34} parent=0 // pred_check
    _
  $region3: #{fwd.34} parent=0 // pred_check_branch
    %15 = sbr.rel (0) target = $region5
  $region4: #{fwd.34} parent=0 // pred_region
    _
  $region5: #{fwd.34} parent=0 // pred_fallthru
    _
  // Predicated region
  $region6: #{fwd.34} parent=0 // pred_check
    _
  $region7: #{fwd.34} parent=0 // pred_check_branch
    %17 = sbr.rel (0) target = $region9
  $region8: #{fwd.34} parent=0 // pred_region
    _
  $region9: #{fwd.34} parent=0 // pred_fallthru
    _
  // Predicated region
  $region10: #{fwd.34} parent=0 // pred_check
    _
  $region11: #{fwd.34} parent=0 // pred_check_branch
    %19 = sbr.rel (0) target = $region13
  $region12: #{fwd.34} parent=0 // pred_region
    _
  $region13: #{fwd.34} parent=0 // pred_fallthru
    _
  // Predicated region
  $region14: #{fwd.34} parent=0 // pred_check
    _
  $region15: #{fwd.34} parent=0 // pred_check_branch
    %21 = sbr.rel (0) target = $region17
  $region16: #{fwd.34} parent=0 // pred_region
    _
  $region17: #{fwd.34} parent=0 // pred_fallthru
    _
  // Predicated region
  $region18: #{fwd.34} parent=0 // pred_check
    _
  $region19: #{fwd.34} parent=0 // pred_check_branch
    %23 = sbr.rel (0) target = $region21
  $region20: #{fwd.34} parent=0 // pred_region
    _
  $region21: #{fwd.34} parent=0 // pred_fallthru
    _
  // Predicated region
  $region22: #{fwd.34} parent=0 // pred_check
    _
  $region23: #{fwd.34} parent=0 // pred_check_branch
    %25 = sbr.rel (0) target = $region25
  $region24: #{fwd.34} parent=0 // pred_region
    _
  $region25: #{fwd.34} parent=0 // pred_fallthru
    _
  // Predicated region
  $region26: #{fwd.34} parent=0 // pred_check
    _
  $region27: #{fwd.34} parent=0 // pred_check_branch
    %27 = sbr.rel (0) target = $region29
  $region28: #{fwd.34} parent=0 // pred_region
    _
  $region29: #{fwd.34} parent=0 // pred_fallthru
    _
  // Predicated region
  $region30: #{fwd.34} parent=0 // pred_check
    _
  $region31: #{fwd.34} parent=0 // pred_check_branch
    %29 = sbr.rel (0) target = $region33
  $region32: #{fwd.34} parent=0 // pred_region
    _
  $region33: #{fwd.34} parent=0 // pred_fallthru
    _
  // Predicated region
  $region34: #{fwd.34} parent=0 // pred_check
    _
  $region35: #{fwd.34} parent=0 // pred_check_branch
    %31 = sbr.rel (0) target = $region37
  $region36: #{fwd.34} parent=0 // pred_region
    _
  $region37: #{fwd.34} parent=0 // pred_fallthru
    _
  %v33 = vld [vmem:[%s0] sm:$0xf]
  %v34 = vld [vmem:[%s0 + $0x4] sm:$0xf]
  %v35 = vld [vmem:[%s0 + $0x8] sm:$0xf]
  %v36 = vld [vmem:[%s0 + $0xc] sm:$0xf]
  %v37 = vld [vmem:[%s0 + $0x10] sm:$0xf]
  %v38 = vld [vmem:[%s0 + $0x14] sm:$0xf]
  %v39 = vld [vmem:[%s0 + $0x18] sm:$0xf]
  %v40 = vld [vmem:[%s0 + $0x1c] sm:$0xf]
  %v41 = vld [vmem:[%s0 + $0x20] sm:$0xf]
  %v42 = vld [vmem:[%s0 + $0x24] sm:$0xf]
  %v43 = vld [vmem:[%s0 + $0x28] sm:$0xf]
  %v44 = vld [vmem:[%s0 + $0x2c] sm:$0xf]
  %v45 = vld [vmem:[%s0 + $0x30] sm:$0xf]
  %v46 = vld [vmem:[%s0 + $0x34] sm:$0xf]
  %v47 = vld [vmem:[%s0 + $0x38] sm:$0xf]
  %v48 = vld [vmem:[%s0 + $0x3c] sm:$0xf]
  %v49 = vld [vmem:[%s1] sm:$0xf]
  %v50 = vld [vmem:[%s1 + $0x4] sm:$0xf]
  %v51 = vld [vmem:[%s1 + $0x8] sm:$0xf]
  %v52 = vld [vmem:[%s1 + $0xc] sm:$0xf]
  %v53 = vld [vmem:[%s1 + $0x10] sm:$0xf]
  %v54 = vld [vmem:[%s1 + $0x14] sm:$0xf]
  %v55 = vld [vmem:[%s1 + $0x18] sm:$0xf]
  %v56 = vld [vmem:[%s1 + $0x1c] sm:$0xf]
  %v57 = vld [vmem:[%s1 + $0x20] sm:$0xf]
  %v58 = vld [vmem:[%s1 + $0x24] sm:$0xf]
  %v59 = vld [vmem:[%s1 + $0x28] sm:$0xf]
  %v60 = vld [vmem:[%s1 + $0x2c] sm:$0xf]
  %v61 = vld [vmem:[%s1 + $0x30] sm:$0xf]
  %v62 = vld [vmem:[%s1 + $0x34] sm:$0xf]
  %v63 = vld [vmem:[%s1 + $0x38] sm:$0xf]
  %v64 = vld [vmem:[%s1 + $0x3c] sm:$0xf]
  %v65 = vunpack.c.l.bf16 %v33
  %v66 = vunpack.c.l.bf16 %v34
  %v67 = vunpack.c.l.bf16 %v35
  %v68 = vunpack.c.l.bf16 %v36
  %v69 = vunpack.c.l.bf16 %v37
  %v70 = vunpack.c.l.bf16 %v38
  %v71 = vunpack.c.l.bf16 %v39
  %v72 = vunpack.c.l.bf16 %v40
  %v73 = vunpack.c.l.bf16 %v41
  %v74 = vunpack.c.l.bf16 %v42
  %v75 = vunpack.c.l.bf16 %v43
  %v76 = vunpack.c.l.bf16 %v44
  %v77 = vunpack.c.l.bf16 %v45
  %v78 = vunpack.c.l.bf16 %v46
  %v79 = vunpack.c.l.bf16 %v47
  %v80 = vunpack.c.l.bf16 %v48
  %v81 = vunpack.c.l.bf16 %v49
  %v82 = vunpack.c.l.bf16 %v50
  %v83 = vunpack.c.l.bf16 %v51
  %v84 = vunpack.c.l.bf16 %v52
  %v85 = vunpack.c.l.bf16 %v53
  %v86 = vunpack.c.l.bf16 %v54
  %v87 = vunpack.c.l.bf16 %v55
  %v88 = vunpack.c.l.bf16 %v56
  %v89 = vunpack.c.l.bf16 %v57
  %v90 = vunpack.c.l.bf16 %v58
  %v91 = vunpack.c.l.bf16 %v59
  %v92 = vunpack.c.l.bf16 %v60
  %v93 = vunpack.c.l.bf16 %v61
  %v94 = vunpack.c.l.bf16 %v62
  %v95 = vunpack.c.l.bf16 %v63
  %v96 = vunpack.c.l.bf16 %v64
  %v97 = vsub.f32 %v65, %v81
  %v98 = vsub.f32 %v66, %v82
  %v99 = vsub.f32 %v67, %v83
  %v100 = vsub.f32 %v68, %v84
  %v101 = vsub.f32 %v69, %v85
  %v102 = vsub.f32 %v70, %v86
  %v103 = vsub.f32 %v71, %v87
  %v104 = vsub.f32 %v72, %v88
  %v105 = vsub.f32 %v73, %v89
  %v106 = vsub.f32 %v74, %v90
  %v107 = vsub.f32 %v75, %v91
  %v108 = vsub.f32 %v76, %v92
  %v109 = vsub.f32 %v77, %v93
  %v110 = vsub.f32 %v78, %v94
  %v111 = vsub.f32 %v79, %v95
  %v112 = vsub.f32 %v80, %v96
  %v113 = vmul.f32 %v97, %v97
  %v114 = vmul.f32 %v98, %v98
  %v115 = vmul.f32 %v99, %v99
  %v116 = vmul.f32 %v100, %v100
  %v117 = vmul.f32 %v101, %v101
  %v118 = vmul.f32 %v102, %v102
  %v119 = vmul.f32 %v103, %v103
  %v120 = vmul.f32 %v104, %v104
  %v121 = vmul.f32 %v105, %v105
  %v122 = vmul.f32 %v106, %v106
  %v123 = vmul.f32 %v107, %v107
  %v124 = vmul.f32 %v108, %v108
  %v125 = vmul.f32 %v109, %v109
  %v126 = vmul.f32 %v110, %v110
  %v127 = vmul.f32 %v111, %v111
  %v128 = vmul.f32 %v112, %v112
  %129 = vadd.xlane.f32.xlu0 %v113
  %v130 = vpop.xlane.xlu0 %129
  %131 = vadd.xlane.f32.xlu0 %v114
  %v132 = vpop.xlane.xlu0 %131
  %133 = vadd.xlane.f32.xlu0 %v115
  %v134 = vpop.xlane.xlu0 %133
  %135 = vadd.xlane.f32.xlu0 %v116
  %v136 = vpop.xlane.xlu0 %135
  %137 = vadd.xlane.f32.xlu0 %v117
  %v138 = vpop.xlane.xlu0 %137
  %139 = vadd.xlane.f32.xlu0 %v118
  %v140 = vpop.xlane.xlu0 %139
  %141 = vadd.xlane.f32.xlu0 %v119
  %v142 = vpop.xlane.xlu0 %141
  %143 = vadd.xlane.f32.xlu0 %v120
  %v144 = vpop.xlane.xlu0 %143
  %145 = vadd.xlane.f32.xlu0 %v121
  %v146 = vpop.xlane.xlu0 %145
  %147 = vadd.xlane.f32.xlu0 %v122
  %v148 = vpop.xlane.xlu0 %147
  %149 = vadd.xlane.f32.xlu0 %v123
  %v150 = vpop.xlane.xlu0 %149
  %151 = vadd.xlane.f32.xlu0 %v124
  %v152 = vpop.xlane.xlu0 %151
  %153 = vadd.xlane.f32.xlu0 %v125
  %v154 = vpop.xlane.xlu0 %153
  %155 = vadd.xlane.f32.xlu0 %v126
  %v156 = vpop.xlane.xlu0 %155
  %157 = vadd.xlane.f32.xlu0 %v127
  %v158 = vpop.xlane.xlu0 %157
  %159 = vadd.xlane.f32.xlu0 %v128
  %v160 = vpop.xlane.xlu0 %159
  %v161 = vrsqrt.pop %v130
  %v162 = vmul.f32 %v130, %v161
  %vm163 = vcmp.eq.f32.partialorder %v130, inf
  %v164 = vsel %vm163, %v130, %v162
  %vm165 = vcmp.eq.f32.partialorder %v130, 0.0
  %v166 = vand.u32 %v130, 2147483648
  %v167 = vsel %vm165, %v166, %v164
  %v168 = vrsqrt.pop %v132
  %v169 = vmul.f32 %v132, %v168
  %vm170 = vcmp.eq.f32.partialorder %v132, inf
  %v171 = vsel %vm170, %v132, %v169
  %vm172 = vcmp.eq.f32.partialorder %v132, 0.0
  %v173 = vand.u32 %v132, 2147483648
  %v174 = vsel %vm172, %v173, %v171
  %v175 = vrsqrt.pop %v134
  %v176 = vmul.f32 %v134, %v175
  %vm177 = vcmp.eq.f32.partialorder %v134, inf
  %v178 = vsel %vm177, %v134, %v176
  %vm179 = vcmp.eq.f32.partialorder %v134, 0.0
  %v180 = vand.u32 %v134, 2147483648
  %v181 = vsel %vm179, %v180, %v178
  %v182 = vrsqrt.pop %v136
  %v183 = vmul.f32 %v136, %v182
  %vm184 = vcmp.eq.f32.partialorder %v136, inf
  %v185 = vsel %vm184, %v136, %v183
  %vm186 = vcmp.eq.f32.partialorder %v136, 0.0
  %v187 = vand.u32 %v136, 2147483648
  %v188 = vsel %vm186, %v187, %v185
  %v189 = vrsqrt.pop %v138
  %v190 = vmul.f32 %v138, %v189
  %vm191 = vcmp.eq.f32.partialorder %v138, inf
  %v192 = vsel %vm191, %v138, %v190
  %vm193 = vcmp.eq.f32.partialorder %v138, 0.0
  %v194 = vand.u32 %v138, 2147483648
  %v195 = vsel %vm193, %v194, %v192
  %v196 = vrsqrt.pop %v140
  %v197 = vmul.f32 %v140, %v196
  %vm198 = vcmp.eq.f32.partialorder %v140, inf
  %v199 = vsel %vm198, %v140, %v197
  %vm200 = vcmp.eq.f32.partialorder %v140, 0.0
  %v201 = vand.u32 %v140, 2147483648
  %v202 = vsel %vm200, %v201, %v199
  %v203 = vrsqrt.pop %v142
  %v204 = vmul.f32 %v142, %v203
  %vm205 = vcmp.eq.f32.partialorder %v142, inf
  %v206 = vsel %vm205, %v142, %v204
  %vm207 = vcmp.eq.f32.partialorder %v142, 0.0
  %v208 = vand.u32 %v142, 2147483648
  %v209 = vsel %vm207, %v208, %v206
  %v210 = vrsqrt.pop %v144
  %v211 = vmul.f32 %v144, %v210
  %vm212 = vcmp.eq.f32.partialorder %v144, inf
  %v213 = vsel %vm212, %v144, %v211
  %vm214 = vcmp.eq.f32.partialorder %v144, 0.0
  %v215 = vand.u32 %v144, 2147483648
  %v216 = vsel %vm214, %v215, %v213
  %v217 = vrsqrt.pop %v146
  %v218 = vmul.f32 %v146, %v217
  %vm219 = vcmp.eq.f32.partialorder %v146, inf
  %v220 = vsel %vm219, %v146, %v218
  %vm221 = vcmp.eq.f32.partialorder %v146, 0.0
  %v222 = vand.u32 %v146, 2147483648
  %v223 = vsel %vm221, %v222, %v220
  %v224 = vrsqrt.pop %v148
  %v225 = vmul.f32 %v148, %v224
  %vm226 = vcmp.eq.f32.partialorder %v148, inf
  %v227 = vsel %vm226, %v148, %v225
  %vm228 = vcmp.eq.f32.partialorder %v148, 0.0
  %v229 = vand.u32 %v148, 2147483648
  %v230 = vsel %vm228, %v229, %v227
  %v231 = vrsqrt.pop %v150
  %v232 = vmul.f32 %v150, %v231
  %vm233 = vcmp.eq.f32.partialorder %v150, inf
  %v234 = vsel %vm233, %v150, %v232
  %vm235 = vcmp.eq.f32.partialorder %v150, 0.0
  %v236 = vand.u32 %v150, 2147483648
  %v237 = vsel %vm235, %v236, %v234
  %v238 = vrsqrt.pop %v152
  %v239 = vmul.f32 %v152, %v238
  %vm240 = vcmp.eq.f32.partialorder %v152, inf
  %v241 = vsel %vm240, %v152, %v239
  %vm242 = vcmp.eq.f32.partialorder %v152, 0.0
  %v243 = vand.u32 %v152, 2147483648
  %v244 = vsel %vm242, %v243, %v241
  %v245 = vrsqrt.pop %v154
  %v246 = vmul.f32 %v154, %v245
  %vm247 = vcmp.eq.f32.partialorder %v154, inf
  %v248 = vsel %vm247, %v154, %v246
  %vm249 = vcmp.eq.f32.partialorder %v154, 0.0
  %v250 = vand.u32 %v154, 2147483648
  %v251 = vsel %vm249, %v250, %v248
  %v252 = vrsqrt.pop %v156
  %v253 = vmul.f32 %v156, %v252
  %vm254 = vcmp.eq.f32.partialorder %v156, inf
  %v255 = vsel %vm254, %v156, %v253
  %vm256 = vcmp.eq.f32.partialorder %v156, 0.0
  %v257 = vand.u32 %v156, 2147483648
  %v258 = vsel %vm256, %v257, %v255
  %v259 = vrsqrt.pop %v158
  %v260 = vmul.f32 %v158, %v259
  %vm261 = vcmp.eq.f32.partialorder %v158, inf
  %v262 = vsel %vm261, %v158, %v260
  %vm263 = vcmp.eq.f32.partialorder %v158, 0.0
  %v264 = vand.u32 %v158, 2147483648
  %v265 = vsel %vm263, %v264, %v262
  %v266 = vrsqrt.pop %v160
  %v267 = vmul.f32 %v160, %v266
  %vm268 = vcmp.eq.f32.partialorder %v160, inf
  %v269 = vsel %vm268, %v160, %v267
  %vm270 = vcmp.eq.f32.partialorder %v160, 0.0
  %v271 = vand.u32 %v160, 2147483648
  %v272 = vsel %vm270, %v271, %v269
  %v273 = vmul.f32 %v65, %v81
  %v274 = vmul.f32 %v66, %v82
  %v275 = vmul.f32 %v67, %v83
  %v276 = vmul.f32 %v68, %v84
  %v277 = vmul.f32 %v69, %v85
  %v278 = vmul.f32 %v70, %v86
  %v279 = vmul.f32 %v71, %v87
  %v280 = vmul.f32 %v72, %v88
  %v281 = vmul.f32 %v73, %v89
  %v282 = vmul.f32 %v74, %v90
  %v283 = vmul.f32 %v75, %v91
  %v284 = vmul.f32 %v76, %v92
  %v285 = vmul.f32 %v77, %v93
  %v286 = vmul.f32 %v78, %v94
  %v287 = vmul.f32 %v79, %v95
  %v288 = vmul.f32 %v80, %v96
  %289 = vadd.xlane.f32.xlu0 %v273
  %v290 = vpop.xlane.xlu0 %289
  %291 = vadd.xlane.f32.xlu0 %v274
  %v292 = vpop.xlane.xlu0 %291
  %293 = vadd.xlane.f32.xlu0 %v275
  %v294 = vpop.xlane.xlu0 %293
  %295 = vadd.xlane.f32.xlu0 %v276
  %v296 = vpop.xlane.xlu0 %295
  %297 = vadd.xlane.f32.xlu0 %v277
  %v298 = vpop.xlane.xlu0 %297
  %299 = vadd.xlane.f32.xlu0 %v278
  %v300 = vpop.xlane.xlu0 %299
  %301 = vadd.xlane.f32.xlu0 %v279
  %v302 = vpop.xlane.xlu0 %301
  %303 = vadd.xlane.f32.xlu0 %v280
  %v304 = vpop.xlane.xlu0 %303
  %305 = vadd.xlane.f32.xlu0 %v281
  %v306 = vpop.xlane.xlu0 %305
  %307 = vadd.xlane.f32.xlu0 %v282
  %v308 = vpop.xlane.xlu0 %307
  %309 = vadd.xlane.f32.xlu0 %v283
  %v310 = vpop.xlane.xlu0 %309
  %311 = vadd.xlane.f32.xlu0 %v284
  %v312 = vpop.xlane.xlu0 %311
  %313 = vadd.xlane.f32.xlu0 %v285
  %v314 = vpop.xlane.xlu0 %313
  %315 = vadd.xlane.f32.xlu0 %v286
  %v316 = vpop.xlane.xlu0 %315
  %317 = vadd.xlane.f32.xlu0 %v287
  %v318 = vpop.xlane.xlu0 %317
  %319 = vadd.xlane.f32.xlu0 %v288
  %v320 = vpop.xlane.xlu0 %319
  %v321 = vmul.f32 %v167, 2.0
  %v322 = vmul.f32 %v174, 2.0
  %v323 = vmul.f32 %v181, 2.0
  %v324 = vmul.f32 %v188, 2.0
  %v325 = vmul.f32 %v195, 2.0
  %v326 = vmul.f32 %v202, 2.0
  %v327 = vmul.f32 %v209, 2.0
  %v328 = vmul.f32 %v216, 2.0
  %v329 = vmul.f32 %v223, 2.0
  %v330 = vmul.f32 %v230, 2.0
  %v331 = vmul.f32 %v237, 2.0
  %v332 = vmul.f32 %v244, 2.0
  %v333 = vmul.f32 %v251, 2.0
  %v334 = vmul.f32 %v258, 2.0
  %v335 = vmul.f32 %v265, 2.0
  %v336 = vmul.f32 %v272, 2.0
  %v337 = vmul.f32 %v167, %v167
  %v338 = vmul.f32 %v174, %v174
  %v339 = vmul.f32 %v181, %v181
  %v340 = vmul.f32 %v188, %v188
  %v341 = vmul.f32 %v195, %v195
  %v342 = vmul.f32 %v202, %v202
  %v343 = vmul.f32 %v209, %v209
  %v344 = vmul.f32 %v216, %v216
  %v345 = vmul.f32 %v223, %v223
  %v346 = vmul.f32 %v230, %v230
  %v347 = vmul.f32 %v237, %v237
  %v348 = vmul.f32 %v244, %v244
  %v349 = vmul.f32 %v251, %v251
  %v350 = vmul.f32 %v258, %v258
  %v351 = vmul.f32 %v265, %v265
  %v352 = vmul.f32 %v272, %v272
  %v353 = vmul.f32 %v337, %v167
  %v354 = vmul.f32 %v338, %v174
  %v355 = vmul.f32 %v339, %v181
  %v356 = vmul.f32 %v340, %v188
  %v357 = vmul.f32 %v341, %v195
  %v358 = vmul.f32 %v342, %v202
  %v359 = vmul.f32 %v343, %v209
  %v360 = vmul.f32 %v344, %v216
  %v361 = vmul.f32 %v345, %v223
  %v362 = vmul.f32 %v346, %v230
  %v363 = vmul.f32 %v347, %v237
  %v364 = vmul.f32 %v348, %v244
  %v365 = vmul.f32 %v349, %v251
  %v366 = vmul.f32 %v350, %v258
  %v367 = vmul.f32 %v351, %v265
  %v368 = vmul.f32 %v352, %v272
  %v369 = vmul.f32 %v353, 0.33333334
  %v370 = vmul.f32 %v354, 0.33333334
  %v371 = vmul.f32 %v355, 0.33333334
  %v372 = vmul.f32 %v356, 0.33333334
  %v373 = vmul.f32 %v357, 0.33333334
  %v374 = vmul.f32 %v358, 0.33333334
  %v375 = vmul.f32 %v359, 0.33333334
  %v376 = vmul.f32 %v360, 0.33333334
  %v377 = vmul.f32 %v361, 0.33333334
  %v378 = vmul.f32 %v362, 0.33333334
  %v379 = vmul.f32 %v363, 0.33333334
  %v380 = vmul.f32 %v364, 0.33333334
  %v381 = vmul.f32 %v365, 0.33333334
  %v382 = vmul.f32 %v366, 0.33333334
  %v383 = vmul.f32 %v367, 0.33333334
  %v384 = vmul.f32 %v368, 0.33333334
  %v385 = vmul.f32 %v290, %v167
  %v386 = vmul.f32 %v292, %v174
  %v387 = vmul.f32 %v294, %v181
  %v388 = vmul.f32 %v296, %v188
  %v389 = vmul.f32 %v298, %v195
  %v390 = vmul.f32 %v300, %v202
  %v391 = vmul.f32 %v302, %v209
  %v392 = vmul.f32 %v304, %v216
  %v393 = vmul.f32 %v306, %v223
  %v394 = vmul.f32 %v308, %v230
  %v395 = vmul.f32 %v310, %v237
  %v396 = vmul.f32 %v312, %v244
  %v397 = vmul.f32 %v314, %v251
  %v398 = vmul.f32 %v316, %v258
  %v399 = vmul.f32 %v318, %v265
  %v400 = vmul.f32 %v320, %v272
  %v401 = vmul.f32 %v385, %v167
  %v402 = vmul.f32 %v386, %v174
  %v403 = vmul.f32 %v387, %v181
  %v404 = vmul.f32 %v388, %v188
  %v405 = vmul.f32 %v389, %v195
  %v406 = vmul.f32 %v390, %v202
  %v407 = vmul.f32 %v391, %v209
  %v408 = vmul.f32 %v392, %v216
  %v409 = vmul.f32 %v393, %v223
  %v410 = vmul.f32 %v394, %v230
  %v411 = vmul.f32 %v395, %v237
  %v412 = vmul.f32 %v396, %v244
  %v413 = vmul.f32 %v397, %v251
  %v414 = vmul.f32 %v398, %v258
  %v415 = vmul.f32 %v399, %v265
  %v416 = vmul.f32 %v400, %v272
  %v417 = vadd.f32 %v369, %v401
  %v418 = vadd.f32 %v370, %v402
  %v419 = vadd.f32 %v371, %v403
  %v420 = vadd.f32 %v372, %v404
  %v421 = vadd.f32 %v373, %v405
  %v422 = vadd.f32 %v374, %v406
  %v423 = vadd.f32 %v375, %v407
  %v424 = vadd.f32 %v376, %v408
  %v425 = vadd.f32 %v377, %v409
  %v426 = vadd.f32 %v378, %v410
  %v427 = vadd.f32 %v379, %v411
  %v428 = vadd.f32 %v380, %v412
  %v429 = vadd.f32 %v381, %v413
  %v430 = vadd.f32 %v382, %v414
  %v431 = vadd.f32 %v383, %v415
  %v432 = vadd.f32 %v384, %v416
  %v433 = vmul.f32 %v417, -1.0
  %v434 = vmul.f32 %v418, -1.0
  %v435 = vmul.f32 %v419, -1.0
  %v436 = vmul.f32 %v420, -1.0
  %v437 = vmul.f32 %v421, -1.0
  %v438 = vmul.f32 %v422, -1.0
  %v439 = vmul.f32 %v423, -1.0
  %v440 = vmul.f32 %v424, -1.0
  %v441 = vmul.f32 %v425, -1.0
  %v442 = vmul.f32 %v426, -1.0
  %v443 = vmul.f32 %v427, -1.0
  %v444 = vmul.f32 %v428, -1.0
  %v445 = vmul.f32 %v429, -1.0
  %v446 = vmul.f32 %v430, -1.0
  %v447 = vmul.f32 %v431, -1.0
  %v448 = vmul.f32 %v432, -1.0
  %v449 = vsub.f32 %v321, %v433
  %v450 = vsub.f32 %v322, %v434
  %v451 = vsub.f32 %v323, %v435
  %v452 = vsub.f32 %v324, %v436
  %v453 = vsub.f32 %v325, %v437
  %v454 = vsub.f32 %v326, %v438
  %v455 = vsub.f32 %v327, %v439
  %v456 = vsub.f32 %v328, %v440
  %v457 = vsub.f32 %v329, %v441
  %v458 = vsub.f32 %v330, %v442
  %v459 = vsub.f32 %v331, %v443
  %v460 = vsub.f32 %v332, %v444
  %v461 = vsub.f32 %v333, %v445
  %v462 = vsub.f32 %v334, %v446
  %v463 = vsub.f32 %v335, %v447
  %v464 = vsub.f32 %v336, %v448
  %v465 = vmul.f32 %v449, 1.442695
  %v466 = vpow.pop %v465
  %v467 = vmul.f32 %v450, 1.442695
  %v468 = vpow.pop %v467
  %v469 = vmul.f32 %v451, 1.442695
  %v470 = vpow.pop %v469
  %v471 = vmul.f32 %v452, 1.442695
  %v472 = vpow.pop %v471
  %v473 = vmul.f32 %v453, 1.442695
  %v474 = vpow.pop %v473
  %v475 = vmul.f32 %v454, 1.442695
  %v476 = vpow.pop %v475
  %v477 = vmul.f32 %v455, 1.442695
  %v478 = vpow.pop %v477
  %v479 = vmul.f32 %v456, 1.442695
  %v480 = vpow.pop %v479
  %v481 = vmul.f32 %v457, 1.442695
  %v482 = vpow.pop %v481
  %v483 = vmul.f32 %v458, 1.442695
  %v484 = vpow.pop %v483
  %v485 = vmul.f32 %v459, 1.442695
  %v486 = vpow.pop %v485
  %v487 = vmul.f32 %v460, 1.442695
  %v488 = vpow.pop %v487
  %v489 = vmul.f32 %v461, 1.442695
  %v490 = vpow.pop %v489
  %v491 = vmul.f32 %v462, 1.442695
  %v492 = vpow.pop %v491
  %v493 = vmul.f32 %v463, 1.442695
  %v494 = vpow.pop %v493
  %v495 = vmul.f32 %v464, 1.442695
  %v496 = vpow.pop %v495
  %v497 = vadd.f32 %v466, 1.0
  %v498 = vadd.f32 %v468, 1.0
  %v499 = vadd.f32 %v470, 1.0
  %v500 = vadd.f32 %v472, 1.0
  %v501 = vadd.f32 %v474, 1.0
  %v502 = vadd.f32 %v476, 1.0
  %v503 = vadd.f32 %v478, 1.0
  %v504 = vadd.f32 %v480, 1.0
  %v505 = vadd.f32 %v482, 1.0
  %v506 = vadd.f32 %v484, 1.0
  %v507 = vadd.f32 %v486, 1.0
  %v508 = vadd.f32 %v488, 1.0
  %v509 = vadd.f32 %v490, 1.0
  %v510 = vadd.f32 %v492, 1.0
  %v511 = vadd.f32 %v494, 1.0
  %v512 = vadd.f32 %v496, 1.0
  %v513 = vrcp.pop %v497
  %v514 = vmul.f32 1.0, %v513
  %v515 = vrcp.pop %v498
  %v516 = vmul.f32 1.0, %v515
  %v517 = vrcp.pop %v499
  %v518 = vmul.f32 1.0, %v517
  %v519 = vrcp.pop %v500
  %v520 = vmul.f32 1.0, %v519
  %v521 = vrcp.pop %v501
  %v522 = vmul.f32 1.0, %v521
  %v523 = vrcp.pop %v502
  %v524 = vmul.f32 1.0, %v523
  %v525 = vrcp.pop %v503
  %v526 = vmul.f32 1.0, %v525
  %v527 = vrcp.pop %v504
  %v528 = vmul.f32 1.0, %v527
  %v529 = vrcp.pop %v505
  %v530 = vmul.f32 1.0, %v529
  %v531 = vrcp.pop %v506
  %v532 = vmul.f32 1.0, %v531
  %v533 = vrcp.pop %v507
  %v534 = vmul.f32 1.0, %v533
  %v535 = vrcp.pop %v508
  %v536 = vmul.f32 1.0, %v535
  %v537 = vrcp.pop %v509
  %v538 = vmul.f32 1.0, %v537
  %v539 = vrcp.pop %v510
  %v540 = vmul.f32 1.0, %v539
  %v541 = vrcp.pop %v511
  %v542 = vmul.f32 1.0, %v541
  %v543 = vrcp.pop %v512
  %v544 = vmul.f32 1.0, %v543
  %v545 = vadd.f32 %v514, 1.0
  %v546 = vadd.f32 %v516, 1.0
  %v547 = vadd.f32 %v518, 1.0
  %v548 = vadd.f32 %v520, 1.0
  %v549 = vadd.f32 %v522, 1.0
  %v550 = vadd.f32 %v524, 1.0
  %v551 = vadd.f32 %v526, 1.0
  %v552 = vadd.f32 %v528, 1.0
  %v553 = vadd.f32 %v530, 1.0
  %v554 = vadd.f32 %v532, 1.0
  %v555 = vadd.f32 %v534, 1.0
  %v556 = vadd.f32 %v536, 1.0
  %v557 = vadd.f32 %v538, 1.0
  %v558 = vadd.f32 %v540, 1.0
  %v559 = vadd.f32 %v542, 1.0
  %v560 = vadd.f32 %v544, 1.0
  %v561 = vmul.f32 %v545, %v65
  %v562 = vmul.f32 %v546, %v66
  %v563 = vmul.f32 %v547, %v67
  %v564 = vmul.f32 %v548, %v68
  %v565 = vmul.f32 %v549, %v69
  %v566 = vmul.f32 %v550, %v70
  %v567 = vmul.f32 %v551, %v71
  %v568 = vmul.f32 %v552, %v72
  %v569 = vmul.f32 %v553, %v73
  %v570 = vmul.f32 %v554, %v74
  %v571 = vmul.f32 %v555, %v75
  %v572 = vmul.f32 %v556, %v76
  %v573 = vmul.f32 %v557, %v77
  %v574 = vmul.f32 %v558, %v78
  %v575 = vmul.f32 %v559, %v79
  %v576 = vmul.f32 %v560, %v80
  %v577 = vpack.c.bf16 %v562, %v561
  %v578 = vpack.c.bf16 %v564, %v563
  %v579 = vpack.c.bf16 %v566, %v565
  %v580 = vpack.c.bf16 %v568, %v567
  %v581 = vpack.c.bf16 %v570, %v569
  %v582 = vpack.c.bf16 %v572, %v571
  %v583 = vpack.c.bf16 %v574, %v573
  %v584 = vpack.c.bf16 %v576, %v575
  %v585 = vld [vmem:[%s2] sm:$0xf]
  %v586 = vld [vmem:[%s2 + $0x4] sm:$0xf]
  %v587 = vld [vmem:[%s2 + $0x8] sm:$0xf]
  %v588 = vld [vmem:[%s2 + $0xc] sm:$0xf]
  %v589 = vld [vmem:[%s2 + $0x10] sm:$0xf]
  %v590 = vld [vmem:[%s2 + $0x14] sm:$0xf]
  %v591 = vld [vmem:[%s2 + $0x18] sm:$0xf]
  %v592 = vld [vmem:[%s2 + $0x1c] sm:$0xf]
  %v593 = vld [vmem:[%s2 + $0x20] sm:$0xf]
  %v594 = vld [vmem:[%s2 + $0x24] sm:$0xf]
  %v595 = vld [vmem:[%s2 + $0x28] sm:$0xf]
  %v596 = vld [vmem:[%s2 + $0x2c] sm:$0xf]
  %v597 = vld [vmem:[%s2 + $0x30] sm:$0xf]
  %v598 = vld [vmem:[%s2 + $0x34] sm:$0xf]
  %v599 = vld [vmem:[%s2 + $0x38] sm:$0xf]
  %v600 = vld [vmem:[%s2 + $0x3c] sm:$0xf]
  %v601 = vld [vmem:[%s3] sm:$0xf]
  %v602 = vld [vmem:[%s3 + $0x4] sm:$0xf]
  %v603 = vld [vmem:[%s3 + $0x8] sm:$0xf]
  %v604 = vld [vmem:[%s3 + $0xc] sm:$0xf]
  %v605 = vld [vmem:[%s3 + $0x10] sm:$0xf]
  %v606 = vld [vmem:[%s3 + $0x14] sm:$0xf]
  %v607 = vld [vmem:[%s3 + $0x18] sm:$0xf]
  %v608 = vld [vmem:[%s3 + $0x1c] sm:$0xf]
  %v609 = vld [vmem:[%s3 + $0x20] sm:$0xf]
  %v610 = vld [vmem:[%s3 + $0x24] sm:$0xf]
  %v611 = vld [vmem:[%s3 + $0x28] sm:$0xf]
  %v612 = vld [vmem:[%s3 + $0x2c] sm:$0xf]
  %v613 = vld [vmem:[%s3 + $0x30] sm:$0xf]
  %v614 = vld [vmem:[%s3 + $0x34] sm:$0xf]
  %v615 = vld [vmem:[%s3 + $0x38] sm:$0xf]
  %v616 = vld [vmem:[%s3 + $0x3c] sm:$0xf]
  %v633 = vunpack.c.l.b16 %v49
  %v634 = vunpack.c.l.b16 %v50
  %v635 = vunpack.c.l.b16 %v51
  %v636 = vunpack.c.l.b16 %v52
  %v637 = vunpack.c.l.b16 %v53
  %v638 = vunpack.c.l.b16 %v54
  %v639 = vunpack.c.l.b16 %v55
  %v640 = vunpack.c.l.b16 %v56
  %v641 = vunpack.c.l.b16 %v57
  %v642 = vunpack.c.l.b16 %v58
  %v643 = vunpack.c.l.b16 %v59
  %v644 = vunpack.c.l.b16 %v60
  %v645 = vunpack.c.l.b16 %v61
  %v646 = vunpack.c.l.b16 %v62
  %v647 = vunpack.c.l.b16 %v63
  %v648 = vunpack.c.l.b16 %v64
  %v649 = vpack.c.b16 %v634, %v633
  %v650 = vpack.c.b16 %v636, %v635
  %v651 = vpack.c.b16 %v638, %v637
  %v652 = vpack.c.b16 %v640, %v639
  %v653 = vpack.c.b16 %v642, %v641
  %v654 = vpack.c.b16 %v644, %v643
  %v655 = vpack.c.b16 %v646, %v645
  %v656 = vpack.c.b16 %v648, %v647
  %v681 = vunpack.c.l.b16 %v601
  %v682 = vunpack.c.l.b16 %v602
  %v683 = vunpack.c.l.b16 %v603
  %v684 = vunpack.c.l.b16 %v604
  %v685 = vunpack.c.l.b16 %v605
  %v686 = vunpack.c.l.b16 %v606
  %v687 = vunpack.c.l.b16 %v607
  %v688 = vunpack.c.l.b16 %v608
  %v689 = vunpack.c.l.b16 %v609
  %v690 = vunpack.c.l.b16 %v610
  %v691 = vunpack.c.l.b16 %v611
  %v692 = vunpack.c.l.b16 %v612
  %v693 = vunpack.c.l.b16 %v613
  %v694 = vunpack.c.l.b16 %v614
  %v695 = vunpack.c.l.b16 %v615
  %v696 = vunpack.c.l.b16 %v616
  %v697 = vpack.c.b16 %v682, %v681
  %v698 = vpack.c.b16 %v684, %v683
  %v699 = vpack.c.b16 %v686, %v685
  %v700 = vpack.c.b16 %v688, %v687
  %v701 = vpack.c.b16 %v690, %v689
  %v702 = vpack.c.b16 %v692, %v691
  %v703 = vpack.c.b16 %v694, %v693
  %v704 = vpack.c.b16 %v696, %v695
  %713 = vmatprep.subr.bf16.mxu0 0
  %714 = vmatpush1.bf16.msra.mxu0 %v704
  %715 = vmatprep.subr.bf16.mxu0 0
  %716 = vmatpush1.bf16.msra.mxu0 %v703
  %717 = vmatprep.subr.bf16.mxu0 0
  %718 = vmatpush1.bf16.msra.mxu0 %v702
  %719 = vmatprep.subr.bf16.mxu0 0
  %720 = vmatpush1.bf16.msra.mxu0 %v701
  %721 = vmatprep.subr.bf16.mxu0 0
  %722 = vmatpush1.bf16.msra.mxu0 %v700
  %723 = vmatprep.subr.bf16.mxu0 0
  %724 = vmatpush1.bf16.msra.mxu0 %v699
  %725 = vmatprep.subr.bf16.mxu0 0
  %726 = vmatpush1.bf16.msra.mxu0 %v698
  %727 = vmatprep.subr.bf16.mxu0 0
  %728 = vmatpush1.bf16.msra.mxu0 %v697
  %729 = vmatprep.subr.bf16.mxu0 0
  %730 = vmatpush2.bf16.msra.mxu0 0
  %731 = vmatprep.subr.bf16.mxu0 0
  %732 = vmatpush2.bf16.msra.mxu0 0
  %733 = vmatprep.subr.bf16.mxu0 0
  %734 = vmatpush2.bf16.msra.mxu0 0
  %735 = vmatprep.subr.bf16.mxu0 0
  %736 = vmatpush2.bf16.msra.mxu0 0
  %737 = vmatprep.subr.bf16.mxu0 0
  %738 = vmatpush2.bf16.msra.mxu0 0
  %739 = vmatprep.subr.bf16.mxu0 0
  %740 = vmatpush2.bf16.msra.mxu0 0
  %741 = vmatprep.subr.bf16.mxu0 0
  %742 = vmatpush2.bf16.msra.mxu0 0
  %743 = vmatprep.subr.bf16.mxu0 0
  %744 = vmatpush2.bf16.msra.mxu0 0
  %745 = vmatprep.mubr.bf16.mxu0 0
  %746 = vmatmul.mubr.bf16.gmra.mxu0 %v649
  %v747 = vpop.f32.mrf.mxu0
  %v748 = vadd.f32 0.0, %v747
  %v749 = vpop.f32.mrf.mxu0
  %v750 = vpop.f32.mrf.mxu0
  %v751 = vadd.f32 0.0, %v750
  %v752 = vpop.f32.mrf.mxu0
  %753 = vmatprep.mubr.bf16.mxu0 0
  %754 = vmatmul.mubr.bf16.gmra.mxu0 %v650
  %v755 = vpop.f32.mrf.mxu0
  %v756 = vadd.f32 0.0, %v755
  %v757 = vpop.f32.mrf.mxu0
  %v758 = vpop.f32.mrf.mxu0
  %v759 = vadd.f32 0.0, %v758
  %v760 = vpop.f32.mrf.mxu0
  %761 = vmatprep.mubr.bf16.mxu0 0
  %762 = vmatmul.mubr.bf16.gmra.mxu0 %v651
  %v763 = vpop.f32.mrf.mxu0
  %v764 = vadd.f32 0.0, %v763
  %v765 = vpop.f32.mrf.mxu0
  %v766 = vpop.f32.mrf.mxu0
  %v767 = vadd.f32 0.0, %v766
  %v768 = vpop.f32.mrf.mxu0
  %769 = vmatprep.mubr.bf16.mxu0 0
  %770 = vmatmul.mubr.bf16.gmra.mxu0 %v652
  %v771 = vpop.f32.mrf.mxu0
  %v772 = vadd.f32 0.0, %v771
  %v773 = vpop.f32.mrf.mxu0
  %v774 = vpop.f32.mrf.mxu0
  %v775 = vadd.f32 0.0, %v774
  %v776 = vpop.f32.mrf.mxu0
  %777 = vmatprep.mubr.bf16.mxu0 0
  %778 = vmatmul.mubr.bf16.gmra.mxu0 %v653
  %v779 = vpop.f32.mrf.mxu0
  %v780 = vadd.f32 0.0, %v779
  %v781 = vpop.f32.mrf.mxu0
  %v782 = vpop.f32.mrf.mxu0
  %v783 = vadd.f32 0.0, %v782
  %v784 = vpop.f32.mrf.mxu0
  %785 = vmatprep.mubr.bf16.mxu0 0
  %786 = vmatmul.mubr.bf16.gmra.mxu0 %v654
  %v787 = vpop.f32.mrf.mxu0
  %v788 = vadd.f32 0.0, %v787
  %v789 = vpop.f32.mrf.mxu0
  %v790 = vpop.f32.mrf.mxu0
  %v791 = vadd.f32 0.0, %v790
  %v792 = vpop.f32.mrf.mxu0
  %793 = vmatprep.mubr.bf16.mxu0 0
  %794 = vmatmul.mubr.bf16.gmra.mxu0 %v655
  %v795 = vpop.f32.mrf.mxu0
  %v796 = vadd.f32 0.0, %v795
  %v797 = vpop.f32.mrf.mxu0
  %v798 = vpop.f32.mrf.mxu0
  %v799 = vadd.f32 0.0, %v798
  %v800 = vpop.f32.mrf.mxu0
  %801 = vmatprep.mubr.bf16.mxu0 0
  %802 = vmatmul.mubr.bf16.gmra.mxu0 %v656
  %v803 = vpop.f32.mrf.mxu0
  %v804 = vadd.f32 0.0, %v803
  %v805 = vpop.f32.mrf.mxu0
  %v806 = vpop.f32.mrf.mxu0
  %v807 = vadd.f32 0.0, %v806
  %v808 = vpop.f32.mrf.mxu0
  %809 = vdwg.mxu0
  %v826 = vunpack.c.l.b16 %v585
  %v827 = vunpack.c.l.b16 %v586
  %v828 = vunpack.c.l.b16 %v587
  %v829 = vunpack.c.l.b16 %v588
  %v830 = vunpack.c.l.b16 %v589
  %v831 = vunpack.c.l.b16 %v590
  %v832 = vunpack.c.l.b16 %v591
  %v833 = vunpack.c.l.b16 %v592
  %v834 = vunpack.c.l.b16 %v593
  %v835 = vunpack.c.l.b16 %v594
  %v836 = vunpack.c.l.b16 %v595
  %v837 = vunpack.c.l.b16 %v596
  %v838 = vunpack.c.l.b16 %v597
  %v839 = vunpack.c.l.b16 %v598
  %v840 = vunpack.c.l.b16 %v599
  %v841 = vunpack.c.l.b16 %v600
  %v842 = vpack.c.b16 %v827, %v826
  %v843 = vpack.c.b16 %v829, %v828
  %v844 = vpack.c.b16 %v831, %v830
  %v845 = vpack.c.b16 %v833, %v832
  %v846 = vpack.c.b16 %v835, %v834
  %v847 = vpack.c.b16 %v837, %v836
  %v848 = vpack.c.b16 %v839, %v838
  %v849 = vpack.c.b16 %v841, %v840
  %858 = vmatprep.subr.bf16.mxu0 0
  %859 = vmatpush1.bf16.msra.mxu0 %v849
  %860 = vmatprep.subr.bf16.mxu0 0
  %861 = vmatpush1.bf16.msra.mxu0 %v848
  %862 = vmatprep.subr.bf16.mxu0 0
  %863 = vmatpush1.bf16.msra.mxu0 %v847
  %864 = vmatprep.subr.bf16.mxu0 0
  %865 = vmatpush1.bf16.msra.mxu0 %v846
  %866 = vmatprep.subr.bf16.mxu0 0
  %867 = vmatpush1.bf16.msra.mxu0 %v845
  %868 = vmatprep.subr.bf16.mxu0 0
  %869 = vmatpush1.bf16.msra.mxu0 %v844
  %870 = vmatprep.subr.bf16.mxu0 0
  %871 = vmatpush1.bf16.msra.mxu0 %v843
  %872 = vmatprep.subr.bf16.mxu0 0
  %873 = vmatpush1.bf16.msra.mxu0 %v842
  %874 = vmatprep.subr.bf16.mxu0 0
  %875 = vmatpush2.bf16.msra.mxu0 0
  %876 = vmatprep.subr.bf16.mxu0 0
  %877 = vmatpush2.bf16.msra.mxu0 0
  %878 = vmatprep.subr.bf16.mxu0 0
  %879 = vmatpush2.bf16.msra.mxu0 0
  %880 = vmatprep.subr.bf16.mxu0 0
  %881 = vmatpush2.bf16.msra.mxu0 0
  %882 = vmatprep.subr.bf16.mxu0 0
  %883 = vmatpush2.bf16.msra.mxu0 0
  %884 = vmatprep.subr.bf16.mxu0 0
  %885 = vmatpush2.bf16.msra.mxu0 0
  %886 = vmatprep.subr.bf16.mxu0 0
  %887 = vmatpush2.bf16.msra.mxu0 0
  %888 = vmatprep.subr.bf16.mxu0 0
  %889 = vmatpush2.bf16.msra.mxu0 0
  %890 = vmatprep.mubr.bf16.mxu0 0
  %891 = vmatmul.mubr.bf16.gmra.mxu0 %v577
  %v892 = vpop.f32.mrf.mxu0
  %v893 = vadd.f32 %v748, %v892
  %v894 = vpop.f32.mrf.mxu0
  %v895 = vpop.f32.mrf.mxu0
  %v896 = vadd.f32 %v751, %v895
  %v897 = vpop.f32.mrf.mxu0
  %898 = vmatprep.mubr.bf16.mxu0 0
  %899 = vmatmul.mubr.bf16.gmra.mxu0 %v578
  %v900 = vpop.f32.mrf.mxu0
  %v901 = vadd.f32 %v756, %v900
  %v902 = vpop.f32.mrf.mxu0
  %v903 = vpop.f32.mrf.mxu0
  %v904 = vadd.f32 %v759, %v903
  %v905 = vpop.f32.mrf.mxu0
  %906 = vmatprep.mubr.bf16.mxu0 0
  %907 = vmatmul.mubr.bf16.gmra.mxu0 %v579
  %v908 = vpop.f32.mrf.mxu0
  %v909 = vadd.f32 %v764, %v908
  %v910 = vpop.f32.mrf.mxu0
  %v911 = vpop.f32.mrf.mxu0
  %v912 = vadd.f32 %v767, %v911
  %v913 = vpop.f32.mrf.mxu0
  %914 = vmatprep.mubr.bf16.mxu0 0
  %915 = vmatmul.mubr.bf16.gmra.mxu0 %v580
  %v916 = vpop.f32.mrf.mxu0
  %v917 = vadd.f32 %v772, %v916
  %v918 = vpop.f32.mrf.mxu0
  %v919 = vpop.f32.mrf.mxu0
  %v920 = vadd.f32 %v775, %v919
  %v921 = vpop.f32.mrf.mxu0
  %922 = vmatprep.mubr.bf16.mxu0 0
  %923 = vmatmul.mubr.bf16.gmra.mxu0 %v581
  %v924 = vpop.f32.mrf.mxu0
  %v925 = vadd.f32 %v780, %v924
  %v926 = vpop.f32.mrf.mxu0
  %v927 = vpop.f32.mrf.mxu0
  %v928 = vadd.f32 %v783, %v927
  %v929 = vpop.f32.mrf.mxu0
  %930 = vmatprep.mubr.bf16.mxu0 0
  %931 = vmatmul.mubr.bf16.gmra.mxu0 %v582
  %v932 = vpop.f32.mrf.mxu0
  %v933 = vadd.f32 %v788, %v932
  %v934 = vpop.f32.mrf.mxu0
  %v935 = vpop.f32.mrf.mxu0
  %v936 = vadd.f32 %v791, %v935
  %v937 = vpop.f32.mrf.mxu0
  %938 = vmatprep.mubr.bf16.mxu0 0
  %939 = vmatmul.mubr.bf16.gmra.mxu0 %v583
  %v940 = vpop.f32.mrf.mxu0
  %v941 = vadd.f32 %v796, %v940
  %v942 = vpop.f32.mrf.mxu0
  %v943 = vpop.f32.mrf.mxu0
  %v944 = vadd.f32 %v799, %v943
  %v945 = vpop.f32.mrf.mxu0
  %946 = vmatprep.mubr.bf16.mxu0 0
  %947 = vmatmul.mubr.bf16.gmra.mxu0 %v584
  %v948 = vpop.f32.mrf.mxu0
  %v949 = vadd.f32 %v804, %v948
  %v950 = vpop.f32.mrf.mxu0
  %v951 = vpop.f32.mrf.mxu0
  %v952 = vadd.f32 %v807, %v951
  %v953 = vpop.f32.mrf.mxu0
  %954 = vdwg.mxu0
  %v955 = vld [vmem:[%s4] sm:$0x1]
  %v957 = vlaneseq
  %v958 = vshrl.u32 %v957, 7
  %v959 = vsub.s32 0, %v958
  %v960 = vrot.slane %v955, %v959
  %v962 = vadd.f32 %v893, %v960
  %v963 = vadd.f32 %v896, %v960
  %v964 = vadd.f32 %v901, %v960
  %v965 = vadd.f32 %v904, %v960
  %v966 = vadd.f32 %v909, %v960
  %v967 = vadd.f32 %v912, %v960
  %v968 = vadd.f32 %v917, %v960
  %v969 = vadd.f32 %v920, %v960
  %v970 = vadd.f32 %v925, %v960
  %v971 = vadd.f32 %v928, %v960
  %v972 = vadd.f32 %v933, %v960
  %v973 = vadd.f32 %v936, %v960
  %v974 = vadd.f32 %v941, %v960
  %v975 = vadd.f32 %v944, %v960
  %v976 = vadd.f32 %v949, %v960
  %v977 = vadd.f32 %v952, %v960
  %vm978 = vcmp.gt.f32.partialorder %v962, 0.0
  %vm979 = vcmp.gt.f32.partialorder %v963, 0.0
  %vm980 = vcmp.gt.f32.partialorder %v964, 0.0
  %vm981 = vcmp.gt.f32.partialorder %v965, 0.0
  %vm982 = vcmp.gt.f32.partialorder %v966, 0.0
  %vm983 = vcmp.gt.f32.partialorder %v967, 0.0
  %vm984 = vcmp.gt.f32.partialorder %v968, 0.0
  %vm985 = vcmp.gt.f32.partialorder %v969, 0.0
  %vm986 = vcmp.gt.f32.partialorder %v970, 0.0
  %vm987 = vcmp.gt.f32.partialorder %v971, 0.0
  %vm988 = vcmp.gt.f32.partialorder %v972, 0.0
  %vm989 = vcmp.gt.f32.partialorder %v973, 0.0
  %vm990 = vcmp.gt.f32.partialorder %v974, 0.0
  %vm991 = vcmp.gt.f32.partialorder %v975, 0.0
  %vm992 = vcmp.gt.f32.partialorder %v976, 0.0
  %vm993 = vcmp.gt.f32.partialorder %v977, 0.0
  %v994 = vmin.f32 %v962, 0.0
  %v995 = vmin.f32 %v963, 0.0
  %v996 = vmin.f32 %v964, 0.0
  %v997 = vmin.f32 %v965, 0.0
  %v998 = vmin.f32 %v966, 0.0
  %v999 = vmin.f32 %v967, 0.0
  %v1000 = vmin.f32 %v968, 0.0
  %v1001 = vmin.f32 %v969, 0.0
  %v1002 = vmin.f32 %v970, 0.0
  %v1003 = vmin.f32 %v971, 0.0
  %v1004 = vmin.f32 %v972, 0.0
  %v1005 = vmin.f32 %v973, 0.0
  %v1006 = vmin.f32 %v974, 0.0
  %v1007 = vmin.f32 %v975, 0.0
  %v1008 = vmin.f32 %v976, 0.0
  %v1009 = vmin.f32 %v977, 0.0
  %v1010 = vmul.f32 %v994, 1.442695
  %v1011 = vpow.pop %v1010
  %v1012 = vmul.f32 %v995, 1.442695
  %v1013 = vpow.pop %v1012
  %v1014 = vmul.f32 %v996, 1.442695
  %v1015 = vpow.pop %v1014
  %v1016 = vmul.f32 %v997, 1.442695
  %v1017 = vpow.pop %v1016
  %v1018 = vmul.f32 %v998, 1.442695
  %v1019 = vpow.pop %v1018
  %v1020 = vmul.f32 %v999, 1.442695
  %v1021 = vpow.pop %v1020
  %v1022 = vmul.f32 %v1000, 1.442695
  %v1023 = vpow.pop %v1022
  %v1024 = vmul.f32 %v1001, 1.442695
  %v1025 = vpow.pop %v1024
  %v1026 = vmul.f32 %v1002, 1.442695
  %v1027 = vpow.pop %v1026
  %v1028 = vmul.f32 %v1003, 1.442695
  %v1029 = vpow.pop %v1028
  %v1030 = vmul.f32 %v1004, 1.442695
  %v1031 = vpow.pop %v1030
  %v1032 = vmul.f32 %v1005, 1.442695
  %v1033 = vpow.pop %v1032
  %v1034 = vmul.f32 %v1006, 1.442695
  %v1035 = vpow.pop %v1034
  %v1036 = vmul.f32 %v1007, 1.442695
  %v1037 = vpow.pop %v1036
  %v1038 = vmul.f32 %v1008, 1.442695
  %v1039 = vpow.pop %v1038
  %v1040 = vmul.f32 %v1009, 1.442695
  %v1041 = vpow.pop %v1040
  %v1042 = vsub.f32 %v1011, 1.0
  %v1043 = vsub.f32 %v1013, 1.0
  %v1044 = vsub.f32 %v1015, 1.0
  %v1045 = vsub.f32 %v1017, 1.0
  %v1046 = vsub.f32 %v1019, 1.0
  %v1047 = vsub.f32 %v1021, 1.0
  %v1048 = vsub.f32 %v1023, 1.0
  %v1049 = vsub.f32 %v1025, 1.0
  %v1050 = vsub.f32 %v1027, 1.0
  %v1051 = vsub.f32 %v1029, 1.0
  %v1052 = vsub.f32 %v1031, 1.0
  %v1053 = vsub.f32 %v1033, 1.0
  %v1054 = vsub.f32 %v1035, 1.0
  %v1055 = vsub.f32 %v1037, 1.0
  %v1056 = vsub.f32 %v1039, 1.0
  %v1057 = vsub.f32 %v1041, 1.0
  %v1058 = vsel %vm978, %v962, %v1042
  %v1059 = vsel %vm979, %v963, %v1043
  %v1060 = vsel %vm980, %v964, %v1044
  %v1061 = vsel %vm981, %v965, %v1045
  %v1062 = vsel %vm982, %v966, %v1046
  %v1063 = vsel %vm983, %v967, %v1047
  %v1064 = vsel %vm984, %v968, %v1048
  %v1065 = vsel %vm985, %v969, %v1049
  %v1066 = vsel %vm986, %v970, %v1050
  %v1067 = vsel %vm987, %v971, %v1051
  %v1068 = vsel %vm988, %v972, %v1052
  %v1069 = vsel %vm989, %v973, %v1053
  %v1070 = vsel %vm990, %v974, %v1054
  %v1071 = vsel %vm991, %v975, %v1055
  %v1072 = vsel %vm992, %v976, %v1056
  %v1073 = vsel %vm993, %v977, %v1057
  %v1074 = vld [vmem:[%s5] sm:$0x1]
  %v1075 = vld [vmem:[%s6] sm:$0x1]
  %v1076 = vlaneseq
  %v1077 = vand.u32 %v1076, 127
  %vm1078 = vcmp.lt.s32.totalorder %v1077, 32
  %1079 = vadd.xlane.f32.xlu0 %v1058
  %v1080 = vpop.xlane.xlu0 %1079
  %1081 = vadd.xlane.f32.xlu0 %v1059
  %v1082 = vpop.xlane.xlu0 %1081
  %1083 = vadd.xlane.f32.xlu0 %v1060
  %v1084 = vpop.xlane.xlu0 %1083
  %1085 = vadd.xlane.f32.xlu0 %v1061
  %v1086 = vpop.xlane.xlu0 %1085
  %1087 = vadd.xlane.f32.xlu0 %v1062
  %v1088 = vpop.xlane.xlu0 %1087
  %1089 = vadd.xlane.f32.xlu0 %v1063
  %v1090 = vpop.xlane.xlu0 %1089
  %1091 = vadd.xlane.f32.xlu0 %v1064
  %v1092 = vpop.xlane.xlu0 %1091
  %1093 = vadd.xlane.f32.xlu0 %v1065
  %v1094 = vpop.xlane.xlu0 %1093
  %1095 = vadd.xlane.f32.xlu0 %v1066
  %v1096 = vpop.xlane.xlu0 %1095
  %1097 = vadd.xlane.f32.xlu0 %v1067
  %v1098 = vpop.xlane.xlu0 %1097
  %1099 = vadd.xlane.f32.xlu0 %v1068
  %v1100 = vpop.xlane.xlu0 %1099
  %1101 = vadd.xlane.f32.xlu0 %v1069
  %v1102 = vpop.xlane.xlu0 %1101
  %1103 = vadd.xlane.f32.xlu0 %v1070
  %v1104 = vpop.xlane.xlu0 %1103
  %1105 = vadd.xlane.f32.xlu0 %v1071
  %v1106 = vpop.xlane.xlu0 %1105
  %1107 = vadd.xlane.f32.xlu0 %v1072
  %v1108 = vpop.xlane.xlu0 %1107
  %1109 = vadd.xlane.f32.xlu0 %v1073
  %v1110 = vpop.xlane.xlu0 %1109
  %v1111 = vmul.f32 %v1080, 0.03125
  %v1112 = vmul.f32 %v1082, 0.03125
  %v1113 = vmul.f32 %v1084, 0.03125
  %v1114 = vmul.f32 %v1086, 0.03125
  %v1115 = vmul.f32 %v1088, 0.03125
  %v1116 = vmul.f32 %v1090, 0.03125
  %v1117 = vmul.f32 %v1092, 0.03125
  %v1118 = vmul.f32 %v1094, 0.03125
  %v1119 = vmul.f32 %v1096, 0.03125
  %v1120 = vmul.f32 %v1098, 0.03125
  %v1121 = vmul.f32 %v1100, 0.03125
  %v1122 = vmul.f32 %v1102, 0.03125
  %v1123 = vmul.f32 %v1104, 0.03125
  %v1124 = vmul.f32 %v1106, 0.03125
  %v1125 = vmul.f32 %v1108, 0.03125
  %v1126 = vmul.f32 %v1110, 0.03125
  %v1127 = vsub.f32 %v1058, %v1111
  %v1128 = vsub.f32 %v1059, %v1112
  %v1129 = vsub.f32 %v1060, %v1113
  %v1130 = vsub.f32 %v1061, %v1114
  %v1131 = vsub.f32 %v1062, %v1115
  %v1132 = vsub.f32 %v1063, %v1116
  %v1133 = vsub.f32 %v1064, %v1117
  %v1134 = vsub.f32 %v1065, %v1118
  %v1135 = vsub.f32 %v1066, %v1119
  %v1136 = vsub.f32 %v1067, %v1120
  %v1137 = vsub.f32 %v1068, %v1121
  %v1138 = vsub.f32 %v1069, %v1122
  %v1139 = vsub.f32 %v1070, %v1123
  %v1140 = vsub.f32 %v1071, %v1124
  %v1141 = vsub.f32 %v1072, %v1125
  %v1142 = vsub.f32 %v1073, %v1126
  %v1143 = vsel %vm1078, 1, 0
  %vm1144 = vcmp.eq.s32.totalorder %v1143, 1
  %v1145 = vsel %vm1144, %v1127, 0.0
  %v1146 = vsel %vm1144, %v1128, 0.0
  %v1147 = vsel %vm1144, %v1129, 0.0
  %v1148 = vsel %vm1144, %v1130, 0.0
  %v1149 = vsel %vm1144, %v1131, 0.0
  %v1150 = vsel %vm1144, %v1132, 0.0
  %v1151 = vsel %vm1144, %v1133, 0.0
  %v1152 = vsel %vm1144, %v1134, 0.0
  %v1153 = vsel %vm1144, %v1135, 0.0
  %v1154 = vsel %vm1144, %v1136, 0.0
  %v1155 = vsel %vm1144, %v1137, 0.0
  %v1156 = vsel %vm1144, %v1138, 0.0
  %v1157 = vsel %vm1144, %v1139, 0.0
  %v1158 = vsel %vm1144, %v1140, 0.0
  %v1159 = vsel %vm1144, %v1141, 0.0
  %v1160 = vsel %vm1144, %v1142, 0.0
  %v1161 = vmul.f32 %v1145, %v1145
  %v1162 = vmul.f32 %v1146, %v1146
  %v1163 = vmul.f32 %v1147, %v1147
  %v1164 = vmul.f32 %v1148, %v1148
  %v1165 = vmul.f32 %v1149, %v1149
  %v1166 = vmul.f32 %v1150, %v1150
  %v1167 = vmul.f32 %v1151, %v1151
  %v1168 = vmul.f32 %v1152, %v1152
  %v1169 = vmul.f32 %v1153, %v1153
  %v1170 = vmul.f32 %v1154, %v1154
  %v1171 = vmul.f32 %v1155, %v1155
  %v1172 = vmul.f32 %v1156, %v1156
  %v1173 = vmul.f32 %v1157, %v1157
  %v1174 = vmul.f32 %v1158, %v1158
  %v1175 = vmul.f32 %v1159, %v1159
  %v1176 = vmul.f32 %v1160, %v1160
  %1177 = vadd.xlane.f32.xlu0 %v1161
  %v1178 = vpop.xlane.xlu0 %1177
  %1179 = vadd.xlane.f32.xlu0 %v1162
  %v1180 = vpop.xlane.xlu0 %1179
  %1181 = vadd.xlane.f32.xlu0 %v1163
  %v1182 = vpop.xlane.xlu0 %1181
  %1183 = vadd.xlane.f32.xlu0 %v1164
  %v1184 = vpop.xlane.xlu0 %1183
  %1185 = vadd.xlane.f32.xlu0 %v1165
  %v1186 = vpop.xlane.xlu0 %1185
  %1187 = vadd.xlane.f32.xlu0 %v1166
  %v1188 = vpop.xlane.xlu0 %1187
  %1189 = vadd.xlane.f32.xlu0 %v1167
  %v1190 = vpop.xlane.xlu0 %1189
  %1191 = vadd.xlane.f32.xlu0 %v1168
  %v1192 = vpop.xlane.xlu0 %1191
  %1193 = vadd.xlane.f32.xlu0 %v1169
  %v1194 = vpop.xlane.xlu0 %1193
  %1195 = vadd.xlane.f32.xlu0 %v1170
  %v1196 = vpop.xlane.xlu0 %1195
  %1197 = vadd.xlane.f32.xlu0 %v1171
  %v1198 = vpop.xlane.xlu0 %1197
  %1199 = vadd.xlane.f32.xlu0 %v1172
  %v1200 = vpop.xlane.xlu0 %1199
  %1201 = vadd.xlane.f32.xlu0 %v1173
  %v1202 = vpop.xlane.xlu0 %1201
  %1203 = vadd.xlane.f32.xlu0 %v1174
  %v1204 = vpop.xlane.xlu0 %1203
  %1205 = vadd.xlane.f32.xlu0 %v1175
  %v1206 = vpop.xlane.xlu0 %1205
  %1207 = vadd.xlane.f32.xlu0 %v1176
  %v1208 = vpop.xlane.xlu0 %1207
  %v1209 = vmul.f32 %v1178, 0.03125
  %v1210 = vmul.f32 %v1180, 0.03125
  %v1211 = vmul.f32 %v1182, 0.03125
  %v1212 = vmul.f32 %v1184, 0.03125
  %v1213 = vmul.f32 %v1186, 0.03125
  %v1214 = vmul.f32 %v1188, 0.03125
  %v1215 = vmul.f32 %v1190, 0.03125
  %v1216 = vmul.f32 %v1192, 0.03125
  %v1217 = vmul.f32 %v1194, 0.03125
  %v1218 = vmul.f32 %v1196, 0.03125
  %v1219 = vmul.f32 %v1198, 0.03125
  %v1220 = vmul.f32 %v1200, 0.03125
  %v1221 = vmul.f32 %v1202, 0.03125
  %v1222 = vmul.f32 %v1204, 0.03125
  %v1223 = vmul.f32 %v1206, 0.03125
  %v1224 = vmul.f32 %v1208, 0.03125
  %v1225 = vadd.f32 %v1209, 1e-05
  %v1226 = vadd.f32 %v1210, 1e-05
  %v1227 = vadd.f32 %v1211, 1e-05
  %v1228 = vadd.f32 %v1212, 1e-05
  %v1229 = vadd.f32 %v1213, 1e-05
  %v1230 = vadd.f32 %v1214, 1e-05
  %v1231 = vadd.f32 %v1215, 1e-05
  %v1232 = vadd.f32 %v1216, 1e-05
  %v1233 = vadd.f32 %v1217, 1e-05
  %v1234 = vadd.f32 %v1218, 1e-05
  %v1235 = vadd.f32 %v1219, 1e-05
  %v1236 = vadd.f32 %v1220, 1e-05
  %v1237 = vadd.f32 %v1221, 1e-05
  %v1238 = vadd.f32 %v1222, 1e-05
  %v1239 = vadd.f32 %v1223, 1e-05
  %v1240 = vadd.f32 %v1224, 1e-05
  %v1241 = vrsqrt.pop %v1225
  %v1242 = vrsqrt.pop %v1226
  %v1243 = vrsqrt.pop %v1227
  %v1244 = vrsqrt.pop %v1228
  %v1245 = vrsqrt.pop %v1229
  %v1246 = vrsqrt.pop %v1230
  %v1247 = vrsqrt.pop %v1231
  %v1248 = vrsqrt.pop %v1232
  %v1249 = vrsqrt.pop %v1233
  %v1250 = vrsqrt.pop %v1234
  %v1251 = vrsqrt.pop %v1235
  %v1252 = vrsqrt.pop %v1236
  %v1253 = vrsqrt.pop %v1237
  %v1254 = vrsqrt.pop %v1238
  %v1255 = vrsqrt.pop %v1239
  %v1256 = vrsqrt.pop %v1240
  %v1257 = vmul.f32 %v1145, %v1241
  %v1258 = vmul.f32 %v1146, %v1242
  %v1259 = vmul.f32 %v1147, %v1243
  %v1260 = vmul.f32 %v1148, %v1244
  %v1261 = vmul.f32 %v1149, %v1245
  %v1262 = vmul.f32 %v1150, %v1246
  %v1263 = vmul.f32 %v1151, %v1247
  %v1264 = vmul.f32 %v1152, %v1248
  %v1265 = vmul.f32 %v1153, %v1249
  %v1266 = vmul.f32 %v1154, %v1250
  %v1267 = vmul.f32 %v1155, %v1251
  %v1268 = vmul.f32 %v1156, %v1252
  %v1269 = vmul.f32 %v1157, %v1253
  %v1270 = vmul.f32 %v1158, %v1254
  %v1271 = vmul.f32 %v1159, %v1255
  %v1272 = vmul.f32 %v1160, %v1256
  %v1274 = vlaneseq
  %v1275 = vshrl.u32 %v1274, 7
  %v1276 = vsub.s32 0, %v1275
  %v1277 = vrot.slane %v1074, %v1276
  %v1279 = vmul.f32 %v1257, %v1277
  %v1280 = vmul.f32 %v1258, %v1277
  %v1281 = vmul.f32 %v1259, %v1277
  %v1282 = vmul.f32 %v1260, %v1277
  %v1283 = vmul.f32 %v1261, %v1277
  %v1284 = vmul.f32 %v1262, %v1277
  %v1285 = vmul.f32 %v1263, %v1277
  %v1286 = vmul.f32 %v1264, %v1277
  %v1287 = vmul.f32 %v1265, %v1277
  %v1288 = vmul.f32 %v1266, %v1277
  %v1289 = vmul.f32 %v1267, %v1277
  %v1290 = vmul.f32 %v1268, %v1277
  %v1291 = vmul.f32 %v1269, %v1277
  %v1292 = vmul.f32 %v1270, %v1277
  %v1293 = vmul.f32 %v1271, %v1277
  %v1294 = vmul.f32 %v1272, %v1277
  %v1296 = vlaneseq
  %v1297 = vshrl.u32 %v1296, 7
  %v1298 = vsub.s32 0, %v1297
  %v1299 = vrot.slane %v1075, %v1298
  %v1301 = vadd.f32 %v1279, %v1299
  %v1302 = vadd.f32 %v1280, %v1299
  %v1303 = vadd.f32 %v1281, %v1299
  %v1304 = vadd.f32 %v1282, %v1299
  %v1305 = vadd.f32 %v1283, %v1299
  %v1306 = vadd.f32 %v1284, %v1299
  %v1307 = vadd.f32 %v1285, %v1299
  %v1308 = vadd.f32 %v1286, %v1299
  %v1309 = vadd.f32 %v1287, %v1299
  %v1310 = vadd.f32 %v1288, %v1299
  %v1311 = vadd.f32 %v1289, %v1299
  %v1312 = vadd.f32 %v1290, %v1299
  %v1313 = vadd.f32 %v1291, %v1299
  %v1314 = vadd.f32 %v1292, %v1299
  %v1315 = vadd.f32 %v1293, %v1299
  %v1316 = vadd.f32 %v1294, %v1299
  %v1317 = vpack.c.bf16 %v1302, %v1301
  %v1318 = vpack.c.bf16 %v1304, %v1303
  %v1319 = vpack.c.bf16 %v1306, %v1305
  %v1320 = vpack.c.bf16 %v1308, %v1307
  %v1321 = vpack.c.bf16 %v1310, %v1309
  %v1322 = vpack.c.bf16 %v1312, %v1311
  %v1323 = vpack.c.bf16 %v1314, %v1313
  %v1324 = vpack.c.bf16 %v1316, %v1315
  %v1325 = vld [vmem:[%s7] sm:$0xf]
  %v1326 = vld [vmem:[%s7 + $0x4] sm:$0xf]
  %v1327 = vld [vmem:[%s7 + $0x8] sm:$0xf]
  %v1328 = vld [vmem:[%s7 + $0xc] sm:$0xf]
  %v1329 = vld [vmem:[%s7 + $0x10] sm:$0xf]
  %v1330 = vld [vmem:[%s7 + $0x14] sm:$0xf]
  %v1331 = vld [vmem:[%s7 + $0x18] sm:$0xf]
  %v1332 = vld [vmem:[%s7 + $0x1c] sm:$0xf]
  %v1333 = vld [vmem:[%s7 + $0x20] sm:$0xf]
  %v1334 = vld [vmem:[%s7 + $0x24] sm:$0xf]
  %v1335 = vld [vmem:[%s7 + $0x28] sm:$0xf]
  %v1336 = vld [vmem:[%s7 + $0x2c] sm:$0xf]
  %v1337 = vld [vmem:[%s7 + $0x30] sm:$0xf]
  %v1338 = vld [vmem:[%s7 + $0x34] sm:$0xf]
  %v1339 = vld [vmem:[%s7 + $0x38] sm:$0xf]
  %v1340 = vld [vmem:[%s7 + $0x3c] sm:$0xf]
  %v1341 = vld [vmem:[%s8] sm:$0x1]
  %v1343 = vlaneseq
  %v1344 = vshrl.u32 %v1343, 7
  %v1345 = vsub.s32 0, %v1344
  %v1346 = vrot.slane %v1341, %v1345
  %v1364 = vunpack.c.l.b16 %v1325
  %v1365 = vunpack.c.l.b16 %v1326
  %v1366 = vunpack.c.l.b16 %v1327
  %v1367 = vunpack.c.l.b16 %v1328
  %v1368 = vunpack.c.l.b16 %v1329
  %v1369 = vunpack.c.l.b16 %v1330
  %v1370 = vunpack.c.l.b16 %v1331
  %v1371 = vunpack.c.l.b16 %v1332
  %v1372 = vunpack.c.l.b16 %v1333
  %v1373 = vunpack.c.l.b16 %v1334
  %v1374 = vunpack.c.l.b16 %v1335
  %v1375 = vunpack.c.l.b16 %v1336
  %v1376 = vunpack.c.l.b16 %v1337
  %v1377 = vunpack.c.l.b16 %v1338
  %v1378 = vunpack.c.l.b16 %v1339
  %v1379 = vunpack.c.l.b16 %v1340
  %v1380 = vpack.c.b16 %v1365, %v1364
  %v1381 = vpack.c.b16 %v1367, %v1366
  %v1382 = vpack.c.b16 %v1369, %v1368
  %v1383 = vpack.c.b16 %v1371, %v1370
  %v1384 = vpack.c.b16 %v1373, %v1372
  %v1385 = vpack.c.b16 %v1375, %v1374
  %v1386 = vpack.c.b16 %v1377, %v1376
  %v1387 = vpack.c.b16 %v1379, %v1378
  %1396 = vmatprep.subr.bf16.mxu0 0
  %1397 = vmatpush1.bf16.msra.mxu0 %v1387
  %1398 = vmatprep.subr.bf16.mxu0 0
  %1399 = vmatpush1.bf16.msra.mxu0 %v1386
  %1400 = vmatprep.subr.bf16.mxu0 0
  %1401 = vmatpush1.bf16.msra.mxu0 %v1385
  %1402 = vmatprep.subr.bf16.mxu0 0
  %1403 = vmatpush1.bf16.msra.mxu0 %v1384
  %1404 = vmatprep.subr.bf16.mxu0 0
  %1405 = vmatpush1.bf16.msra.mxu0 %v1383
  %1406 = vmatprep.subr.bf16.mxu0 0
  %1407 = vmatpush1.bf16.msra.mxu0 %v1382
  %1408 = vmatprep.subr.bf16.mxu0 0
  %1409 = vmatpush1.bf16.msra.mxu0 %v1381
  %1410 = vmatprep.subr.bf16.mxu0 0
  %1411 = vmatpush1.bf16.msra.mxu0 %v1380
  %1412 = vmatprep.subr.bf16.mxu0 0
  %1413 = vmatpush2.bf16.msra.mxu0 0
  %1414 = vmatprep.subr.bf16.mxu0 0
  %1415 = vmatpush2.bf16.msra.mxu0 0
  %1416 = vmatprep.subr.bf16.mxu0 0
  %1417 = vmatpush2.bf16.msra.mxu0 0
  %1418 = vmatprep.subr.bf16.mxu0 0
  %1419 = vmatpush2.bf16.msra.mxu0 0
  %1420 = vmatprep.subr.bf16.mxu0 0
  %1421 = vmatpush2.bf16.msra.mxu0 0
  %1422 = vmatprep.subr.bf16.mxu0 0
  %1423 = vmatpush2.bf16.msra.mxu0 0
  %1424 = vmatprep.subr.bf16.mxu0 0
  %1425 = vmatpush2.bf16.msra.mxu0 0
  %1426 = vmatprep.subr.bf16.mxu0 0
  %1427 = vmatpush2.bf16.msra.mxu0 0
  %1428 = vmatprep.mubr.bf16.mxu0 0
  %1429 = vmatmul.mubr.bf16.gmra.mxu0 %v1317
  %v1430 = vpop.f32.mrf.mxu0
  %v1431 = vadd.f32 %v1346, %v1430
  %v1432 = vpop.f32.mrf.mxu0
  %v1433 = vpop.f32.mrf.mxu0
  %v1434 = vadd.f32 %v1346, %v1433
  %v1435 = vpop.f32.mrf.mxu0
  %1436 = vmatprep.mubr.bf16.mxu0 0
  %1437 = vmatmul.mubr.bf16.gmra.mxu0 %v1318
  %v1438 = vpop.f32.mrf.mxu0
  %v1439 = vadd.f32 %v1346, %v1438
  %v1440 = vpop.f32.mrf.mxu0
  %v1441 = vpop.f32.mrf.mxu0
  %v1442 = vadd.f32 %v1346, %v1441
  %v1443 = vpop.f32.mrf.mxu0
  %1444 = vmatprep.mubr.bf16.mxu0 0
  %1445 = vmatmul.mubr.bf16.gmra.mxu0 %v1319
  %v1446 = vpop.f32.mrf.mxu0
  %v1447 = vadd.f32 %v1346, %v1446
  %v1448 = vpop.f32.mrf.mxu0
  %v1449 = vpop.f32.mrf.mxu0
  %v1450 = vadd.f32 %v1346, %v1449
  %v1451 = vpop.f32.mrf.mxu0
  %1452 = vmatprep.mubr.bf16.mxu0 0
  %1453 = vmatmul.mubr.bf16.gmra.mxu0 %v1320
  %v1454 = vpop.f32.mrf.mxu0
  %v1455 = vadd.f32 %v1346, %v1454
  %v1456 = vpop.f32.mrf.mxu0
  %v1457 = vpop.f32.mrf.mxu0
  %v1458 = vadd.f32 %v1346, %v1457
  %v1459 = vpop.f32.mrf.mxu0
  %1460 = vmatprep.mubr.bf16.mxu0 0
  %1461 = vmatmul.mubr.bf16.gmra.mxu0 %v1321
  %v1462 = vpop.f32.mrf.mxu0
  %v1463 = vadd.f32 %v1346, %v1462
  %v1464 = vpop.f32.mrf.mxu0
  %v1465 = vpop.f32.mrf.mxu0
  %v1466 = vadd.f32 %v1346, %v1465
  %v1467 = vpop.f32.mrf.mxu0
  %1468 = vmatprep.mubr.bf16.mxu0 0
  %1469 = vmatmul.mubr.bf16.gmra.mxu0 %v1322
  %v1470 = vpop.f32.mrf.mxu0
  %v1471 = vadd.f32 %v1346, %v1470
  %v1472 = vpop.f32.mrf.mxu0
  %v1473 = vpop.f32.mrf.mxu0
  %v1474 = vadd.f32 %v1346, %v1473
  %v1475 = vpop.f32.mrf.mxu0
  %1476 = vmatprep.mubr.bf16.mxu0 0
  %1477 = vmatmul.mubr.bf16.gmra.mxu0 %v1323
  %v1478 = vpop.f32.mrf.mxu0
  %v1479 = vadd.f32 %v1346, %v1478
  %v1480 = vpop.f32.mrf.mxu0
  %v1481 = vpop.f32.mrf.mxu0
  %v1482 = vadd.f32 %v1346, %v1481
  %v1483 = vpop.f32.mrf.mxu0
  %1484 = vmatprep.mubr.bf16.mxu0 0
  %1485 = vmatmul.mubr.bf16.gmra.mxu0 %v1324
  %v1486 = vpop.f32.mrf.mxu0
  %v1487 = vadd.f32 %v1346, %v1486
  %v1488 = vpop.f32.mrf.mxu0
  %v1489 = vpop.f32.mrf.mxu0
  %v1490 = vadd.f32 %v1346, %v1489
  %v1491 = vpop.f32.mrf.mxu0
  %1492 = vdwg.mxu0
  %vm1493 = vcmp.gt.f32.partialorder %v1431, 0.0
  %vm1494 = vcmp.gt.f32.partialorder %v1434, 0.0
  %vm1495 = vcmp.gt.f32.partialorder %v1439, 0.0
  %vm1496 = vcmp.gt.f32.partialorder %v1442, 0.0
  %vm1497 = vcmp.gt.f32.partialorder %v1447, 0.0
  %vm1498 = vcmp.gt.f32.partialorder %v1450, 0.0
  %vm1499 = vcmp.gt.f32.partialorder %v1455, 0.0
  %vm1500 = vcmp.gt.f32.partialorder %v1458, 0.0
  %vm1501 = vcmp.gt.f32.partialorder %v1463, 0.0
  %vm1502 = vcmp.gt.f32.partialorder %v1466, 0.0
  %vm1503 = vcmp.gt.f32.partialorder %v1471, 0.0
  %vm1504 = vcmp.gt.f32.partialorder %v1474, 0.0
  %vm1505 = vcmp.gt.f32.partialorder %v1479, 0.0
  %vm1506 = vcmp.gt.f32.partialorder %v1482, 0.0
  %vm1507 = vcmp.gt.f32.partialorder %v1487, 0.0
  %vm1508 = vcmp.gt.f32.partialorder %v1490, 0.0
  %v1509 = vmin.f32 %v1431, 0.0
  %v1510 = vmin.f32 %v1434, 0.0
  %v1511 = vmin.f32 %v1439, 0.0
  %v1512 = vmin.f32 %v1442, 0.0
  %v1513 = vmin.f32 %v1447, 0.0
  %v1514 = vmin.f32 %v1450, 0.0
  %v1515 = vmin.f32 %v1455, 0.0
  %v1516 = vmin.f32 %v1458, 0.0
  %v1517 = vmin.f32 %v1463, 0.0
  %v1518 = vmin.f32 %v1466, 0.0
  %v1519 = vmin.f32 %v1471, 0.0
  %v1520 = vmin.f32 %v1474, 0.0
  %v1521 = vmin.f32 %v1479, 0.0
  %v1522 = vmin.f32 %v1482, 0.0
  %v1523 = vmin.f32 %v1487, 0.0
  %v1524 = vmin.f32 %v1490, 0.0
  %v1525 = vmul.f32 %v1509, 1.442695
  %v1526 = vpow.pop %v1525
  %v1527 = vmul.f32 %v1510, 1.442695
  %v1528 = vpow.pop %v1527
  %v1529 = vmul.f32 %v1511, 1.442695
  %v1530 = vpow.pop %v1529
  %v1531 = vmul.f32 %v1512, 1.442695
  %v1532 = vpow.pop %v1531
  %v1533 = vmul.f32 %v1513, 1.442695
  %v1534 = vpow.pop %v1533
  %v1535 = vmul.f32 %v1514, 1.442695
  %v1536 = vpow.pop %v1535
  %v1537 = vmul.f32 %v1515, 1.442695
  %v1538 = vpow.pop %v1537
  %v1539 = vmul.f32 %v1516, 1.442695
  %v1540 = vpow.pop %v1539
  %v1541 = vmul.f32 %v1517, 1.442695
  %v1542 = vpow.pop %v1541
  %v1543 = vmul.f32 %v1518, 1.442695
  %v1544 = vpow.pop %v1543
  %v1545 = vmul.f32 %v1519, 1.442695
  %v1546 = vpow.pop %v1545
  %v1547 = vmul.f32 %v1520, 1.442695
  %v1548 = vpow.pop %v1547
  %v1549 = vmul.f32 %v1521, 1.442695
  %v1550 = vpow.pop %v1549
  %v1551 = vmul.f32 %v1522, 1.442695
  %v1552 = vpow.pop %v1551
  %v1553 = vmul.f32 %v1523, 1.442695
  %v1554 = vpow.pop %v1553
  %v1555 = vmul.f32 %v1524, 1.442695
  %v1556 = vpow.pop %v1555
  %v1557 = vsub.f32 %v1526, 1.0
  %v1558 = vsub.f32 %v1528, 1.0
  %v1559 = vsub.f32 %v1530, 1.0
  %v1560 = vsub.f32 %v1532, 1.0
  %v1561 = vsub.f32 %v1534, 1.0
  %v1562 = vsub.f32 %v1536, 1.0
  %v1563 = vsub.f32 %v1538, 1.0
  %v1564 = vsub.f32 %v1540, 1.0
  %v1565 = vsub.f32 %v1542, 1.0
  %v1566 = vsub.f32 %v1544, 1.0
  %v1567 = vsub.f32 %v1546, 1.0
  %v1568 = vsub.f32 %v1548, 1.0
  %v1569 = vsub.f32 %v1550, 1.0
  %v1570 = vsub.f32 %v1552, 1.0
  %v1571 = vsub.f32 %v1554, 1.0
  %v1572 = vsub.f32 %v1556, 1.0
  %v1573 = vsel %vm1493, %v1431, %v1557
  %v1574 = vsel %vm1494, %v1434, %v1558
  %v1575 = vsel %vm1495, %v1439, %v1559
  %v1576 = vsel %vm1496, %v1442, %v1560
  %v1577 = vsel %vm1497, %v1447, %v1561
  %v1578 = vsel %vm1498, %v1450, %v1562
  %v1579 = vsel %vm1499, %v1455, %v1563
  %v1580 = vsel %vm1500, %v1458, %v1564
  %v1581 = vsel %vm1501, %v1463, %v1565
  %v1582 = vsel %vm1502, %v1466, %v1566
  %v1583 = vsel %vm1503, %v1471, %v1567
  %v1584 = vsel %vm1504, %v1474, %v1568
  %v1585 = vsel %vm1505, %v1479, %v1569
  %v1586 = vsel %vm1506, %v1482, %v1570
  %v1587 = vsel %vm1507, %v1487, %v1571
  %v1588 = vsel %vm1508, %v1490, %v1572
  %v1589 = vmul.f32 %v1573, 0.999995
  %v1590 = vmul.f32 %v1574, 0.999995
  %v1591 = vmul.f32 %v1575, 0.999995
  %v1592 = vmul.f32 %v1576, 0.999995
  %v1593 = vmul.f32 %v1577, 0.999995
  %v1594 = vmul.f32 %v1578, 0.999995
  %v1595 = vmul.f32 %v1579, 0.999995
  %v1596 = vmul.f32 %v1580, 0.999995
  %v1597 = vmul.f32 %v1581, 0.999995
  %v1598 = vmul.f32 %v1582, 0.999995
  %v1599 = vmul.f32 %v1583, 0.999995
  %v1600 = vmul.f32 %v1584, 0.999995
  %v1601 = vmul.f32 %v1585, 0.999995
  %v1602 = vmul.f32 %v1586, 0.999995
  %v1603 = vmul.f32 %v1587, 0.999995
  %v1604 = vmul.f32 %v1588, 0.999995
  %v1605 = vpack.c.bf16 %v1590, %v1589
  %v1606 = vpack.c.bf16 %v1592, %v1591
  %v1607 = vpack.c.bf16 %v1594, %v1593
  %v1608 = vpack.c.bf16 %v1596, %v1595
  %v1609 = vpack.c.bf16 %v1598, %v1597
  %v1610 = vpack.c.bf16 %v1600, %v1599
  %v1611 = vpack.c.bf16 %v1602, %v1601
  %v1612 = vpack.c.bf16 %v1604, %v1603
  %v1621 = vunpack.c.l.b16 %v1605
  %v1622 = vunpack.c.h.b16 %v1605
  %v1623 = vunpack.c.l.b16 %v1606
  %v1624 = vunpack.c.h.b16 %v1606
  %v1625 = vunpack.c.l.b16 %v1607
  %v1626 = vunpack.c.h.b16 %v1607
  %v1627 = vunpack.c.l.b16 %v1608
  %v1628 = vunpack.c.h.b16 %v1608
  %v1629 = vunpack.c.l.b16 %v1609
  %v1630 = vunpack.c.h.b16 %v1609
  %v1631 = vunpack.c.l.b16 %v1610
  %v1632 = vunpack.c.h.b16 %v1610
  %v1633 = vunpack.c.l.b16 %v1611
  %v1634 = vunpack.c.h.b16 %v1611
  %v1635 = vunpack.c.l.b16 %v1612
  %v1636 = vunpack.c.h.b16 %v1612
  %v1637 = vpack.c.b16 %v1621, %v1621
  %v1638 = vpack.c.b16 %v1622, %v1622
  %v1639 = vpack.c.b16 %v1623, %v1623
  %v1640 = vpack.c.b16 %v1624, %v1624
  %v1641 = vpack.c.b16 %v1625, %v1625
  %v1642 = vpack.c.b16 %v1626, %v1626
  %v1643 = vpack.c.b16 %v1627, %v1627
  %v1644 = vpack.c.b16 %v1628, %v1628
  %v1645 = vpack.c.b16 %v1629, %v1629
  %v1646 = vpack.c.b16 %v1630, %v1630
  %v1647 = vpack.c.b16 %v1631, %v1631
  %v1648 = vpack.c.b16 %v1632, %v1632
  %v1649 = vpack.c.b16 %v1633, %v1633
  %v1650 = vpack.c.b16 %v1634, %v1634
  %v1651 = vpack.c.b16 %v1635, %v1635
  %v1652 = vpack.c.b16 %v1636, %v1636
  %1669 = vst [vmem:[%s9] sm:$0xf] %v1637
  %1670 = vst [vmem:[%s9 + $0x4] sm:$0xf] %v1638
  %1671 = vst [vmem:[%s9 + $0x8] sm:$0xf] %v1639
  %1672 = vst [vmem:[%s9 + $0xc] sm:$0xf] %v1640
  %1673 = vst [vmem:[%s9 + $0x10] sm:$0xf] %v1641
  %1674 = vst [vmem:[%s9 + $0x14] sm:$0xf] %v1642
  %1675 = vst [vmem:[%s9 + $0x18] sm:$0xf] %v1643
  %1676 = vst [vmem:[%s9 + $0x1c] sm:$0xf] %v1644
  %1677 = vst [vmem:[%s9 + $0x20] sm:$0xf] %v1645
  %1678 = vst [vmem:[%s9 + $0x24] sm:$0xf] %v1646
  %1679 = vst [vmem:[%s9 + $0x28] sm:$0xf] %v1647
  %1680 = vst [vmem:[%s9 + $0x2c] sm:$0xf] %v1648
  %1681 = vst [vmem:[%s9 + $0x30] sm:$0xf] %v1649
  %1682 = vst [vmem:[%s9 + $0x34] sm:$0xf] %v1650
  %1683 = vst [vmem:[%s9 + $0x38] sm:$0xf] %v1651
  %1684 = vst [vmem:[%s9 + $0x3c] sm:$0xf] %v1652
  // Predicated region
  $region38: #{fwd.34} parent=0 // pred_check
    _
  $region39: #{fwd.34} parent=0 // pred_check_branch
    %1686 = sbr.rel (0) target = $region41
  $region40: #{fwd.34} parent=0 // pred_region
    _
  $region41: #{fwd.34} parent=0 // pred_fallthru
    _
  // Predicated region
  $region42: #{fwd.34} parent=0 // pred_check
    _
  $region43: #{fwd.34} parent=0 // pred_check_branch
    %1688 = sbr.rel (0) target = $region45
  $region44: #{fwd.34} parent=0 // pred_region
    _
  $region45: #{fwd.34} parent=0 // pred_fallthru
    _

// kernel: fwd.41
$region0: #{fwd.41}
  #allocation0 [shape = 'u32[]', space=smem, size = 0x4, offset = 0x4, fixed_abs, tag = 'smem constant byte address 0x4 - core index']
  #allocation1 [shape = 'u32[144,128]{1,0:T(1,128)}', space=vmem, size = 0x12000, scoped, tag = 'internal scratch']
  #allocation2 [shape = 'f32[8,128]{1,0:T(8,128)}', space=vmem, size = 0x1000, scoped, tag = 'scratch operand']
  %s0 = inlined_call_operand.vmem [shape: s32[1,128], index: 0, kind: input, shape index: {}]
  %s1 = inlined_call_operand.vmem [shape: bf16[128,128], index: 1, kind: input, shape index: {}]
  %s2 = inlined_call_operand.vmem [shape: bf16[8,128], index: 2, kind: input, shape index: {}]
  %s3 = inlined_call_operand.vmem [shape: bf16[128,128], index: 3, kind: input, shape index: {}]
  %s4 = inlined_call_operand.vmem [shape: f32[1,128], index: 4, kind: input, shape index: {}]
  %s5 = inlined_call_operand.vmem [shape: f32[8,128], index: 5, kind: output, shape index: {}]
  %s6 = sld [smem:[#allocation0]]
  $region38: #{fwd.41} parent=0
    _
  %s8 = ssub.s32 1, %s6
  %s9 = scalar_select 0, %s8, %s6
  // Predicated region
  $region2: #{fwd.41} parent=0 // pred_check
    _
  $region3: #{fwd.41} parent=0 // pred_check_branch
    %11 = sbr.rel (0) target = $region5
  $region4: #{fwd.41} parent=0 // pred_region
    _
  $region5: #{fwd.41} parent=0 // pred_fallthru
    _
  // Predicated region
  $region6: #{fwd.41} parent=0 // pred_check
    _
  $region7: #{fwd.41} parent=0 // pred_check_branch
    %13 = sbr.rel (0) target = $region9
  $region8: #{fwd.41} parent=0 // pred_region
    _
  $region9: #{fwd.41} parent=0 // pred_fallthru
    _
  // Predicated region
  $region10: #{fwd.41} parent=0 // pred_check
    _
  $region11: #{fwd.41} parent=0 // pred_check_branch
    %15 = sbr.rel (0) target = $region13
  $region12: #{fwd.41} parent=0 // pred_region
    _
  $region13: #{fwd.41} parent=0 // pred_fallthru
    _
  // Predicated region
  $region14: #{fwd.41} parent=0 // pred_check
    _
  $region15: #{fwd.41} parent=0 // pred_check_branch
    %17 = sbr.rel (0) target = $region17
  $region16: #{fwd.41} parent=0 // pred_region
    _
  $region17: #{fwd.41} parent=0 // pred_fallthru
    _
  // Predicated region
  $region18: #{fwd.41} parent=0 // pred_check
    _
  $region19: #{fwd.41} parent=0 // pred_check_branch
    %19 = sbr.rel (0) target = $region21
  $region20: #{fwd.41} parent=0 // pred_region
    _
  $region21: #{fwd.41} parent=0 // pred_fallthru
    _
  %p21 = scmp.eq.s32.totalorder 0, 0
  // Predicated region
  $region22: #{fwd.41} parent=0 // pred_check
    %p22 = pneg %p21
  $region23: #{fwd.41} parent=0 // pred_check_branch
    %24 = sbr.rel (%p22) target = $region25
  $region24: #{fwd.41} parent=0 // pred_region
    %25 = vst [vmem:[#allocation2] sm:$0xff] 0.0
  $region25: #{fwd.41} parent=0 // pred_fallthru
    _
  %v26 = vld [vmem:[%s0] sm:$0x1]
  %v27 = vlaneseq
  %v28 = vshrl.u32 %v27, 7
  %s29 = smul.u32 0, 8
  %v30 = vstv %s29
  %v31 = vadd.s32 %v28, %v30
  %v32 = vlaneseq
  %v33 = vshrl.u32 %v32, 7
  %v34 = vsub.s32 0, %v33
  %v35 = vrot.slane %v26, %v34
  %vm36 = vcmp.eq.s32.totalorder %v31, %v35
  %v37 = vsel %vm36, 1.0, 0.0
  %v38 = vpack.c.bf16 %v37, %v37
  %v39 = vld [vmem:[#allocation2] sm:$0xff]
  %v40 = vld [vmem:[%s1] sm:$0xf]
  %v41 = vld [vmem:[%s1 + $0x4] sm:$0xf]
  %v42 = vld [vmem:[%s1 + $0x8] sm:$0xf]
  %v43 = vld [vmem:[%s1 + $0xc] sm:$0xf]
  %v44 = vld [vmem:[%s1 + $0x10] sm:$0xf]
  %v45 = vld [vmem:[%s1 + $0x14] sm:$0xf]
  %v46 = vld [vmem:[%s1 + $0x18] sm:$0xf]
  %v47 = vld [vmem:[%s1 + $0x1c] sm:$0xf]
  %v48 = vld [vmem:[%s1 + $0x20] sm:$0xf]
  %v49 = vld [vmem:[%s1 + $0x24] sm:$0xf]
  %v50 = vld [vmem:[%s1 + $0x28] sm:$0xf]
  %v51 = vld [vmem:[%s1 + $0x2c] sm:$0xf]
  %v52 = vld [vmem:[%s1 + $0x30] sm:$0xf]
  %v53 = vld [vmem:[%s1 + $0x34] sm:$0xf]
  %v54 = vld [vmem:[%s1 + $0x38] sm:$0xf]
  %v55 = vld [vmem:[%s1 + $0x3c] sm:$0xf]
  %v72 = vunpack.c.l.b16 %v40
  %v73 = vunpack.c.l.b16 %v41
  %v74 = vunpack.c.l.b16 %v42
  %v75 = vunpack.c.l.b16 %v43
  %v76 = vunpack.c.l.b16 %v44
  %v77 = vunpack.c.l.b16 %v45
  %v78 = vunpack.c.l.b16 %v46
  %v79 = vunpack.c.l.b16 %v47
  %v80 = vunpack.c.l.b16 %v48
  %v81 = vunpack.c.l.b16 %v49
  %v82 = vunpack.c.l.b16 %v50
  %v83 = vunpack.c.l.b16 %v51
  %v84 = vunpack.c.l.b16 %v52
  %v85 = vunpack.c.l.b16 %v53
  %v86 = vunpack.c.l.b16 %v54
  %v87 = vunpack.c.l.b16 %v55
  %v88 = vpack.c.b16 %v73, %v72
  %v89 = vpack.c.b16 %v75, %v74
  %v90 = vpack.c.b16 %v77, %v76
  %v91 = vpack.c.b16 %v79, %v78
  %v92 = vpack.c.b16 %v81, %v80
  %v93 = vpack.c.b16 %v83, %v82
  %v94 = vpack.c.b16 %v85, %v84
  %v95 = vpack.c.b16 %v87, %v86
  %104 = vmatprep.subr.bf16.mxu0 0
  %105 = vmatpush1.bf16.msra.mxu0 %v95
  %106 = vmatprep.subr.bf16.mxu0 0
  %107 = vmatpush1.bf16.msra.mxu0 %v94
  %108 = vmatprep.subr.bf16.mxu0 0
  %109 = vmatpush1.bf16.msra.mxu0 %v93
  %110 = vmatprep.subr.bf16.mxu0 0
  %111 = vmatpush1.bf16.msra.mxu0 %v92
  %112 = vmatprep.subr.bf16.mxu0 0
  %113 = vmatpush1.bf16.msra.mxu0 %v91
  %114 = vmatprep.subr.bf16.mxu0 0
  %115 = vmatpush1.bf16.msra.mxu0 %v90
  %116 = vmatprep.subr.bf16.mxu0 0
  %117 = vmatpush1.bf16.msra.mxu0 %v89
  %118 = vmatprep.subr.bf16.mxu0 0
  %119 = vmatpush1.bf16.msra.mxu0 %v88
  %120 = vmatprep.subr.bf16.mxu0 0
  %121 = vmatpush2.bf16.msra.mxu0 0
  %122 = vmatprep.subr.bf16.mxu0 0
  %123 = vmatpush2.bf16.msra.mxu0 0
  %124 = vmatprep.subr.bf16.mxu0 0
  %125 = vmatpush2.bf16.msra.mxu0 0
  %126 = vmatprep.subr.bf16.mxu0 0
  %127 = vmatpush2.bf16.msra.mxu0 0
  %128 = vmatprep.subr.bf16.mxu0 0
  %129 = vmatpush2.bf16.msra.mxu0 0
  %130 = vmatprep.subr.bf16.mxu0 0
  %131 = vmatpush2.bf16.msra.mxu0 0
  %132 = vmatprep.subr.bf16.mxu0 0
  %133 = vmatpush2.bf16.msra.mxu0 0
  %134 = vmatprep.subr.bf16.mxu0 0
  %135 = vmatpush2.bf16.msra.mxu0 0
  %136 = vmatprep.mubr.bf16.mxu0 0
  %137 = vmatmul.mubr.bf16.gmra.mxu0 %v38
  %v138 = vpop.f32.mrf.mxu0
  %v139 = vadd.f32 0.0, %v138
  %v140 = vpop.f32.mrf.mxu0
  %v141 = vpop.f32.mrf.mxu0
  %v142 = vpop.f32.mrf.mxu0
  %143 = vdwg.mxu0
  %v144 = vadd.f32 %v39, %v139
  %145 = vst [vmem:[#allocation2] sm:$0xff] %v144
  // Predicated region
  $region26: #{fwd.41} parent=0 // pred_check
    %p146 = pneg %p21
  $region27: #{fwd.41} parent=0 // pred_check_branch
    %148 = sbr.rel (%p146) target = $region29
  $region28: #{fwd.41} parent=0 // pred_region
    %v149 = vld [vmem:[#allocation2] sm:$0xff]
    %v150 = vpack.c.bf16 %v149, %v149
    %v151 = vld [vmem:[%s3] sm:$0xf]
    %v152 = vld [vmem:[%s3 + $0x4] sm:$0xf]
    %v153 = vld [vmem:[%s3 + $0x8] sm:$0xf]
    %v154 = vld [vmem:[%s3 + $0xc] sm:$0xf]
    %v155 = vld [vmem:[%s3 + $0x10] sm:$0xf]
    %v156 = vld [vmem:[%s3 + $0x14] sm:$0xf]
    %v157 = vld [vmem:[%s3 + $0x18] sm:$0xf]
    %v158 = vld [vmem:[%s3 + $0x1c] sm:$0xf]
    %v159 = vld [vmem:[%s3 + $0x20] sm:$0xf]
    %v160 = vld [vmem:[%s3 + $0x24] sm:$0xf]
    %v161 = vld [vmem:[%s3 + $0x28] sm:$0xf]
    %v162 = vld [vmem:[%s3 + $0x2c] sm:$0xf]
    %v163 = vld [vmem:[%s3 + $0x30] sm:$0xf]
    %v164 = vld [vmem:[%s3 + $0x34] sm:$0xf]
    %v165 = vld [vmem:[%s3 + $0x38] sm:$0xf]
    %v166 = vld [vmem:[%s3 + $0x3c] sm:$0xf]
    %v167 = vld [vmem:[%s4] sm:$0x1]
    %v169 = vlaneseq
    %v170 = vshrl.u32 %v169, 7
    %v171 = vsub.s32 0, %v170
    %v172 = vrot.slane %v167, %v171
    %v190 = vunpack.c.l.b16 %v151
    %v191 = vunpack.c.l.b16 %v152
    %v192 = vunpack.c.l.b16 %v153
    %v193 = vunpack.c.l.b16 %v154
    %v194 = vunpack.c.l.b16 %v155
    %v195 = vunpack.c.l.b16 %v156
    %v196 = vunpack.c.l.b16 %v157
    %v197 = vunpack.c.l.b16 %v158
    %v198 = vunpack.c.l.b16 %v159
    %v199 = vunpack.c.l.b16 %v160
    %v200 = vunpack.c.l.b16 %v161
    %v201 = vunpack.c.l.b16 %v162
    %v202 = vunpack.c.l.b16 %v163
    %v203 = vunpack.c.l.b16 %v164
    %v204 = vunpack.c.l.b16 %v165
    %v205 = vunpack.c.l.b16 %v166
    %v206 = vpack.c.b16 %v191, %v190
    %v207 = vpack.c.b16 %v193, %v192
    %v208 = vpack.c.b16 %v195, %v194
    %v209 = vpack.c.b16 %v197, %v196
    %v210 = vpack.c.b16 %v199, %v198
    %v211 = vpack.c.b16 %v201, %v200
    %v212 = vpack.c.b16 %v203, %v202
    %v213 = vpack.c.b16 %v205, %v204
    %222 = vmatprep.subr.bf16.mxu0 0
    %223 = vmatpush1.bf16.msra.mxu0 %v213
    %224 = vmatprep.subr.bf16.mxu0 0
    %225 = vmatpush1.bf16.msra.mxu0 %v212
    %226 = vmatprep.subr.bf16.mxu0 0
    %227 = vmatpush1.bf16.msra.mxu0 %v211
    %228 = vmatprep.subr.bf16.mxu0 0
    %229 = vmatpush1.bf16.msra.mxu0 %v210
    %230 = vmatprep.subr.bf16.mxu0 0
    %231 = vmatpush1.bf16.msra.mxu0 %v209
    %232 = vmatprep.subr.bf16.mxu0 0
    %233 = vmatpush1.bf16.msra.mxu0 %v208
    %234 = vmatprep.subr.bf16.mxu0 0
    %235 = vmatpush1.bf16.msra.mxu0 %v207
    %236 = vmatprep.subr.bf16.mxu0 0
    %237 = vmatpush1.bf16.msra.mxu0 %v206
    %238 = vmatprep.subr.bf16.mxu0 0
    %239 = vmatpush2.bf16.msra.mxu0 0
    %240 = vmatprep.subr.bf16.mxu0 0
    %241 = vmatpush2.bf16.msra.mxu0 0
    %242 = vmatprep.subr.bf16.mxu0 0
    %243 = vmatpush2.bf16.msra.mxu0 0
    %244 = vmatprep.subr.bf16.mxu0 0
    %245 = vmatpush2.bf16.msra.mxu0 0
    %246 = vmatprep.subr.bf16.mxu0 0
    %247 = vmatpush2.bf16.msra.mxu0 0
    %248 = vmatprep.subr.bf16.mxu0 0
    %249 = vmatpush2.bf16.msra.mxu0 0
    %250 = vmatprep.subr.bf16.mxu0 0
    %251 = vmatpush2.bf16.msra.mxu0 0
    %252 = vmatprep.subr.bf16.mxu0 0
    %253 = vmatpush2.bf16.msra.mxu0 0
    %254 = vmatprep.mubr.bf16.mxu0 0
    %255 = vmatmul.mubr.bf16.gmra.mxu0 %v150
    %v256 = vpop.f32.mrf.mxu0
    %v257 = vadd.f32 %v172, %v256
    %v258 = vpop.f32.mrf.mxu0
    %v259 = vpop.f32.mrf.mxu0
    %v260 = vpop.f32.mrf.mxu0
    %261 = vdwg.mxu0
    %v262 = vld [vmem:[%s2] sm:$0xf]
    %v263 = vunpack.c.l.bf16 %v262
    %v264 = vadd.f32 %v257, %v263
    %265 = vst [vmem:[%s5] sm:$0xff] %v264
  $region29: #{fwd.41} parent=0 // pred_fallthru
    _
  // Predicated region
  $region30: #{fwd.41} parent=0 // pred_check
    _
  $region31: #{fwd.41} parent=0 // pred_check_branch
    %267 = sbr.rel (0) target = $region33
  $region32: #{fwd.41} parent=0 // pred_region
    _
  $region33: #{fwd.41} parent=0 // pred_fallthru
    _
  // Predicated region
  $region34: #{fwd.41} parent=0 // pred_check
    _
  $region35: #{fwd.41} parent=0 // pred_check_branch
    %269 = sbr.rel (0) target = $region37
  $region36: #{fwd.41} parent=0 // pred_region
    _
  $region37: #{fwd.41} parent=0 // pred_fallthru
    _

// kernel: fwd.24
$region0: #{fwd.24}
  #allocation0 [shape = 'u32[]', space=smem, size = 0x4, offset = 0x4, fixed_abs, tag = 'smem constant byte address 0x4 - core index']
  #allocation1 [shape = 'u32[144,128]{1,0:T(1,128)}', space=vmem, size = 0x12000, scoped, tag = 'internal scratch']
  %s0 = inlined_call_operand.vmem [shape: bf16[128,128], index: 0, kind: input, shape index: {}]
  %s1 = inlined_call_operand.vmem [shape: bf16[128,128], index: 1, kind: input, shape index: {}]
  %s2 = inlined_call_operand.vmem [shape: bf16[128,128], index: 2, kind: input, shape index: {}]
  %s3 = inlined_call_operand.vmem [shape: bf16[128,128], index: 3, kind: input, shape index: {}]
  %s4 = inlined_call_operand.vmem [shape: f32[1,128], index: 4, kind: input, shape index: {}]
  %s5 = inlined_call_operand.vmem [shape: f32[1,128], index: 5, kind: input, shape index: {}]
  %s6 = inlined_call_operand.vmem [shape: f32[1,128], index: 6, kind: input, shape index: {}]
  %s7 = inlined_call_operand.vmem [shape: bf16[128,128], index: 7, kind: input, shape index: {}]
  %s8 = inlined_call_operand.vmem [shape: f32[1,128], index: 8, kind: input, shape index: {}]
  %s9 = inlined_call_operand.vmem [shape: bf16[128,128], index: 9, kind: output, shape index: {}]
  %s10 = sld [smem:[#allocation0]]
  $region46: #{fwd.24} parent=0
    _
  %s12 = ssub.s32 1, %s10
  %s13 = scalar_select 0, %s12, %s10
  // Predicated region
  $region2: #{fwd.24} parent=0 // pred_check
    _
  $region3: #{fwd.24} parent=0 // pred_check_branch
    %15 = sbr.rel (0) target = $region5
  $region4: #{fwd.24} parent=0 // pred_region
    _
  $region5: #{fwd.24} parent=0 // pred_fallthru
    _
  // Predicated region
  $region6: #{fwd.24} parent=0 // pred_check
    _
  $region7: #{fwd.24} parent=0 // pred_check_branch
    %17 = sbr.rel (0) target = $region9
  $region8: #{fwd.24} parent=0 // pred_region
    _
  $region9: #{fwd.24} parent=0 // pred_fallthru
    _
  // Predicated region
  $region10: #{fwd.24} parent=0 // pred_check
    _
  $region11: #{fwd.24} parent=0 // pred_check_branch
    %19 = sbr.rel (0) target = $region13
  $region12: #{fwd.24} parent=0 // pred_region
    _
  $region13: #{fwd.24} parent=0 // pred_fallthru
    _
  // Predicated region
  $region14: #{fwd.24} parent=0 // pred_check
    _
  $region15: #{fwd.24} parent=0 // pred_check_branch
    %21 = sbr.rel (0) target = $region17
  $region16: #{fwd.24} parent=0 // pred_region
    _
  $region17: #{fwd.24} parent=0 // pred_fallthru
    _
  // Predicated region
  $region18: #{fwd.24} parent=0 // pred_check
    _
  $region19: #{fwd.24} parent=0 // pred_check_branch
    %23 = sbr.rel (0) target = $region21
  $region20: #{fwd.24} parent=0 // pred_region
    _
  $region21: #{fwd.24} parent=0 // pred_fallthru
    _
  // Predicated region
  $region22: #{fwd.24} parent=0 // pred_check
    _
  $region23: #{fwd.24} parent=0 // pred_check_branch
    %25 = sbr.rel (0) target = $region25
  $region24: #{fwd.24} parent=0 // pred_region
    _
  $region25: #{fwd.24} parent=0 // pred_fallthru
    _
  // Predicated region
  $region26: #{fwd.24} parent=0 // pred_check
    _
  $region27: #{fwd.24} parent=0 // pred_check_branch
    %27 = sbr.rel (0) target = $region29
  $region28: #{fwd.24} parent=0 // pred_region
    _
  $region29: #{fwd.24} parent=0 // pred_fallthru
    _
  // Predicated region
  $region30: #{fwd.24} parent=0 // pred_check
    _
  $region31: #{fwd.24} parent=0 // pred_check_branch
    %29 = sbr.rel (0) target = $region33
  $region32: #{fwd.24} parent=0 // pred_region
    _
  $region33: #{fwd.24} parent=0 // pred_fallthru
    _
  // Predicated region
  $region34: #{fwd.24} parent=0 // pred_check
    _
  $region35: #{fwd.24} parent=0 // pred_check_branch
    %31 = sbr.rel (0) target = $region37
  $region36: #{fwd.24} parent=0 // pred_region
    _
  $region37: #{fwd.24} parent=0 // pred_fallthru
    _
  %v33 = vld [vmem:[%s0] sm:$0xf]
  %v34 = vld [vmem:[%s0 + $0x4] sm:$0xf]
  %v35 = vld [vmem:[%s0 + $0x8] sm:$0xf]
  %v36 = vld [vmem:[%s0 + $0xc] sm:$0xf]
  %v37 = vld [vmem:[%s0 + $0x10] sm:$0xf]
  %v38 = vld [vmem:[%s0 + $0x14] sm:$0xf]
  %v39 = vld [vmem:[%s0 + $0x18] sm:$0xf]
  %v40 = vld [vmem:[%s0 + $0x1c] sm:$0xf]
  %v41 = vld [vmem:[%s0 + $0x20] sm:$0xf]
  %v42 = vld [vmem:[%s0 + $0x24] sm:$0xf]
  %v43 = vld [vmem:[%s0 + $0x28] sm:$0xf]
  %v44 = vld [vmem:[%s0 + $0x2c] sm:$0xf]
  %v45 = vld [vmem:[%s0 + $0x30] sm:$0xf]
  %v46 = vld [vmem:[%s0 + $0x34] sm:$0xf]
  %v47 = vld [vmem:[%s0 + $0x38] sm:$0xf]
  %v48 = vld [vmem:[%s0 + $0x3c] sm:$0xf]
  %v49 = vld [vmem:[%s1] sm:$0xf]
  %v50 = vld [vmem:[%s1 + $0x4] sm:$0xf]
  %v51 = vld [vmem:[%s1 + $0x8] sm:$0xf]
  %v52 = vld [vmem:[%s1 + $0xc] sm:$0xf]
  %v53 = vld [vmem:[%s1 + $0x10] sm:$0xf]
  %v54 = vld [vmem:[%s1 + $0x14] sm:$0xf]
  %v55 = vld [vmem:[%s1 + $0x18] sm:$0xf]
  %v56 = vld [vmem:[%s1 + $0x1c] sm:$0xf]
  %v57 = vld [vmem:[%s1 + $0x20] sm:$0xf]
  %v58 = vld [vmem:[%s1 + $0x24] sm:$0xf]
  %v59 = vld [vmem:[%s1 + $0x28] sm:$0xf]
  %v60 = vld [vmem:[%s1 + $0x2c] sm:$0xf]
  %v61 = vld [vmem:[%s1 + $0x30] sm:$0xf]
  %v62 = vld [vmem:[%s1 + $0x34] sm:$0xf]
  %v63 = vld [vmem:[%s1 + $0x38] sm:$0xf]
  %v64 = vld [vmem:[%s1 + $0x3c] sm:$0xf]
  %v65 = vunpack.c.l.bf16 %v33
  %v66 = vunpack.c.l.bf16 %v34
  %v67 = vunpack.c.l.bf16 %v35
  %v68 = vunpack.c.l.bf16 %v36
  %v69 = vunpack.c.l.bf16 %v37
  %v70 = vunpack.c.l.bf16 %v38
  %v71 = vunpack.c.l.bf16 %v39
  %v72 = vunpack.c.l.bf16 %v40
  %v73 = vunpack.c.l.bf16 %v41
  %v74 = vunpack.c.l.bf16 %v42
  %v75 = vunpack.c.l.bf16 %v43
  %v76 = vunpack.c.l.bf16 %v44
  %v77 = vunpack.c.l.bf16 %v45
  %v78 = vunpack.c.l.bf16 %v46
  %v79 = vunpack.c.l.bf16 %v47
  %v80 = vunpack.c.l.bf16 %v48
  %v81 = vunpack.c.l.bf16 %v49
  %v82 = vunpack.c.l.bf16 %v50
  %v83 = vunpack.c.l.bf16 %v51
  %v84 = vunpack.c.l.bf16 %v52
  %v85 = vunpack.c.l.bf16 %v53
  %v86 = vunpack.c.l.bf16 %v54
  %v87 = vunpack.c.l.bf16 %v55
  %v88 = vunpack.c.l.bf16 %v56
  %v89 = vunpack.c.l.bf16 %v57
  %v90 = vunpack.c.l.bf16 %v58
  %v91 = vunpack.c.l.bf16 %v59
  %v92 = vunpack.c.l.bf16 %v60
  %v93 = vunpack.c.l.bf16 %v61
  %v94 = vunpack.c.l.bf16 %v62
  %v95 = vunpack.c.l.bf16 %v63
  %v96 = vunpack.c.l.bf16 %v64
  %v97 = vsub.f32 %v65, %v81
  %v98 = vsub.f32 %v66, %v82
  %v99 = vsub.f32 %v67, %v83
  %v100 = vsub.f32 %v68, %v84
  %v101 = vsub.f32 %v69, %v85
  %v102 = vsub.f32 %v70, %v86
  %v103 = vsub.f32 %v71, %v87
  %v104 = vsub.f32 %v72, %v88
  %v105 = vsub.f32 %v73, %v89
  %v106 = vsub.f32 %v74, %v90
  %v107 = vsub.f32 %v75, %v91
  %v108 = vsub.f32 %v76, %v92
  %v109 = vsub.f32 %v77, %v93
  %v110 = vsub.f32 %v78, %v94
  %v111 = vsub.f32 %v79, %v95
  %v112 = vsub.f32 %v80, %v96
  %v113 = vmul.f32 %v97, %v97
  %v114 = vmul.f32 %v98, %v98
  %v115 = vmul.f32 %v99, %v99
  %v116 = vmul.f32 %v100, %v100
  %v117 = vmul.f32 %v101, %v101
  %v118 = vmul.f32 %v102, %v102
  %v119 = vmul.f32 %v103, %v103
  %v120 = vmul.f32 %v104, %v104
  %v121 = vmul.f32 %v105, %v105
  %v122 = vmul.f32 %v106, %v106
  %v123 = vmul.f32 %v107, %v107
  %v124 = vmul.f32 %v108, %v108
  %v125 = vmul.f32 %v109, %v109
  %v126 = vmul.f32 %v110, %v110
  %v127 = vmul.f32 %v111, %v111
  %v128 = vmul.f32 %v112, %v112
  %129 = vadd.xlane.f32.xlu0 %v113
  %v130 = vpop.xlane.xlu0 %129
  %131 = vadd.xlane.f32.xlu0 %v114
  %v132 = vpop.xlane.xlu0 %131
  %133 = vadd.xlane.f32.xlu0 %v115
  %v134 = vpop.xlane.xlu0 %133
  %135 = vadd.xlane.f32.xlu0 %v116
  %v136 = vpop.xlane.xlu0 %135
  %137 = vadd.xlane.f32.xlu0 %v117
  %v138 = vpop.xlane.xlu0 %137
  %139 = vadd.xlane.f32.xlu0 %v118
  %v140 = vpop.xlane.xlu0 %139
  %141 = vadd.xlane.f32.xlu0 %v119
  %v142 = vpop.xlane.xlu0 %141
  %143 = vadd.xlane.f32.xlu0 %v120
  %v144 = vpop.xlane.xlu0 %143
  %145 = vadd.xlane.f32.xlu0 %v121
  %v146 = vpop.xlane.xlu0 %145
  %147 = vadd.xlane.f32.xlu0 %v122
  %v148 = vpop.xlane.xlu0 %147
  %149 = vadd.xlane.f32.xlu0 %v123
  %v150 = vpop.xlane.xlu0 %149
  %151 = vadd.xlane.f32.xlu0 %v124
  %v152 = vpop.xlane.xlu0 %151
  %153 = vadd.xlane.f32.xlu0 %v125
  %v154 = vpop.xlane.xlu0 %153
  %155 = vadd.xlane.f32.xlu0 %v126
  %v156 = vpop.xlane.xlu0 %155
  %157 = vadd.xlane.f32.xlu0 %v127
  %v158 = vpop.xlane.xlu0 %157
  %159 = vadd.xlane.f32.xlu0 %v128
  %v160 = vpop.xlane.xlu0 %159
  %v161 = vrsqrt.pop %v130
  %v162 = vmul.f32 %v130, %v161
  %vm163 = vcmp.eq.f32.partialorder %v130, inf
  %v164 = vsel %vm163, %v130, %v162
  %vm165 = vcmp.eq.f32.partialorder %v130, 0.0
  %v166 = vand.u32 %v130, 2147483648
  %v167 = vsel %vm165, %v166, %v164
  %v168 = vrsqrt.pop %v132
  %v169 = vmul.f32 %v132, %v168
  %vm170 = vcmp.eq.f32.partialorder %v132, inf
  %v171 = vsel %vm170, %v132, %v169
  %vm172 = vcmp.eq.f32.partialorder %v132, 0.0
  %v173 = vand.u32 %v132, 2147483648
  %v174 = vsel %vm172, %v173, %v171
  %v175 = vrsqrt.pop %v134
  %v176 = vmul.f32 %v134, %v175
  %vm177 = vcmp.eq.f32.partialorder %v134, inf
  %v178 = vsel %vm177, %v134, %v176
  %vm179 = vcmp.eq.f32.partialorder %v134, 0.0
  %v180 = vand.u32 %v134, 2147483648
  %v181 = vsel %vm179, %v180, %v178
  %v182 = vrsqrt.pop %v136
  %v183 = vmul.f32 %v136, %v182
  %vm184 = vcmp.eq.f32.partialorder %v136, inf
  %v185 = vsel %vm184, %v136, %v183
  %vm186 = vcmp.eq.f32.partialorder %v136, 0.0
  %v187 = vand.u32 %v136, 2147483648
  %v188 = vsel %vm186, %v187, %v185
  %v189 = vrsqrt.pop %v138
  %v190 = vmul.f32 %v138, %v189
  %vm191 = vcmp.eq.f32.partialorder %v138, inf
  %v192 = vsel %vm191, %v138, %v190
  %vm193 = vcmp.eq.f32.partialorder %v138, 0.0
  %v194 = vand.u32 %v138, 2147483648
  %v195 = vsel %vm193, %v194, %v192
  %v196 = vrsqrt.pop %v140
  %v197 = vmul.f32 %v140, %v196
  %vm198 = vcmp.eq.f32.partialorder %v140, inf
  %v199 = vsel %vm198, %v140, %v197
  %vm200 = vcmp.eq.f32.partialorder %v140, 0.0
  %v201 = vand.u32 %v140, 2147483648
  %v202 = vsel %vm200, %v201, %v199
  %v203 = vrsqrt.pop %v142
  %v204 = vmul.f32 %v142, %v203
  %vm205 = vcmp.eq.f32.partialorder %v142, inf
  %v206 = vsel %vm205, %v142, %v204
  %vm207 = vcmp.eq.f32.partialorder %v142, 0.0
  %v208 = vand.u32 %v142, 2147483648
  %v209 = vsel %vm207, %v208, %v206
  %v210 = vrsqrt.pop %v144
  %v211 = vmul.f32 %v144, %v210
  %vm212 = vcmp.eq.f32.partialorder %v144, inf
  %v213 = vsel %vm212, %v144, %v211
  %vm214 = vcmp.eq.f32.partialorder %v144, 0.0
  %v215 = vand.u32 %v144, 2147483648
  %v216 = vsel %vm214, %v215, %v213
  %v217 = vrsqrt.pop %v146
  %v218 = vmul.f32 %v146, %v217
  %vm219 = vcmp.eq.f32.partialorder %v146, inf
  %v220 = vsel %vm219, %v146, %v218
  %vm221 = vcmp.eq.f32.partialorder %v146, 0.0
  %v222 = vand.u32 %v146, 2147483648
  %v223 = vsel %vm221, %v222, %v220
  %v224 = vrsqrt.pop %v148
  %v225 = vmul.f32 %v148, %v224
  %vm226 = vcmp.eq.f32.partialorder %v148, inf
  %v227 = vsel %vm226, %v148, %v225
  %vm228 = vcmp.eq.f32.partialorder %v148, 0.0
  %v229 = vand.u32 %v148, 2147483648
  %v230 = vsel %vm228, %v229, %v227
  %v231 = vrsqrt.pop %v150
  %v232 = vmul.f32 %v150, %v231
  %vm233 = vcmp.eq.f32.partialorder %v150, inf
  %v234 = vsel %vm233, %v150, %v232
  %vm235 = vcmp.eq.f32.partialorder %v150, 0.0
  %v236 = vand.u32 %v150, 2147483648
  %v237 = vsel %vm235, %v236, %v234
  %v238 = vrsqrt.pop %v152
  %v239 = vmul.f32 %v152, %v238
  %vm240 = vcmp.eq.f32.partialorder %v152, inf
  %v241 = vsel %vm240, %v152, %v239
  %vm242 = vcmp.eq.f32.partialorder %v152, 0.0
  %v243 = vand.u32 %v152, 2147483648
  %v244 = vsel %vm242, %v243, %v241
  %v245 = vrsqrt.pop %v154
  %v246 = vmul.f32 %v154, %v245
  %vm247 = vcmp.eq.f32.partialorder %v154, inf
  %v248 = vsel %vm247, %v154, %v246
  %vm249 = vcmp.eq.f32.partialorder %v154, 0.0
  %v250 = vand.u32 %v154, 2147483648
  %v251 = vsel %vm249, %v250, %v248
  %v252 = vrsqrt.pop %v156
  %v253 = vmul.f32 %v156, %v252
  %vm254 = vcmp.eq.f32.partialorder %v156, inf
  %v255 = vsel %vm254, %v156, %v253
  %vm256 = vcmp.eq.f32.partialorder %v156, 0.0
  %v257 = vand.u32 %v156, 2147483648
  %v258 = vsel %vm256, %v257, %v255
  %v259 = vrsqrt.pop %v158
  %v260 = vmul.f32 %v158, %v259
  %vm261 = vcmp.eq.f32.partialorder %v158, inf
  %v262 = vsel %vm261, %v158, %v260
  %vm263 = vcmp.eq.f32.partialorder %v158, 0.0
  %v264 = vand.u32 %v158, 2147483648
  %v265 = vsel %vm263, %v264, %v262
  %v266 = vrsqrt.pop %v160
  %v267 = vmul.f32 %v160, %v266
  %vm268 = vcmp.eq.f32.partialorder %v160, inf
  %v269 = vsel %vm268, %v160, %v267
  %vm270 = vcmp.eq.f32.partialorder %v160, 0.0
  %v271 = vand.u32 %v160, 2147483648
  %v272 = vsel %vm270, %v271, %v269
  %v273 = vmul.f32 %v65, %v81
  %v274 = vmul.f32 %v66, %v82
  %v275 = vmul.f32 %v67, %v83
  %v276 = vmul.f32 %v68, %v84
  %v277 = vmul.f32 %v69, %v85
  %v278 = vmul.f32 %v70, %v86
  %v279 = vmul.f32 %v71, %v87
  %v280 = vmul.f32 %v72, %v88
  %v281 = vmul.f32 %v73, %v89
  %v282 = vmul.f32 %v74, %v90
  %v283 = vmul.f32 %v75, %v91
  %v284 = vmul.f32 %v76, %v92
  %v285 = vmul.f32 %v77, %v93
  %v286 = vmul.f32 %v78, %v94
  %v287 = vmul.f32 %v79, %v95
  %v288 = vmul.f32 %v80, %v96
  %289 = vadd.xlane.f32.xlu0 %v273
  %v290 = vpop.xlane.xlu0 %289
  %291 = vadd.xlane.f32.xlu0 %v274
  %v292 = vpop.xlane.xlu0 %291
  %293 = vadd.xlane.f32.xlu0 %v275
  %v294 = vpop.xlane.xlu0 %293
  %295 = vadd.xlane.f32.xlu0 %v276
  %v296 = vpop.xlane.xlu0 %295
  %297 = vadd.xlane.f32.xlu0 %v277
  %v298 = vpop.xlane.xlu0 %297
  %299 = vadd.xlane.f32.xlu0 %v278
  %v300 = vpop.xlane.xlu0 %299
  %301 = vadd.xlane.f32.xlu0 %v279
  %v302 = vpop.xlane.xlu0 %301
  %303 = vadd.xlane.f32.xlu0 %v280
  %v304 = vpop.xlane.xlu0 %303
  %305 = vadd.xlane.f32.xlu0 %v281
  %v306 = vpop.xlane.xlu0 %305
  %307 = vadd.xlane.f32.xlu0 %v282
  %v308 = vpop.xlane.xlu0 %307
  %309 = vadd.xlane.f32.xlu0 %v283
  %v310 = vpop.xlane.xlu0 %309
  %311 = vadd.xlane.f32.xlu0 %v284
  %v312 = vpop.xlane.xlu0 %311
  %313 = vadd.xlane.f32.xlu0 %v285
  %v314 = vpop.xlane.xlu0 %313
  %315 = vadd.xlane.f32.xlu0 %v286
  %v316 = vpop.xlane.xlu0 %315
  %317 = vadd.xlane.f32.xlu0 %v287
  %v318 = vpop.xlane.xlu0 %317
  %319 = vadd.xlane.f32.xlu0 %v288
  %v320 = vpop.xlane.xlu0 %319
  %v321 = vmul.f32 %v167, 2.0
  %v322 = vmul.f32 %v174, 2.0
  %v323 = vmul.f32 %v181, 2.0
  %v324 = vmul.f32 %v188, 2.0
  %v325 = vmul.f32 %v195, 2.0
  %v326 = vmul.f32 %v202, 2.0
  %v327 = vmul.f32 %v209, 2.0
  %v328 = vmul.f32 %v216, 2.0
  %v329 = vmul.f32 %v223, 2.0
  %v330 = vmul.f32 %v230, 2.0
  %v331 = vmul.f32 %v237, 2.0
  %v332 = vmul.f32 %v244, 2.0
  %v333 = vmul.f32 %v251, 2.0
  %v334 = vmul.f32 %v258, 2.0
  %v335 = vmul.f32 %v265, 2.0
  %v336 = vmul.f32 %v272, 2.0
  %v337 = vmul.f32 %v167, %v167
  %v338 = vmul.f32 %v174, %v174
  %v339 = vmul.f32 %v181, %v181
  %v340 = vmul.f32 %v188, %v188
  %v341 = vmul.f32 %v195, %v195
  %v342 = vmul.f32 %v202, %v202
  %v343 = vmul.f32 %v209, %v209
  %v344 = vmul.f32 %v216, %v216
  %v345 = vmul.f32 %v223, %v223
  %v346 = vmul.f32 %v230, %v230
  %v347 = vmul.f32 %v237, %v237
  %v348 = vmul.f32 %v244, %v244
  %v349 = vmul.f32 %v251, %v251
  %v350 = vmul.f32 %v258, %v258
  %v351 = vmul.f32 %v265, %v265
  %v352 = vmul.f32 %v272, %v272
  %v353 = vmul.f32 %v337, %v167
  %v354 = vmul.f32 %v338, %v174
  %v355 = vmul.f32 %v339, %v181
  %v356 = vmul.f32 %v340, %v188
  %v357 = vmul.f32 %v341, %v195
  %v358 = vmul.f32 %v342, %v202
  %v359 = vmul.f32 %v343, %v209
  %v360 = vmul.f32 %v344, %v216
  %v361 = vmul.f32 %v345, %v223
  %v362 = vmul.f32 %v346, %v230
  %v363 = vmul.f32 %v347, %v237
  %v364 = vmul.f32 %v348, %v244
  %v365 = vmul.f32 %v349, %v251
  %v366 = vmul.f32 %v350, %v258
  %v367 = vmul.f32 %v351, %v265
  %v368 = vmul.f32 %v352, %v272
  %v369 = vmul.f32 %v353, 0.33333334
  %v370 = vmul.f32 %v354, 0.33333334
  %v371 = vmul.f32 %v355, 0.33333334
  %v372 = vmul.f32 %v356, 0.33333334
  %v373 = vmul.f32 %v357, 0.33333334
  %v374 = vmul.f32 %v358, 0.33333334
  %v375 = vmul.f32 %v359, 0.33333334
  %v376 = vmul.f32 %v360, 0.33333334
  %v377 = vmul.f32 %v361, 0.33333334
  %v378 = vmul.f32 %v362, 0.33333334
  %v379 = vmul.f32 %v363, 0.33333334
  %v380 = vmul.f32 %v364, 0.33333334
  %v381 = vmul.f32 %v365, 0.33333334
  %v382 = vmul.f32 %v366, 0.33333334
  %v383 = vmul.f32 %v367, 0.33333334
  %v384 = vmul.f32 %v368, 0.33333334
  %v385 = vmul.f32 %v290, %v167
  %v386 = vmul.f32 %v292, %v174
  %v387 = vmul.f32 %v294, %v181
  %v388 = vmul.f32 %v296, %v188
  %v389 = vmul.f32 %v298, %v195
  %v390 = vmul.f32 %v300, %v202
  %v391 = vmul.f32 %v302, %v209
  %v392 = vmul.f32 %v304, %v216
  %v393 = vmul.f32 %v306, %v223
  %v394 = vmul.f32 %v308, %v230
  %v395 = vmul.f32 %v310, %v237
  %v396 = vmul.f32 %v312, %v244
  %v397 = vmul.f32 %v314, %v251
  %v398 = vmul.f32 %v316, %v258
  %v399 = vmul.f32 %v318, %v265
  %v400 = vmul.f32 %v320, %v272
  %v401 = vmul.f32 %v385, %v167
  %v402 = vmul.f32 %v386, %v174
  %v403 = vmul.f32 %v387, %v181
  %v404 = vmul.f32 %v388, %v188
  %v405 = vmul.f32 %v389, %v195
  %v406 = vmul.f32 %v390, %v202
  %v407 = vmul.f32 %v391, %v209
  %v408 = vmul.f32 %v392, %v216
  %v409 = vmul.f32 %v393, %v223
  %v410 = vmul.f32 %v394, %v230
  %v411 = vmul.f32 %v395, %v237
  %v412 = vmul.f32 %v396, %v244
  %v413 = vmul.f32 %v397, %v251
  %v414 = vmul.f32 %v398, %v258
  %v415 = vmul.f32 %v399, %v265
  %v416 = vmul.f32 %v400, %v272
  %v417 = vadd.f32 %v369, %v401
  %v418 = vadd.f32 %v370, %v402
  %v419 = vadd.f32 %v371, %v403
  %v420 = vadd.f32 %v372, %v404
  %v421 = vadd.f32 %v373, %v405
  %v422 = vadd.f32 %v374, %v406
  %v423 = vadd.f32 %v375, %v407
  %v424 = vadd.f32 %v376, %v408
  %v425 = vadd.f32 %v377, %v409
  %v426 = vadd.f32 %v378, %v410
  %v427 = vadd.f32 %v379, %v411
  %v428 = vadd.f32 %v380, %v412
  %v429 = vadd.f32 %v381, %v413
  %v430 = vadd.f32 %v382, %v414
  %v431 = vadd.f32 %v383, %v415
  %v432 = vadd.f32 %v384, %v416
  %v433 = vmul.f32 %v417, -2.0
  %v434 = vmul.f32 %v418, -2.0
  %v435 = vmul.f32 %v419, -2.0
  %v436 = vmul.f32 %v420, -2.0
  %v437 = vmul.f32 %v421, -2.0
  %v438 = vmul.f32 %v422, -2.0
  %v439 = vmul.f32 %v423, -2.0
  %v440 = vmul.f32 %v424, -2.0
  %v441 = vmul.f32 %v425, -2.0
  %v442 = vmul.f32 %v426, -2.0
  %v443 = vmul.f32 %v427, -2.0
  %v444 = vmul.f32 %v428, -2.0
  %v445 = vmul.f32 %v429, -2.0
  %v446 = vmul.f32 %v430, -2.0
  %v447 = vmul.f32 %v431, -2.0
  %v448 = vmul.f32 %v432, -2.0
  %v449 = vsub.f32 %v321, %v433
  %v450 = vsub.f32 %v322, %v434
  %v451 = vsub.f32 %v323, %v435
  %v452 = vsub.f32 %v324, %v436
  %v453 = vsub.f32 %v325, %v437
  %v454 = vsub.f32 %v326, %v438
  %v455 = vsub.f32 %v327, %v439
  %v456 = vsub.f32 %v328, %v440
  %v457 = vsub.f32 %v329, %v441
  %v458 = vsub.f32 %v330, %v442
  %v459 = vsub.f32 %v331, %v443
  %v460 = vsub.f32 %v332, %v444
  %v461 = vsub.f32 %v333, %v445
  %v462 = vsub.f32 %v334, %v446
  %v463 = vsub.f32 %v335, %v447
  %v464 = vsub.f32 %v336, %v448
  %v465 = vmul.f32 %v449, 1.442695
  %v466 = vpow.pop %v465
  %v467 = vmul.f32 %v450, 1.442695
  %v468 = vpow.pop %v467
  %v469 = vmul.f32 %v451, 1.442695
  %v470 = vpow.pop %v469
  %v471 = vmul.f32 %v452, 1.442695
  %v472 = vpow.pop %v471
  %v473 = vmul.f32 %v453, 1.442695
  %v474 = vpow.pop %v473
  %v475 = vmul.f32 %v454, 1.442695
  %v476 = vpow.pop %v475
  %v477 = vmul.f32 %v455, 1.442695
  %v478 = vpow.pop %v477
  %v479 = vmul.f32 %v456, 1.442695
  %v480 = vpow.pop %v479
  %v481 = vmul.f32 %v457, 1.442695
  %v482 = vpow.pop %v481
  %v483 = vmul.f32 %v458, 1.442695
  %v484 = vpow.pop %v483
  %v485 = vmul.f32 %v459, 1.442695
  %v486 = vpow.pop %v485
  %v487 = vmul.f32 %v460, 1.442695
  %v488 = vpow.pop %v487
  %v489 = vmul.f32 %v461, 1.442695
  %v490 = vpow.pop %v489
  %v491 = vmul.f32 %v462, 1.442695
  %v492 = vpow.pop %v491
  %v493 = vmul.f32 %v463, 1.442695
  %v494 = vpow.pop %v493
  %v495 = vmul.f32 %v464, 1.442695
  %v496 = vpow.pop %v495
  %v497 = vadd.f32 %v466, 1.0
  %v498 = vadd.f32 %v468, 1.0
  %v499 = vadd.f32 %v470, 1.0
  %v500 = vadd.f32 %v472, 1.0
  %v501 = vadd.f32 %v474, 1.0
  %v502 = vadd.f32 %v476, 1.0
  %v503 = vadd.f32 %v478, 1.0
  %v504 = vadd.f32 %v480, 1.0
  %v505 = vadd.f32 %v482, 1.0
  %v506 = vadd.f32 %v484, 1.0
  %v507 = vadd.f32 %v486, 1.0
  %v508 = vadd.f32 %v488, 1.0
  %v509 = vadd.f32 %v490, 1.0
  %v510 = vadd.f32 %v492, 1.0
  %v511 = vadd.f32 %v494, 1.0
  %v512 = vadd.f32 %v496, 1.0
  %v513 = vrcp.pop %v497
  %v514 = vmul.f32 1.0, %v513
  %v515 = vrcp.pop %v498
  %v516 = vmul.f32 1.0, %v515
  %v517 = vrcp.pop %v499
  %v518 = vmul.f32 1.0, %v517
  %v519 = vrcp.pop %v500
  %v520 = vmul.f32 1.0, %v519
  %v521 = vrcp.pop %v501
  %v522 = vmul.f32 1.0, %v521
  %v523 = vrcp.pop %v502
  %v524 = vmul.f32 1.0, %v523
  %v525 = vrcp.pop %v503
  %v526 = vmul.f32 1.0, %v525
  %v527 = vrcp.pop %v504
  %v528 = vmul.f32 1.0, %v527
  %v529 = vrcp.pop %v505
  %v530 = vmul.f32 1.0, %v529
  %v531 = vrcp.pop %v506
  %v532 = vmul.f32 1.0, %v531
  %v533 = vrcp.pop %v507
  %v534 = vmul.f32 1.0, %v533
  %v535 = vrcp.pop %v508
  %v536 = vmul.f32 1.0, %v535
  %v537 = vrcp.pop %v509
  %v538 = vmul.f32 1.0, %v537
  %v539 = vrcp.pop %v510
  %v540 = vmul.f32 1.0, %v539
  %v541 = vrcp.pop %v511
  %v542 = vmul.f32 1.0, %v541
  %v543 = vrcp.pop %v512
  %v544 = vmul.f32 1.0, %v543
  %v545 = vadd.f32 %v514, 1.0
  %v546 = vadd.f32 %v516, 1.0
  %v547 = vadd.f32 %v518, 1.0
  %v548 = vadd.f32 %v520, 1.0
  %v549 = vadd.f32 %v522, 1.0
  %v550 = vadd.f32 %v524, 1.0
  %v551 = vadd.f32 %v526, 1.0
  %v552 = vadd.f32 %v528, 1.0
  %v553 = vadd.f32 %v530, 1.0
  %v554 = vadd.f32 %v532, 1.0
  %v555 = vadd.f32 %v534, 1.0
  %v556 = vadd.f32 %v536, 1.0
  %v557 = vadd.f32 %v538, 1.0
  %v558 = vadd.f32 %v540, 1.0
  %v559 = vadd.f32 %v542, 1.0
  %v560 = vadd.f32 %v544, 1.0
  %v561 = vmul.f32 %v545, %v65
  %v562 = vmul.f32 %v546, %v66
  %v563 = vmul.f32 %v547, %v67
  %v564 = vmul.f32 %v548, %v68
  %v565 = vmul.f32 %v549, %v69
  %v566 = vmul.f32 %v550, %v70
  %v567 = vmul.f32 %v551, %v71
  %v568 = vmul.f32 %v552, %v72
  %v569 = vmul.f32 %v553, %v73
  %v570 = vmul.f32 %v554, %v74
  %v571 = vmul.f32 %v555, %v75
  %v572 = vmul.f32 %v556, %v76
  %v573 = vmul.f32 %v557, %v77
  %v574 = vmul.f32 %v558, %v78
  %v575 = vmul.f32 %v559, %v79
  %v576 = vmul.f32 %v560, %v80
  %v577 = vpack.c.bf16 %v562, %v561
  %v578 = vpack.c.bf16 %v564, %v563
  %v579 = vpack.c.bf16 %v566, %v565
  %v580 = vpack.c.bf16 %v568, %v567
  %v581 = vpack.c.bf16 %v570, %v569
  %v582 = vpack.c.bf16 %v572, %v571
  %v583 = vpack.c.bf16 %v574, %v573
  %v584 = vpack.c.bf16 %v576, %v575
  %v585 = vld [vmem:[%s2] sm:$0xf]
  %v586 = vld [vmem:[%s2 + $0x4] sm:$0xf]
  %v587 = vld [vmem:[%s2 + $0x8] sm:$0xf]
  %v588 = vld [vmem:[%s2 + $0xc] sm:$0xf]
  %v589 = vld [vmem:[%s2 + $0x10] sm:$0xf]
  %v590 = vld [vmem:[%s2 + $0x14] sm:$0xf]
  %v591 = vld [vmem:[%s2 + $0x18] sm:$0xf]
  %v592 = vld [vmem:[%s2 + $0x1c] sm:$0xf]
  %v593 = vld [vmem:[%s2 + $0x20] sm:$0xf]
  %v594 = vld [vmem:[%s2 + $0x24] sm:$0xf]
  %v595 = vld [vmem:[%s2 + $0x28] sm:$0xf]
  %v596 = vld [vmem:[%s2 + $0x2c] sm:$0xf]
  %v597 = vld [vmem:[%s2 + $0x30] sm:$0xf]
  %v598 = vld [vmem:[%s2 + $0x34] sm:$0xf]
  %v599 = vld [vmem:[%s2 + $0x38] sm:$0xf]
  %v600 = vld [vmem:[%s2 + $0x3c] sm:$0xf]
  %v601 = vld [vmem:[%s3] sm:$0xf]
  %v602 = vld [vmem:[%s3 + $0x4] sm:$0xf]
  %v603 = vld [vmem:[%s3 + $0x8] sm:$0xf]
  %v604 = vld [vmem:[%s3 + $0xc] sm:$0xf]
  %v605 = vld [vmem:[%s3 + $0x10] sm:$0xf]
  %v606 = vld [vmem:[%s3 + $0x14] sm:$0xf]
  %v607 = vld [vmem:[%s3 + $0x18] sm:$0xf]
  %v608 = vld [vmem:[%s3 + $0x1c] sm:$0xf]
  %v609 = vld [vmem:[%s3 + $0x20] sm:$0xf]
  %v610 = vld [vmem:[%s3 + $0x24] sm:$0xf]
  %v611 = vld [vmem:[%s3 + $0x28] sm:$0xf]
  %v612 = vld [vmem:[%s3 + $0x2c] sm:$0xf]
  %v613 = vld [vmem:[%s3 + $0x30] sm:$0xf]
  %v614 = vld [vmem:[%s3 + $0x34] sm:$0xf]
  %v615 = vld [vmem:[%s3 + $0x38] sm:$0xf]
  %v616 = vld [vmem:[%s3 + $0x3c] sm:$0xf]
  %v633 = vunpack.c.l.b16 %v49
  %v634 = vunpack.c.l.b16 %v50
  %v635 = vunpack.c.l.b16 %v51
  %v636 = vunpack.c.l.b16 %v52
  %v637 = vunpack.c.l.b16 %v53
  %v638 = vunpack.c.l.b16 %v54
  %v639 = vunpack.c.l.b16 %v55
  %v640 = vunpack.c.l.b16 %v56
  %v641 = vunpack.c.l.b16 %v57
  %v642 = vunpack.c.l.b16 %v58
  %v643 = vunpack.c.l.b16 %v59
  %v644 = vunpack.c.l.b16 %v60
  %v645 = vunpack.c.l.b16 %v61
  %v646 = vunpack.c.l.b16 %v62
  %v647 = vunpack.c.l.b16 %v63
  %v648 = vunpack.c.l.b16 %v64
  %v649 = vpack.c.b16 %v634, %v633
  %v650 = vpack.c.b16 %v636, %v635
  %v651 = vpack.c.b16 %v638, %v637
  %v652 = vpack.c.b16 %v640, %v639
  %v653 = vpack.c.b16 %v642, %v641
  %v654 = vpack.c.b16 %v644, %v643
  %v655 = vpack.c.b16 %v646, %v645
  %v656 = vpack.c.b16 %v648, %v647
  %v681 = vunpack.c.l.b16 %v601
  %v682 = vunpack.c.l.b16 %v602
  %v683 = vunpack.c.l.b16 %v603
  %v684 = vunpack.c.l.b16 %v604
  %v685 = vunpack.c.l.b16 %v605
  %v686 = vunpack.c.l.b16 %v606
  %v687 = vunpack.c.l.b16 %v607
  %v688 = vunpack.c.l.b16 %v608
  %v689 = vunpack.c.l.b16 %v609
  %v690 = vunpack.c.l.b16 %v610
  %v691 = vunpack.c.l.b16 %v611
  %v692 = vunpack.c.l.b16 %v612
  %v693 = vunpack.c.l.b16 %v613
  %v694 = vunpack.c.l.b16 %v614
  %v695 = vunpack.c.l.b16 %v615
  %v696 = vunpack.c.l.b16 %v616
  %v697 = vpack.c.b16 %v682, %v681
  %v698 = vpack.c.b16 %v684, %v683
  %v699 = vpack.c.b16 %v686, %v685
  %v700 = vpack.c.b16 %v688, %v687
  %v701 = vpack.c.b16 %v690, %v689
  %v702 = vpack.c.b16 %v692, %v691
  %v703 = vpack.c.b16 %v694, %v693
  %v704 = vpack.c.b16 %v696, %v695
  %713 = vmatprep.subr.bf16.mxu0 0
  %714 = vmatpush1.bf16.msra.mxu0 %v704
  %715 = vmatprep.subr.bf16.mxu0 0
  %716 = vmatpush1.bf16.msra.mxu0 %v703
  %717 = vmatprep.subr.bf16.mxu0 0
  %718 = vmatpush1.bf16.msra.mxu0 %v702
  %719 = vmatprep.subr.bf16.mxu0 0
  %720 = vmatpush1.bf16.msra.mxu0 %v701
  %721 = vmatprep.subr.bf16.mxu0 0
  %722 = vmatpush1.bf16.msra.mxu0 %v700
  %723 = vmatprep.subr.bf16.mxu0 0
  %724 = vmatpush1.bf16.msra.mxu0 %v699
  %725 = vmatprep.subr.bf16.mxu0 0
  %726 = vmatpush1.bf16.msra.mxu0 %v698
  %727 = vmatprep.subr.bf16.mxu0 0
  %728 = vmatpush1.bf16.msra.mxu0 %v697
  %729 = vmatprep.subr.bf16.mxu0 0
  %730 = vmatpush2.bf16.msra.mxu0 0
  %731 = vmatprep.subr.bf16.mxu0 0
  %732 = vmatpush2.bf16.msra.mxu0 0
  %733 = vmatprep.subr.bf16.mxu0 0
  %734 = vmatpush2.bf16.msra.mxu0 0
  %735 = vmatprep.subr.bf16.mxu0 0
  %736 = vmatpush2.bf16.msra.mxu0 0
  %737 = vmatprep.subr.bf16.mxu0 0
  %738 = vmatpush2.bf16.msra.mxu0 0
  %739 = vmatprep.subr.bf16.mxu0 0
  %740 = vmatpush2.bf16.msra.mxu0 0
  %741 = vmatprep.subr.bf16.mxu0 0
  %742 = vmatpush2.bf16.msra.mxu0 0
  %743 = vmatprep.subr.bf16.mxu0 0
  %744 = vmatpush2.bf16.msra.mxu0 0
  %745 = vmatprep.mubr.bf16.mxu0 0
  %746 = vmatmul.mubr.bf16.gmra.mxu0 %v649
  %v747 = vpop.f32.mrf.mxu0
  %v748 = vadd.f32 0.0, %v747
  %v749 = vpop.f32.mrf.mxu0
  %v750 = vpop.f32.mrf.mxu0
  %v751 = vadd.f32 0.0, %v750
  %v752 = vpop.f32.mrf.mxu0
  %753 = vmatprep.mubr.bf16.mxu0 0
  %754 = vmatmul.mubr.bf16.gmra.mxu0 %v650
  %v755 = vpop.f32.mrf.mxu0
  %v756 = vadd.f32 0.0, %v755
  %v757 = vpop.f32.mrf.mxu0
  %v758 = vpop.f32.mrf.mxu0
  %v759 = vadd.f32 0.0, %v758
  %v760 = vpop.f32.mrf.mxu0
  %761 = vmatprep.mubr.bf16.mxu0 0
  %762 = vmatmul.mubr.bf16.gmra.mxu0 %v651
  %v763 = vpop.f32.mrf.mxu0
  %v764 = vadd.f32 0.0, %v763
  %v765 = vpop.f32.mrf.mxu0
  %v766 = vpop.f32.mrf.mxu0
  %v767 = vadd.f32 0.0, %v766
  %v768 = vpop.f32.mrf.mxu0
  %769 = vmatprep.mubr.bf16.mxu0 0
  %770 = vmatmul.mubr.bf16.gmra.mxu0 %v652
  %v771 = vpop.f32.mrf.mxu0
  %v772 = vadd.f32 0.0, %v771
  %v773 = vpop.f32.mrf.mxu0
  %v774 = vpop.f32.mrf.mxu0
  %v775 = vadd.f32 0.0, %v774
  %v776 = vpop.f32.mrf.mxu0
  %777 = vmatprep.mubr.bf16.mxu0 0
  %778 = vmatmul.mubr.bf16.gmra.mxu0 %v653
  %v779 = vpop.f32.mrf.mxu0
  %v780 = vadd.f32 0.0, %v779
  %v781 = vpop.f32.mrf.mxu0
  %v782 = vpop.f32.mrf.mxu0
  %v783 = vadd.f32 0.0, %v782
  %v784 = vpop.f32.mrf.mxu0
  %785 = vmatprep.mubr.bf16.mxu0 0
  %786 = vmatmul.mubr.bf16.gmra.mxu0 %v654
  %v787 = vpop.f32.mrf.mxu0
  %v788 = vadd.f32 0.0, %v787
  %v789 = vpop.f32.mrf.mxu0
  %v790 = vpop.f32.mrf.mxu0
  %v791 = vadd.f32 0.0, %v790
  %v792 = vpop.f32.mrf.mxu0
  %793 = vmatprep.mubr.bf16.mxu0 0
  %794 = vmatmul.mubr.bf16.gmra.mxu0 %v655
  %v795 = vpop.f32.mrf.mxu0
  %v796 = vadd.f32 0.0, %v795
  %v797 = vpop.f32.mrf.mxu0
  %v798 = vpop.f32.mrf.mxu0
  %v799 = vadd.f32 0.0, %v798
  %v800 = vpop.f32.mrf.mxu0
  %801 = vmatprep.mubr.bf16.mxu0 0
  %802 = vmatmul.mubr.bf16.gmra.mxu0 %v656
  %v803 = vpop.f32.mrf.mxu0
  %v804 = vadd.f32 0.0, %v803
  %v805 = vpop.f32.mrf.mxu0
  %v806 = vpop.f32.mrf.mxu0
  %v807 = vadd.f32 0.0, %v806
  %v808 = vpop.f32.mrf.mxu0
  %809 = vdwg.mxu0
  %v826 = vunpack.c.l.b16 %v585
  %v827 = vunpack.c.l.b16 %v586
  %v828 = vunpack.c.l.b16 %v587
  %v829 = vunpack.c.l.b16 %v588
  %v830 = vunpack.c.l.b16 %v589
  %v831 = vunpack.c.l.b16 %v590
  %v832 = vunpack.c.l.b16 %v591
  %v833 = vunpack.c.l.b16 %v592
  %v834 = vunpack.c.l.b16 %v593
  %v835 = vunpack.c.l.b16 %v594
  %v836 = vunpack.c.l.b16 %v595
  %v837 = vunpack.c.l.b16 %v596
  %v838 = vunpack.c.l.b16 %v597
  %v839 = vunpack.c.l.b16 %v598
  %v840 = vunpack.c.l.b16 %v599
  %v841 = vunpack.c.l.b16 %v600
  %v842 = vpack.c.b16 %v827, %v826
  %v843 = vpack.c.b16 %v829, %v828
  %v844 = vpack.c.b16 %v831, %v830
  %v845 = vpack.c.b16 %v833, %v832
  %v846 = vpack.c.b16 %v835, %v834
  %v847 = vpack.c.b16 %v837, %v836
  %v848 = vpack.c.b16 %v839, %v838
  %v849 = vpack.c.b16 %v841, %v840
  %858 = vmatprep.subr.bf16.mxu0 0
  %859 = vmatpush1.bf16.msra.mxu0 %v849
  %860 = vmatprep.subr.bf16.mxu0 0
  %861 = vmatpush1.bf16.msra.mxu0 %v848
  %862 = vmatprep.subr.bf16.mxu0 0
  %863 = vmatpush1.bf16.msra.mxu0 %v847
  %864 = vmatprep.subr.bf16.mxu0 0
  %865 = vmatpush1.bf16.msra.mxu0 %v846
  %866 = vmatprep.subr.bf16.mxu0 0
  %867 = vmatpush1.bf16.msra.mxu0 %v845
  %868 = vmatprep.subr.bf16.mxu0 0
  %869 = vmatpush1.bf16.msra.mxu0 %v844
  %870 = vmatprep.subr.bf16.mxu0 0
  %871 = vmatpush1.bf16.msra.mxu0 %v843
  %872 = vmatprep.subr.bf16.mxu0 0
  %873 = vmatpush1.bf16.msra.mxu0 %v842
  %874 = vmatprep.subr.bf16.mxu0 0
  %875 = vmatpush2.bf16.msra.mxu0 0
  %876 = vmatprep.subr.bf16.mxu0 0
  %877 = vmatpush2.bf16.msra.mxu0 0
  %878 = vmatprep.subr.bf16.mxu0 0
  %879 = vmatpush2.bf16.msra.mxu0 0
  %880 = vmatprep.subr.bf16.mxu0 0
  %881 = vmatpush2.bf16.msra.mxu0 0
  %882 = vmatprep.subr.bf16.mxu0 0
  %883 = vmatpush2.bf16.msra.mxu0 0
  %884 = vmatprep.subr.bf16.mxu0 0
  %885 = vmatpush2.bf16.msra.mxu0 0
  %886 = vmatprep.subr.bf16.mxu0 0
  %887 = vmatpush2.bf16.msra.mxu0 0
  %888 = vmatprep.subr.bf16.mxu0 0
  %889 = vmatpush2.bf16.msra.mxu0 0
  %890 = vmatprep.mubr.bf16.mxu0 0
  %891 = vmatmul.mubr.bf16.gmra.mxu0 %v577
  %v892 = vpop.f32.mrf.mxu0
  %v893 = vadd.f32 %v748, %v892
  %v894 = vpop.f32.mrf.mxu0
  %v895 = vpop.f32.mrf.mxu0
  %v896 = vadd.f32 %v751, %v895
  %v897 = vpop.f32.mrf.mxu0
  %898 = vmatprep.mubr.bf16.mxu0 0
  %899 = vmatmul.mubr.bf16.gmra.mxu0 %v578
  %v900 = vpop.f32.mrf.mxu0
  %v901 = vadd.f32 %v756, %v900
  %v902 = vpop.f32.mrf.mxu0
  %v903 = vpop.f32.mrf.mxu0
  %v904 = vadd.f32 %v759, %v903
  %v905 = vpop.f32.mrf.mxu0
  %906 = vmatprep.mubr.bf16.mxu0 0
  %907 = vmatmul.mubr.bf16.gmra.mxu0 %v579
  %v908 = vpop.f32.mrf.mxu0
  %v909 = vadd.f32 %v764, %v908
  %v910 = vpop.f32.mrf.mxu0
  %v911 = vpop.f32.mrf.mxu0
  %v912 = vadd.f32 %v767, %v911
  %v913 = vpop.f32.mrf.mxu0
  %914 = vmatprep.mubr.bf16.mxu0 0
  %915 = vmatmul.mubr.bf16.gmra.mxu0 %v580
  %v916 = vpop.f32.mrf.mxu0
  %v917 = vadd.f32 %v772, %v916
  %v918 = vpop.f32.mrf.mxu0
  %v919 = vpop.f32.mrf.mxu0
  %v920 = vadd.f32 %v775, %v919
  %v921 = vpop.f32.mrf.mxu0
  %922 = vmatprep.mubr.bf16.mxu0 0
  %923 = vmatmul.mubr.bf16.gmra.mxu0 %v581
  %v924 = vpop.f32.mrf.mxu0
  %v925 = vadd.f32 %v780, %v924
  %v926 = vpop.f32.mrf.mxu0
  %v927 = vpop.f32.mrf.mxu0
  %v928 = vadd.f32 %v783, %v927
  %v929 = vpop.f32.mrf.mxu0
  %930 = vmatprep.mubr.bf16.mxu0 0
  %931 = vmatmul.mubr.bf16.gmra.mxu0 %v582
  %v932 = vpop.f32.mrf.mxu0
  %v933 = vadd.f32 %v788, %v932
  %v934 = vpop.f32.mrf.mxu0
  %v935 = vpop.f32.mrf.mxu0
  %v936 = vadd.f32 %v791, %v935
  %v937 = vpop.f32.mrf.mxu0
  %938 = vmatprep.mubr.bf16.mxu0 0
  %939 = vmatmul.mubr.bf16.gmra.mxu0 %v583
  %v940 = vpop.f32.mrf.mxu0
  %v941 = vadd.f32 %v796, %v940
  %v942 = vpop.f32.mrf.mxu0
  %v943 = vpop.f32.mrf.mxu0
  %v944 = vadd.f32 %v799, %v943
  %v945 = vpop.f32.mrf.mxu0
  %946 = vmatprep.mubr.bf16.mxu0 0
  %947 = vmatmul.mubr.bf16.gmra.mxu0 %v584
  %v948 = vpop.f32.mrf.mxu0
  %v949 = vadd.f32 %v804, %v948
  %v950 = vpop.f32.mrf.mxu0
  %v951 = vpop.f32.mrf.mxu0
  %v952 = vadd.f32 %v807, %v951
  %v953 = vpop.f32.mrf.mxu0
  %954 = vdwg.mxu0
  %v955 = vld [vmem:[%s4] sm:$0x1]
  %v957 = vlaneseq
  %v958 = vshrl.u32 %v957, 7
  %v959 = vsub.s32 0, %v958
  %v960 = vrot.slane %v955, %v959
  %v962 = vadd.f32 %v893, %v960
  %v963 = vadd.f32 %v896, %v960
  %v964 = vadd.f32 %v901, %v960
  %v965 = vadd.f32 %v904, %v960
  %v966 = vadd.f32 %v909, %v960
  %v967 = vadd.f32 %v912, %v960
  %v968 = vadd.f32 %v917, %v960
  %v969 = vadd.f32 %v920, %v960
  %v970 = vadd.f32 %v925, %v960
  %v971 = vadd.f32 %v928, %v960
  %v972 = vadd.f32 %v933, %v960
  %v973 = vadd.f32 %v936, %v960
  %v974 = vadd.f32 %v941, %v960
  %v975 = vadd.f32 %v944, %v960
  %v976 = vadd.f32 %v949, %v960
  %v977 = vadd.f32 %v952, %v960
  %vm978 = vcmp.gt.f32.partialorder %v962, 0.0
  %vm979 = vcmp.gt.f32.partialorder %v963, 0.0
  %vm980 = vcmp.gt.f32.partialorder %v964, 0.0
  %vm981 = vcmp.gt.f32.partialorder %v965, 0.0
  %vm982 = vcmp.gt.f32.partialorder %v966, 0.0
  %vm983 = vcmp.gt.f32.partialorder %v967, 0.0
  %vm984 = vcmp.gt.f32.partialorder %v968, 0.0
  %vm985 = vcmp.gt.f32.partialorder %v969, 0.0
  %vm986 = vcmp.gt.f32.partialorder %v970, 0.0
  %vm987 = vcmp.gt.f32.partialorder %v971, 0.0
  %vm988 = vcmp.gt.f32.partialorder %v972, 0.0
  %vm989 = vcmp.gt.f32.partialorder %v973, 0.0
  %vm990 = vcmp.gt.f32.partialorder %v974, 0.0
  %vm991 = vcmp.gt.f32.partialorder %v975, 0.0
  %vm992 = vcmp.gt.f32.partialorder %v976, 0.0
  %vm993 = vcmp.gt.f32.partialorder %v977, 0.0
  %v994 = vmin.f32 %v962, 0.0
  %v995 = vmin.f32 %v963, 0.0
  %v996 = vmin.f32 %v964, 0.0
  %v997 = vmin.f32 %v965, 0.0
  %v998 = vmin.f32 %v966, 0.0
  %v999 = vmin.f32 %v967, 0.0
  %v1000 = vmin.f32 %v968, 0.0
  %v1001 = vmin.f32 %v969, 0.0
  %v1002 = vmin.f32 %v970, 0.0
  %v1003 = vmin.f32 %v971, 0.0
  %v1004 = vmin.f32 %v972, 0.0
  %v1005 = vmin.f32 %v973, 0.0
  %v1006 = vmin.f32 %v974, 0.0
  %v1007 = vmin.f32 %v975, 0.0
  %v1008 = vmin.f32 %v976, 0.0
  %v1009 = vmin.f32 %v977, 0.0
  %v1010 = vmul.f32 %v994, 1.442695
  %v1011 = vpow.pop %v1010
  %v1012 = vmul.f32 %v995, 1.442695
  %v1013 = vpow.pop %v1012
  %v1014 = vmul.f32 %v996, 1.442695
  %v1015 = vpow.pop %v1014
  %v1016 = vmul.f32 %v997, 1.442695
  %v1017 = vpow.pop %v1016
  %v1018 = vmul.f32 %v998, 1.442695
  %v1019 = vpow.pop %v1018
  %v1020 = vmul.f32 %v999, 1.442695
  %v1021 = vpow.pop %v1020
  %v1022 = vmul.f32 %v1000, 1.442695
  %v1023 = vpow.pop %v1022
  %v1024 = vmul.f32 %v1001, 1.442695
  %v1025 = vpow.pop %v1024
  %v1026 = vmul.f32 %v1002, 1.442695
  %v1027 = vpow.pop %v1026
  %v1028 = vmul.f32 %v1003, 1.442695
  %v1029 = vpow.pop %v1028
  %v1030 = vmul.f32 %v1004, 1.442695
  %v1031 = vpow.pop %v1030
  %v1032 = vmul.f32 %v1005, 1.442695
  %v1033 = vpow.pop %v1032
  %v1034 = vmul.f32 %v1006, 1.442695
  %v1035 = vpow.pop %v1034
  %v1036 = vmul.f32 %v1007, 1.442695
  %v1037 = vpow.pop %v1036
  %v1038 = vmul.f32 %v1008, 1.442695
  %v1039 = vpow.pop %v1038
  %v1040 = vmul.f32 %v1009, 1.442695
  %v1041 = vpow.pop %v1040
  %v1042 = vsub.f32 %v1011, 1.0
  %v1043 = vsub.f32 %v1013, 1.0
  %v1044 = vsub.f32 %v1015, 1.0
  %v1045 = vsub.f32 %v1017, 1.0
  %v1046 = vsub.f32 %v1019, 1.0
  %v1047 = vsub.f32 %v1021, 1.0
  %v1048 = vsub.f32 %v1023, 1.0
  %v1049 = vsub.f32 %v1025, 1.0
  %v1050 = vsub.f32 %v1027, 1.0
  %v1051 = vsub.f32 %v1029, 1.0
  %v1052 = vsub.f32 %v1031, 1.0
  %v1053 = vsub.f32 %v1033, 1.0
  %v1054 = vsub.f32 %v1035, 1.0
  %v1055 = vsub.f32 %v1037, 1.0
  %v1056 = vsub.f32 %v1039, 1.0
  %v1057 = vsub.f32 %v1041, 1.0
  %v1058 = vsel %vm978, %v962, %v1042
  %v1059 = vsel %vm979, %v963, %v1043
  %v1060 = vsel %vm980, %v964, %v1044
  %v1061 = vsel %vm981, %v965, %v1045
  %v1062 = vsel %vm982, %v966, %v1046
  %v1063 = vsel %vm983, %v967, %v1047
  %v1064 = vsel %vm984, %v968, %v1048
  %v1065 = vsel %vm985, %v969, %v1049
  %v1066 = vsel %vm986, %v970, %v1050
  %v1067 = vsel %vm987, %v971, %v1051
  %v1068 = vsel %vm988, %v972, %v1052
  %v1069 = vsel %vm989, %v973, %v1053
  %v1070 = vsel %vm990, %v974, %v1054
  %v1071 = vsel %vm991, %v975, %v1055
  %v1072 = vsel %vm992, %v976, %v1056
  %v1073 = vsel %vm993, %v977, %v1057
  %v1074 = vld [vmem:[%s5] sm:$0x1]
  %v1075 = vld [vmem:[%s6] sm:$0x1]
  %v1076 = vlaneseq
  %v1077 = vand.u32 %v1076, 127
  %vm1078 = vcmp.lt.s32.totalorder %v1077, 32
  %1079 = vadd.xlane.f32.xlu0 %v1058
  %v1080 = vpop.xlane.xlu0 %1079
  %1081 = vadd.xlane.f32.xlu0 %v1059
  %v1082 = vpop.xlane.xlu0 %1081
  %1083 = vadd.xlane.f32.xlu0 %v1060
  %v1084 = vpop.xlane.xlu0 %1083
  %1085 = vadd.xlane.f32.xlu0 %v1061
  %v1086 = vpop.xlane.xlu0 %1085
  %1087 = vadd.xlane.f32.xlu0 %v1062
  %v1088 = vpop.xlane.xlu0 %1087
  %1089 = vadd.xlane.f32.xlu0 %v1063
  %v1090 = vpop.xlane.xlu0 %1089
  %1091 = vadd.xlane.f32.xlu0 %v1064
  %v1092 = vpop.xlane.xlu0 %1091
  %1093 = vadd.xlane.f32.xlu0 %v1065
  %v1094 = vpop.xlane.xlu0 %1093
  %1095 = vadd.xlane.f32.xlu0 %v1066
  %v1096 = vpop.xlane.xlu0 %1095
  %1097 = vadd.xlane.f32.xlu0 %v1067
  %v1098 = vpop.xlane.xlu0 %1097
  %1099 = vadd.xlane.f32.xlu0 %v1068
  %v1100 = vpop.xlane.xlu0 %1099
  %1101 = vadd.xlane.f32.xlu0 %v1069
  %v1102 = vpop.xlane.xlu0 %1101
  %1103 = vadd.xlane.f32.xlu0 %v1070
  %v1104 = vpop.xlane.xlu0 %1103
  %1105 = vadd.xlane.f32.xlu0 %v1071
  %v1106 = vpop.xlane.xlu0 %1105
  %1107 = vadd.xlane.f32.xlu0 %v1072
  %v1108 = vpop.xlane.xlu0 %1107
  %1109 = vadd.xlane.f32.xlu0 %v1073
  %v1110 = vpop.xlane.xlu0 %1109
  %v1111 = vmul.f32 %v1080, 0.03125
  %v1112 = vmul.f32 %v1082, 0.03125
  %v1113 = vmul.f32 %v1084, 0.03125
  %v1114 = vmul.f32 %v1086, 0.03125
  %v1115 = vmul.f32 %v1088, 0.03125
  %v1116 = vmul.f32 %v1090, 0.03125
  %v1117 = vmul.f32 %v1092, 0.03125
  %v1118 = vmul.f32 %v1094, 0.03125
  %v1119 = vmul.f32 %v1096, 0.03125
  %v1120 = vmul.f32 %v1098, 0.03125
  %v1121 = vmul.f32 %v1100, 0.03125
  %v1122 = vmul.f32 %v1102, 0.03125
  %v1123 = vmul.f32 %v1104, 0.03125
  %v1124 = vmul.f32 %v1106, 0.03125
  %v1125 = vmul.f32 %v1108, 0.03125
  %v1126 = vmul.f32 %v1110, 0.03125
  %v1127 = vsub.f32 %v1058, %v1111
  %v1128 = vsub.f32 %v1059, %v1112
  %v1129 = vsub.f32 %v1060, %v1113
  %v1130 = vsub.f32 %v1061, %v1114
  %v1131 = vsub.f32 %v1062, %v1115
  %v1132 = vsub.f32 %v1063, %v1116
  %v1133 = vsub.f32 %v1064, %v1117
  %v1134 = vsub.f32 %v1065, %v1118
  %v1135 = vsub.f32 %v1066, %v1119
  %v1136 = vsub.f32 %v1067, %v1120
  %v1137 = vsub.f32 %v1068, %v1121
  %v1138 = vsub.f32 %v1069, %v1122
  %v1139 = vsub.f32 %v1070, %v1123
  %v1140 = vsub.f32 %v1071, %v1124
  %v1141 = vsub.f32 %v1072, %v1125
  %v1142 = vsub.f32 %v1073, %v1126
  %v1143 = vsel %vm1078, 1, 0
  %vm1144 = vcmp.eq.s32.totalorder %v1143, 1
  %v1145 = vsel %vm1144, %v1127, 0.0
  %v1146 = vsel %vm1144, %v1128, 0.0
  %v1147 = vsel %vm1144, %v1129, 0.0
  %v1148 = vsel %vm1144, %v1130, 0.0
  %v1149 = vsel %vm1144, %v1131, 0.0
  %v1150 = vsel %vm1144, %v1132, 0.0
  %v1151 = vsel %vm1144, %v1133, 0.0
  %v1152 = vsel %vm1144, %v1134, 0.0
  %v1153 = vsel %vm1144, %v1135, 0.0
  %v1154 = vsel %vm1144, %v1136, 0.0
  %v1155 = vsel %vm1144, %v1137, 0.0
  %v1156 = vsel %vm1144, %v1138, 0.0
  %v1157 = vsel %vm1144, %v1139, 0.0
  %v1158 = vsel %vm1144, %v1140, 0.0
  %v1159 = vsel %vm1144, %v1141, 0.0
  %v1160 = vsel %vm1144, %v1142, 0.0
  %v1161 = vmul.f32 %v1145, %v1145
  %v1162 = vmul.f32 %v1146, %v1146
  %v1163 = vmul.f32 %v1147, %v1147
  %v1164 = vmul.f32 %v1148, %v1148
  %v1165 = vmul.f32 %v1149, %v1149
  %v1166 = vmul.f32 %v1150, %v1150
  %v1167 = vmul.f32 %v1151, %v1151
  %v1168 = vmul.f32 %v1152, %v1152
  %v1169 = vmul.f32 %v1153, %v1153
  %v1170 = vmul.f32 %v1154, %v1154
  %v1171 = vmul.f32 %v1155, %v1155
  %v1172 = vmul.f32 %v1156, %v1156
  %v1173 = vmul.f32 %v1157, %v1157
  %v1174 = vmul.f32 %v1158, %v1158
  %v1175 = vmul.f32 %v1159, %v1159
  %v1176 = vmul.f32 %v1160, %v1160
  %1177 = vadd.xlane.f32.xlu0 %v1161
  %v1178 = vpop.xlane.xlu0 %1177
  %1179 = vadd.xlane.f32.xlu0 %v1162
  %v1180 = vpop.xlane.xlu0 %1179
  %1181 = vadd.xlane.f32.xlu0 %v1163
  %v1182 = vpop.xlane.xlu0 %1181
  %1183 = vadd.xlane.f32.xlu0 %v1164
  %v1184 = vpop.xlane.xlu0 %1183
  %1185 = vadd.xlane.f32.xlu0 %v1165
  %v1186 = vpop.xlane.xlu0 %1185
  %1187 = vadd.xlane.f32.xlu0 %v1166
  %v1188 = vpop.xlane.xlu0 %1187
  %1189 = vadd.xlane.f32.xlu0 %v1167
  %v1190 = vpop.xlane.xlu0 %1189
  %1191 = vadd.xlane.f32.xlu0 %v1168
  %v1192 = vpop.xlane.xlu0 %1191
  %1193 = vadd.xlane.f32.xlu0 %v1169
  %v1194 = vpop.xlane.xlu0 %1193
  %1195 = vadd.xlane.f32.xlu0 %v1170
  %v1196 = vpop.xlane.xlu0 %1195
  %1197 = vadd.xlane.f32.xlu0 %v1171
  %v1198 = vpop.xlane.xlu0 %1197
  %1199 = vadd.xlane.f32.xlu0 %v1172
  %v1200 = vpop.xlane.xlu0 %1199
  %1201 = vadd.xlane.f32.xlu0 %v1173
  %v1202 = vpop.xlane.xlu0 %1201
  %1203 = vadd.xlane.f32.xlu0 %v1174
  %v1204 = vpop.xlane.xlu0 %1203
  %1205 = vadd.xlane.f32.xlu0 %v1175
  %v1206 = vpop.xlane.xlu0 %1205
  %1207 = vadd.xlane.f32.xlu0 %v1176
  %v1208 = vpop.xlane.xlu0 %1207
  %v1209 = vmul.f32 %v1178, 0.03125
  %v1210 = vmul.f32 %v1180, 0.03125
  %v1211 = vmul.f32 %v1182, 0.03125
  %v1212 = vmul.f32 %v1184, 0.03125
  %v1213 = vmul.f32 %v1186, 0.03125
  %v1214 = vmul.f32 %v1188, 0.03125
  %v1215 = vmul.f32 %v1190, 0.03125
  %v1216 = vmul.f32 %v1192, 0.03125
  %v1217 = vmul.f32 %v1194, 0.03125
  %v1218 = vmul.f32 %v1196, 0.03125
  %v1219 = vmul.f32 %v1198, 0.03125
  %v1220 = vmul.f32 %v1200, 0.03125
  %v1221 = vmul.f32 %v1202, 0.03125
  %v1222 = vmul.f32 %v1204, 0.03125
  %v1223 = vmul.f32 %v1206, 0.03125
  %v1224 = vmul.f32 %v1208, 0.03125
  %v1225 = vadd.f32 %v1209, 1e-05
  %v1226 = vadd.f32 %v1210, 1e-05
  %v1227 = vadd.f32 %v1211, 1e-05
  %v1228 = vadd.f32 %v1212, 1e-05
  %v1229 = vadd.f32 %v1213, 1e-05
  %v1230 = vadd.f32 %v1214, 1e-05
  %v1231 = vadd.f32 %v1215, 1e-05
  %v1232 = vadd.f32 %v1216, 1e-05
  %v1233 = vadd.f32 %v1217, 1e-05
  %v1234 = vadd.f32 %v1218, 1e-05
  %v1235 = vadd.f32 %v1219, 1e-05
  %v1236 = vadd.f32 %v1220, 1e-05
  %v1237 = vadd.f32 %v1221, 1e-05
  %v1238 = vadd.f32 %v1222, 1e-05
  %v1239 = vadd.f32 %v1223, 1e-05
  %v1240 = vadd.f32 %v1224, 1e-05
  %v1241 = vrsqrt.pop %v1225
  %v1242 = vrsqrt.pop %v1226
  %v1243 = vrsqrt.pop %v1227
  %v1244 = vrsqrt.pop %v1228
  %v1245 = vrsqrt.pop %v1229
  %v1246 = vrsqrt.pop %v1230
  %v1247 = vrsqrt.pop %v1231
  %v1248 = vrsqrt.pop %v1232
  %v1249 = vrsqrt.pop %v1233
  %v1250 = vrsqrt.pop %v1234
  %v1251 = vrsqrt.pop %v1235
  %v1252 = vrsqrt.pop %v1236
  %v1253 = vrsqrt.pop %v1237
  %v1254 = vrsqrt.pop %v1238
  %v1255 = vrsqrt.pop %v1239
  %v1256 = vrsqrt.pop %v1240
  %v1257 = vmul.f32 %v1145, %v1241
  %v1258 = vmul.f32 %v1146, %v1242
  %v1259 = vmul.f32 %v1147, %v1243
  %v1260 = vmul.f32 %v1148, %v1244
  %v1261 = vmul.f32 %v1149, %v1245
  %v1262 = vmul.f32 %v1150, %v1246
  %v1263 = vmul.f32 %v1151, %v1247
  %v1264 = vmul.f32 %v1152, %v1248
  %v1265 = vmul.f32 %v1153, %v1249
  %v1266 = vmul.f32 %v1154, %v1250
  %v1267 = vmul.f32 %v1155, %v1251
  %v1268 = vmul.f32 %v1156, %v1252
  %v1269 = vmul.f32 %v1157, %v1253
  %v1270 = vmul.f32 %v1158, %v1254
  %v1271 = vmul.f32 %v1159, %v1255
  %v1272 = vmul.f32 %v1160, %v1256
  %v1274 = vlaneseq
  %v1275 = vshrl.u32 %v1274, 7
  %v1276 = vsub.s32 0, %v1275
  %v1277 = vrot.slane %v1074, %v1276
  %v1279 = vmul.f32 %v1257, %v1277
  %v1280 = vmul.f32 %v1258, %v1277
  %v1281 = vmul.f32 %v1259, %v1277
  %v1282 = vmul.f32 %v1260, %v1277
  %v1283 = vmul.f32 %v1261, %v1277
  %v1284 = vmul.f32 %v1262, %v1277
  %v1285 = vmul.f32 %v1263, %v1277
  %v1286 = vmul.f32 %v1264, %v1277
  %v1287 = vmul.f32 %v1265, %v1277
  %v1288 = vmul.f32 %v1266, %v1277
  %v1289 = vmul.f32 %v1267, %v1277
  %v1290 = vmul.f32 %v1268, %v1277
  %v1291 = vmul.f32 %v1269, %v1277
  %v1292 = vmul.f32 %v1270, %v1277
  %v1293 = vmul.f32 %v1271, %v1277
  %v1294 = vmul.f32 %v1272, %v1277
  %v1296 = vlaneseq
  %v1297 = vshrl.u32 %v1296, 7
  %v1298 = vsub.s32 0, %v1297
  %v1299 = vrot.slane %v1075, %v1298
  %v1301 = vadd.f32 %v1279, %v1299
  %v1302 = vadd.f32 %v1280, %v1299
  %v1303 = vadd.f32 %v1281, %v1299
  %v1304 = vadd.f32 %v1282, %v1299
  %v1305 = vadd.f32 %v1283, %v1299
  %v1306 = vadd.f32 %v1284, %v1299
  %v1307 = vadd.f32 %v1285, %v1299
  %v1308 = vadd.f32 %v1286, %v1299
  %v1309 = vadd.f32 %v1287, %v1299
  %v1310 = vadd.f32 %v1288, %v1299
  %v1311 = vadd.f32 %v1289, %v1299
  %v1312 = vadd.f32 %v1290, %v1299
  %v1313 = vadd.f32 %v1291, %v1299
  %v1314 = vadd.f32 %v1292, %v1299
  %v1315 = vadd.f32 %v1293, %v1299
  %v1316 = vadd.f32 %v1294, %v1299
  %v1317 = vpack.c.bf16 %v1302, %v1301
  %v1318 = vpack.c.bf16 %v1304, %v1303
  %v1319 = vpack.c.bf16 %v1306, %v1305
  %v1320 = vpack.c.bf16 %v1308, %v1307
  %v1321 = vpack.c.bf16 %v1310, %v1309
  %v1322 = vpack.c.bf16 %v1312, %v1311
  %v1323 = vpack.c.bf16 %v1314, %v1313
  %v1324 = vpack.c.bf16 %v1316, %v1315
  %v1325 = vld [vmem:[%s7] sm:$0xf]
  %v1326 = vld [vmem:[%s7 + $0x4] sm:$0xf]
  %v1327 = vld [vmem:[%s7 + $0x8] sm:$0xf]
  %v1328 = vld [vmem:[%s7 + $0xc] sm:$0xf]
  %v1329 = vld [vmem:[%s7 + $0x10] sm:$0xf]
  %v1330 = vld [vmem:[%s7 + $0x14] sm:$0xf]
  %v1331 = vld [vmem:[%s7 + $0x18] sm:$0xf]
  %v1332 = vld [vmem:[%s7 + $0x1c] sm:$0xf]
  %v1333 = vld [vmem:[%s7 + $0x20] sm:$0xf]
  %v1334 = vld [vmem:[%s7 + $0x24] sm:$0xf]
  %v1335 = vld [vmem:[%s7 + $0x28] sm:$0xf]
  %v1336 = vld [vmem:[%s7 + $0x2c] sm:$0xf]
  %v1337 = vld [vmem:[%s7 + $0x30] sm:$0xf]
  %v1338 = vld [vmem:[%s7 + $0x34] sm:$0xf]
  %v1339 = vld [vmem:[%s7 + $0x38] sm:$0xf]
  %v1340 = vld [vmem:[%s7 + $0x3c] sm:$0xf]
  %v1341 = vld [vmem:[%s8] sm:$0x1]
  %v1343 = vlaneseq
  %v1344 = vshrl.u32 %v1343, 7
  %v1345 = vsub.s32 0, %v1344
  %v1346 = vrot.slane %v1341, %v1345
  %v1364 = vunpack.c.l.b16 %v1325
  %v1365 = vunpack.c.l.b16 %v1326
  %v1366 = vunpack.c.l.b16 %v1327
  %v1367 = vunpack.c.l.b16 %v1328
  %v1368 = vunpack.c.l.b16 %v1329
  %v1369 = vunpack.c.l.b16 %v1330
  %v1370 = vunpack.c.l.b16 %v1331
  %v1371 = vunpack.c.l.b16 %v1332
  %v1372 = vunpack.c.l.b16 %v1333
  %v1373 = vunpack.c.l.b16 %v1334
  %v1374 = vunpack.c.l.b16 %v1335
  %v1375 = vunpack.c.l.b16 %v1336
  %v1376 = vunpack.c.l.b16 %v1337
  %v1377 = vunpack.c.l.b16 %v1338
  %v1378 = vunpack.c.l.b16 %v1339
  %v1379 = vunpack.c.l.b16 %v1340
  %v1380 = vpack.c.b16 %v1365, %v1364
  %v1381 = vpack.c.b16 %v1367, %v1366
  %v1382 = vpack.c.b16 %v1369, %v1368
  %v1383 = vpack.c.b16 %v1371, %v1370
  %v1384 = vpack.c.b16 %v1373, %v1372
  %v1385 = vpack.c.b16 %v1375, %v1374
  %v1386 = vpack.c.b16 %v1377, %v1376
  %v1387 = vpack.c.b16 %v1379, %v1378
  %1396 = vmatprep.subr.bf16.mxu0 0
  %1397 = vmatpush1.bf16.msra.mxu0 %v1387
  %1398 = vmatprep.subr.bf16.mxu0 0
  %1399 = vmatpush1.bf16.msra.mxu0 %v1386
  %1400 = vmatprep.subr.bf16.mxu0 0
  %1401 = vmatpush1.bf16.msra.mxu0 %v1385
  %1402 = vmatprep.subr.bf16.mxu0 0
  %1403 = vmatpush1.bf16.msra.mxu0 %v1384
  %1404 = vmatprep.subr.bf16.mxu0 0
  %1405 = vmatpush1.bf16.msra.mxu0 %v1383
  %1406 = vmatprep.subr.bf16.mxu0 0
  %1407 = vmatpush1.bf16.msra.mxu0 %v1382
  %1408 = vmatprep.subr.bf16.mxu0 0
  %1409 = vmatpush1.bf16.msra.mxu0 %v1381
  %1410 = vmatprep.subr.bf16.mxu0 0
  %1411 = vmatpush1.bf16.msra.mxu0 %v1380
  %1412 = vmatprep.subr.bf16.mxu0 0
  %1413 = vmatpush2.bf16.msra.mxu0 0
  %1414 = vmatprep.subr.bf16.mxu0 0
  %1415 = vmatpush2.bf16.msra.mxu0 0
  %1416 = vmatprep.subr.bf16.mxu0 0
  %1417 = vmatpush2.bf16.msra.mxu0 0
  %1418 = vmatprep.subr.bf16.mxu0 0
  %1419 = vmatpush2.bf16.msra.mxu0 0
  %1420 = vmatprep.subr.bf16.mxu0 0
  %1421 = vmatpush2.bf16.msra.mxu0 0
  %1422 = vmatprep.subr.bf16.mxu0 0
  %1423 = vmatpush2.bf16.msra.mxu0 0
  %1424 = vmatprep.subr.bf16.mxu0 0
  %1425 = vmatpush2.bf16.msra.mxu0 0
  %1426 = vmatprep.subr.bf16.mxu0 0
  %1427 = vmatpush2.bf16.msra.mxu0 0
  %1428 = vmatprep.mubr.bf16.mxu0 0
  %1429 = vmatmul.mubr.bf16.gmra.mxu0 %v1317
  %v1430 = vpop.f32.mrf.mxu0
  %v1431 = vadd.f32 %v1346, %v1430
  %v1432 = vpop.f32.mrf.mxu0
  %v1433 = vpop.f32.mrf.mxu0
  %v1434 = vadd.f32 %v1346, %v1433
  %v1435 = vpop.f32.mrf.mxu0
  %1436 = vmatprep.mubr.bf16.mxu0 0
  %1437 = vmatmul.mubr.bf16.gmra.mxu0 %v1318
  %v1438 = vpop.f32.mrf.mxu0
  %v1439 = vadd.f32 %v1346, %v1438
  %v1440 = vpop.f32.mrf.mxu0
  %v1441 = vpop.f32.mrf.mxu0
  %v1442 = vadd.f32 %v1346, %v1441
  %v1443 = vpop.f32.mrf.mxu0
  %1444 = vmatprep.mubr.bf16.mxu0 0
  %1445 = vmatmul.mubr.bf16.gmra.mxu0 %v1319
  %v1446 = vpop.f32.mrf.mxu0
  %v1447 = vadd.f32 %v1346, %v1446
  %v1448 = vpop.f32.mrf.mxu0
  %v1449 = vpop.f32.mrf.mxu0
  %v1450 = vadd.f32 %v1346, %v1449
  %v1451 = vpop.f32.mrf.mxu0
  %1452 = vmatprep.mubr.bf16.mxu0 0
  %1453 = vmatmul.mubr.bf16.gmra.mxu0 %v1320
  %v1454 = vpop.f32.mrf.mxu0
  %v1455 = vadd.f32 %v1346, %v1454
  %v1456 = vpop.f32.mrf.mxu0
  %v1457 = vpop.f32.mrf.mxu0
  %v1458 = vadd.f32 %v1346, %v1457
  %v1459 = vpop.f32.mrf.mxu0
  %1460 = vmatprep.mubr.bf16.mxu0 0
  %1461 = vmatmul.mubr.bf16.gmra.mxu0 %v1321
  %v1462 = vpop.f32.mrf.mxu0
  %v1463 = vadd.f32 %v1346, %v1462
  %v1464 = vpop.f32.mrf.mxu0
  %v1465 = vpop.f32.mrf.mxu0
  %v1466 = vadd.f32 %v1346, %v1465
  %v1467 = vpop.f32.mrf.mxu0
  %1468 = vmatprep.mubr.bf16.mxu0 0
  %1469 = vmatmul.mubr.bf16.gmra.mxu0 %v1322
  %v1470 = vpop.f32.mrf.mxu0
  %v1471 = vadd.f32 %v1346, %v1470
  %v1472 = vpop.f32.mrf.mxu0
  %v1473 = vpop.f32.mrf.mxu0
  %v1474 = vadd.f32 %v1346, %v1473
  %v1475 = vpop.f32.mrf.mxu0
  %1476 = vmatprep.mubr.bf16.mxu0 0
  %1477 = vmatmul.mubr.bf16.gmra.mxu0 %v1323
  %v1478 = vpop.f32.mrf.mxu0
  %v1479 = vadd.f32 %v1346, %v1478
  %v1480 = vpop.f32.mrf.mxu0
  %v1481 = vpop.f32.mrf.mxu0
  %v1482 = vadd.f32 %v1346, %v1481
  %v1483 = vpop.f32.mrf.mxu0
  %1484 = vmatprep.mubr.bf16.mxu0 0
  %1485 = vmatmul.mubr.bf16.gmra.mxu0 %v1324
  %v1486 = vpop.f32.mrf.mxu0
  %v1487 = vadd.f32 %v1346, %v1486
  %v1488 = vpop.f32.mrf.mxu0
  %v1489 = vpop.f32.mrf.mxu0
  %v1490 = vadd.f32 %v1346, %v1489
  %v1491 = vpop.f32.mrf.mxu0
  %1492 = vdwg.mxu0
  %vm1493 = vcmp.gt.f32.partialorder %v1431, 0.0
  %vm1494 = vcmp.gt.f32.partialorder %v1434, 0.0
  %vm1495 = vcmp.gt.f32.partialorder %v1439, 0.0
  %vm1496 = vcmp.gt.f32.partialorder %v1442, 0.0
  %vm1497 = vcmp.gt.f32.partialorder %v1447, 0.0
  %vm1498 = vcmp.gt.f32.partialorder %v1450, 0.0
  %vm1499 = vcmp.gt.f32.partialorder %v1455, 0.0
  %vm1500 = vcmp.gt.f32.partialorder %v1458, 0.0
  %vm1501 = vcmp.gt.f32.partialorder %v1463, 0.0
  %vm1502 = vcmp.gt.f32.partialorder %v1466, 0.0
  %vm1503 = vcmp.gt.f32.partialorder %v1471, 0.0
  %vm1504 = vcmp.gt.f32.partialorder %v1474, 0.0
  %vm1505 = vcmp.gt.f32.partialorder %v1479, 0.0
  %vm1506 = vcmp.gt.f32.partialorder %v1482, 0.0
  %vm1507 = vcmp.gt.f32.partialorder %v1487, 0.0
  %vm1508 = vcmp.gt.f32.partialorder %v1490, 0.0
  %v1509 = vmin.f32 %v1431, 0.0
  %v1510 = vmin.f32 %v1434, 0.0
  %v1511 = vmin.f32 %v1439, 0.0
  %v1512 = vmin.f32 %v1442, 0.0
  %v1513 = vmin.f32 %v1447, 0.0
  %v1514 = vmin.f32 %v1450, 0.0
  %v1515 = vmin.f32 %v1455, 0.0
  %v1516 = vmin.f32 %v1458, 0.0
  %v1517 = vmin.f32 %v1463, 0.0
  %v1518 = vmin.f32 %v1466, 0.0
  %v1519 = vmin.f32 %v1471, 0.0
  %v1520 = vmin.f32 %v1474, 0.0
  %v1521 = vmin.f32 %v1479, 0.0
  %v1522 = vmin.f32 %v1482, 0.0
  %v1523 = vmin.f32 %v1487, 0.0
  %v1524 = vmin.f32 %v1490, 0.0
  %v1525 = vmul.f32 %v1509, 1.442695
  %v1526 = vpow.pop %v1525
  %v1527 = vmul.f32 %v1510, 1.442695
  %v1528 = vpow.pop %v1527
  %v1529 = vmul.f32 %v1511, 1.442695
  %v1530 = vpow.pop %v1529
  %v1531 = vmul.f32 %v1512, 1.442695
  %v1532 = vpow.pop %v1531
  %v1533 = vmul.f32 %v1513, 1.442695
  %v1534 = vpow.pop %v1533
  %v1535 = vmul.f32 %v1514, 1.442695
  %v1536 = vpow.pop %v1535
  %v1537 = vmul.f32 %v1515, 1.442695
  %v1538 = vpow.pop %v1537
  %v1539 = vmul.f32 %v1516, 1.442695
  %v1540 = vpow.pop %v1539
  %v1541 = vmul.f32 %v1517, 1.442695
  %v1542 = vpow.pop %v1541
  %v1543 = vmul.f32 %v1518, 1.442695
  %v1544 = vpow.pop %v1543
  %v1545 = vmul.f32 %v1519, 1.442695
  %v1546 = vpow.pop %v1545
  %v1547 = vmul.f32 %v1520, 1.442695
  %v1548 = vpow.pop %v1547
  %v1549 = vmul.f32 %v1521, 1.442695
  %v1550 = vpow.pop %v1549
  %v1551 = vmul.f32 %v1522, 1.442695
  %v1552 = vpow.pop %v1551
  %v1553 = vmul.f32 %v1523, 1.442695
  %v1554 = vpow.pop %v1553
  %v1555 = vmul.f32 %v1524, 1.442695
  %v1556 = vpow.pop %v1555
  %v1557 = vsub.f32 %v1526, 1.0
  %v1558 = vsub.f32 %v1528, 1.0
  %v1559 = vsub.f32 %v1530, 1.0
  %v1560 = vsub.f32 %v1532, 1.0
  %v1561 = vsub.f32 %v1534, 1.0
  %v1562 = vsub.f32 %v1536, 1.0
  %v1563 = vsub.f32 %v1538, 1.0
  %v1564 = vsub.f32 %v1540, 1.0
  %v1565 = vsub.f32 %v1542, 1.0
  %v1566 = vsub.f32 %v1544, 1.0
  %v1567 = vsub.f32 %v1546, 1.0
  %v1568 = vsub.f32 %v1548, 1.0
  %v1569 = vsub.f32 %v1550, 1.0
  %v1570 = vsub.f32 %v1552, 1.0
  %v1571 = vsub.f32 %v1554, 1.0
  %v1572 = vsub.f32 %v1556, 1.0
  %v1573 = vsel %vm1493, %v1431, %v1557
  %v1574 = vsel %vm1494, %v1434, %v1558
  %v1575 = vsel %vm1495, %v1439, %v1559
  %v1576 = vsel %vm1496, %v1442, %v1560
  %v1577 = vsel %vm1497, %v1447, %v1561
  %v1578 = vsel %vm1498, %v1450, %v1562
  %v1579 = vsel %vm1499, %v1455, %v1563
  %v1580 = vsel %vm1500, %v1458, %v1564
  %v1581 = vsel %vm1501, %v1463, %v1565
  %v1582 = vsel %vm1502, %v1466, %v1566
  %v1583 = vsel %vm1503, %v1471, %v1567
  %v1584 = vsel %vm1504, %v1474, %v1568
  %v1585 = vsel %vm1505, %v1479, %v1569
  %v1586 = vsel %vm1506, %v1482, %v1570
  %v1587 = vsel %vm1507, %v1487, %v1571
  %v1588 = vsel %vm1508, %v1490, %v1572
  %v1589 = vmul.f32 %v1573, 0.999995
  %v1590 = vmul.f32 %v1574, 0.999995
  %v1591 = vmul.f32 %v1575, 0.999995
  %v1592 = vmul.f32 %v1576, 0.999995
  %v1593 = vmul.f32 %v1577, 0.999995
  %v1594 = vmul.f32 %v1578, 0.999995
  %v1595 = vmul.f32 %v1579, 0.999995
  %v1596 = vmul.f32 %v1580, 0.999995
  %v1597 = vmul.f32 %v1581, 0.999995
  %v1598 = vmul.f32 %v1582, 0.999995
  %v1599 = vmul.f32 %v1583, 0.999995
  %v1600 = vmul.f32 %v1584, 0.999995
  %v1601 = vmul.f32 %v1585, 0.999995
  %v1602 = vmul.f32 %v1586, 0.999995
  %v1603 = vmul.f32 %v1587, 0.999995
  %v1604 = vmul.f32 %v1588, 0.999995
  %v1605 = vpack.c.bf16 %v1590, %v1589
  %v1606 = vpack.c.bf16 %v1592, %v1591
  %v1607 = vpack.c.bf16 %v1594, %v1593
  %v1608 = vpack.c.bf16 %v1596, %v1595
  %v1609 = vpack.c.bf16 %v1598, %v1597
  %v1610 = vpack.c.bf16 %v1600, %v1599
  %v1611 = vpack.c.bf16 %v1602, %v1601
  %v1612 = vpack.c.bf16 %v1604, %v1603
  %v1621 = vunpack.c.l.b16 %v1605
  %v1622 = vunpack.c.h.b16 %v1605
  %v1623 = vunpack.c.l.b16 %v1606
  %v1624 = vunpack.c.h.b16 %v1606
  %v1625 = vunpack.c.l.b16 %v1607
  %v1626 = vunpack.c.h.b16 %v1607
  %v1627 = vunpack.c.l.b16 %v1608
  %v1628 = vunpack.c.h.b16 %v1608
  %v1629 = vunpack.c.l.b16 %v1609
  %v1630 = vunpack.c.h.b16 %v1609
  %v1631 = vunpack.c.l.b16 %v1610
  %v1632 = vunpack.c.h.b16 %v1610
  %v1633 = vunpack.c.l.b16 %v1611
  %v1634 = vunpack.c.h.b16 %v1611
  %v1635 = vunpack.c.l.b16 %v1612
  %v1636 = vunpack.c.h.b16 %v1612
  %v1637 = vpack.c.b16 %v1621, %v1621
  %v1638 = vpack.c.b16 %v1622, %v1622
  %v1639 = vpack.c.b16 %v1623, %v1623
  %v1640 = vpack.c.b16 %v1624, %v1624
  %v1641 = vpack.c.b16 %v1625, %v1625
  %v1642 = vpack.c.b16 %v1626, %v1626
  %v1643 = vpack.c.b16 %v1627, %v1627
  %v1644 = vpack.c.b16 %v1628, %v1628
  %v1645 = vpack.c.b16 %v1629, %v1629
  %v1646 = vpack.c.b16 %v1630, %v1630
  %v1647 = vpack.c.b16 %v1631, %v1631
  %v1648 = vpack.c.b16 %v1632, %v1632
  %v1649 = vpack.c.b16 %v1633, %v1633
  %v1650 = vpack.c.b16 %v1634, %v1634
  %v1651 = vpack.c.b16 %v1635, %v1635
  %v1652 = vpack.c.b16 %v1636, %v1636
  %1669 = vst [vmem:[%s9] sm:$0xf] %v1637
  %1670 = vst [vmem:[%s9 + $0x4] sm:$0xf] %v1638
  %1671 = vst [vmem:[%s9 + $0x8] sm:$0xf] %v1639
  %1672 = vst [vmem:[%s9 + $0xc] sm:$0xf] %v1640
  %1673 = vst [vmem:[%s9 + $0x10] sm:$0xf] %v1641
  %1674 = vst [vmem:[%s9 + $0x14] sm:$0xf] %v1642
  %1675 = vst [vmem:[%s9 + $0x18] sm:$0xf] %v1643
  %1676 = vst [vmem:[%s9 + $0x1c] sm:$0xf] %v1644
  %1677 = vst [vmem:[%s9 + $0x20] sm:$0xf] %v1645
  %1678 = vst [vmem:[%s9 + $0x24] sm:$0xf] %v1646
  %1679 = vst [vmem:[%s9 + $0x28] sm:$0xf] %v1647
  %1680 = vst [vmem:[%s9 + $0x2c] sm:$0xf] %v1648
  %1681 = vst [vmem:[%s9 + $0x30] sm:$0xf] %v1649
  %1682 = vst [vmem:[%s9 + $0x34] sm:$0xf] %v1650
  %1683 = vst [vmem:[%s9 + $0x38] sm:$0xf] %v1651
  %1684 = vst [vmem:[%s9 + $0x3c] sm:$0xf] %v1652
  // Predicated region
  $region38: #{fwd.24} parent=0 // pred_check
    _
  $region39: #{fwd.24} parent=0 // pred_check_branch
    %1686 = sbr.rel (0) target = $region41
  $region40: #{fwd.24} parent=0 // pred_region
    _
  $region41: #{fwd.24} parent=0 // pred_fallthru
    _
  // Predicated region
  $region42: #{fwd.24} parent=0 // pred_check
    _
  $region43: #{fwd.24} parent=0 // pred_check_branch
    %1688 = sbr.rel (0) target = $region45
  $region44: #{fwd.24} parent=0 // pred_region
    _
  $region45: #{fwd.24} parent=0 // pred_fallthru
    _

// kernel: fwd.40
$region0: #{fwd.40}
  #allocation0 [shape = 'u32[]', space=smem, size = 0x4, offset = 0x4, fixed_abs, tag = 'smem constant byte address 0x4 - core index']
  #allocation1 [shape = 'u32[144,128]{1,0:T(1,128)}', space=vmem, size = 0x12000, scoped, tag = 'internal scratch']
  %s0 = inlined_call_operand.vmem [shape: bf16[128,128], index: 0, kind: input, shape index: {}]
  %s1 = inlined_call_operand.vmem [shape: bf16[128,128], index: 1, kind: input, shape index: {}]
  %s2 = inlined_call_operand.vmem [shape: bf16[128,128], index: 2, kind: input, shape index: {}]
  %s3 = inlined_call_operand.vmem [shape: bf16[128,128], index: 3, kind: input, shape index: {}]
  %s4 = inlined_call_operand.vmem [shape: f32[1,128], index: 4, kind: input, shape index: {}]
  %s5 = inlined_call_operand.vmem [shape: f32[1,128], index: 5, kind: input, shape index: {}]
  %s6 = inlined_call_operand.vmem [shape: f32[1,128], index: 6, kind: input, shape index: {}]
  %s7 = inlined_call_operand.vmem [shape: bf16[128,128], index: 7, kind: input, shape index: {}]
  %s8 = inlined_call_operand.vmem [shape: f32[1,128], index: 8, kind: input, shape index: {}]
  %s9 = inlined_call_operand.vmem [shape: bf16[128,128], index: 9, kind: output, shape index: {}]
  %s10 = sld [smem:[#allocation0]]
  $region46: #{fwd.40} parent=0
    _
  %s12 = ssub.s32 1, %s10
  %s13 = scalar_select 0, %s12, %s10
  // Predicated region
  $region2: #{fwd.40} parent=0 // pred_check
    _
  $region3: #{fwd.40} parent=0 // pred_check_branch
    %15 = sbr.rel (0) target = $region5
  $region4: #{fwd.40} parent=0 // pred_region
    _
  $region5: #{fwd.40} parent=0 // pred_fallthru
    _
  // Predicated region
  $region6: #{fwd.40} parent=0 // pred_check
    _
  $region7: #{fwd.40} parent=0 // pred_check_branch
    %17 = sbr.rel (0) target = $region9
  $region8: #{fwd.40} parent=0 // pred_region
    _
  $region9: #{fwd.40} parent=0 // pred_fallthru
    _
  // Predicated region
  $region10: #{fwd.40} parent=0 // pred_check
    _
  $region11: #{fwd.40} parent=0 // pred_check_branch
    %19 = sbr.rel (0) target = $region13
  $region12: #{fwd.40} parent=0 // pred_region
    _
  $region13: #{fwd.40} parent=0 // pred_fallthru
    _
  // Predicated region
  $region14: #{fwd.40} parent=0 // pred_check
    _
  $region15: #{fwd.40} parent=0 // pred_check_branch
    %21 = sbr.rel (0) target = $region17
  $region16: #{fwd.40} parent=0 // pred_region
    _
  $region17: #{fwd.40} parent=0 // pred_fallthru
    _
  // Predicated region
  $region18: #{fwd.40} parent=0 // pred_check
    _
  $region19: #{fwd.40} parent=0 // pred_check_branch
    %23 = sbr.rel (0) target = $region21
  $region20: #{fwd.40} parent=0 // pred_region
    _
  $region21: #{fwd.40} parent=0 // pred_fallthru
    _
  // Predicated region
  $region22: #{fwd.40} parent=0 // pred_check
    _
  $region23: #{fwd.40} parent=0 // pred_check_branch
    %25 = sbr.rel (0) target = $region25
  $region24: #{fwd.40} parent=0 // pred_region
    _
  $region25: #{fwd.40} parent=0 // pred_fallthru
    _
  // Predicated region
  $region26: #{fwd.40} parent=0 // pred_check
    _
  $region27: #{fwd.40} parent=0 // pred_check_branch
    %27 = sbr.rel (0) target = $region29
  $region28: #{fwd.40} parent=0 // pred_region
    _
  $region29: #{fwd.40} parent=0 // pred_fallthru
    _
  // Predicated region
  $region30: #{fwd.40} parent=0 // pred_check
    _
  $region31: #{fwd.40} parent=0 // pred_check_branch
    %29 = sbr.rel (0) target = $region33
  $region32: #{fwd.40} parent=0 // pred_region
    _
  $region33: #{fwd.40} parent=0 // pred_fallthru
    _
  // Predicated region
  $region34: #{fwd.40} parent=0 // pred_check
    _
  $region35: #{fwd.40} parent=0 // pred_check_branch
    %31 = sbr.rel (0) target = $region37
  $region36: #{fwd.40} parent=0 // pred_region
    _
  $region37: #{fwd.40} parent=0 // pred_fallthru
    _
  %v33 = vld [vmem:[%s0] sm:$0xf]
  %v34 = vld [vmem:[%s0 + $0x4] sm:$0xf]
  %v35 = vld [vmem:[%s0 + $0x8] sm:$0xf]
  %v36 = vld [vmem:[%s0 + $0xc] sm:$0xf]
  %v37 = vld [vmem:[%s0 + $0x10] sm:$0xf]
  %v38 = vld [vmem:[%s0 + $0x14] sm:$0xf]
  %v39 = vld [vmem:[%s0 + $0x18] sm:$0xf]
  %v40 = vld [vmem:[%s0 + $0x1c] sm:$0xf]
  %v41 = vld [vmem:[%s0 + $0x20] sm:$0xf]
  %v42 = vld [vmem:[%s0 + $0x24] sm:$0xf]
  %v43 = vld [vmem:[%s0 + $0x28] sm:$0xf]
  %v44 = vld [vmem:[%s0 + $0x2c] sm:$0xf]
  %v45 = vld [vmem:[%s0 + $0x30] sm:$0xf]
  %v46 = vld [vmem:[%s0 + $0x34] sm:$0xf]
  %v47 = vld [vmem:[%s0 + $0x38] sm:$0xf]
  %v48 = vld [vmem:[%s0 + $0x3c] sm:$0xf]
  %v49 = vld [vmem:[%s1] sm:$0xf]
  %v50 = vld [vmem:[%s1 + $0x4] sm:$0xf]
  %v51 = vld [vmem:[%s1 + $0x8] sm:$0xf]
  %v52 = vld [vmem:[%s1 + $0xc] sm:$0xf]
  %v53 = vld [vmem:[%s1 + $0x10] sm:$0xf]
  %v54 = vld [vmem:[%s1 + $0x14] sm:$0xf]
  %v55 = vld [vmem:[%s1 + $0x18] sm:$0xf]
  %v56 = vld [vmem:[%s1 + $0x1c] sm:$0xf]
  %v57 = vld [vmem:[%s1 + $0x20] sm:$0xf]
  %v58 = vld [vmem:[%s1 + $0x24] sm:$0xf]
  %v59 = vld [vmem:[%s1 + $0x28] sm:$0xf]
  %v60 = vld [vmem:[%s1 + $0x2c] sm:$0xf]
  %v61 = vld [vmem:[%s1 + $0x30] sm:$0xf]
  %v62 = vld [vmem:[%s1 + $0x34] sm:$0xf]
  %v63 = vld [vmem:[%s1 + $0x38] sm:$0xf]
  %v64 = vld [vmem:[%s1 + $0x3c] sm:$0xf]
  %v65 = vunpack.c.l.bf16 %v33
  %v66 = vunpack.c.l.bf16 %v34
  %v67 = vunpack.c.l.bf16 %v35
  %v68 = vunpack.c.l.bf16 %v36
  %v69 = vunpack.c.l.bf16 %v37
  %v70 = vunpack.c.l.bf16 %v38
  %v71 = vunpack.c.l.bf16 %v39
  %v72 = vunpack.c.l.bf16 %v40
  %v73 = vunpack.c.l.bf16 %v41
  %v74 = vunpack.c.l.bf16 %v42
  %v75 = vunpack.c.l.bf16 %v43
  %v76 = vunpack.c.l.bf16 %v44
  %v77 = vunpack.c.l.bf16 %v45
  %v78 = vunpack.c.l.bf16 %v46
  %v79 = vunpack.c.l.bf16 %v47
  %v80 = vunpack.c.l.bf16 %v48
  %v81 = vunpack.c.l.bf16 %v49
  %v82 = vunpack.c.l.bf16 %v50
  %v83 = vunpack.c.l.bf16 %v51
  %v84 = vunpack.c.l.bf16 %v52
  %v85 = vunpack.c.l.bf16 %v53
  %v86 = vunpack.c.l.bf16 %v54
  %v87 = vunpack.c.l.bf16 %v55
  %v88 = vunpack.c.l.bf16 %v56
  %v89 = vunpack.c.l.bf16 %v57
  %v90 = vunpack.c.l.bf16 %v58
  %v91 = vunpack.c.l.bf16 %v59
  %v92 = vunpack.c.l.bf16 %v60
  %v93 = vunpack.c.l.bf16 %v61
  %v94 = vunpack.c.l.bf16 %v62
  %v95 = vunpack.c.l.bf16 %v63
  %v96 = vunpack.c.l.bf16 %v64
  %v97 = vsub.f32 %v65, %v81
  %v98 = vsub.f32 %v66, %v82
  %v99 = vsub.f32 %v67, %v83
  %v100 = vsub.f32 %v68, %v84
  %v101 = vsub.f32 %v69, %v85
  %v102 = vsub.f32 %v70, %v86
  %v103 = vsub.f32 %v71, %v87
  %v104 = vsub.f32 %v72, %v88
  %v105 = vsub.f32 %v73, %v89
  %v106 = vsub.f32 %v74, %v90
  %v107 = vsub.f32 %v75, %v91
  %v108 = vsub.f32 %v76, %v92
  %v109 = vsub.f32 %v77, %v93
  %v110 = vsub.f32 %v78, %v94
  %v111 = vsub.f32 %v79, %v95
  %v112 = vsub.f32 %v80, %v96
  %v113 = vmul.f32 %v97, %v97
  %v114 = vmul.f32 %v98, %v98
  %v115 = vmul.f32 %v99, %v99
  %v116 = vmul.f32 %v100, %v100
  %v117 = vmul.f32 %v101, %v101
  %v118 = vmul.f32 %v102, %v102
  %v119 = vmul.f32 %v103, %v103
  %v120 = vmul.f32 %v104, %v104
  %v121 = vmul.f32 %v105, %v105
  %v122 = vmul.f32 %v106, %v106
  %v123 = vmul.f32 %v107, %v107
  %v124 = vmul.f32 %v108, %v108
  %v125 = vmul.f32 %v109, %v109
  %v126 = vmul.f32 %v110, %v110
  %v127 = vmul.f32 %v111, %v111
  %v128 = vmul.f32 %v112, %v112
  %129 = vadd.xlane.f32.xlu0 %v113
  %v130 = vpop.xlane.xlu0 %129
  %131 = vadd.xlane.f32.xlu0 %v114
  %v132 = vpop.xlane.xlu0 %131
  %133 = vadd.xlane.f32.xlu0 %v115
  %v134 = vpop.xlane.xlu0 %133
  %135 = vadd.xlane.f32.xlu0 %v116
  %v136 = vpop.xlane.xlu0 %135
  %137 = vadd.xlane.f32.xlu0 %v117
  %v138 = vpop.xlane.xlu0 %137
  %139 = vadd.xlane.f32.xlu0 %v118
  %v140 = vpop.xlane.xlu0 %139
  %141 = vadd.xlane.f32.xlu0 %v119
  %v142 = vpop.xlane.xlu0 %141
  %143 = vadd.xlane.f32.xlu0 %v120
  %v144 = vpop.xlane.xlu0 %143
  %145 = vadd.xlane.f32.xlu0 %v121
  %v146 = vpop.xlane.xlu0 %145
  %147 = vadd.xlane.f32.xlu0 %v122
  %v148 = vpop.xlane.xlu0 %147
  %149 = vadd.xlane.f32.xlu0 %v123
  %v150 = vpop.xlane.xlu0 %149
  %151 = vadd.xlane.f32.xlu0 %v124
  %v152 = vpop.xlane.xlu0 %151
  %153 = vadd.xlane.f32.xlu0 %v125
  %v154 = vpop.xlane.xlu0 %153
  %155 = vadd.xlane.f32.xlu0 %v126
  %v156 = vpop.xlane.xlu0 %155
  %157 = vadd.xlane.f32.xlu0 %v127
  %v158 = vpop.xlane.xlu0 %157
  %159 = vadd.xlane.f32.xlu0 %v128
  %v160 = vpop.xlane.xlu0 %159
  %v161 = vrsqrt.pop %v130
  %v162 = vmul.f32 %v130, %v161
  %vm163 = vcmp.eq.f32.partialorder %v130, inf
  %v164 = vsel %vm163, %v130, %v162
  %vm165 = vcmp.eq.f32.partialorder %v130, 0.0
  %v166 = vand.u32 %v130, 2147483648
  %v167 = vsel %vm165, %v166, %v164
  %v168 = vrsqrt.pop %v132
  %v169 = vmul.f32 %v132, %v168
  %vm170 = vcmp.eq.f32.partialorder %v132, inf
  %v171 = vsel %vm170, %v132, %v169
  %vm172 = vcmp.eq.f32.partialorder %v132, 0.0
  %v173 = vand.u32 %v132, 2147483648
  %v174 = vsel %vm172, %v173, %v171
  %v175 = vrsqrt.pop %v134
  %v176 = vmul.f32 %v134, %v175
  %vm177 = vcmp.eq.f32.partialorder %v134, inf
  %v178 = vsel %vm177, %v134, %v176
  %vm179 = vcmp.eq.f32.partialorder %v134, 0.0
  %v180 = vand.u32 %v134, 2147483648
  %v181 = vsel %vm179, %v180, %v178
  %v182 = vrsqrt.pop %v136
  %v183 = vmul.f32 %v136, %v182
  %vm184 = vcmp.eq.f32.partialorder %v136, inf
  %v185 = vsel %vm184, %v136, %v183
  %vm186 = vcmp.eq.f32.partialorder %v136, 0.0
  %v187 = vand.u32 %v136, 2147483648
  %v188 = vsel %vm186, %v187, %v185
  %v189 = vrsqrt.pop %v138
  %v190 = vmul.f32 %v138, %v189
  %vm191 = vcmp.eq.f32.partialorder %v138, inf
  %v192 = vsel %vm191, %v138, %v190
  %vm193 = vcmp.eq.f32.partialorder %v138, 0.0
  %v194 = vand.u32 %v138, 2147483648
  %v195 = vsel %vm193, %v194, %v192
  %v196 = vrsqrt.pop %v140
  %v197 = vmul.f32 %v140, %v196
  %vm198 = vcmp.eq.f32.partialorder %v140, inf
  %v199 = vsel %vm198, %v140, %v197
  %vm200 = vcmp.eq.f32.partialorder %v140, 0.0
  %v201 = vand.u32 %v140, 2147483648
  %v202 = vsel %vm200, %v201, %v199
  %v203 = vrsqrt.pop %v142
  %v204 = vmul.f32 %v142, %v203
  %vm205 = vcmp.eq.f32.partialorder %v142, inf
  %v206 = vsel %vm205, %v142, %v204
  %vm207 = vcmp.eq.f32.partialorder %v142, 0.0
  %v208 = vand.u32 %v142, 2147483648
  %v209 = vsel %vm207, %v208, %v206
  %v210 = vrsqrt.pop %v144
  %v211 = vmul.f32 %v144, %v210
  %vm212 = vcmp.eq.f32.partialorder %v144, inf
  %v213 = vsel %vm212, %v144, %v211
  %vm214 = vcmp.eq.f32.partialorder %v144, 0.0
  %v215 = vand.u32 %v144, 2147483648
  %v216 = vsel %vm214, %v215, %v213
  %v217 = vrsqrt.pop %v146
  %v218 = vmul.f32 %v146, %v217
  %vm219 = vcmp.eq.f32.partialorder %v146, inf
  %v220 = vsel %vm219, %v146, %v218
  %vm221 = vcmp.eq.f32.partialorder %v146, 0.0
  %v222 = vand.u32 %v146, 2147483648
  %v223 = vsel %vm221, %v222, %v220
  %v224 = vrsqrt.pop %v148
  %v225 = vmul.f32 %v148, %v224
  %vm226 = vcmp.eq.f32.partialorder %v148, inf
  %v227 = vsel %vm226, %v148, %v225
  %vm228 = vcmp.eq.f32.partialorder %v148, 0.0
  %v229 = vand.u32 %v148, 2147483648
  %v230 = vsel %vm228, %v229, %v227
  %v231 = vrsqrt.pop %v150
  %v232 = vmul.f32 %v150, %v231
  %vm233 = vcmp.eq.f32.partialorder %v150, inf
  %v234 = vsel %vm233, %v150, %v232
  %vm235 = vcmp.eq.f32.partialorder %v150, 0.0
  %v236 = vand.u32 %v150, 2147483648
  %v237 = vsel %vm235, %v236, %v234
  %v238 = vrsqrt.pop %v152
  %v239 = vmul.f32 %v152, %v238
  %vm240 = vcmp.eq.f32.partialorder %v152, inf
  %v241 = vsel %vm240, %v152, %v239
  %vm242 = vcmp.eq.f32.partialorder %v152, 0.0
  %v243 = vand.u32 %v152, 2147483648
  %v244 = vsel %vm242, %v243, %v241
  %v245 = vrsqrt.pop %v154
  %v246 = vmul.f32 %v154, %v245
  %vm247 = vcmp.eq.f32.partialorder %v154, inf
  %v248 = vsel %vm247, %v154, %v246
  %vm249 = vcmp.eq.f32.partialorder %v154, 0.0
  %v250 = vand.u32 %v154, 2147483648
  %v251 = vsel %vm249, %v250, %v248
  %v252 = vrsqrt.pop %v156
  %v253 = vmul.f32 %v156, %v252
  %vm254 = vcmp.eq.f32.partialorder %v156, inf
  %v255 = vsel %vm254, %v156, %v253
  %vm256 = vcmp.eq.f32.partialorder %v156, 0.0
  %v257 = vand.u32 %v156, 2147483648
  %v258 = vsel %vm256, %v257, %v255
  %v259 = vrsqrt.pop %v158
  %v260 = vmul.f32 %v158, %v259
  %vm261 = vcmp.eq.f32.partialorder %v158, inf
  %v262 = vsel %vm261, %v158, %v260
  %vm263 = vcmp.eq.f32.partialorder %v158, 0.0
  %v264 = vand.u32 %v158, 2147483648
  %v265 = vsel %vm263, %v264, %v262
  %v266 = vrsqrt.pop %v160
  %v267 = vmul.f32 %v160, %v266
  %vm268 = vcmp.eq.f32.partialorder %v160, inf
  %v269 = vsel %vm268, %v160, %v267
  %vm270 = vcmp.eq.f32.partialorder %v160, 0.0
  %v271 = vand.u32 %v160, 2147483648
  %v272 = vsel %vm270, %v271, %v269
  %v273 = vmul.f32 %v167, 1.442695
  %v274 = vpow.pop %v273
  %v275 = vmul.f32 %v174, 1.442695
  %v276 = vpow.pop %v275
  %v277 = vmul.f32 %v181, 1.442695
  %v278 = vpow.pop %v277
  %v279 = vmul.f32 %v188, 1.442695
  %v280 = vpow.pop %v279
  %v281 = vmul.f32 %v195, 1.442695
  %v282 = vpow.pop %v281
  %v283 = vmul.f32 %v202, 1.442695
  %v284 = vpow.pop %v283
  %v285 = vmul.f32 %v209, 1.442695
  %v286 = vpow.pop %v285
  %v287 = vmul.f32 %v216, 1.442695
  %v288 = vpow.pop %v287
  %v289 = vmul.f32 %v223, 1.442695
  %v290 = vpow.pop %v289
  %v291 = vmul.f32 %v230, 1.442695
  %v292 = vpow.pop %v291
  %v293 = vmul.f32 %v237, 1.442695
  %v294 = vpow.pop %v293
  %v295 = vmul.f32 %v244, 1.442695
  %v296 = vpow.pop %v295
  %v297 = vmul.f32 %v251, 1.442695
  %v298 = vpow.pop %v297
  %v299 = vmul.f32 %v258, 1.442695
  %v300 = vpow.pop %v299
  %v301 = vmul.f32 %v265, 1.442695
  %v302 = vpow.pop %v301
  %v303 = vmul.f32 %v272, 1.442695
  %v304 = vpow.pop %v303
  %v305 = vadd.f32 %v274, 1.0
  %v306 = vadd.f32 %v276, 1.0
  %v307 = vadd.f32 %v278, 1.0
  %v308 = vadd.f32 %v280, 1.0
  %v309 = vadd.f32 %v282, 1.0
  %v310 = vadd.f32 %v284, 1.0
  %v311 = vadd.f32 %v286, 1.0
  %v312 = vadd.f32 %v288, 1.0
  %v313 = vadd.f32 %v290, 1.0
  %v314 = vadd.f32 %v292, 1.0
  %v315 = vadd.f32 %v294, 1.0
  %v316 = vadd.f32 %v296, 1.0
  %v317 = vadd.f32 %v298, 1.0
  %v318 = vadd.f32 %v300, 1.0
  %v319 = vadd.f32 %v302, 1.0
  %v320 = vadd.f32 %v304, 1.0
  %v321 = vrcp.pop %v305
  %v322 = vmul.f32 1.0, %v321
  %v323 = vrcp.pop %v306
  %v324 = vmul.f32 1.0, %v323
  %v325 = vrcp.pop %v307
  %v326 = vmul.f32 1.0, %v325
  %v327 = vrcp.pop %v308
  %v328 = vmul.f32 1.0, %v327
  %v329 = vrcp.pop %v309
  %v330 = vmul.f32 1.0, %v329
  %v331 = vrcp.pop %v310
  %v332 = vmul.f32 1.0, %v331
  %v333 = vrcp.pop %v311
  %v334 = vmul.f32 1.0, %v333
  %v335 = vrcp.pop %v312
  %v336 = vmul.f32 1.0, %v335
  %v337 = vrcp.pop %v313
  %v338 = vmul.f32 1.0, %v337
  %v339 = vrcp.pop %v314
  %v340 = vmul.f32 1.0, %v339
  %v341 = vrcp.pop %v315
  %v342 = vmul.f32 1.0, %v341
  %v343 = vrcp.pop %v316
  %v344 = vmul.f32 1.0, %v343
  %v345 = vrcp.pop %v317
  %v346 = vmul.f32 1.0, %v345
  %v347 = vrcp.pop %v318
  %v348 = vmul.f32 1.0, %v347
  %v349 = vrcp.pop %v319
  %v350 = vmul.f32 1.0, %v349
  %v351 = vrcp.pop %v320
  %v352 = vmul.f32 1.0, %v351
  %v353 = vadd.f32 %v322, 1.0
  %v354 = vadd.f32 %v324, 1.0
  %v355 = vadd.f32 %v326, 1.0
  %v356 = vadd.f32 %v328, 1.0
  %v357 = vadd.f32 %v330, 1.0
  %v358 = vadd.f32 %v332, 1.0
  %v359 = vadd.f32 %v334, 1.0
  %v360 = vadd.f32 %v336, 1.0
  %v361 = vadd.f32 %v338, 1.0
  %v362 = vadd.f32 %v340, 1.0
  %v363 = vadd.f32 %v342, 1.0
  %v364 = vadd.f32 %v344, 1.0
  %v365 = vadd.f32 %v346, 1.0
  %v366 = vadd.f32 %v348, 1.0
  %v367 = vadd.f32 %v350, 1.0
  %v368 = vadd.f32 %v352, 1.0
  %v369 = vmul.f32 %v353, %v65
  %v370 = vmul.f32 %v354, %v66
  %v371 = vmul.f32 %v355, %v67
  %v372 = vmul.f32 %v356, %v68
  %v373 = vmul.f32 %v357, %v69
  %v374 = vmul.f32 %v358, %v70
  %v375 = vmul.f32 %v359, %v71
  %v376 = vmul.f32 %v360, %v72
  %v377 = vmul.f32 %v361, %v73
  %v378 = vmul.f32 %v362, %v74
  %v379 = vmul.f32 %v363, %v75
  %v380 = vmul.f32 %v364, %v76
  %v381 = vmul.f32 %v365, %v77
  %v382 = vmul.f32 %v366, %v78
  %v383 = vmul.f32 %v367, %v79
  %v384 = vmul.f32 %v368, %v80
  %v385 = vpack.c.bf16 %v370, %v369
  %v386 = vpack.c.bf16 %v372, %v371
  %v387 = vpack.c.bf16 %v374, %v373
  %v388 = vpack.c.bf16 %v376, %v375
  %v389 = vpack.c.bf16 %v378, %v377
  %v390 = vpack.c.bf16 %v380, %v379
  %v391 = vpack.c.bf16 %v382, %v381
  %v392 = vpack.c.bf16 %v384, %v383
  %v393 = vld [vmem:[%s2] sm:$0xf]
  %v394 = vld [vmem:[%s2 + $0x4] sm:$0xf]
  %v395 = vld [vmem:[%s2 + $0x8] sm:$0xf]
  %v396 = vld [vmem:[%s2 + $0xc] sm:$0xf]
  %v397 = vld [vmem:[%s2 + $0x10] sm:$0xf]
  %v398 = vld [vmem:[%s2 + $0x14] sm:$0xf]
  %v399 = vld [vmem:[%s2 + $0x18] sm:$0xf]
  %v400 = vld [vmem:[%s2 + $0x1c] sm:$0xf]
  %v401 = vld [vmem:[%s2 + $0x20] sm:$0xf]
  %v402 = vld [vmem:[%s2 + $0x24] sm:$0xf]
  %v403 = vld [vmem:[%s2 + $0x28] sm:$0xf]
  %v404 = vld [vmem:[%s2 + $0x2c] sm:$0xf]
  %v405 = vld [vmem:[%s2 + $0x30] sm:$0xf]
  %v406 = vld [vmem:[%s2 + $0x34] sm:$0xf]
  %v407 = vld [vmem:[%s2 + $0x38] sm:$0xf]
  %v408 = vld [vmem:[%s2 + $0x3c] sm:$0xf]
  %v409 = vld [vmem:[%s3] sm:$0xf]
  %v410 = vld [vmem:[%s3 + $0x4] sm:$0xf]
  %v411 = vld [vmem:[%s3 + $0x8] sm:$0xf]
  %v412 = vld [vmem:[%s3 + $0xc] sm:$0xf]
  %v413 = vld [vmem:[%s3 + $0x10] sm:$0xf]
  %v414 = vld [vmem:[%s3 + $0x14] sm:$0xf]
  %v415 = vld [vmem:[%s3 + $0x18] sm:$0xf]
  %v416 = vld [vmem:[%s3 + $0x1c] sm:$0xf]
  %v417 = vld [vmem:[%s3 + $0x20] sm:$0xf]
  %v418 = vld [vmem:[%s3 + $0x24] sm:$0xf]
  %v419 = vld [vmem:[%s3 + $0x28] sm:$0xf]
  %v420 = vld [vmem:[%s3 + $0x2c] sm:$0xf]
  %v421 = vld [vmem:[%s3 + $0x30] sm:$0xf]
  %v422 = vld [vmem:[%s3 + $0x34] sm:$0xf]
  %v423 = vld [vmem:[%s3 + $0x38] sm:$0xf]
  %v424 = vld [vmem:[%s3 + $0x3c] sm:$0xf]
  %v441 = vunpack.c.l.b16 %v49
  %v442 = vunpack.c.l.b16 %v50
  %v443 = vunpack.c.l.b16 %v51
  %v444 = vunpack.c.l.b16 %v52
  %v445 = vunpack.c.l.b16 %v53
  %v446 = vunpack.c.l.b16 %v54
  %v447 = vunpack.c.l.b16 %v55
  %v448 = vunpack.c.l.b16 %v56
  %v449 = vunpack.c.l.b16 %v57
  %v450 = vunpack.c.l.b16 %v58
  %v451 = vunpack.c.l.b16 %v59
  %v452 = vunpack.c.l.b16 %v60
  %v453 = vunpack.c.l.b16 %v61
  %v454 = vunpack.c.l.b16 %v62
  %v455 = vunpack.c.l.b16 %v63
  %v456 = vunpack.c.l.b16 %v64
  %v457 = vpack.c.b16 %v442, %v441
  %v458 = vpack.c.b16 %v444, %v443
  %v459 = vpack.c.b16 %v446, %v445
  %v460 = vpack.c.b16 %v448, %v447
  %v461 = vpack.c.b16 %v450, %v449
  %v462 = vpack.c.b16 %v452, %v451
  %v463 = vpack.c.b16 %v454, %v453
  %v464 = vpack.c.b16 %v456, %v455
  %v489 = vunpack.c.l.b16 %v409
  %v490 = vunpack.c.l.b16 %v410
  %v491 = vunpack.c.l.b16 %v411
  %v492 = vunpack.c.l.b16 %v412
  %v493 = vunpack.c.l.b16 %v413
  %v494 = vunpack.c.l.b16 %v414
  %v495 = vunpack.c.l.b16 %v415
  %v496 = vunpack.c.l.b16 %v416
  %v497 = vunpack.c.l.b16 %v417
  %v498 = vunpack.c.l.b16 %v418
  %v499 = vunpack.c.l.b16 %v419
  %v500 = vunpack.c.l.b16 %v420
  %v501 = vunpack.c.l.b16 %v421
  %v502 = vunpack.c.l.b16 %v422
  %v503 = vunpack.c.l.b16 %v423
  %v504 = vunpack.c.l.b16 %v424
  %v505 = vpack.c.b16 %v490, %v489
  %v506 = vpack.c.b16 %v492, %v491
  %v507 = vpack.c.b16 %v494, %v493
  %v508 = vpack.c.b16 %v496, %v495
  %v509 = vpack.c.b16 %v498, %v497
  %v510 = vpack.c.b16 %v500, %v499
  %v511 = vpack.c.b16 %v502, %v501
  %v512 = vpack.c.b16 %v504, %v503
  %521 = vmatprep.subr.bf16.mxu0 0
  %522 = vmatpush1.bf16.msra.mxu0 %v512
  %523 = vmatprep.subr.bf16.mxu0 0
  %524 = vmatpush1.bf16.msra.mxu0 %v511
  %525 = vmatprep.subr.bf16.mxu0 0
  %526 = vmatpush1.bf16.msra.mxu0 %v510
  %527 = vmatprep.subr.bf16.mxu0 0
  %528 = vmatpush1.bf16.msra.mxu0 %v509
  %529 = vmatprep.subr.bf16.mxu0 0
  %530 = vmatpush1.bf16.msra.mxu0 %v508
  %531 = vmatprep.subr.bf16.mxu0 0
  %532 = vmatpush1.bf16.msra.mxu0 %v507
  %533 = vmatprep.subr.bf16.mxu0 0
  %534 = vmatpush1.bf16.msra.mxu0 %v506
  %535 = vmatprep.subr.bf16.mxu0 0
  %536 = vmatpush1.bf16.msra.mxu0 %v505
  %537 = vmatprep.subr.bf16.mxu0 0
  %538 = vmatpush2.bf16.msra.mxu0 0
  %539 = vmatprep.subr.bf16.mxu0 0
  %540 = vmatpush2.bf16.msra.mxu0 0
  %541 = vmatprep.subr.bf16.mxu0 0
  %542 = vmatpush2.bf16.msra.mxu0 0
  %543 = vmatprep.subr.bf16.mxu0 0
  %544 = vmatpush2.bf16.msra.mxu0 0
  %545 = vmatprep.subr.bf16.mxu0 0
  %546 = vmatpush2.bf16.msra.mxu0 0
  %547 = vmatprep.subr.bf16.mxu0 0
  %548 = vmatpush2.bf16.msra.mxu0 0
  %549 = vmatprep.subr.bf16.mxu0 0
  %550 = vmatpush2.bf16.msra.mxu0 0
  %551 = vmatprep.subr.bf16.mxu0 0
  %552 = vmatpush2.bf16.msra.mxu0 0
  %553 = vmatprep.mubr.bf16.mxu0 0
  %554 = vmatmul.mubr.bf16.gmra.mxu0 %v457
  %v555 = vpop.f32.mrf.mxu0
  %v556 = vadd.f32 0.0, %v555
  %v557 = vpop.f32.mrf.mxu0
  %v558 = vpop.f32.mrf.mxu0
  %v559 = vadd.f32 0.0, %v558
  %v560 = vpop.f32.mrf.mxu0
  %561 = vmatprep.mubr.bf16.mxu0 0
  %562 = vmatmul.mubr.bf16.gmra.mxu0 %v458
  %v563 = vpop.f32.mrf.mxu0
  %v564 = vadd.f32 0.0, %v563
  %v565 = vpop.f32.mrf.mxu0
  %v566 = vpop.f32.mrf.mxu0
  %v567 = vadd.f32 0.0, %v566
  %v568 = vpop.f32.mrf.mxu0
  %569 = vmatprep.mubr.bf16.mxu0 0
  %570 = vmatmul.mubr.bf16.gmra.mxu0 %v459
  %v571 = vpop.f32.mrf.mxu0
  %v572 = vadd.f32 0.0, %v571
  %v573 = vpop.f32.mrf.mxu0
  %v574 = vpop.f32.mrf.mxu0
  %v575 = vadd.f32 0.0, %v574
  %v576 = vpop.f32.mrf.mxu0
  %577 = vmatprep.mubr.bf16.mxu0 0
  %578 = vmatmul.mubr.bf16.gmra.mxu0 %v460
  %v579 = vpop.f32.mrf.mxu0
  %v580 = vadd.f32 0.0, %v579
  %v581 = vpop.f32.mrf.mxu0
  %v582 = vpop.f32.mrf.mxu0
  %v583 = vadd.f32 0.0, %v582
  %v584 = vpop.f32.mrf.mxu0
  %585 = vmatprep.mubr.bf16.mxu0 0
  %586 = vmatmul.mubr.bf16.gmra.mxu0 %v461
  %v587 = vpop.f32.mrf.mxu0
  %v588 = vadd.f32 0.0, %v587
  %v589 = vpop.f32.mrf.mxu0
  %v590 = vpop.f32.mrf.mxu0
  %v591 = vadd.f32 0.0, %v590
  %v592 = vpop.f32.mrf.mxu0
  %593 = vmatprep.mubr.bf16.mxu0 0
  %594 = vmatmul.mubr.bf16.gmra.mxu0 %v462
  %v595 = vpop.f32.mrf.mxu0
  %v596 = vadd.f32 0.0, %v595
  %v597 = vpop.f32.mrf.mxu0
  %v598 = vpop.f32.mrf.mxu0
  %v599 = vadd.f32 0.0, %v598
  %v600 = vpop.f32.mrf.mxu0
  %601 = vmatprep.mubr.bf16.mxu0 0
  %602 = vmatmul.mubr.bf16.gmra.mxu0 %v463
  %v603 = vpop.f32.mrf.mxu0
  %v604 = vadd.f32 0.0, %v603
  %v605 = vpop.f32.mrf.mxu0
  %v606 = vpop.f32.mrf.mxu0
  %v607 = vadd.f32 0.0, %v606
  %v608 = vpop.f32.mrf.mxu0
  %609 = vmatprep.mubr.bf16.mxu0 0
  %610 = vmatmul.mubr.bf16.gmra.mxu0 %v464
  %v611 = vpop.f32.mrf.mxu0
  %v612 = vadd.f32 0.0, %v611
  %v613 = vpop.f32.mrf.mxu0
  %v614 = vpop.f32.mrf.mxu0
  %v615 = vadd.f32 0.0, %v614
  %v616 = vpop.f32.mrf.mxu0
  %617 = vdwg.mxu0
  %v634 = vunpack.c.l.b16 %v393
  %v635 = vunpack.c.l.b16 %v394
  %v636 = vunpack.c.l.b16 %v395
  %v637 = vunpack.c.l.b16 %v396
  %v638 = vunpack.c.l.b16 %v397
  %v639 = vunpack.c.l.b16 %v398
  %v640 = vunpack.c.l.b16 %v399
  %v641 = vunpack.c.l.b16 %v400
  %v642 = vunpack.c.l.b16 %v401
  %v643 = vunpack.c.l.b16 %v402
  %v644 = vunpack.c.l.b16 %v403
  %v645 = vunpack.c.l.b16 %v404
  %v646 = vunpack.c.l.b16 %v405
  %v647 = vunpack.c.l.b16 %v406
  %v648 = vunpack.c.l.b16 %v407
  %v649 = vunpack.c.l.b16 %v408
  %v650 = vpack.c.b16 %v635, %v634
  %v651 = vpack.c.b16 %v637, %v636
  %v652 = vpack.c.b16 %v639, %v638
  %v653 = vpack.c.b16 %v641, %v640
  %v654 = vpack.c.b16 %v643, %v642
  %v655 = vpack.c.b16 %v645, %v644
  %v656 = vpack.c.b16 %v647, %v646
  %v657 = vpack.c.b16 %v649, %v648
  %666 = vmatprep.subr.bf16.mxu0 0
  %667 = vmatpush1.bf16.msra.mxu0 %v657
  %668 = vmatprep.subr.bf16.mxu0 0
  %669 = vmatpush1.bf16.msra.mxu0 %v656
  %670 = vmatprep.subr.bf16.mxu0 0
  %671 = vmatpush1.bf16.msra.mxu0 %v655
  %672 = vmatprep.subr.bf16.mxu0 0
  %673 = vmatpush1.bf16.msra.mxu0 %v654
  %674 = vmatprep.subr.bf16.mxu0 0
  %675 = vmatpush1.bf16.msra.mxu0 %v653
  %676 = vmatprep.subr.bf16.mxu0 0
  %677 = vmatpush1.bf16.msra.mxu0 %v652
  %678 = vmatprep.subr.bf16.mxu0 0
  %679 = vmatpush1.bf16.msra.mxu0 %v651
  %680 = vmatprep.subr.bf16.mxu0 0
  %681 = vmatpush1.bf16.msra.mxu0 %v650
  %682 = vmatprep.subr.bf16.mxu0 0
  %683 = vmatpush2.bf16.msra.mxu0 0
  %684 = vmatprep.subr.bf16.mxu0 0
  %685 = vmatpush2.bf16.msra.mxu0 0
  %686 = vmatprep.subr.bf16.mxu0 0
  %687 = vmatpush2.bf16.msra.mxu0 0
  %688 = vmatprep.subr.bf16.mxu0 0
  %689 = vmatpush2.bf16.msra.mxu0 0
  %690 = vmatprep.subr.bf16.mxu0 0
  %691 = vmatpush2.bf16.msra.mxu0 0
  %692 = vmatprep.subr.bf16.mxu0 0
  %693 = vmatpush2.bf16.msra.mxu0 0
  %694 = vmatprep.subr.bf16.mxu0 0
  %695 = vmatpush2.bf16.msra.mxu0 0
  %696 = vmatprep.subr.bf16.mxu0 0
  %697 = vmatpush2.bf16.msra.mxu0 0
  %698 = vmatprep.mubr.bf16.mxu0 0
  %699 = vmatmul.mubr.bf16.gmra.mxu0 %v385
  %v700 = vpop.f32.mrf.mxu0
  %v701 = vadd.f32 %v556, %v700
  %v702 = vpop.f32.mrf.mxu0
  %v703 = vpop.f32.mrf.mxu0
  %v704 = vadd.f32 %v559, %v703
  %v705 = vpop.f32.mrf.mxu0
  %706 = vmatprep.mubr.bf16.mxu0 0
  %707 = vmatmul.mubr.bf16.gmra.mxu0 %v386
  %v708 = vpop.f32.mrf.mxu0
  %v709 = vadd.f32 %v564, %v708
  %v710 = vpop.f32.mrf.mxu0
  %v711 = vpop.f32.mrf.mxu0
  %v712 = vadd.f32 %v567, %v711
  %v713 = vpop.f32.mrf.mxu0
  %714 = vmatprep.mubr.bf16.mxu0 0
  %715 = vmatmul.mubr.bf16.gmra.mxu0 %v387
  %v716 = vpop.f32.mrf.mxu0
  %v717 = vadd.f32 %v572, %v716
  %v718 = vpop.f32.mrf.mxu0
  %v719 = vpop.f32.mrf.mxu0
  %v720 = vadd.f32 %v575, %v719
  %v721 = vpop.f32.mrf.mxu0
  %722 = vmatprep.mubr.bf16.mxu0 0
  %723 = vmatmul.mubr.bf16.gmra.mxu0 %v388
  %v724 = vpop.f32.mrf.mxu0
  %v725 = vadd.f32 %v580, %v724
  %v726 = vpop.f32.mrf.mxu0
  %v727 = vpop.f32.mrf.mxu0
  %v728 = vadd.f32 %v583, %v727
  %v729 = vpop.f32.mrf.mxu0
  %730 = vmatprep.mubr.bf16.mxu0 0
  %731 = vmatmul.mubr.bf16.gmra.mxu0 %v389
  %v732 = vpop.f32.mrf.mxu0
  %v733 = vadd.f32 %v588, %v732
  %v734 = vpop.f32.mrf.mxu0
  %v735 = vpop.f32.mrf.mxu0
  %v736 = vadd.f32 %v591, %v735
  %v737 = vpop.f32.mrf.mxu0
  %738 = vmatprep.mubr.bf16.mxu0 0
  %739 = vmatmul.mubr.bf16.gmra.mxu0 %v390
  %v740 = vpop.f32.mrf.mxu0
  %v741 = vadd.f32 %v596, %v740
  %v742 = vpop.f32.mrf.mxu0
  %v743 = vpop.f32.mrf.mxu0
  %v744 = vadd.f32 %v599, %v743
  %v745 = vpop.f32.mrf.mxu0
  %746 = vmatprep.mubr.bf16.mxu0 0
  %747 = vmatmul.mubr.bf16.gmra.mxu0 %v391
  %v748 = vpop.f32.mrf.mxu0
  %v749 = vadd.f32 %v604, %v748
  %v750 = vpop.f32.mrf.mxu0
  %v751 = vpop.f32.mrf.mxu0
  %v752 = vadd.f32 %v607, %v751
  %v753 = vpop.f32.mrf.mxu0
  %754 = vmatprep.mubr.bf16.mxu0 0
  %755 = vmatmul.mubr.bf16.gmra.mxu0 %v392
  %v756 = vpop.f32.mrf.mxu0
  %v757 = vadd.f32 %v612, %v756
  %v758 = vpop.f32.mrf.mxu0
  %v759 = vpop.f32.mrf.mxu0
  %v760 = vadd.f32 %v615, %v759
  %v761 = vpop.f32.mrf.mxu0
  %762 = vdwg.mxu0
  %v763 = vld [vmem:[%s4] sm:$0x1]
  %v765 = vlaneseq
  %v766 = vshrl.u32 %v765, 7
  %v767 = vsub.s32 0, %v766
  %v768 = vrot.slane %v763, %v767
  %v770 = vadd.f32 %v701, %v768
  %v771 = vadd.f32 %v704, %v768
  %v772 = vadd.f32 %v709, %v768
  %v773 = vadd.f32 %v712, %v768
  %v774 = vadd.f32 %v717, %v768
  %v775 = vadd.f32 %v720, %v768
  %v776 = vadd.f32 %v725, %v768
  %v777 = vadd.f32 %v728, %v768
  %v778 = vadd.f32 %v733, %v768
  %v779 = vadd.f32 %v736, %v768
  %v780 = vadd.f32 %v741, %v768
  %v781 = vadd.f32 %v744, %v768
  %v782 = vadd.f32 %v749, %v768
  %v783 = vadd.f32 %v752, %v768
  %v784 = vadd.f32 %v757, %v768
  %v785 = vadd.f32 %v760, %v768
  %vm786 = vcmp.gt.f32.partialorder %v770, 0.0
  %vm787 = vcmp.gt.f32.partialorder %v771, 0.0
  %vm788 = vcmp.gt.f32.partialorder %v772, 0.0
  %vm789 = vcmp.gt.f32.partialorder %v773, 0.0
  %vm790 = vcmp.gt.f32.partialorder %v774, 0.0
  %vm791 = vcmp.gt.f32.partialorder %v775, 0.0
  %vm792 = vcmp.gt.f32.partialorder %v776, 0.0
  %vm793 = vcmp.gt.f32.partialorder %v777, 0.0
  %vm794 = vcmp.gt.f32.partialorder %v778, 0.0
  %vm795 = vcmp.gt.f32.partialorder %v779, 0.0
  %vm796 = vcmp.gt.f32.partialorder %v780, 0.0
  %vm797 = vcmp.gt.f32.partialorder %v781, 0.0
  %vm798 = vcmp.gt.f32.partialorder %v782, 0.0
  %vm799 = vcmp.gt.f32.partialorder %v783, 0.0
  %vm800 = vcmp.gt.f32.partialorder %v784, 0.0
  %vm801 = vcmp.gt.f32.partialorder %v785, 0.0
  %v802 = vmin.f32 %v770, 0.0
  %v803 = vmin.f32 %v771, 0.0
  %v804 = vmin.f32 %v772, 0.0
  %v805 = vmin.f32 %v773, 0.0
  %v806 = vmin.f32 %v774, 0.0
  %v807 = vmin.f32 %v775, 0.0
  %v808 = vmin.f32 %v776, 0.0
  %v809 = vmin.f32 %v777, 0.0
  %v810 = vmin.f32 %v778, 0.0
  %v811 = vmin.f32 %v779, 0.0
  %v812 = vmin.f32 %v780, 0.0
  %v813 = vmin.f32 %v781, 0.0
  %v814 = vmin.f32 %v782, 0.0
  %v815 = vmin.f32 %v783, 0.0
  %v816 = vmin.f32 %v784, 0.0
  %v817 = vmin.f32 %v785, 0.0
  %v818 = vmul.f32 %v802, 1.442695
  %v819 = vpow.pop %v818
  %v820 = vmul.f32 %v803, 1.442695
  %v821 = vpow.pop %v820
  %v822 = vmul.f32 %v804, 1.442695
  %v823 = vpow.pop %v822
  %v824 = vmul.f32 %v805, 1.442695
  %v825 = vpow.pop %v824
  %v826 = vmul.f32 %v806, 1.442695
  %v827 = vpow.pop %v826
  %v828 = vmul.f32 %v807, 1.442695
  %v829 = vpow.pop %v828
  %v830 = vmul.f32 %v808, 1.442695
  %v831 = vpow.pop %v830
  %v832 = vmul.f32 %v809, 1.442695
  %v833 = vpow.pop %v832
  %v834 = vmul.f32 %v810, 1.442695
  %v835 = vpow.pop %v834
  %v836 = vmul.f32 %v811, 1.442695
  %v837 = vpow.pop %v836
  %v838 = vmul.f32 %v812, 1.442695
  %v839 = vpow.pop %v838
  %v840 = vmul.f32 %v813, 1.442695
  %v841 = vpow.pop %v840
  %v842 = vmul.f32 %v814, 1.442695
  %v843 = vpow.pop %v842
  %v844 = vmul.f32 %v815, 1.442695
  %v845 = vpow.pop %v844
  %v846 = vmul.f32 %v816, 1.442695
  %v847 = vpow.pop %v846
  %v848 = vmul.f32 %v817, 1.442695
  %v849 = vpow.pop %v848
  %v850 = vsub.f32 %v819, 1.0
  %v851 = vsub.f32 %v821, 1.0
  %v852 = vsub.f32 %v823, 1.0
  %v853 = vsub.f32 %v825, 1.0
  %v854 = vsub.f32 %v827, 1.0
  %v855 = vsub.f32 %v829, 1.0
  %v856 = vsub.f32 %v831, 1.0
  %v857 = vsub.f32 %v833, 1.0
  %v858 = vsub.f32 %v835, 1.0
  %v859 = vsub.f32 %v837, 1.0
  %v860 = vsub.f32 %v839, 1.0
  %v861 = vsub.f32 %v841, 1.0
  %v862 = vsub.f32 %v843, 1.0
  %v863 = vsub.f32 %v845, 1.0
  %v864 = vsub.f32 %v847, 1.0
  %v865 = vsub.f32 %v849, 1.0
  %v866 = vsel %vm786, %v770, %v850
  %v867 = vsel %vm787, %v771, %v851
  %v868 = vsel %vm788, %v772, %v852
  %v869 = vsel %vm789, %v773, %v853
  %v870 = vsel %vm790, %v774, %v854
  %v871 = vsel %vm791, %v775, %v855
  %v872 = vsel %vm792, %v776, %v856
  %v873 = vsel %vm793, %v777, %v857
  %v874 = vsel %vm794, %v778, %v858
  %v875 = vsel %vm795, %v779, %v859
  %v876 = vsel %vm796, %v780, %v860
  %v877 = vsel %vm797, %v781, %v861
  %v878 = vsel %vm798, %v782, %v862
  %v879 = vsel %vm799, %v783, %v863
  %v880 = vsel %vm800, %v784, %v864
  %v881 = vsel %vm801, %v785, %v865
  %v882 = vld [vmem:[%s5] sm:$0x1]
  %v883 = vld [vmem:[%s6] sm:$0x1]
  %v884 = vlaneseq
  %v885 = vand.u32 %v884, 127
  %vm886 = vcmp.lt.s32.totalorder %v885, 32
  %887 = vadd.xlane.f32.xlu0 %v866
  %v888 = vpop.xlane.xlu0 %887
  %889 = vadd.xlane.f32.xlu0 %v867
  %v890 = vpop.xlane.xlu0 %889
  %891 = vadd.xlane.f32.xlu0 %v868
  %v892 = vpop.xlane.xlu0 %891
  %893 = vadd.xlane.f32.xlu0 %v869
  %v894 = vpop.xlane.xlu0 %893
  %895 = vadd.xlane.f32.xlu0 %v870
  %v896 = vpop.xlane.xlu0 %895
  %897 = vadd.xlane.f32.xlu0 %v871
  %v898 = vpop.xlane.xlu0 %897
  %899 = vadd.xlane.f32.xlu0 %v872
  %v900 = vpop.xlane.xlu0 %899
  %901 = vadd.xlane.f32.xlu0 %v873
  %v902 = vpop.xlane.xlu0 %901
  %903 = vadd.xlane.f32.xlu0 %v874
  %v904 = vpop.xlane.xlu0 %903
  %905 = vadd.xlane.f32.xlu0 %v875
  %v906 = vpop.xlane.xlu0 %905
  %907 = vadd.xlane.f32.xlu0 %v876
  %v908 = vpop.xlane.xlu0 %907
  %909 = vadd.xlane.f32.xlu0 %v877
  %v910 = vpop.xlane.xlu0 %909
  %911 = vadd.xlane.f32.xlu0 %v878
  %v912 = vpop.xlane.xlu0 %911
  %913 = vadd.xlane.f32.xlu0 %v879
  %v914 = vpop.xlane.xlu0 %913
  %915 = vadd.xlane.f32.xlu0 %v880
  %v916 = vpop.xlane.xlu0 %915
  %917 = vadd.xlane.f32.xlu0 %v881
  %v918 = vpop.xlane.xlu0 %917
  %v919 = vmul.f32 %v888, 0.03125
  %v920 = vmul.f32 %v890, 0.03125
  %v921 = vmul.f32 %v892, 0.03125
  %v922 = vmul.f32 %v894, 0.03125
  %v923 = vmul.f32 %v896, 0.03125
  %v924 = vmul.f32 %v898, 0.03125
  %v925 = vmul.f32 %v900, 0.03125
  %v926 = vmul.f32 %v902, 0.03125
  %v927 = vmul.f32 %v904, 0.03125
  %v928 = vmul.f32 %v906, 0.03125
  %v929 = vmul.f32 %v908, 0.03125
  %v930 = vmul.f32 %v910, 0.03125
  %v931 = vmul.f32 %v912, 0.03125
  %v932 = vmul.f32 %v914, 0.03125
  %v933 = vmul.f32 %v916, 0.03125
  %v934 = vmul.f32 %v918, 0.03125
  %v935 = vsub.f32 %v866, %v919
  %v936 = vsub.f32 %v867, %v920
  %v937 = vsub.f32 %v868, %v921
  %v938 = vsub.f32 %v869, %v922
  %v939 = vsub.f32 %v870, %v923
  %v940 = vsub.f32 %v871, %v924
  %v941 = vsub.f32 %v872, %v925
  %v942 = vsub.f32 %v873, %v926
  %v943 = vsub.f32 %v874, %v927
  %v944 = vsub.f32 %v875, %v928
  %v945 = vsub.f32 %v876, %v929
  %v946 = vsub.f32 %v877, %v930
  %v947 = vsub.f32 %v878, %v931
  %v948 = vsub.f32 %v879, %v932
  %v949 = vsub.f32 %v880, %v933
  %v950 = vsub.f32 %v881, %v934
  %v951 = vsel %vm886, 1, 0
  %vm952 = vcmp.eq.s32.totalorder %v951, 1
  %v953 = vsel %vm952, %v935, 0.0
  %v954 = vsel %vm952, %v936, 0.0
  %v955 = vsel %vm952, %v937, 0.0
  %v956 = vsel %vm952, %v938, 0.0
  %v957 = vsel %vm952, %v939, 0.0
  %v958 = vsel %vm952, %v940, 0.0
  %v959 = vsel %vm952, %v941, 0.0
  %v960 = vsel %vm952, %v942, 0.0
  %v961 = vsel %vm952, %v943, 0.0
  %v962 = vsel %vm952, %v944, 0.0
  %v963 = vsel %vm952, %v945, 0.0
  %v964 = vsel %vm952, %v946, 0.0
  %v965 = vsel %vm952, %v947, 0.0
  %v966 = vsel %vm952, %v948, 0.0
  %v967 = vsel %vm952, %v949, 0.0
  %v968 = vsel %vm952, %v950, 0.0
  %v969 = vmul.f32 %v953, %v953
  %v970 = vmul.f32 %v954, %v954
  %v971 = vmul.f32 %v955, %v955
  %v972 = vmul.f32 %v956, %v956
  %v973 = vmul.f32 %v957, %v957
  %v974 = vmul.f32 %v958, %v958
  %v975 = vmul.f32 %v959, %v959
  %v976 = vmul.f32 %v960, %v960
  %v977 = vmul.f32 %v961, %v961
  %v978 = vmul.f32 %v962, %v962
  %v979 = vmul.f32 %v963, %v963
  %v980 = vmul.f32 %v964, %v964
  %v981 = vmul.f32 %v965, %v965
  %v982 = vmul.f32 %v966, %v966
  %v983 = vmul.f32 %v967, %v967
  %v984 = vmul.f32 %v968, %v968
  %985 = vadd.xlane.f32.xlu0 %v969
  %v986 = vpop.xlane.xlu0 %985
  %987 = vadd.xlane.f32.xlu0 %v970
  %v988 = vpop.xlane.xlu0 %987
  %989 = vadd.xlane.f32.xlu0 %v971
  %v990 = vpop.xlane.xlu0 %989
  %991 = vadd.xlane.f32.xlu0 %v972
  %v992 = vpop.xlane.xlu0 %991
  %993 = vadd.xlane.f32.xlu0 %v973
  %v994 = vpop.xlane.xlu0 %993
  %995 = vadd.xlane.f32.xlu0 %v974
  %v996 = vpop.xlane.xlu0 %995
  %997 = vadd.xlane.f32.xlu0 %v975
  %v998 = vpop.xlane.xlu0 %997
  %999 = vadd.xlane.f32.xlu0 %v976
  %v1000 = vpop.xlane.xlu0 %999
  %1001 = vadd.xlane.f32.xlu0 %v977
  %v1002 = vpop.xlane.xlu0 %1001
  %1003 = vadd.xlane.f32.xlu0 %v978
  %v1004 = vpop.xlane.xlu0 %1003
  %1005 = vadd.xlane.f32.xlu0 %v979
  %v1006 = vpop.xlane.xlu0 %1005
  %1007 = vadd.xlane.f32.xlu0 %v980
  %v1008 = vpop.xlane.xlu0 %1007
  %1009 = vadd.xlane.f32.xlu0 %v981
  %v1010 = vpop.xlane.xlu0 %1009
  %1011 = vadd.xlane.f32.xlu0 %v982
  %v1012 = vpop.xlane.xlu0 %1011
  %1013 = vadd.xlane.f32.xlu0 %v983
  %v1014 = vpop.xlane.xlu0 %1013
  %1015 = vadd.xlane.f32.xlu0 %v984
  %v1016 = vpop.xlane.xlu0 %1015
  %v1017 = vmul.f32 %v986, 0.03125
  %v1018 = vmul.f32 %v988, 0.03125
  %v1019 = vmul.f32 %v990, 0.03125
  %v1020 = vmul.f32 %v992, 0.03125
  %v1021 = vmul.f32 %v994, 0.03125
  %v1022 = vmul.f32 %v996, 0.03125
  %v1023 = vmul.f32 %v998, 0.03125
  %v1024 = vmul.f32 %v1000, 0.03125
  %v1025 = vmul.f32 %v1002, 0.03125
  %v1026 = vmul.f32 %v1004, 0.03125
  %v1027 = vmul.f32 %v1006, 0.03125
  %v1028 = vmul.f32 %v1008, 0.03125
  %v1029 = vmul.f32 %v1010, 0.03125
  %v1030 = vmul.f32 %v1012, 0.03125
  %v1031 = vmul.f32 %v1014, 0.03125
  %v1032 = vmul.f32 %v1016, 0.03125
  %v1033 = vadd.f32 %v1017, 1e-05
  %v1034 = vadd.f32 %v1018, 1e-05
  %v1035 = vadd.f32 %v1019, 1e-05
  %v1036 = vadd.f32 %v1020, 1e-05
  %v1037 = vadd.f32 %v1021, 1e-05
  %v1038 = vadd.f32 %v1022, 1e-05
  %v1039 = vadd.f32 %v1023, 1e-05
  %v1040 = vadd.f32 %v1024, 1e-05
  %v1041 = vadd.f32 %v1025, 1e-05
  %v1042 = vadd.f32 %v1026, 1e-05
  %v1043 = vadd.f32 %v1027, 1e-05
  %v1044 = vadd.f32 %v1028, 1e-05
  %v1045 = vadd.f32 %v1029, 1e-05
  %v1046 = vadd.f32 %v1030, 1e-05
  %v1047 = vadd.f32 %v1031, 1e-05
  %v1048 = vadd.f32 %v1032, 1e-05
  %v1049 = vrsqrt.pop %v1033
  %v1050 = vrsqrt.pop %v1034
  %v1051 = vrsqrt.pop %v1035
  %v1052 = vrsqrt.pop %v1036
  %v1053 = vrsqrt.pop %v1037
  %v1054 = vrsqrt.pop %v1038
  %v1055 = vrsqrt.pop %v1039
  %v1056 = vrsqrt.pop %v1040
  %v1057 = vrsqrt.pop %v1041
  %v1058 = vrsqrt.pop %v1042
  %v1059 = vrsqrt.pop %v1043
  %v1060 = vrsqrt.pop %v1044
  %v1061 = vrsqrt.pop %v1045
  %v1062 = vrsqrt.pop %v1046
  %v1063 = vrsqrt.pop %v1047
  %v1064 = vrsqrt.pop %v1048
  %v1065 = vmul.f32 %v953, %v1049
  %v1066 = vmul.f32 %v954, %v1050
  %v1067 = vmul.f32 %v955, %v1051
  %v1068 = vmul.f32 %v956, %v1052
  %v1069 = vmul.f32 %v957, %v1053
  %v1070 = vmul.f32 %v958, %v1054
  %v1071 = vmul.f32 %v959, %v1055
  %v1072 = vmul.f32 %v960, %v1056
  %v1073 = vmul.f32 %v961, %v1057
  %v1074 = vmul.f32 %v962, %v1058
  %v1075 = vmul.f32 %v963, %v1059
  %v1076 = vmul.f32 %v964, %v1060
  %v1077 = vmul.f32 %v965, %v1061
  %v1078 = vmul.f32 %v966, %v1062
  %v1079 = vmul.f32 %v967, %v1063
  %v1080 = vmul.f32 %v968, %v1064
  %v1082 = vlaneseq
  %v1083 = vshrl.u32 %v1082, 7
  %v1084 = vsub.s32 0, %v1083
  %v1085 = vrot.slane %v882, %v1084
  %v1087 = vmul.f32 %v1065, %v1085
  %v1088 = vmul.f32 %v1066, %v1085
  %v1089 = vmul.f32 %v1067, %v1085
  %v1090 = vmul.f32 %v1068, %v1085
  %v1091 = vmul.f32 %v1069, %v1085
  %v1092 = vmul.f32 %v1070, %v1085
  %v1093 = vmul.f32 %v1071, %v1085
  %v1094 = vmul.f32 %v1072, %v1085
  %v1095 = vmul.f32 %v1073, %v1085
  %v1096 = vmul.f32 %v1074, %v1085
  %v1097 = vmul.f32 %v1075, %v1085
  %v1098 = vmul.f32 %v1076, %v1085
  %v1099 = vmul.f32 %v1077, %v1085
  %v1100 = vmul.f32 %v1078, %v1085
  %v1101 = vmul.f32 %v1079, %v1085
  %v1102 = vmul.f32 %v1080, %v1085
  %v1104 = vlaneseq
  %v1105 = vshrl.u32 %v1104, 7
  %v1106 = vsub.s32 0, %v1105
  %v1107 = vrot.slane %v883, %v1106
  %v1109 = vadd.f32 %v1087, %v1107
  %v1110 = vadd.f32 %v1088, %v1107
  %v1111 = vadd.f32 %v1089, %v1107
  %v1112 = vadd.f32 %v1090, %v1107
  %v1113 = vadd.f32 %v1091, %v1107
  %v1114 = vadd.f32 %v1092, %v1107
  %v1115 = vadd.f32 %v1093, %v1107
  %v1116 = vadd.f32 %v1094, %v1107
  %v1117 = vadd.f32 %v1095, %v1107
  %v1118 = vadd.f32 %v1096, %v1107
  %v1119 = vadd.f32 %v1097, %v1107
  %v1120 = vadd.f32 %v1098, %v1107
  %v1121 = vadd.f32 %v1099, %v1107
  %v1122 = vadd.f32 %v1100, %v1107
  %v1123 = vadd.f32 %v1101, %v1107
  %v1124 = vadd.f32 %v1102, %v1107
  %v1125 = vpack.c.bf16 %v1110, %v1109
  %v1126 = vpack.c.bf16 %v1112, %v1111
  %v1127 = vpack.c.bf16 %v1114, %v1113
  %v1128 = vpack.c.bf16 %v1116, %v1115
  %v1129 = vpack.c.bf16 %v1118, %v1117
  %v1130 = vpack.c.bf16 %v1120, %v1119
  %v1131 = vpack.c.bf16 %v1122, %v1121
  %v1132 = vpack.c.bf16 %v1124, %v1123
  %v1133 = vld [vmem:[%s7] sm:$0xf]
  %v1134 = vld [vmem:[%s7 + $0x4] sm:$0xf]
  %v1135 = vld [vmem:[%s7 + $0x8] sm:$0xf]
  %v1136 = vld [vmem:[%s7 + $0xc] sm:$0xf]
  %v1137 = vld [vmem:[%s7 + $0x10] sm:$0xf]
  %v1138 = vld [vmem:[%s7 + $0x14] sm:$0xf]
  %v1139 = vld [vmem:[%s7 + $0x18] sm:$0xf]
  %v1140 = vld [vmem:[%s7 + $0x1c] sm:$0xf]
  %v1141 = vld [vmem:[%s7 + $0x20] sm:$0xf]
  %v1142 = vld [vmem:[%s7 + $0x24] sm:$0xf]
  %v1143 = vld [vmem:[%s7 + $0x28] sm:$0xf]
  %v1144 = vld [vmem:[%s7 + $0x2c] sm:$0xf]
  %v1145 = vld [vmem:[%s7 + $0x30] sm:$0xf]
  %v1146 = vld [vmem:[%s7 + $0x34] sm:$0xf]
  %v1147 = vld [vmem:[%s7 + $0x38] sm:$0xf]
  %v1148 = vld [vmem:[%s7 + $0x3c] sm:$0xf]
  %v1149 = vld [vmem:[%s8] sm:$0x1]
  %v1151 = vlaneseq
  %v1152 = vshrl.u32 %v1151, 7
  %v1153 = vsub.s32 0, %v1152
  %v1154 = vrot.slane %v1149, %v1153
  %v1172 = vunpack.c.l.b16 %v1133
  %v1173 = vunpack.c.l.b16 %v1134
  %v1174 = vunpack.c.l.b16 %v1135
  %v1175 = vunpack.c.l.b16 %v1136
  %v1176 = vunpack.c.l.b16 %v1137
  %v1177 = vunpack.c.l.b16 %v1138
  %v1178 = vunpack.c.l.b16 %v1139
  %v1179 = vunpack.c.l.b16 %v1140
  %v1180 = vunpack.c.l.b16 %v1141
  %v1181 = vunpack.c.l.b16 %v1142
  %v1182 = vunpack.c.l.b16 %v1143
  %v1183 = vunpack.c.l.b16 %v1144
  %v1184 = vunpack.c.l.b16 %v1145
  %v1185 = vunpack.c.l.b16 %v1146
  %v1186 = vunpack.c.l.b16 %v1147
  %v1187 = vunpack.c.l.b16 %v1148
  %v1188 = vpack.c.b16 %v1173, %v1172
  %v1189 = vpack.c.b16 %v1175, %v1174
  %v1190 = vpack.c.b16 %v1177, %v1176
  %v1191 = vpack.c.b16 %v1179, %v1178
  %v1192 = vpack.c.b16 %v1181, %v1180
  %v1193 = vpack.c.b16 %v1183, %v1182
  %v1194 = vpack.c.b16 %v1185, %v1184
  %v1195 = vpack.c.b16 %v1187, %v1186
  %1204 = vmatprep.subr.bf16.mxu0 0
  %1205 = vmatpush1.bf16.msra.mxu0 %v1195
  %1206 = vmatprep.subr.bf16.mxu0 0
  %1207 = vmatpush1.bf16.msra.mxu0 %v1194
  %1208 = vmatprep.subr.bf16.mxu0 0
  %1209 = vmatpush1.bf16.msra.mxu0 %v1193
  %1210 = vmatprep.subr.bf16.mxu0 0
  %1211 = vmatpush1.bf16.msra.mxu0 %v1192
  %1212 = vmatprep.subr.bf16.mxu0 0
  %1213 = vmatpush1.bf16.msra.mxu0 %v1191
  %1214 = vmatprep.subr.bf16.mxu0 0
  %1215 = vmatpush1.bf16.msra.mxu0 %v1190
  %1216 = vmatprep.subr.bf16.mxu0 0
  %1217 = vmatpush1.bf16.msra.mxu0 %v1189
  %1218 = vmatprep.subr.bf16.mxu0 0
  %1219 = vmatpush1.bf16.msra.mxu0 %v1188
  %1220 = vmatprep.subr.bf16.mxu0 0
  %1221 = vmatpush2.bf16.msra.mxu0 0
  %1222 = vmatprep.subr.bf16.mxu0 0
  %1223 = vmatpush2.bf16.msra.mxu0 0
  %1224 = vmatprep.subr.bf16.mxu0 0
  %1225 = vmatpush2.bf16.msra.mxu0 0
  %1226 = vmatprep.subr.bf16.mxu0 0
  %1227 = vmatpush2.bf16.msra.mxu0 0
  %1228 = vmatprep.subr.bf16.mxu0 0
  %1229 = vmatpush2.bf16.msra.mxu0 0
  %1230 = vmatprep.subr.bf16.mxu0 0
  %1231 = vmatpush2.bf16.msra.mxu0 0
  %1232 = vmatprep.subr.bf16.mxu0 0
  %1233 = vmatpush2.bf16.msra.mxu0 0
  %1234 = vmatprep.subr.bf16.mxu0 0
  %1235 = vmatpush2.bf16.msra.mxu0 0
  %1236 = vmatprep.mubr.bf16.mxu0 0
  %1237 = vmatmul.mubr.bf16.gmra.mxu0 %v1125
  %v1238 = vpop.f32.mrf.mxu0
  %v1239 = vadd.f32 %v1154, %v1238
  %v1240 = vpop.f32.mrf.mxu0
  %v1241 = vpop.f32.mrf.mxu0
  %v1242 = vadd.f32 %v1154, %v1241
  %v1243 = vpop.f32.mrf.mxu0
  %1244 = vmatprep.mubr.bf16.mxu0 0
  %1245 = vmatmul.mubr.bf16.gmra.mxu0 %v1126
  %v1246 = vpop.f32.mrf.mxu0
  %v1247 = vadd.f32 %v1154, %v1246
  %v1248 = vpop.f32.mrf.mxu0
  %v1249 = vpop.f32.mrf.mxu0
  %v1250 = vadd.f32 %v1154, %v1249
  %v1251 = vpop.f32.mrf.mxu0
  %1252 = vmatprep.mubr.bf16.mxu0 0
  %1253 = vmatmul.mubr.bf16.gmra.mxu0 %v1127
  %v1254 = vpop.f32.mrf.mxu0
  %v1255 = vadd.f32 %v1154, %v1254
  %v1256 = vpop.f32.mrf.mxu0
  %v1257 = vpop.f32.mrf.mxu0
  %v1258 = vadd.f32 %v1154, %v1257
  %v1259 = vpop.f32.mrf.mxu0
  %1260 = vmatprep.mubr.bf16.mxu0 0
  %1261 = vmatmul.mubr.bf16.gmra.mxu0 %v1128
  %v1262 = vpop.f32.mrf.mxu0
  %v1263 = vadd.f32 %v1154, %v1262
  %v1264 = vpop.f32.mrf.mxu0
  %v1265 = vpop.f32.mrf.mxu0
  %v1266 = vadd.f32 %v1154, %v1265
  %v1267 = vpop.f32.mrf.mxu0
  %1268 = vmatprep.mubr.bf16.mxu0 0
  %1269 = vmatmul.mubr.bf16.gmra.mxu0 %v1129
  %v1270 = vpop.f32.mrf.mxu0
  %v1271 = vadd.f32 %v1154, %v1270
  %v1272 = vpop.f32.mrf.mxu0
  %v1273 = vpop.f32.mrf.mxu0
  %v1274 = vadd.f32 %v1154, %v1273
  %v1275 = vpop.f32.mrf.mxu0
  %1276 = vmatprep.mubr.bf16.mxu0 0
  %1277 = vmatmul.mubr.bf16.gmra.mxu0 %v1130
  %v1278 = vpop.f32.mrf.mxu0
  %v1279 = vadd.f32 %v1154, %v1278
  %v1280 = vpop.f32.mrf.mxu0
  %v1281 = vpop.f32.mrf.mxu0
  %v1282 = vadd.f32 %v1154, %v1281
  %v1283 = vpop.f32.mrf.mxu0
  %1284 = vmatprep.mubr.bf16.mxu0 0
  %1285 = vmatmul.mubr.bf16.gmra.mxu0 %v1131
  %v1286 = vpop.f32.mrf.mxu0
  %v1287 = vadd.f32 %v1154, %v1286
  %v1288 = vpop.f32.mrf.mxu0
  %v1289 = vpop.f32.mrf.mxu0
  %v1290 = vadd.f32 %v1154, %v1289
  %v1291 = vpop.f32.mrf.mxu0
  %1292 = vmatprep.mubr.bf16.mxu0 0
  %1293 = vmatmul.mubr.bf16.gmra.mxu0 %v1132
  %v1294 = vpop.f32.mrf.mxu0
  %v1295 = vadd.f32 %v1154, %v1294
  %v1296 = vpop.f32.mrf.mxu0
  %v1297 = vpop.f32.mrf.mxu0
  %v1298 = vadd.f32 %v1154, %v1297
  %v1299 = vpop.f32.mrf.mxu0
  %1300 = vdwg.mxu0
  %vm1301 = vcmp.gt.f32.partialorder %v1239, 0.0
  %vm1302 = vcmp.gt.f32.partialorder %v1242, 0.0
  %vm1303 = vcmp.gt.f32.partialorder %v1247, 0.0
  %vm1304 = vcmp.gt.f32.partialorder %v1250, 0.0
  %vm1305 = vcmp.gt.f32.partialorder %v1255, 0.0
  %vm1306 = vcmp.gt.f32.partialorder %v1258, 0.0
  %vm1307 = vcmp.gt.f32.partialorder %v1263, 0.0
  %vm1308 = vcmp.gt.f32.partialorder %v1266, 0.0
  %vm1309 = vcmp.gt.f32.partialorder %v1271, 0.0
  %vm1310 = vcmp.gt.f32.partialorder %v1274, 0.0
  %vm1311 = vcmp.gt.f32.partialorder %v1279, 0.0
  %vm1312 = vcmp.gt.f32.partialorder %v1282, 0.0
  %vm1313 = vcmp.gt.f32.partialorder %v1287, 0.0
  %vm1314 = vcmp.gt.f32.partialorder %v1290, 0.0
  %vm1315 = vcmp.gt.f32.partialorder %v1295, 0.0
  %vm1316 = vcmp.gt.f32.partialorder %v1298, 0.0
  %v1317 = vmin.f32 %v1239, 0.0
  %v1318 = vmin.f32 %v1242, 0.0
  %v1319 = vmin.f32 %v1247, 0.0
  %v1320 = vmin.f32 %v1250, 0.0
  %v1321 = vmin.f32 %v1255, 0.0
  %v1322 = vmin.f32 %v1258, 0.0
  %v1323 = vmin.f32 %v1263, 0.0
  %v1324 = vmin.f32 %v1266, 0.0
  %v1325 = vmin.f32 %v1271, 0.0
  %v1326 = vmin.f32 %v1274, 0.0
  %v1327 = vmin.f32 %v1279, 0.0
  %v1328 = vmin.f32 %v1282, 0.0
  %v1329 = vmin.f32 %v1287, 0.0
  %v1330 = vmin.f32 %v1290, 0.0
  %v1331 = vmin.f32 %v1295, 0.0
  %v1332 = vmin.f32 %v1298, 0.0
  %v1333 = vmul.f32 %v1317, 1.442695
  %v1334 = vpow.pop %v1333
  %v1335 = vmul.f32 %v1318, 1.442695
  %v1336 = vpow.pop %v1335
  %v1337 = vmul.f32 %v1319, 1.442695
  %v1338 = vpow.pop %v1337
  %v1339 = vmul.f32 %v1320, 1.442695
  %v1340 = vpow.pop %v1339
  %v1341 = vmul.f32 %v1321, 1.442695
  %v1342 = vpow.pop %v1341
  %v1343 = vmul.f32 %v1322, 1.442695
  %v1344 = vpow.pop %v1343
  %v1345 = vmul.f32 %v1323, 1.442695
  %v1346 = vpow.pop %v1345
  %v1347 = vmul.f32 %v1324, 1.442695
  %v1348 = vpow.pop %v1347
  %v1349 = vmul.f32 %v1325, 1.442695
  %v1350 = vpow.pop %v1349
  %v1351 = vmul.f32 %v1326, 1.442695
  %v1352 = vpow.pop %v1351
  %v1353 = vmul.f32 %v1327, 1.442695
  %v1354 = vpow.pop %v1353
  %v1355 = vmul.f32 %v1328, 1.442695
  %v1356 = vpow.pop %v1355
  %v1357 = vmul.f32 %v1329, 1.442695
  %v1358 = vpow.pop %v1357
  %v1359 = vmul.f32 %v1330, 1.442695
  %v1360 = vpow.pop %v1359
  %v1361 = vmul.f32 %v1331, 1.442695
  %v1362 = vpow.pop %v1361
  %v1363 = vmul.f32 %v1332, 1.442695
  %v1364 = vpow.pop %v1363
  %v1365 = vsub.f32 %v1334, 1.0
  %v1366 = vsub.f32 %v1336, 1.0
  %v1367 = vsub.f32 %v1338, 1.0
  %v1368 = vsub.f32 %v1340, 1.0
  %v1369 = vsub.f32 %v1342, 1.0
  %v1370 = vsub.f32 %v1344, 1.0
  %v1371 = vsub.f32 %v1346, 1.0
  %v1372 = vsub.f32 %v1348, 1.0
  %v1373 = vsub.f32 %v1350, 1.0
  %v1374 = vsub.f32 %v1352, 1.0
  %v1375 = vsub.f32 %v1354, 1.0
  %v1376 = vsub.f32 %v1356, 1.0
  %v1377 = vsub.f32 %v1358, 1.0
  %v1378 = vsub.f32 %v1360, 1.0
  %v1379 = vsub.f32 %v1362, 1.0
  %v1380 = vsub.f32 %v1364, 1.0
  %v1381 = vsel %vm1301, %v1239, %v1365
  %v1382 = vsel %vm1302, %v1242, %v1366
  %v1383 = vsel %vm1303, %v1247, %v1367
  %v1384 = vsel %vm1304, %v1250, %v1368
  %v1385 = vsel %vm1305, %v1255, %v1369
  %v1386 = vsel %vm1306, %v1258, %v1370
  %v1387 = vsel %vm1307, %v1263, %v1371
  %v1388 = vsel %vm1308, %v1266, %v1372
  %v1389 = vsel %vm1309, %v1271, %v1373
  %v1390 = vsel %vm1310, %v1274, %v1374
  %v1391 = vsel %vm1311, %v1279, %v1375
  %v1392 = vsel %vm1312, %v1282, %v1376
  %v1393 = vsel %vm1313, %v1287, %v1377
  %v1394 = vsel %vm1314, %v1290, %v1378
  %v1395 = vsel %vm1315, %v1295, %v1379
  %v1396 = vsel %vm1316, %v1298, %v1380
  %v1397 = vmul.f32 %v1381, 0.999995
  %v1398 = vmul.f32 %v1382, 0.999995
  %v1399 = vmul.f32 %v1383, 0.999995
  %v1400 = vmul.f32 %v1384, 0.999995
  %v1401 = vmul.f32 %v1385, 0.999995
  %v1402 = vmul.f32 %v1386, 0.999995
  %v1403 = vmul.f32 %v1387, 0.999995
  %v1404 = vmul.f32 %v1388, 0.999995
  %v1405 = vmul.f32 %v1389, 0.999995
  %v1406 = vmul.f32 %v1390, 0.999995
  %v1407 = vmul.f32 %v1391, 0.999995
  %v1408 = vmul.f32 %v1392, 0.999995
  %v1409 = vmul.f32 %v1393, 0.999995
  %v1410 = vmul.f32 %v1394, 0.999995
  %v1411 = vmul.f32 %v1395, 0.999995
  %v1412 = vmul.f32 %v1396, 0.999995
  %v1413 = vpack.c.bf16 %v1398, %v1397
  %v1414 = vpack.c.bf16 %v1400, %v1399
  %v1415 = vpack.c.bf16 %v1402, %v1401
  %v1416 = vpack.c.bf16 %v1404, %v1403
  %v1417 = vpack.c.bf16 %v1406, %v1405
  %v1418 = vpack.c.bf16 %v1408, %v1407
  %v1419 = vpack.c.bf16 %v1410, %v1409
  %v1420 = vpack.c.bf16 %v1412, %v1411
  %v1429 = vunpack.c.l.b16 %v1413
  %v1430 = vunpack.c.h.b16 %v1413
  %v1431 = vunpack.c.l.b16 %v1414
  %v1432 = vunpack.c.h.b16 %v1414
  %v1433 = vunpack.c.l.b16 %v1415
  %v1434 = vunpack.c.h.b16 %v1415
  %v1435 = vunpack.c.l.b16 %v1416
  %v1436 = vunpack.c.h.b16 %v1416
  %v1437 = vunpack.c.l.b16 %v1417
  %v1438 = vunpack.c.h.b16 %v1417
  %v1439 = vunpack.c.l.b16 %v1418
  %v1440 = vunpack.c.h.b16 %v1418
  %v1441 = vunpack.c.l.b16 %v1419
  %v1442 = vunpack.c.h.b16 %v1419
  %v1443 = vunpack.c.l.b16 %v1420
  %v1444 = vunpack.c.h.b16 %v1420
  %v1445 = vpack.c.b16 %v1429, %v1429
  %v1446 = vpack.c.b16 %v1430, %v1430
  %v1447 = vpack.c.b16 %v1431, %v1431
  %v1448 = vpack.c.b16 %v1432, %v1432
  %v1449 = vpack.c.b16 %v1433, %v1433
  %v1450 = vpack.c.b16 %v1434, %v1434
  %v1451 = vpack.c.b16 %v1435, %v1435
  %v1452 = vpack.c.b16 %v1436, %v1436
  %v1453 = vpack.c.b16 %v1437, %v1437
  %v1454 = vpack.c.b16 %v1438, %v1438
  %v1455 = vpack.c.b16 %v1439, %v1439
  %v1456 = vpack.c.b16 %v1440, %v1440
  %v1457 = vpack.c.b16 %v1441, %v1441
  %v1458 = vpack.c.b16 %v1442, %v1442
  %v1459 = vpack.c.b16 %v1443, %v1443
  %v1460 = vpack.c.b16 %v1444, %v1444
  %1477 = vst [vmem:[%s9] sm:$0xf] %v1445
  %1478 = vst [vmem:[%s9 + $0x4] sm:$0xf] %v1446
  %1479 = vst [vmem:[%s9 + $0x8] sm:$0xf] %v1447
  %1480 = vst [vmem:[%s9 + $0xc] sm:$0xf] %v1448
  %1481 = vst [vmem:[%s9 + $0x10] sm:$0xf] %v1449
  %1482 = vst [vmem:[%s9 + $0x14] sm:$0xf] %v1450
  %1483 = vst [vmem:[%s9 + $0x18] sm:$0xf] %v1451
  %1484 = vst [vmem:[%s9 + $0x1c] sm:$0xf] %v1452
  %1485 = vst [vmem:[%s9 + $0x20] sm:$0xf] %v1453
  %1486 = vst [vmem:[%s9 + $0x24] sm:$0xf] %v1454
  %1487 = vst [vmem:[%s9 + $0x28] sm:$0xf] %v1455
  %1488 = vst [vmem:[%s9 + $0x2c] sm:$0xf] %v1456
  %1489 = vst [vmem:[%s9 + $0x30] sm:$0xf] %v1457
  %1490 = vst [vmem:[%s9 + $0x34] sm:$0xf] %v1458
  %1491 = vst [vmem:[%s9 + $0x38] sm:$0xf] %v1459
  %1492 = vst [vmem:[%s9 + $0x3c] sm:$0xf] %v1460
  // Predicated region
  $region38: #{fwd.40} parent=0 // pred_check
    _
  $region39: #{fwd.40} parent=0 // pred_check_branch
    %1494 = sbr.rel (0) target = $region41
  $region40: #{fwd.40} parent=0 // pred_region
    _
  $region41: #{fwd.40} parent=0 // pred_fallthru
    _
  // Predicated region
  $region42: #{fwd.40} parent=0 // pred_check
    _
  $region43: #{fwd.40} parent=0 // pred_check_branch
    %1496 = sbr.rel (0) target = $region45
  $region44: #{fwd.40} parent=0 // pred_region
    _
  $region45: #{fwd.40} parent=0 // pred_fallthru
    _

</llo_original>
